<compile_context>
chip_gen: v6e
topology: v6e:2x2x1
jax: 0.10.0
libtpu: 0.0.40
codegen_flags: <defaults>
</compile_context>

<pallas_src>
import functools

import jax
import jax.numpy as jnp
from jax.experimental import pallas as pl
from jax.experimental.pallas import tpu as pltpu


# ----------------------------------------------------------------------------- utils
def _round_up(x, m):
    return (x + m - 1) // m * m


# ----------------------------------------------------------------------------- matmul
def _matmul_kernel(a_ref, b_ref, bias_ref, o_ref):
    # The (tm, tn) output block is resident across the (innermost) K grid axis,
    # so accumulate directly into it; bias is folded into the k == 0 init.
    @pl.when(pl.program_id(2) == 0)
    def _():
        o_ref[...] = jnp.broadcast_to(bias_ref[...], o_ref.shape)

    o_ref[...] += jnp.dot(a_ref[...], b_ref[...],
                          preferred_element_type=jnp.float32)


def pallas_matmul(a, b, bias=None):
    """(M,K) @ (K,N) + bias.  bf16 MXU inputs, fp32 accumulation, M/N/K tiled."""
    M, K = a.shape
    K2, N = b.shape
    assert K == K2

    tm = 256 if M > 256 else _round_up(M, 8)
    tn = 256 if N > 256 else _round_up(N, 128)
    tk = 256 if K > 256 else _round_up(K, 128)
    Mp, Np, Kp = _round_up(M, tm), _round_up(N, tn), _round_up(K, tk)

    a_p = jnp.pad(a.astype(jnp.bfloat16), ((0, Mp - M), (0, Kp - K)))
    b_p = jnp.pad(b.astype(jnp.bfloat16), ((0, Kp - K), (0, Np - N)))
    if bias is None:
        bias_p = jnp.zeros((1, Np), jnp.float32)
    else:
        bias_p = jnp.pad(bias.astype(jnp.float32).reshape(1, N),
                         ((0, 0), (0, Np - N)))

    out = pl.pallas_call(
        _matmul_kernel,
        out_shape=jax.ShapeDtypeStruct((Mp, Np), jnp.float32),
        grid=(Mp // tm, Np // tn, Kp // tk),
        in_specs=[
            pl.BlockSpec((tm, tk), lambda i, j, k: (i, k)),
            pl.BlockSpec((tk, tn), lambda i, j, k: (k, j)),
            pl.BlockSpec((1, tn), lambda i, j, k: (0, j)),
        ],
        out_specs=pl.BlockSpec((tm, tn), lambda i, j, k: (i, j)),
        compiler_params=pltpu.CompilerParams(
            dimension_semantics=("parallel", "parallel", "arbitrary")),
    )(a_p, b_p, bias_p)
    return out[:M, :N]


# ----------------------------------------------------------------------------- instance norm (+ fused ReLU)
def _instnorm_kernel(x_ref, o_ref, *, eps, relu):
    x = x_ref[...]
    mu = jnp.mean(x, axis=-1, keepdims=True)
    var = jnp.mean((x - mu) ** 2, axis=-1, keepdims=True)
    y = (x - mu) * jax.lax.rsqrt(var + eps)
    if relu:
        y = jnp.maximum(y, 0.0)
    o_ref[...] = y


def instance_norm(x, relu=False, eps=1e-5):
    # nn.InstanceNorm2d(affine=False): per (b,c) normalization over spatial dims.
    # layout: rows = B*C (sublanes), lanes = H*W; gridded over rows.
    B, C, H, W = x.shape
    rows, hw = B * C, H * W
    if rows % 64 == 0:
        tile = 64
    elif rows % 8 == 0:
        tile = 8
    else:
        tile = rows
    y = pl.pallas_call(
        functools.partial(_instnorm_kernel, eps=eps, relu=relu),
        out_shape=jax.ShapeDtypeStruct((rows, hw), jnp.float32),
        grid=(rows // tile,),
        in_specs=[pl.BlockSpec((tile, hw), lambda i: (i, 0))],
        out_specs=pl.BlockSpec((tile, hw), lambda i: (i, 0)),
        compiler_params=pltpu.CompilerParams(dimension_semantics=("parallel",)),
    )(x.reshape(rows, hw).astype(jnp.float32))
    return y.reshape(B, C, H, W)


# ----------------------------------------------------------------------------- convolution (im2col + matmul)
def conv2d(x, w, b=None, stride=1, padding=0):
    # NCHW in/out (PyTorch); im2col rows = B*Ho*Wo, matmul lanes = Cout.
    B, Cin, H, W = x.shape
    Cout, _, kh, kw = w.shape
    xp = jnp.pad(x, ((0, 0), (0, 0), (padding, padding), (padding, padding)))
    Ho = (H + 2 * padding - kh) // stride + 1
    Wo = (W + 2 * padding - kw) // stride + 1
    cols = []
    for i in range(kh):
        for j in range(kw):
            cols.append(xp[:, :, i:i + stride * Ho:stride, j:j + stride * Wo:stride])
    patches = jnp.stack(cols, axis=2)                                  # (B, Cin, kh*kw, Ho, Wo)
    patches = jnp.transpose(patches, (0, 3, 4, 1, 2)).reshape(B * Ho * Wo, Cin * kh * kw)
    wmat = w.reshape(Cout, Cin * kh * kw).T
    out = pallas_matmul(patches, wmat, bias=b)
    return jnp.transpose(out.reshape(B, Ho, Wo, Cout), (0, 3, 1, 2))


# ----------------------------------------------------------------------------- 2x bilinear upsample (align_corners=True)
def _interp_matrix_ac(n_in, n_out):
    # 1-D linear interpolation matrix, align_corners=True
    if n_in == 1:
        return jnp.ones((n_out, 1), jnp.float32)
    src = jnp.arange(n_out, dtype=jnp.float32) * (n_in - 1) / (n_out - 1)
    lo = jnp.clip(jnp.floor(src), 0, n_in - 1).astype(jnp.int32)
    hi = jnp.clip(lo + 1, 0, n_in - 1)
    frac = src - lo.astype(jnp.float32)
    return ((1.0 - frac)[:, None] * jax.nn.one_hot(lo, n_in, dtype=jnp.float32)
            + frac[:, None] * jax.nn.one_hot(hi, n_in, dtype=jnp.float32))


def upsample2x_bilinear(x):
    # nn.Upsample(scale_factor=2, mode='bilinear', align_corners=True) via two Pallas matmuls.
    B, C, H, W = x.shape
    Ry = _interp_matrix_ac(H, 2 * H)
    Rx = _interp_matrix_ac(W, 2 * W)
    t = pallas_matmul(x.reshape(B * C * H, W), Rx.T).reshape(B, C, H, 2 * W)
    t = pallas_matmul(jnp.transpose(t, (0, 1, 3, 2)).reshape(B * C * 2 * W, H), Ry.T)
    return jnp.transpose(t.reshape(B, C, 2 * W, 2 * H), (0, 1, 3, 2))


def topk_channels(x, k):
    # torch.topk(x, k, dim=1).values (sorted descending)
    # TODO(synk): sort/top-k has no clean Pallas TPU primitive; jax.lax.top_k glue.
    xt = jnp.transpose(x, (0, 2, 3, 1))
    vals, _ = jax.lax.top_k(xt, k)
    return jnp.transpose(vals, (0, 3, 1, 2))


# ----------------------------------------------------------------------------- MLSP modules
def resblock(x, p, same):
    h = conv2d(x, p['c1_w'], p['c1_b'], stride=1, padding=1)
    h = instance_norm(h, relu=True)
    h = conv2d(h, p['c2_w'], p['c2_b'], stride=1, padding=1)
    if same:
        h = instance_norm(h, relu=False)
        return x + h
    h = instance_norm(h, relu=True)
    a = conv2d(x, p['al_w'], p['al_b'])            # 1x1 align conv
    a = instance_norm(a, relu=True)
    return a + h


def double_conv(x, p):
    h = conv2d(x, p['w1'], None, stride=1, padding=1)
    h = instance_norm(h, relu=True)
    h = conv2d(h, p['w2'], None, stride=1, padding=1)
    return instance_norm(h, relu=True)


def mlsp(x, p):
    C = x.shape[1]                                  # backbone_channels
    h = resblock(x, p['res1'], same=False)          # C -> C/2
    h = resblock(h, p['res2'], same=True)           # C/2 -> C/2
    h = jnp.maximum(h, 0.0)                         # functional ReLU
    h_up = upsample2x_bilinear(h)                   # shared by both branches
    x_cu1 = double_conv(h_up, p['cu1'])             # C/2 -> C/4
    x_u1 = topk_channels(h_up, C // 4)              # top C/4 channels
    h2 = jnp.concatenate([x_cu1, x_u1], axis=1)     # C/2 channels
    x_cu2 = double_conv(upsample2x_bilinear(h2), p['cu2'])      # C/2 -> C/8
    x_u2 = topk_channels(upsample2x_bilinear(x_u1), C // 8)     # top C/8 channels
    h3 = jnp.concatenate([x_cu2, x_u2], axis=1)     # C/4 channels
    h4 = double_conv(h3, p['conv_out'])             # C/4 -> C/8
    return conv2d(h4, p['seg_w'], p['seg_b'])       # C/8 -> classes (1x1)


# ----------------------------------------------------------------------------- parameters
def init_params(key, C, classes):
    keys = iter(jax.random.split(key, 32))

    def w(shape, fan_in):
        return jax.random.normal(next(keys), shape, jnp.float32) / jnp.sqrt(float(fan_in))

    zeros = lambda s: jnp.zeros(s, jnp.float32)
    C2, C4, C8 = C // 2, C // 4, C // 8
    return dict(
        res1=dict(c1_w=w((C2, C, 3, 3), C * 9), c1_b=zeros((C2,)),
                  c2_w=w((C2, C2, 3, 3), C2 * 9), c2_b=zeros((C2,)),
                  al_w=w((C2, C, 1, 1), C), al_b=zeros((C2,))),
        res2=dict(c1_w=w((C2, C2, 3, 3), C2 * 9), c1_b=zeros((C2,)),
                  c2_w=w((C2, C2, 3, 3), C2 * 9), c2_b=zeros((C2,))),
        cu1=dict(w1=w((C4, C2, 3, 3), C2 * 9), w2=w((C4, C4, 3, 3), C4 * 9)),
        cu2=dict(w1=w((C8, C2, 3, 3), C2 * 9), w2=w((C8, C8, 3, 3), C8 * 9)),
        conv_out=dict(w1=w((C8, C4, 3, 3), C4 * 9), w2=w((C8, C8, 3, 3), C8 * 9)),
        seg_w=w((classes, C8, 1, 1), C8), seg_b=zeros((classes,)),
    )


# ----------------------------------------------------------------------------- main
if __name__ == "__main__":
    C = 32            # backbone_channels  # TODO(synk): real model uses 256
    classes = 4       # real model default: 8
    B, H, W = 2, 16, 16

    key = jax.random.PRNGKey(0)
    pkey, xkey = jax.random.split(key)
    params = init_params(pkey, C, classes)
    x = jax.random.normal(xkey, (B, C, H, W), jnp.float32)     # NCHW, like PyTorch

    fwd = jax.jit(mlsp)
    out = jax.block_until_ready(fwd(x, params))

    assert out.shape == (B, classes, 4 * H, 4 * W), out.shape
    assert bool(jnp.all(jnp.isfinite(out)))
    print("KERNEL_OK")
</pallas_src>

<mosaic_0001>
module attributes {stable_mosaic.version = 11 : i64} {
  func.func @_matmul_kernel(%arg0: i32, %arg1: i32, %arg2: i32, %arg3: memref<256x128xbf16, #tpu.memory_space<vmem>>, %arg4: memref<128x128xbf16, #tpu.memory_space<vmem>>, %arg5: memref<1x128xf32, #tpu.memory_space<vmem>>, %arg6: memref<256x128xf32, #tpu.memory_space<vmem>>) attributes {dimension_semantics = [#tpu.dimension_semantics<parallel>, #tpu.dimension_semantics<parallel>, #tpu.dimension_semantics<arbitrary>], iteration_bounds = array<i64: 2, 1, 1>, scalar_prefetch = 0 : i64, scratch_operands = 0 : i64, tpu.core_type = #tpu.core_type<tc>, window_params = [{transform_indices = @transform_0, window_bounds = array<i64: 256, 128>}, {transform_indices = @transform_1, window_bounds = array<i64: 128, 128>}, {transform_indices = @transform_2, window_bounds = array<i64: 1, 128>}, {transform_indices = @transform_3, window_bounds = array<i64: 256, 128>}]} {
    %c0_i32 = arith.constant 0 : i32
    %0 = arith.cmpi eq, %arg2, %c0_i32 : i32
    %1 = arith.extui %0 : i1 to i32
    %c0_i32_0 = arith.constant 0 : i32
    %2 = arith.cmpi ne, %1, %c0_i32_0 : i32
    scf.if %2 {
      %c0_8 = arith.constant 0 : index
      %c0_9 = arith.constant 0 : index
      %9 = vector.load %arg5[%c0_8, %c0_9] : memref<1x128xf32, #tpu.memory_space<vmem>>, vector<1x128xf32>
      %10 = vector.shape_cast %9 : vector<1x128xf32> to vector<1x128xf32>
      %11 = vector.broadcast %10 : vector<1x128xf32> to vector<256x128xf32>
      %c0_10 = arith.constant 0 : index
      %c0_11 = arith.constant 0 : index
      %12 = vector.load %arg6[%c0_10, %c0_11] : memref<256x128xf32, #tpu.memory_space<vmem>>, vector<256x128xf32>
      tpu.vector_store %arg6[%c0_10, %c0_11], %11 {strides = array<i32>} : memref<256x128xf32, #tpu.memory_space<vmem>>, vector<256x128xf32>,
    } else {
    }
    %c0 = arith.constant 0 : index
    %c0_1 = arith.constant 0 : index
    %3 = vector.load %arg6[%c0, %c0_1] : memref<256x128xf32, #tpu.memory_space<vmem>>, vector<256x128xf32>
    %c0_2 = arith.constant 0 : index
    %c0_3 = arith.constant 0 : index
    %4 = vector.load %arg3[%c0_2, %c0_3] : memref<256x128xbf16, #tpu.memory_space<vmem>>, vector<256x128xbf16>
    %c0_4 = arith.constant 0 : index
    %c0_5 = arith.constant 0 : index
    %5 = vector.load %arg4[%c0_4, %c0_5] : memref<128x128xbf16, #tpu.memory_space<vmem>>, vector<128x128xbf16>
    %cst = arith.constant dense<0.000000e+00> : vector<256x128xf32>
    %6 = tpu.matmul %4, %5, %cst {dimension_numbers = #tpu.dot_dimension_numbers<[1], [0], [0], [1], [0, 0, 1, 1], [], []>} : vector<256x128xbf16>, vector<128x128xbf16>, vector<256x128xf32> -> vector<256x128xf32>
    %7 = arith.addf %3, %6 : vector<256x128xf32>
    %c0_6 = arith.constant 0 : index
    %c0_7 = arith.constant 0 : index
    %8 = vector.load %arg6[%c0_6, %c0_7] : memref<256x128xf32, #tpu.memory_space<vmem>>, vector<256x128xf32>
    tpu.vector_store %arg6[%c0_6, %c0_7], %7 {strides = array<i32>} : memref<256x128xf32, #tpu.memory_space<vmem>>, vector<256x128xf32>,
    return
  }
  func.func @transform_0(%arg0: i32, %arg1: i32, %arg2: i32) -> (i32, i32) {
    %c0_i32 = arith.constant 0 : i32
    return %arg0, %arg2 : i32, i32
  }
  func.func @transform_1(%arg0: i32, %arg1: i32, %arg2: i32) -> (i32, i32) {
    %c0_i32 = arith.constant 0 : i32
    return %arg2, %arg1 : i32, i32
  }
  func.func @transform_2(%arg0: i32, %arg1: i32, %arg2: i32) -> (i32, i32) {
    %c0_i32 = arith.constant 0 : i32
    %c0_i32_0 = arith.constant 0 : i32
    return %c0_i32, %arg1 : i32, i32
  }
  func.func @transform_3(%arg0: i32, %arg1: i32, %arg2: i32) -> (i32, i32) {
    %c0_i32 = arith.constant 0 : i32
    return %arg0, %arg1 : i32, i32
  }
}

module attributes {stable_mosaic.version = 11 : i64} {
  func.func @_instnorm_kernel(%arg0: i32, %arg1: memref<8x256xf32, #tpu.memory_space<vmem>>, %arg2: memref<8x256xf32, #tpu.memory_space<vmem>>) attributes {dimension_semantics = [#tpu.dimension_semantics<parallel>], iteration_bounds = array<i64: 4>, scalar_prefetch = 0 : i64, scratch_operands = 0 : i64, tpu.core_type = #tpu.core_type<tc>, window_params = [{transform_indices = @transform_0, window_bounds = array<i64: 8, 256>}, {transform_indices = @transform_1, window_bounds = array<i64: 8, 256>}]} {
    %c0 = arith.constant 0 : index
    %c0_0 = arith.constant 0 : index
    %0 = vector.load %arg1[%c0, %c0_0] : memref<8x256xf32, #tpu.memory_space<vmem>>, vector<8x256xf32>
    %cst = arith.constant dense<0.000000e+00> : vector<8xf32>
    %1 = vector.multi_reduction <add>, %0, %cst [1] : vector<8x256xf32> to vector<8xf32>
    %2 = vector.shape_cast %1 : vector<8xf32> to vector<8x1xf32>
    %cst_1 = arith.constant 2.560000e+02 : f32
    %3 = vector.broadcast %cst_1 : f32 to vector<8x1xf32>
    %4 = arith.divf %2, %3 : vector<8x1xf32>
    %5 = vector.broadcast %4 : vector<8x1xf32> to vector<8x256xf32>
    %6 = arith.subf %0, %5 : vector<8x256xf32>
    %7 = arith.mulf %6, %6 : vector<8x256xf32>
    %cst_2 = arith.constant dense<0.000000e+00> : vector<8xf32>
    %8 = vector.multi_reduction <add>, %7, %cst_2 [1] : vector<8x256xf32> to vector<8xf32>
    %9 = vector.shape_cast %8 : vector<8xf32> to vector<8x1xf32>
    %cst_3 = arith.constant 2.560000e+02 : f32
    %10 = vector.broadcast %cst_3 : f32 to vector<8x1xf32>
    %11 = arith.divf %9, %10 : vector<8x1xf32>
    %12 = vector.broadcast %4 : vector<8x1xf32> to vector<8x256xf32>
    %13 = arith.subf %0, %12 : vector<8x256xf32>
    %cst_4 = arith.constant 9.99999974E-6 : f32
    %14 = vector.broadcast %cst_4 : f32 to vector<8x1xf32>
    %15 = arith.addf %11, %14 : vector<8x1xf32>
    %16 = math.rsqrt %15 : vector<8x1xf32>
    %17 = vector.broadcast %16 : vector<8x1xf32> to vector<8x256xf32>
    %18 = arith.mulf %13, %17 : vector<8x256xf32>
    %cst_5 = arith.constant 0.000000e+00 : f32
    %19 = vector.broadcast %cst_5 : f32 to vector<8x256xf32>
    %20 = arith.maximumf %18, %19 : vector<8x256xf32>
    %c0_6 = arith.constant 0 : index
    %c0_7 = arith.constant 0 : index
    %21 = vector.load %arg2[%c0_6, %c0_7] : memref<8x256xf32, #tpu.memory_space<vmem>>, vector<8x256xf32>
    tpu.vector_store %arg2[%c0_6, %c0_7], %20 {strides = array<i32>} : memref<8x256xf32, #tpu.memory_space<vmem>>, vector<8x256xf32>,
    return
  }
  func.func @transform_0(%arg0: i32) -> (i32, i32) {
    %c0_i32 = arith.constant 0 : i32
    %c0_i32_0 = arith.constant 0 : i32
    return %arg0, %c0_i32 : i32, i32
  }
  func.func @transform_1(%arg0: i32) -> (i32, i32) {
    %c0_i32 = arith.constant 0 : i32
    %c0_i32_0 = arith.constant 0 : i32
    return %arg0, %c0_i32 : i32, i32
  }
}

module attributes {stable_mosaic.version = 11 : i64} {
  func.func @_matmul_kernel(%arg0: i32, %arg1: i32, %arg2: i32, %arg3: memref<256x256xbf16, #tpu.memory_space<vmem>>, %arg4: memref<256x128xbf16, #tpu.memory_space<vmem>>, %arg5: memref<1x128xf32, #tpu.memory_space<vmem>>, %arg6: memref<256x128xf32, #tpu.memory_space<vmem>>) attributes {dimension_semantics = [#tpu.dimension_semantics<parallel>, #tpu.dimension_semantics<parallel>, #tpu.dimension_semantics<arbitrary>], iteration_bounds = array<i64: 2, 1, 2>, scalar_prefetch = 0 : i64, scratch_operands = 0 : i64, tpu.core_type = #tpu.core_type<tc>, window_params = [{transform_indices = @transform_0, window_bounds = array<i64: 256, 256>}, {transform_indices = @transform_1, window_bounds = array<i64: 256, 128>}, {transform_indices = @transform_2, window_bounds = array<i64: 1, 128>}, {transform_indices = @transform_3, window_bounds = array<i64: 256, 128>}]} {
    %c0_i32 = arith.constant 0 : i32
    %0 = arith.cmpi eq, %arg2, %c0_i32 : i32
    %1 = arith.extui %0 : i1 to i32
    %c0_i32_0 = arith.constant 0 : i32
    %2 = arith.cmpi ne, %1, %c0_i32_0 : i32
    scf.if %2 {
      %c0_8 = arith.constant 0 : index
      %c0_9 = arith.constant 0 : index
      %9 = vector.load %arg5[%c0_8, %c0_9] : memref<1x128xf32, #tpu.memory_space<vmem>>, vector<1x128xf32>
      %10 = vector.shape_cast %9 : vector<1x128xf32> to vector<1x128xf32>
      %11 = vector.broadcast %10 : vector<1x128xf32> to vector<256x128xf32>
      %c0_10 = arith.constant 0 : index
      %c0_11 = arith.constant 0 : index
      %12 = vector.load %arg6[%c0_10, %c0_11] : memref<256x128xf32, #tpu.memory_space<vmem>>, vector<256x128xf32>
      tpu.vector_store %arg6[%c0_10, %c0_11], %11 {strides = array<i32>} : memref<256x128xf32, #tpu.memory_space<vmem>>, vector<256x128xf32>,
    } else {
    }
    %c0 = arith.constant 0 : index
    %c0_1 = arith.constant 0 : index
    %3 = vector.load %arg6[%c0, %c0_1] : memref<256x128xf32, #tpu.memory_space<vmem>>, vector<256x128xf32>
    %c0_2 = arith.constant 0 : index
    %c0_3 = arith.constant 0 : index
    %4 = vector.load %arg3[%c0_2, %c0_3] : memref<256x256xbf16, #tpu.memory_space<vmem>>, vector<256x256xbf16>
    %c0_4 = arith.constant 0 : index
    %c0_5 = arith.constant 0 : index
    %5 = vector.load %arg4[%c0_4, %c0_5] : memref<256x128xbf16, #tpu.memory_space<vmem>>, vector<256x128xbf16>
    %cst = arith.constant dense<0.000000e+00> : vector<256x128xf32>
    %6 = tpu.matmul %4, %5, %cst {dimension_numbers = #tpu.dot_dimension_numbers<[1], [0], [0], [1], [0, 0, 1, 1], [], []>} : vector<256x256xbf16>, vector<256x128xbf16>, vector<256x128xf32> -> vector<256x128xf32>
    %7 = arith.addf %3, %6 : vector<256x128xf32>
    %c0_6 = arith.constant 0 : index
    %c0_7 = arith.constant 0 : index
    %8 = vector.load %arg6[%c0_6, %c0_7] : memref<256x128xf32, #tpu.memory_space<vmem>>, vector<256x128xf32>
    tpu.vector_store %arg6[%c0_6, %c0_7], %7 {strides = array<i32>} : memref<256x128xf32, #tpu.memory_space<vmem>>, vector<256x128xf32>,
    return
  }
  func.func @transform_0(%arg0: i32, %arg1: i32, %arg2: i32) -> (i32, i32) {
    %c0_i32 = arith.constant 0 : i32
    return %arg0, %arg2 : i32, i32
  }
  func.func @transform_1(%arg0: i32, %arg1: i32, %arg2: i32) -> (i32, i32) {
    %c0_i32 = arith.constant 0 : i32
    return %arg2, %arg1 : i32, i32
  }
  func.func @transform_2(%arg0: i32, %arg1: i32, %arg2: i32) -> (i32, i32) {
    %c0_i32 = arith.constant 0 : i32
    %c0_i32_0 = arith.constant 0 : i32
    return %c0_i32, %arg1 : i32, i32
  }
  func.func @transform_3(%arg0: i32, %arg1: i32, %arg2: i32) -> (i32, i32) {
    %c0_i32 = arith.constant 0 : i32
    return %arg0, %arg1 : i32, i32
  }
}

module attributes {stable_mosaic.version = 11 : i64} {
  func.func @_matmul_kernel(%arg0: i32, %arg1: i32, %arg2: i32, %arg3: memref<256x256xbf16, #tpu.memory_space<vmem>>, %arg4: memref<256x128xbf16, #tpu.memory_space<vmem>>, %arg5: memref<1x128xf32, #tpu.memory_space<vmem>>, %arg6: memref<256x128xf32, #tpu.memory_space<vmem>>) attributes {dimension_semantics = [#tpu.dimension_semantics<parallel>, #tpu.dimension_semantics<parallel>, #tpu.dimension_semantics<arbitrary>], iteration_bounds = array<i64: 2, 1, 1>, scalar_prefetch = 0 : i64, scratch_operands = 0 : i64, tpu.core_type = #tpu.core_type<tc>, window_params = [{transform_indices = @transform_0, window_bounds = array<i64: 256, 256>}, {transform_indices = @transform_1, window_bounds = array<i64: 256, 128>}, {transform_indices = @transform_2, window_bounds = array<i64: 1, 128>}, {transform_indices = @transform_3, window_bounds = array<i64: 256, 128>}]} {
    %c0_i32 = arith.constant 0 : i32
    %0 = arith.cmpi eq, %arg2, %c0_i32 : i32
    %1 = arith.extui %0 : i1 to i32
    %c0_i32_0 = arith.constant 0 : i32
    %2 = arith.cmpi ne, %1, %c0_i32_0 : i32
    scf.if %2 {
      %c0_8 = arith.constant 0 : index
      %c0_9 = arith.constant 0 : index
      %9 = vector.load %arg5[%c0_8, %c0_9] : memref<1x128xf32, #tpu.memory_space<vmem>>, vector<1x128xf32>
      %10 = vector.shape_cast %9 : vector<1x128xf32> to vector<1x128xf32>
      %11 = vector.broadcast %10 : vector<1x128xf32> to vector<256x128xf32>
      %c0_10 = arith.constant 0 : index
      %c0_11 = arith.constant 0 : index
      %12 = vector.load %arg6[%c0_10, %c0_11] : memref<256x128xf32, #tpu.memory_space<vmem>>, vector<256x128xf32>
      tpu.vector_store %arg6[%c0_10, %c0_11], %11 {strides = array<i32>} : memref<256x128xf32, #tpu.memory_space<vmem>>, vector<256x128xf32>,
    } else {
    }
    %c0 = arith.constant 0 : index
    %c0_1 = arith.constant 0 : index
    %3 = vector.load %arg6[%c0, %c0_1] : memref<256x128xf32, #tpu.memory_space<vmem>>, vector<256x128xf32>
    %c0_2 = arith.constant 0 : index
    %c0_3 = arith.constant 0 : index
    %4 = vector.load %arg3[%c0_2, %c0_3] : memref<256x256xbf16, #tpu.memory_space<vmem>>, vector<256x256xbf16>
    %c0_4 = arith.constant 0 : index
    %c0_5 = arith.constant 0 : index
    %5 = vector.load %arg4[%c0_4, %c0_5] : memref<256x128xbf16, #tpu.memory_space<vmem>>, vector<256x128xbf16>
    %cst = arith.constant dense<0.000000e+00> : vector<256x128xf32>
    %6 = tpu.matmul %4, %5, %cst {dimension_numbers = #tpu.dot_dimension_numbers<[1], [0], [0], [1], [0, 0, 1, 1], [], []>} : vector<256x256xbf16>, vector<256x128xbf16>, vector<256x128xf32> -> vector<256x128xf32>
    %7 = arith.addf %3, %6 : vector<256x128xf32>
    %c0_6 = arith.constant 0 : index
    %c0_7 = arith.constant 0 : index
    %8 = vector.load %arg6[%c0_6, %c0_7] : memref<256x128xf32, #tpu.memory_space<vmem>>, vector<256x128xf32>
    tpu.vector_store %arg6[%c0_6, %c0_7], %7 {strides = array<i32>} : memref<256x128xf32, #tpu.memory_space<vmem>>, vector<256x128xf32>,
    return
  }
  func.func @transform_0(%arg0: i32, %arg1: i32, %arg2: i32) -> (i32, i32) {
    %c0_i32 = arith.constant 0 : i32
    return %arg0, %arg2 : i32, i32
  }
  func.func @transform_1(%arg0: i32, %arg1: i32, %arg2: i32) -> (i32, i32) {
    %c0_i32 = arith.constant 0 : i32
    return %arg2, %arg1 : i32, i32
  }
  func.func @transform_2(%arg0: i32, %arg1: i32, %arg2: i32) -> (i32, i32) {
    %c0_i32 = arith.constant 0 : i32
    %c0_i32_0 = arith.constant 0 : i32
    return %c0_i32, %arg1 : i32, i32
  }
  func.func @transform_3(%arg0: i32, %arg1: i32, %arg2: i32) -> (i32, i32) {
    %c0_i32 = arith.constant 0 : i32
    return %arg0, %arg1 : i32, i32
  }
}

module attributes {stable_mosaic.version = 11 : i64} {
  func.func @_instnorm_kernel(%arg0: i32, %arg1: memref<8x256xf32, #tpu.memory_space<vmem>>, %arg2: memref<8x256xf32, #tpu.memory_space<vmem>>) attributes {dimension_semantics = [#tpu.dimension_semantics<parallel>], iteration_bounds = array<i64: 4>, scalar_prefetch = 0 : i64, scratch_operands = 0 : i64, tpu.core_type = #tpu.core_type<tc>, window_params = [{transform_indices = @transform_0, window_bounds = array<i64: 8, 256>}, {transform_indices = @transform_1, window_bounds = array<i64: 8, 256>}]} {
    %c0 = arith.constant 0 : index
    %c0_0 = arith.constant 0 : index
    %0 = vector.load %arg1[%c0, %c0_0] : memref<8x256xf32, #tpu.memory_space<vmem>>, vector<8x256xf32>
    %cst = arith.constant dense<0.000000e+00> : vector<8xf32>
    %1 = vector.multi_reduction <add>, %0, %cst [1] : vector<8x256xf32> to vector<8xf32>
    %2 = vector.shape_cast %1 : vector<8xf32> to vector<8x1xf32>
    %cst_1 = arith.constant 2.560000e+02 : f32
    %3 = vector.broadcast %cst_1 : f32 to vector<8x1xf32>
    %4 = arith.divf %2, %3 : vector<8x1xf32>
    %5 = vector.broadcast %4 : vector<8x1xf32> to vector<8x256xf32>
    %6 = arith.subf %0, %5 : vector<8x256xf32>
    %7 = arith.mulf %6, %6 : vector<8x256xf32>
    %cst_2 = arith.constant dense<0.000000e+00> : vector<8xf32>
    %8 = vector.multi_reduction <add>, %7, %cst_2 [1] : vector<8x256xf32> to vector<8xf32>
    %9 = vector.shape_cast %8 : vector<8xf32> to vector<8x1xf32>
    %cst_3 = arith.constant 2.560000e+02 : f32
    %10 = vector.broadcast %cst_3 : f32 to vector<8x1xf32>
    %11 = arith.divf %9, %10 : vector<8x1xf32>
    %12 = vector.broadcast %4 : vector<8x1xf32> to vector<8x256xf32>
    %13 = arith.subf %0, %12 : vector<8x256xf32>
    %cst_4 = arith.constant 9.99999974E-6 : f32
    %14 = vector.broadcast %cst_4 : f32 to vector<8x1xf32>
    %15 = arith.addf %11, %14 : vector<8x1xf32>
    %16 = math.rsqrt %15 : vector<8x1xf32>
    %17 = vector.broadcast %16 : vector<8x1xf32> to vector<8x256xf32>
    %18 = arith.mulf %13, %17 : vector<8x256xf32>
    %c0_5 = arith.constant 0 : index
    %c0_6 = arith.constant 0 : index
    %19 = vector.load %arg2[%c0_5, %c0_6] : memref<8x256xf32, #tpu.memory_space<vmem>>, vector<8x256xf32>
    tpu.vector_store %arg2[%c0_5, %c0_6], %18 {strides = array<i32>} : memref<8x256xf32, #tpu.memory_space<vmem>>, vector<8x256xf32>,
    return
  }
  func.func @transform_0(%arg0: i32) -> (i32, i32) {
    %c0_i32 = arith.constant 0 : i32
    %c0_i32_0 = arith.constant 0 : i32
    return %arg0, %c0_i32 : i32, i32
  }
  func.func @transform_1(%arg0: i32) -> (i32, i32) {
    %c0_i32 = arith.constant 0 : i32
    %c0_i32_0 = arith.constant 0 : i32
    return %arg0, %c0_i32 : i32, i32
  }
}

module attributes {stable_mosaic.version = 11 : i64} {
  func.func @_matmul_kernel(%arg0: i32, %arg1: i32, %arg2: i32, %arg3: memref<256x128xbf16, #tpu.memory_space<vmem>>, %arg4: memref<128x128xbf16, #tpu.memory_space<vmem>>, %arg5: memref<1x128xf32, #tpu.memory_space<vmem>>, %arg6: memref<256x128xf32, #tpu.memory_space<vmem>>) attributes {dimension_semantics = [#tpu.dimension_semantics<parallel>, #tpu.dimension_semantics<parallel>, #tpu.dimension_semantics<arbitrary>], iteration_bounds = array<i64: 4, 1, 1>, scalar_prefetch = 0 : i64, scratch_operands = 0 : i64, tpu.core_type = #tpu.core_type<tc>, window_params = [{transform_indices = @transform_0, window_bounds = array<i64: 256, 128>}, {transform_indices = @transform_1, window_bounds = array<i64: 128, 128>}, {transform_indices = @transform_2, window_bounds = array<i64: 1, 128>}, {transform_indices = @transform_3, window_bounds = array<i64: 256, 128>}]} {
    %c0_i32 = arith.constant 0 : i32
    %0 = arith.cmpi eq, %arg2, %c0_i32 : i32
    %1 = arith.extui %0 : i1 to i32
    %c0_i32_0 = arith.constant 0 : i32
    %2 = arith.cmpi ne, %1, %c0_i32_0 : i32
    scf.if %2 {
      %c0_8 = arith.constant 0 : index
      %c0_9 = arith.constant 0 : index
      %9 = vector.load %arg5[%c0_8, %c0_9] : memref<1x128xf32, #tpu.memory_space<vmem>>, vector<1x128xf32>
      %10 = vector.shape_cast %9 : vector<1x128xf32> to vector<1x128xf32>
      %11 = vector.broadcast %10 : vector<1x128xf32> to vector<256x128xf32>
      %c0_10 = arith.constant 0 : index
      %c0_11 = arith.constant 0 : index
      %12 = vector.load %arg6[%c0_10, %c0_11] : memref<256x128xf32, #tpu.memory_space<vmem>>, vector<256x128xf32>
      tpu.vector_store %arg6[%c0_10, %c0_11], %11 {strides = array<i32>} : memref<256x128xf32, #tpu.memory_space<vmem>>, vector<256x128xf32>,
    } else {
    }
    %c0 = arith.constant 0 : index
    %c0_1 = arith.constant 0 : index
    %3 = vector.load %arg6[%c0, %c0_1] : memref<256x128xf32, #tpu.memory_space<vmem>>, vector<256x128xf32>
    %c0_2 = arith.constant 0 : index
    %c0_3 = arith.constant 0 : index
    %4 = vector.load %arg3[%c0_2, %c0_3] : memref<256x128xbf16, #tpu.memory_space<vmem>>, vector<256x128xbf16>
    %c0_4 = arith.constant 0 : index
    %c0_5 = arith.constant 0 : index
    %5 = vector.load %arg4[%c0_4, %c0_5] : memref<128x128xbf16, #tpu.memory_space<vmem>>, vector<128x128xbf16>
    %cst = arith.constant dense<0.000000e+00> : vector<256x128xf32>
    %6 = tpu.matmul %4, %5, %cst {dimension_numbers = #tpu.dot_dimension_numbers<[1], [0], [0], [1], [0, 0, 1, 1], [], []>} : vector<256x128xbf16>, vector<128x128xbf16>, vector<256x128xf32> -> vector<256x128xf32>
    %7 = arith.addf %3, %6 : vector<256x128xf32>
    %c0_6 = arith.constant 0 : index
    %c0_7 = arith.constant 0 : index
    %8 = vector.load %arg6[%c0_6, %c0_7] : memref<256x128xf32, #tpu.memory_space<vmem>>, vector<256x128xf32>
    tpu.vector_store %arg6[%c0_6, %c0_7], %7 {strides = array<i32>} : memref<256x128xf32, #tpu.memory_space<vmem>>, vector<256x128xf32>,
    return
  }
  func.func @transform_0(%arg0: i32, %arg1: i32, %arg2: i32) -> (i32, i32) {
    %c0_i32 = arith.constant 0 : i32
    return %arg0, %arg2 : i32, i32
  }
  func.func @transform_1(%arg0: i32, %arg1: i32, %arg2: i32) -> (i32, i32) {
    %c0_i32 = arith.constant 0 : i32
    return %arg2, %arg1 : i32, i32
  }
  func.func @transform_2(%arg0: i32, %arg1: i32, %arg2: i32) -> (i32, i32) {
    %c0_i32 = arith.constant 0 : i32
    %c0_i32_0 = arith.constant 0 : i32
    return %c0_i32, %arg1 : i32, i32
  }
  func.func @transform_3(%arg0: i32, %arg1: i32, %arg2: i32) -> (i32, i32) {
    %c0_i32 = arith.constant 0 : i32
    return %arg0, %arg1 : i32, i32
  }
}

module attributes {stable_mosaic.version = 11 : i64} {
  func.func @_matmul_kernel(%arg0: i32, %arg1: i32, %arg2: i32, %arg3: memref<256x256xbf16, #tpu.memory_space<vmem>>, %arg4: memref<256x128xbf16, #tpu.memory_space<vmem>>, %arg5: memref<1x128xf32, #tpu.memory_space<vmem>>, %arg6: memref<256x128xf32, #tpu.memory_space<vmem>>) attributes {dimension_semantics = [#tpu.dimension_semantics<parallel>, #tpu.dimension_semantics<parallel>, #tpu.dimension_semantics<arbitrary>], iteration_bounds = array<i64: 8, 1, 1>, scalar_prefetch = 0 : i64, scratch_operands = 0 : i64, tpu.core_type = #tpu.core_type<tc>, window_params = [{transform_indices = @transform_0, window_bounds = array<i64: 256, 256>}, {transform_indices = @transform_1, window_bounds = array<i64: 256, 128>}, {transform_indices = @transform_2, window_bounds = array<i64: 1, 128>}, {transform_indices = @transform_3, window_bounds = array<i64: 256, 128>}]} {
    %c0_i32 = arith.constant 0 : i32
    %0 = arith.cmpi eq, %arg2, %c0_i32 : i32
    %1 = arith.extui %0 : i1 to i32
    %c0_i32_0 = arith.constant 0 : i32
    %2 = arith.cmpi ne, %1, %c0_i32_0 : i32
    scf.if %2 {
      %c0_8 = arith.constant 0 : index
      %c0_9 = arith.constant 0 : index
      %9 = vector.load %arg5[%c0_8, %c0_9] : memref<1x128xf32, #tpu.memory_space<vmem>>, vector<1x128xf32>
      %10 = vector.shape_cast %9 : vector<1x128xf32> to vector<1x128xf32>
      %11 = vector.broadcast %10 : vector<1x128xf32> to vector<256x128xf32>
      %c0_10 = arith.constant 0 : index
      %c0_11 = arith.constant 0 : index
      %12 = vector.load %arg6[%c0_10, %c0_11] : memref<256x128xf32, #tpu.memory_space<vmem>>, vector<256x128xf32>
      tpu.vector_store %arg6[%c0_10, %c0_11], %11 {strides = array<i32>} : memref<256x128xf32, #tpu.memory_space<vmem>>, vector<256x128xf32>,
    } else {
    }
    %c0 = arith.constant 0 : index
    %c0_1 = arith.constant 0 : index
    %3 = vector.load %arg6[%c0, %c0_1] : memref<256x128xf32, #tpu.memory_space<vmem>>, vector<256x128xf32>
    %c0_2 = arith.constant 0 : index
    %c0_3 = arith.constant 0 : index
    %4 = vector.load %arg3[%c0_2, %c0_3] : memref<256x256xbf16, #tpu.memory_space<vmem>>, vector<256x256xbf16>
    %c0_4 = arith.constant 0 : index
    %c0_5 = arith.constant 0 : index
    %5 = vector.load %arg4[%c0_4, %c0_5] : memref<256x128xbf16, #tpu.memory_space<vmem>>, vector<256x128xbf16>
    %cst = arith.constant dense<0.000000e+00> : vector<256x128xf32>
    %6 = tpu.matmul %4, %5, %cst {dimension_numbers = #tpu.dot_dimension_numbers<[1], [0], [0], [1], [0, 0, 1, 1], [], []>} : vector<256x256xbf16>, vector<256x128xbf16>, vector<256x128xf32> -> vector<256x128xf32>
    %7 = arith.addf %3, %6 : vector<256x128xf32>
    %c0_6 = arith.constant 0 : index
    %c0_7 = arith.constant 0 : index
    %8 = vector.load %arg6[%c0_6, %c0_7] : memref<256x128xf32, #tpu.memory_space<vmem>>, vector<256x128xf32>
    tpu.vector_store %arg6[%c0_6, %c0_7], %7 {strides = array<i32>} : memref<256x128xf32, #tpu.memory_space<vmem>>, vector<256x128xf32>,
    return
  }
  func.func @transform_0(%arg0: i32, %arg1: i32, %arg2: i32) -> (i32, i32) {
    %c0_i32 = arith.constant 0 : i32
    return %arg0, %arg2 : i32, i32
  }
  func.func @transform_1(%arg0: i32, %arg1: i32, %arg2: i32) -> (i32, i32) {
    %c0_i32 = arith.constant 0 : i32
    return %arg2, %arg1 : i32, i32
  }
  func.func @transform_2(%arg0: i32, %arg1: i32, %arg2: i32) -> (i32, i32) {
    %c0_i32 = arith.constant 0 : i32
    %c0_i32_0 = arith.constant 0 : i32
    return %c0_i32, %arg1 : i32, i32
  }
  func.func @transform_3(%arg0: i32, %arg1: i32, %arg2: i32) -> (i32, i32) {
    %c0_i32 = arith.constant 0 : i32
    return %arg0, %arg1 : i32, i32
  }
}

module attributes {stable_mosaic.version = 11 : i64} {
  func.func @_instnorm_kernel(%arg0: i32, %arg1: memref<8x1024xf32, #tpu.memory_space<vmem>>, %arg2: memref<8x1024xf32, #tpu.memory_space<vmem>>) attributes {dimension_semantics = [#tpu.dimension_semantics<parallel>], iteration_bounds = array<i64: 2>, scalar_prefetch = 0 : i64, scratch_operands = 0 : i64, tpu.core_type = #tpu.core_type<tc>, window_params = [{transform_indices = @transform_0, window_bounds = array<i64: 8, 1024>}, {transform_indices = @transform_1, window_bounds = array<i64: 8, 1024>}]} {
    %c0 = arith.constant 0 : index
    %c0_0 = arith.constant 0 : index
    %0 = vector.load %arg1[%c0, %c0_0] : memref<8x1024xf32, #tpu.memory_space<vmem>>, vector<8x1024xf32>
    %cst = arith.constant dense<0.000000e+00> : vector<8xf32>
    %1 = vector.multi_reduction <add>, %0, %cst [1] : vector<8x1024xf32> to vector<8xf32>
    %2 = vector.shape_cast %1 : vector<8xf32> to vector<8x1xf32>
    %cst_1 = arith.constant 1.024000e+03 : f32
    %3 = vector.broadcast %cst_1 : f32 to vector<8x1xf32>
    %4 = arith.divf %2, %3 : vector<8x1xf32>
    %5 = vector.broadcast %4 : vector<8x1xf32> to vector<8x1024xf32>
    %6 = arith.subf %0, %5 : vector<8x1024xf32>
    %7 = arith.mulf %6, %6 : vector<8x1024xf32>
    %cst_2 = arith.constant dense<0.000000e+00> : vector<8xf32>
    %8 = vector.multi_reduction <add>, %7, %cst_2 [1] : vector<8x1024xf32> to vector<8xf32>
    %9 = vector.shape_cast %8 : vector<8xf32> to vector<8x1xf32>
    %cst_3 = arith.constant 1.024000e+03 : f32
    %10 = vector.broadcast %cst_3 : f32 to vector<8x1xf32>
    %11 = arith.divf %9, %10 : vector<8x1xf32>
    %12 = vector.broadcast %4 : vector<8x1xf32> to vector<8x1024xf32>
    %13 = arith.subf %0, %12 : vector<8x1024xf32>
    %cst_4 = arith.constant 9.99999974E-6 : f32
    %14 = vector.broadcast %cst_4 : f32 to vector<8x1xf32>
    %15 = arith.addf %11, %14 : vector<8x1xf32>
    %16 = math.rsqrt %15 : vector<8x1xf32>
    %17 = vector.broadcast %16 : vector<8x1xf32> to vector<8x1024xf32>
    %18 = arith.mulf %13, %17 : vector<8x1024xf32>
    %cst_5 = arith.constant 0.000000e+00 : f32
    %19 = vector.broadcast %cst_5 : f32 to vector<8x1024xf32>
    %20 = arith.maximumf %18, %19 : vector<8x1024xf32>
    %c0_6 = arith.constant 0 : index
    %c0_7 = arith.constant 0 : index
    %21 = vector.load %arg2[%c0_6, %c0_7] : memref<8x1024xf32, #tpu.memory_space<vmem>>, vector<8x1024xf32>
    tpu.vector_store %arg2[%c0_6, %c0_7], %20 {strides = array<i32>} : memref<8x1024xf32, #tpu.memory_space<vmem>>, vector<8x1024xf32>,
    return
  }
  func.func @transform_0(%arg0: i32) -> (i32, i32) {
    %c0_i32 = arith.constant 0 : i32
    %c0_i32_0 = arith.constant 0 : i32
    return %arg0, %c0_i32 : i32, i32
  }
  func.func @transform_1(%arg0: i32) -> (i32, i32) {
    %c0_i32 = arith.constant 0 : i32
    %c0_i32_0 = arith.constant 0 : i32
    return %arg0, %c0_i32 : i32, i32
  }
}

module attributes {stable_mosaic.version = 11 : i64} {
  func.func @_matmul_kernel(%arg0: i32, %arg1: i32, %arg2: i32, %arg3: memref<256x128xbf16, #tpu.memory_space<vmem>>, %arg4: memref<128x128xbf16, #tpu.memory_space<vmem>>, %arg5: memref<1x128xf32, #tpu.memory_space<vmem>>, %arg6: memref<256x128xf32, #tpu.memory_space<vmem>>) attributes {dimension_semantics = [#tpu.dimension_semantics<parallel>, #tpu.dimension_semantics<parallel>, #tpu.dimension_semantics<arbitrary>], iteration_bounds = array<i64: 8, 1, 1>, scalar_prefetch = 0 : i64, scratch_operands = 0 : i64, tpu.core_type = #tpu.core_type<tc>, window_params = [{transform_indices = @transform_0, window_bounds = array<i64: 256, 128>}, {transform_indices = @transform_1, window_bounds = array<i64: 128, 128>}, {transform_indices = @transform_2, window_bounds = array<i64: 1, 128>}, {transform_indices = @transform_3, window_bounds = array<i64: 256, 128>}]} {
    %c0_i32 = arith.constant 0 : i32
    %0 = arith.cmpi eq, %arg2, %c0_i32 : i32
    %1 = arith.extui %0 : i1 to i32
    %c0_i32_0 = arith.constant 0 : i32
    %2 = arith.cmpi ne, %1, %c0_i32_0 : i32
    scf.if %2 {
      %c0_8 = arith.constant 0 : index
      %c0_9 = arith.constant 0 : index
      %9 = vector.load %arg5[%c0_8, %c0_9] : memref<1x128xf32, #tpu.memory_space<vmem>>, vector<1x128xf32>
      %10 = vector.shape_cast %9 : vector<1x128xf32> to vector<1x128xf32>
      %11 = vector.broadcast %10 : vector<1x128xf32> to vector<256x128xf32>
      %c0_10 = arith.constant 0 : index
      %c0_11 = arith.constant 0 : index
      %12 = vector.load %arg6[%c0_10, %c0_11] : memref<256x128xf32, #tpu.memory_space<vmem>>, vector<256x128xf32>
      tpu.vector_store %arg6[%c0_10, %c0_11], %11 {strides = array<i32>} : memref<256x128xf32, #tpu.memory_space<vmem>>, vector<256x128xf32>,
    } else {
    }
    %c0 = arith.constant 0 : index
    %c0_1 = arith.constant 0 : index
    %3 = vector.load %arg6[%c0, %c0_1] : memref<256x128xf32, #tpu.memory_space<vmem>>, vector<256x128xf32>
    %c0_2 = arith.constant 0 : index
    %c0_3 = arith.constant 0 : index
    %4 = vector.load %arg3[%c0_2, %c0_3] : memref<256x128xbf16, #tpu.memory_space<vmem>>, vector<256x128xbf16>
    %c0_4 = arith.constant 0 : index
    %c0_5 = arith.constant 0 : index
    %5 = vector.load %arg4[%c0_4, %c0_5] : memref<128x128xbf16, #tpu.memory_space<vmem>>, vector<128x128xbf16>
    %cst = arith.constant dense<0.000000e+00> : vector<256x128xf32>
    %6 = tpu.matmul %4, %5, %cst {dimension_numbers = #tpu.dot_dimension_numbers<[1], [0], [0], [1], [0, 0, 1, 1], [], []>} : vector<256x128xbf16>, vector<128x128xbf16>, vector<256x128xf32> -> vector<256x128xf32>
    %7 = arith.addf %3, %6 : vector<256x128xf32>
    %c0_6 = arith.constant 0 : index
    %c0_7 = arith.constant 0 : index
    %8 = vector.load %arg6[%c0_6, %c0_7] : memref<256x128xf32, #tpu.memory_space<vmem>>, vector<256x128xf32>
    tpu.vector_store %arg6[%c0_6, %c0_7], %7 {strides = array<i32>} : memref<256x128xf32, #tpu.memory_space<vmem>>, vector<256x128xf32>,
    return
  }
  func.func @transform_0(%arg0: i32, %arg1: i32, %arg2: i32) -> (i32, i32) {
    %c0_i32 = arith.constant 0 : i32
    return %arg0, %arg2 : i32, i32
  }
  func.func @transform_1(%arg0: i32, %arg1: i32, %arg2: i32) -> (i32, i32) {
    %c0_i32 = arith.constant 0 : i32
    return %arg2, %arg1 : i32, i32
  }
  func.func @transform_2(%arg0: i32, %arg1: i32, %arg2: i32) -> (i32, i32) {
    %c0_i32 = arith.constant 0 : i32
    %c0_i32_0 = arith.constant 0 : i32
    return %c0_i32, %arg1 : i32, i32
  }
  func.func @transform_3(%arg0: i32, %arg1: i32, %arg2: i32) -> (i32, i32) {
    %c0_i32 = arith.constant 0 : i32
    return %arg0, %arg1 : i32, i32
  }
}

module attributes {stable_mosaic.version = 11 : i64} {
  func.func @_matmul_kernel(%arg0: i32, %arg1: i32, %arg2: i32, %arg3: memref<256x256xbf16, #tpu.memory_space<vmem>>, %arg4: memref<256x128xbf16, #tpu.memory_space<vmem>>, %arg5: memref<1x128xf32, #tpu.memory_space<vmem>>, %arg6: memref<256x128xf32, #tpu.memory_space<vmem>>) attributes {dimension_semantics = [#tpu.dimension_semantics<parallel>, #tpu.dimension_semantics<parallel>, #tpu.dimension_semantics<arbitrary>], iteration_bounds = array<i64: 32, 1, 1>, scalar_prefetch = 0 : i64, scratch_operands = 0 : i64, tpu.core_type = #tpu.core_type<tc>, window_params = [{transform_indices = @transform_0, window_bounds = array<i64: 256, 256>}, {transform_indices = @transform_1, window_bounds = array<i64: 256, 128>}, {transform_indices = @transform_2, window_bounds = array<i64: 1, 128>}, {transform_indices = @transform_3, window_bounds = array<i64: 256, 128>}]} {
    %c0_i32 = arith.constant 0 : i32
    %0 = arith.cmpi eq, %arg2, %c0_i32 : i32
    %1 = arith.extui %0 : i1 to i32
    %c0_i32_0 = arith.constant 0 : i32
    %2 = arith.cmpi ne, %1, %c0_i32_0 : i32
    scf.if %2 {
      %c0_8 = arith.constant 0 : index
      %c0_9 = arith.constant 0 : index
      %9 = vector.load %arg5[%c0_8, %c0_9] : memref<1x128xf32, #tpu.memory_space<vmem>>, vector<1x128xf32>
      %10 = vector.shape_cast %9 : vector<1x128xf32> to vector<1x128xf32>
      %11 = vector.broadcast %10 : vector<1x128xf32> to vector<256x128xf32>
      %c0_10 = arith.constant 0 : index
      %c0_11 = arith.constant 0 : index
      %12 = vector.load %arg6[%c0_10, %c0_11] : memref<256x128xf32, #tpu.memory_space<vmem>>, vector<256x128xf32>
      tpu.vector_store %arg6[%c0_10, %c0_11], %11 {strides = array<i32>} : memref<256x128xf32, #tpu.memory_space<vmem>>, vector<256x128xf32>,
    } else {
    }
    %c0 = arith.constant 0 : index
    %c0_1 = arith.constant 0 : index
    %3 = vector.load %arg6[%c0, %c0_1] : memref<256x128xf32, #tpu.memory_space<vmem>>, vector<256x128xf32>
    %c0_2 = arith.constant 0 : index
    %c0_3 = arith.constant 0 : index
    %4 = vector.load %arg3[%c0_2, %c0_3] : memref<256x256xbf16, #tpu.memory_space<vmem>>, vector<256x256xbf16>
    %c0_4 = arith.constant 0 : index
    %c0_5 = arith.constant 0 : index
    %5 = vector.load %arg4[%c0_4, %c0_5] : memref<256x128xbf16, #tpu.memory_space<vmem>>, vector<256x128xbf16>
    %cst = arith.constant dense<0.000000e+00> : vector<256x128xf32>
    %6 = tpu.matmul %4, %5, %cst {dimension_numbers = #tpu.dot_dimension_numbers<[1], [0], [0], [1], [0, 0, 1, 1], [], []>} : vector<256x256xbf16>, vector<256x128xbf16>, vector<256x128xf32> -> vector<256x128xf32>
    %7 = arith.addf %3, %6 : vector<256x128xf32>
    %c0_6 = arith.constant 0 : index
    %c0_7 = arith.constant 0 : index
    %8 = vector.load %arg6[%c0_6, %c0_7] : memref<256x128xf32, #tpu.memory_space<vmem>>, vector<256x128xf32>
    tpu.vector_store %arg6[%c0_6, %c0_7], %7 {strides = array<i32>} : memref<256x128xf32, #tpu.memory_space<vmem>>, vector<256x128xf32>,
    return
  }
  func.func @transform_0(%arg0: i32, %arg1: i32, %arg2: i32) -> (i32, i32) {
    %c0_i32 = arith.constant 0 : i32
    return %arg0, %arg2 : i32, i32
  }
  func.func @transform_1(%arg0: i32, %arg1: i32, %arg2: i32) -> (i32, i32) {
    %c0_i32 = arith.constant 0 : i32
    return %arg2, %arg1 : i32, i32
  }
  func.func @transform_2(%arg0: i32, %arg1: i32, %arg2: i32) -> (i32, i32) {
    %c0_i32 = arith.constant 0 : i32
    %c0_i32_0 = arith.constant 0 : i32
    return %c0_i32, %arg1 : i32, i32
  }
  func.func @transform_3(%arg0: i32, %arg1: i32, %arg2: i32) -> (i32, i32) {
    %c0_i32 = arith.constant 0 : i32
    return %arg0, %arg1 : i32, i32
  }
}

module attributes {stable_mosaic.version = 11 : i64} {
  func.func @_instnorm_kernel(%arg0: i32, %arg1: memref<8x4096xf32, #tpu.memory_space<vmem>>, %arg2: memref<8x4096xf32, #tpu.memory_space<vmem>>) attributes {dimension_semantics = [#tpu.dimension_semantics<parallel>], iteration_bounds = array<i64: 1>, scalar_prefetch = 0 : i64, scratch_operands = 0 : i64, tpu.core_type = #tpu.core_type<tc>, window_params = [{transform_indices = @transform_0, window_bounds = array<i64: 8, 4096>}, {transform_indices = @transform_1, window_bounds = array<i64: 8, 4096>}]} {
    %c0 = arith.constant 0 : index
    %c0_0 = arith.constant 0 : index
    %0 = vector.load %arg1[%c0, %c0_0] : memref<8x4096xf32, #tpu.memory_space<vmem>>, vector<8x4096xf32>
    %cst = arith.constant dense<0.000000e+00> : vector<8xf32>
    %1 = vector.multi_reduction <add>, %0, %cst [1] : vector<8x4096xf32> to vector<8xf32>
    %2 = vector.shape_cast %1 : vector<8xf32> to vector<8x1xf32>
    %cst_1 = arith.constant 4.096000e+03 : f32
    %3 = vector.broadcast %cst_1 : f32 to vector<8x1xf32>
    %4 = arith.divf %2, %3 : vector<8x1xf32>
    %5 = vector.broadcast %4 : vector<8x1xf32> to vector<8x4096xf32>
    %6 = arith.subf %0, %5 : vector<8x4096xf32>
    %7 = arith.mulf %6, %6 : vector<8x4096xf32>
    %cst_2 = arith.constant dense<0.000000e+00> : vector<8xf32>
    %8 = vector.multi_reduction <add>, %7, %cst_2 [1] : vector<8x4096xf32> to vector<8xf32>
    %9 = vector.shape_cast %8 : vector<8xf32> to vector<8x1xf32>
    %cst_3 = arith.constant 4.096000e+03 : f32
    %10 = vector.broadcast %cst_3 : f32 to vector<8x1xf32>
    %11 = arith.divf %9, %10 : vector<8x1xf32>
    %12 = vector.broadcast %4 : vector<8x1xf32> to vector<8x4096xf32>
    %13 = arith.subf %0, %12 : vector<8x4096xf32>
    %cst_4 = arith.constant 9.99999974E-6 : f32
    %14 = vector.broadcast %cst_4 : f32 to vector<8x1xf32>
    %15 = arith.addf %11, %14 : vector<8x1xf32>
    %16 = math.rsqrt %15 : vector<8x1xf32>
    %17 = vector.broadcast %16 : vector<8x1xf32> to vector<8x4096xf32>
    %18 = arith.mulf %13, %17 : vector<8x4096xf32>
    %cst_5 = arith.constant 0.000000e+00 : f32
    %19 = vector.broadcast %cst_5 : f32 to vector<8x4096xf32>
    %20 = arith.maximumf %18, %19 : vector<8x4096xf32>
    %c0_6 = arith.constant 0 : index
    %c0_7 = arith.constant 0 : index
    %21 = vector.load %arg2[%c0_6, %c0_7] : memref<8x4096xf32, #tpu.memory_space<vmem>>, vector<8x4096xf32>
    tpu.vector_store %arg2[%c0_6, %c0_7], %20 {strides = array<i32>} : memref<8x4096xf32, #tpu.memory_space<vmem>>, vector<8x4096xf32>,
    return
  }
  func.func @transform_0(%arg0: i32) -> (i32, i32) {
    %c0_i32 = arith.constant 0 : i32
    %c0_i32_0 = arith.constant 0 : i32
    return %arg0, %c0_i32 : i32, i32
  }
  func.func @transform_1(%arg0: i32) -> (i32, i32) {
    %c0_i32 = arith.constant 0 : i32
    %c0_i32_0 = arith.constant 0 : i32
    return %arg0, %c0_i32 : i32, i32
  }
}

module attributes {stable_mosaic.version = 11 : i64} {
  func.func @_matmul_kernel(%arg0: i32, %arg1: i32, %arg2: i32, %arg3: memref<256x128xbf16, #tpu.memory_space<vmem>>, %arg4: memref<128x128xbf16, #tpu.memory_space<vmem>>, %arg5: memref<1x128xf32, #tpu.memory_space<vmem>>, %arg6: memref<256x128xf32, #tpu.memory_space<vmem>>) attributes {dimension_semantics = [#tpu.dimension_semantics<parallel>, #tpu.dimension_semantics<parallel>, #tpu.dimension_semantics<arbitrary>], iteration_bounds = array<i64: 32, 1, 1>, scalar_prefetch = 0 : i64, scratch_operands = 0 : i64, tpu.core_type = #tpu.core_type<tc>, window_params = [{transform_indices = @transform_0, window_bounds = array<i64: 256, 128>}, {transform_indices = @transform_1, window_bounds = array<i64: 128, 128>}, {transform_indices = @transform_2, window_bounds = array<i64: 1, 128>}, {transform_indices = @transform_3, window_bounds = array<i64: 256, 128>}]} {
    %c0_i32 = arith.constant 0 : i32
    %0 = arith.cmpi eq, %arg2, %c0_i32 : i32
    %1 = arith.extui %0 : i1 to i32
    %c0_i32_0 = arith.constant 0 : i32
    %2 = arith.cmpi ne, %1, %c0_i32_0 : i32
    scf.if %2 {
      %c0_8 = arith.constant 0 : index
      %c0_9 = arith.constant 0 : index
      %9 = vector.load %arg5[%c0_8, %c0_9] : memref<1x128xf32, #tpu.memory_space<vmem>>, vector<1x128xf32>
      %10 = vector.shape_cast %9 : vector<1x128xf32> to vector<1x128xf32>
      %11 = vector.broadcast %10 : vector<1x128xf32> to vector<256x128xf32>
      %c0_10 = arith.constant 0 : index
      %c0_11 = arith.constant 0 : index
      %12 = vector.load %arg6[%c0_10, %c0_11] : memref<256x128xf32, #tpu.memory_space<vmem>>, vector<256x128xf32>
      tpu.vector_store %arg6[%c0_10, %c0_11], %11 {strides = array<i32>} : memref<256x128xf32, #tpu.memory_space<vmem>>, vector<256x128xf32>,
    } else {
    }
    %c0 = arith.constant 0 : index
    %c0_1 = arith.constant 0 : index
    %3 = vector.load %arg6[%c0, %c0_1] : memref<256x128xf32, #tpu.memory_space<vmem>>, vector<256x128xf32>
    %c0_2 = arith.constant 0 : index
    %c0_3 = arith.constant 0 : index
    %4 = vector.load %arg3[%c0_2, %c0_3] : memref<256x128xbf16, #tpu.memory_space<vmem>>, vector<256x128xbf16>
    %c0_4 = arith.constant 0 : index
    %c0_5 = arith.constant 0 : index
    %5 = vector.load %arg4[%c0_4, %c0_5] : memref<128x128xbf16, #tpu.memory_space<vmem>>, vector<128x128xbf16>
    %cst = arith.constant dense<0.000000e+00> : vector<256x128xf32>
    %6 = tpu.matmul %4, %5, %cst {dimension_numbers = #tpu.dot_dimension_numbers<[1], [0], [0], [1], [0, 0, 1, 1], [], []>} : vector<256x128xbf16>, vector<128x128xbf16>, vector<256x128xf32> -> vector<256x128xf32>
    %7 = arith.addf %3, %6 : vector<256x128xf32>
    %c0_6 = arith.constant 0 : index
    %c0_7 = arith.constant 0 : index
    %8 = vector.load %arg6[%c0_6, %c0_7] : memref<256x128xf32, #tpu.memory_space<vmem>>, vector<256x128xf32>
    tpu.vector_store %arg6[%c0_6, %c0_7], %7 {strides = array<i32>} : memref<256x128xf32, #tpu.memory_space<vmem>>, vector<256x128xf32>,
    return
  }
  func.func @transform_0(%arg0: i32, %arg1: i32, %arg2: i32) -> (i32, i32) {
    %c0_i32 = arith.constant 0 : i32
    return %arg0, %arg2 : i32, i32
  }
  func.func @transform_1(%arg0: i32, %arg1: i32, %arg2: i32) -> (i32, i32) {
    %c0_i32 = arith.constant 0 : i32
    return %arg2, %arg1 : i32, i32
  }
  func.func @transform_2(%arg0: i32, %arg1: i32, %arg2: i32) -> (i32, i32) {
    %c0_i32 = arith.constant 0 : i32
    %c0_i32_0 = arith.constant 0 : i32
    return %c0_i32, %arg1 : i32, i32
  }
  func.func @transform_3(%arg0: i32, %arg1: i32, %arg2: i32) -> (i32, i32) {
    %c0_i32 = arith.constant 0 : i32
    return %arg0, %arg1 : i32, i32
  }
}

</mosaic_0001>

<llo_original>
// kernel: mlsp.34
$region0: #{mlsp.34}
  #allocation0 [shape = 'u32[]', space=smem, size = 0x4, offset = 0x4, fixed_abs, tag = 'smem constant byte address 0x4 - core index']
  #allocation1 [shape = 'u32[144,128]{1,0:T(1,128)}', space=vmem, size = 0x12000, scoped, tag = 'internal scratch']
  %s0 = inlined_call_operand.vmem [shape: f32[32,256], index: 0, kind: input, shape index: {}]
  %s1 = inlined_call_operand.vmem [shape: f32[32,256], index: 1, kind: output, shape index: {}]
  %s2 = sld [smem:[#allocation0]]
  $region37: #{mlsp.34} parent=0
    _
  %s4 = ssub.s32 1, %s2
  %s5 = scalar_select 0, %s4, %s2
  loop: start=0, step=1, limit=6
  $region2: #{mlsp.34} parent=0 // loop_pre_header
    _
  $region3: #{mlsp.34} parent=0 // loop_header
    %s7 = sphi 0, %s11
    %p8 = scmp.ge.s32.totalorder %s7, 6
    %s17 = sphi 0, %s19
    %s20 = sphi 0, %s17
    %s21 = sphi 0, %s20
    %s37 = sphi 0, %s21
    %s43 = sphi 0, %s45
    %s46 = sphi 0, %s43
    %s47 = sphi 0, %s46
    %s63 = sphi 0, %s47
  $region4: #{mlsp.34} parent=0 // loop_header_branch
    %10 = sbr.rel (%p8) target = $region8
  $region5: #{mlsp.34} parent=0 // loop_body
    %s12 = ssub.s32 %s7, 1
    %s13 = ssub.s32 %s7, 2
    %s14 = sadd.s32 %s7, 1
    %s15 = ssub.s32 %s7, %s14
    %p16 = scmp.eq.s32.totalorder %s15, 0
    %s18 = sadd.s32 %s17, 1
    %s19 = scalar_select %p16, %s17, %s18
    %p22 = pneg %p16
    %p23 = scmp.eq.s32.totalorder %s7, 3
    %p24 = por %p22, %p23
    %p25 = scmp.ne.s32.totalorder %s17, %s20
    %p26 = scmp.eq.s32.totalorder %s7, 0
    %p27 = por %p25, %p26
    %p28 = scmp.ne.s32.totalorder %s17, %s20
    %p29 = scmp.eq.s32.totalorder %s12, 3
    %p30 = por %p28, %p29
    %p31 = scmp.ne.s32.totalorder %s20, %s21
    %p32 = scmp.eq.s32.totalorder %s12, 0
    %p33 = por %p31, %p32
    %p34 = scmp.ne.s32.totalorder %s20, %s21
    %p35 = scmp.eq.s32.totalorder %s13, 3
    %p36 = por %p34, %p35
    %p38 = scmp.ne.s32.totalorder %s21, %s37
    %p39 = scmp.eq.s32.totalorder %s13, 0
    %p40 = por %p38, %p39
    %s41 = ssub.s32 %s7, %s14
    %p42 = scmp.eq.s32.totalorder %s41, 0
    %s44 = sadd.s32 %s43, 1
    %s45 = scalar_select %p42, %s43, %s44
    %p48 = pneg %p42
    %p49 = scmp.eq.s32.totalorder %s7, 3
    %p50 = por %p48, %p49
    %p51 = scmp.ne.s32.totalorder %s43, %s46
    %p52 = scmp.eq.s32.totalorder %s7, 0
    %p53 = por %p51, %p52
    %p54 = scmp.ne.s32.totalorder %s43, %s46
    %p55 = scmp.eq.s32.totalorder %s12, 3
    %p56 = por %p54, %p55
    %p57 = scmp.ne.s32.totalorder %s46, %s47
    %p58 = scmp.eq.s32.totalorder %s12, 0
    %p59 = por %p57, %p58
    %p60 = scmp.ne.s32.totalorder %s46, %s47
    %p61 = scmp.eq.s32.totalorder %s13, 3
    %p62 = por %p60, %p61
    %p64 = scmp.ne.s32.totalorder %s47, %s63
    %p65 = scmp.eq.s32.totalorder %s13, 0
    %p66 = por %p64, %p65
    %p67 = scmp.le.s32.totalorder 1, %s7
    %p68 = scmp.lt.s32.totalorder %s7, 5
    %p69 = pnand %p67, %p68
    %p70 = pneg %p69
    // Predicated region
    $region9: #{mlsp.34} parent=5 // pred_check
      _
    $region10: #{mlsp.34} parent=5 // pred_check_branch
      %72 = sbr.rel (%p69) target = $region12
    $region11: #{mlsp.34} parent=5 // pred_region
      %s73 = ssub.s32 %s7, 1
    $region12: #{mlsp.34} parent=5 // pred_fallthru
      _
    %p74 = scmp.lt.s32.totalorder %s7, 4
    // Predicated region
    $region13: #{mlsp.34} parent=5 // pred_check
      %p75 = pneg %p74
    $region14: #{mlsp.34} parent=5 // pred_check_branch
      %77 = sbr.rel (%p75) target = $region16
    $region15: #{mlsp.34} parent=5 // pred_region
      // Predicated region
      $region17: #{mlsp.34} parent=15 // pred_check
        %p78 = pneg %p27
      $region18: #{mlsp.34} parent=15 // pred_check_branch
        %80 = sbr.rel (%p78) target = $region20
      $region19: #{mlsp.34} parent=15 // pred_region
        %p81 = scmp.lt.s32.totalorder %s7, 3
        %s82 = scalar_select %p81, %s7, 3
        %s83 = smul.addr %s82, 2
        %s84 = smul.addr %s83, 8
        %s85 = scalar_lea.vmem %s0, %s84
      $region20: #{mlsp.34} parent=15 // pred_fallthru
        _
    $region16: #{mlsp.34} parent=5 // pred_fallthru
      _
    %p86 = scmp.le.s32.totalorder 1, %s7
    %p87 = scmp.lt.s32.totalorder %s7, 5
    %p88 = pnand %p86, %p87
    %p89 = pneg %p88
    // Predicated region
    $region21: #{mlsp.34} parent=5 // pred_check
      _
    $region22: #{mlsp.34} parent=5 // pred_check_branch
      %91 = sbr.rel (%p88) target = $region24
    $region23: #{mlsp.34} parent=5 // pred_region
      %s92 = ssub.s32 %s7, 1
      %p93 = scmp.lt.s32.totalorder %s12, 3
      %s94 = scalar_select %p93, %s12, 3
      %s95 = smul.addr %s94, 2
      %s96 = smul.addr %s95, 8
      %s97 = scalar_lea.vmem %s0, %s96
      %p98 = pneg %p33
      %p99 = pneg %p30
      %p100 = pneg %p59
      %p101 = pneg %p56
      %p102 = scmp.lt.s32.totalorder %s12, 3
      %s103 = scalar_select %p102, %s12, 3
      %s104 = smul.addr %s103, 2
      %s105 = smul.addr %s104, 8
      %s106 = scalar_lea.vmem %s1, %s105
      %p107 = scmp.lt.s32.totalorder %s12, 3
      %s108 = scalar_select %p107, %s12, 3
      %s109 = smul.addr %s108, 2
      %s110 = smul.addr %s109, 8
      %s111 = scalar_lea.vmem %s0, %s110
      %p112 = scmp.lt.s32.totalorder %s12, 3
      %s113 = scalar_select %p112, %s12, 3
      %s114 = smul.addr %s113, 2
      %s115 = smul.addr %s114, 8
      %s116 = scalar_lea.vmem %s1, %s115
      %v117 = vld [vmem:[%s111] sm:$0xff]
      %v118 = vld [vmem:[%s111 + $0x8] sm:$0xff]
      %v119 = vadd.f32 %v117, %v118
      %120 = vadd.xlane.f32.xlu0 %v119
      %v121 = vpop.xlane.xlu0 %120
      %v122 = vrcp.pop 256.0
      %v123 = vmul.f32 %v121, %v122
      %v124 = vsub.f32 %v117, %v123
      %v125 = vsub.f32 %v118, %v123
      %v126 = vmul.f32 %v124, %v124
      %v127 = vmul.f32 %v125, %v125
      %v128 = vadd.f32 %v126, %v127
      %129 = vadd.xlane.f32.xlu0 %v128
      %v130 = vpop.xlane.xlu0 %129
      %v131 = vmul.f32 %v130, %v122
      %v132 = vadd.f32 %v131, 1e-05
      %v133 = vrsqrt.pop %v132
      %v134 = vmul.f32 %v124, %v133
      %v135 = vmul.f32 %v125, %v133
      %v136 = vmax.f32 %v134, 0.0
      %v137 = vmax.f32 %v135, 0.0
      %138 = vst [vmem:[%s116] sm:$0xff] %v136
      %139 = vst [vmem:[%s116 + $0x8] sm:$0xff] %v137
      %p140 = scmp.lt.s32.totalorder %s12, 3
      %s141 = scalar_select %p140, %s12, 3
      %s142 = smul.addr %s141, 2
      %s143 = smul.addr %s142, 8
      %s144 = scalar_lea.vmem %s1, %s143
      // Predicated region
      $region25: #{mlsp.34} parent=23 // pred_check
        %p145 = pneg %p56
      $region26: #{mlsp.34} parent=23 // pred_check_branch
        %147 = sbr.rel (%p145) target = $region28
      $region27: #{mlsp.34} parent=23 // pred_region
        _
      $region28: #{mlsp.34} parent=23 // pred_fallthru
        _
    $region24: #{mlsp.34} parent=5 // pred_fallthru
      _
    %p148 = scmp.le.s32.totalorder 2, %s7
    // Predicated region
    $region29: #{mlsp.34} parent=5 // pred_check
      %p149 = pneg %p148
    $region30: #{mlsp.34} parent=5 // pred_check_branch
      %151 = sbr.rel (%p149) target = $region32
    $region31: #{mlsp.34} parent=5 // pred_region
      %s152 = ssub.s32 %s7, 2
      // Predicated region
      $region33: #{mlsp.34} parent=31 // pred_check
        %p153 = pneg %p62
      $region34: #{mlsp.34} parent=31 // pred_check_branch
        %155 = sbr.rel (%p153) target = $region36
      $region35: #{mlsp.34} parent=31 // pred_region
        %p156 = scmp.lt.s32.totalorder %s13, 3
        %s157 = scalar_select %p156, %s13, 3
        %s158 = smul.addr %s157, 2
        %s159 = smul.addr %s158, 8
        %s160 = scalar_lea.vmem %s1, %s159
      $region36: #{mlsp.34} parent=31 // pred_fallthru
        _
    $region32: #{mlsp.34} parent=5 // pred_fallthru
      _
  $region6: #{mlsp.34} parent=0 // loop_footer
    %s11 = sadd.s32 1, %s7
  $region7: #{mlsp.34} parent=0 // loop_footer_branch
    %6 = sbr.rel target = $region3
  $region8: #{mlsp.34} parent=0 // loop_exit
    _

// kernel: mlsp.33
$region0: #{mlsp.33}
  #allocation0 [shape = 'u32[]', space=smem, size = 0x4, offset = 0x4, fixed_abs, tag = 'smem constant byte address 0x4 - core index']
  #allocation1 [shape = 'u32[144,128]{1,0:T(1,128)}', space=vmem, size = 0x12000, scoped, tag = 'internal scratch']
  %s0 = inlined_call_operand.vmem [shape: bf16[512,128], index: 0, kind: input, shape index: {}]
  %s1 = inlined_call_operand.vmem [shape: bf16[128,128], index: 1, kind: input, shape index: {}]
  %s2 = inlined_call_operand.vmem [shape: f32[1,128], index: 2, kind: input, shape index: {}]
  %s3 = inlined_call_operand.vmem [shape: f32[512,128], index: 3, kind: output, shape index: {}]
  %s4 = sld [smem:[#allocation0]]
  $region49: #{mlsp.33} parent=0
    _
  %s6 = ssub.s32 1, %s4
  %s7 = scalar_select 0, %s6, %s4
  loop: start=0, step=1, limit=4
  $region2: #{mlsp.33} parent=0 // loop_pre_header
    _
  $region3: #{mlsp.33} parent=0 // loop_header
    %s9 = sphi 0, %s13
    %p10 = scmp.ge.s32.totalorder %s9, 4
    %s16 = sphi 0, %s35
    %s17 = sphi 0, %s31
    %s18 = sphi 0, %s27
    %s19 = sphi 0, %s16
    %s20 = sphi 0, %s17
    %s21 = sphi 0, %s18
    %s22 = sphi 0, %s19
    %s23 = sphi 0, %s20
    %s24 = sphi 0, %s21
    %s40 = sphi 0, %s42
    %s43 = sphi 0, %s40
    %s44 = sphi 0, %s43
    %s60 = sphi 0, %s44
    %s68 = sphi 0, %s70
    %s71 = sphi 0, %s68
    %s72 = sphi 0, %s71
    %s88 = sphi 0, %s72
    %s94 = sphi 0, %s96
    %s97 = sphi 0, %s94
    %s98 = sphi 0, %s97
    %s114 = sphi 0, %s98
    %s122 = sphi 0, %s124
    %s125 = sphi 0, %s122
    %s126 = sphi 0, %s125
    %s142 = sphi 0, %s126
  $region4: #{mlsp.33} parent=0 // loop_header_branch
    %12 = sbr.rel (%p10) target = $region8
  $region5: #{mlsp.33} parent=0 // loop_body
    %s14 = ssub.s32 %s9, 1
    %s15 = ssub.s32 %s9, 2
    %s25 = sadd.s32 1, %s18
    %p26 = scmp.ge.s32.totalorder %s25, 1
    %s27 = scalar_select %p26, 0, %s25
    %s28 = sadd.s32 1, %s17
    %s29 = scalar_select %p26, %s28, %s17
    %p30 = scmp.ge.s32.totalorder %s29, 1
    %s31 = scalar_select %p30, 0, %s29
    %s32 = sadd.s32 1, %s16
    %s33 = scalar_select %p30, %s32, %s16
    %p34 = scmp.ge.s32.totalorder %s33, 2
    %s35 = scalar_select %p34, 0, %s33
    %s36 = ssub.s32 %s16, %s35
    %s37 = ssub.s32 %s18, %s27
    %s38 = sor.u32 %s36, %s37
    %p39 = scmp.eq.s32.totalorder %s38, 0
    %s41 = sadd.s32 %s40, 1
    %s42 = scalar_select %p39, %s40, %s41
    %p45 = pneg %p39
    %p46 = scmp.eq.s32.totalorder %s9, 1
    %p47 = por %p45, %p46
    %p48 = scmp.ne.s32.totalorder %s40, %s43
    %p49 = scmp.eq.s32.totalorder %s9, 0
    %p50 = por %p48, %p49
    %p51 = scmp.ne.s32.totalorder %s40, %s43
    %p52 = scmp.eq.s32.totalorder %s14, 1
    %p53 = por %p51, %p52
    %p54 = scmp.ne.s32.totalorder %s43, %s44
    %p55 = scmp.eq.s32.totalorder %s14, 0
    %p56 = por %p54, %p55
    %p57 = scmp.ne.s32.totalorder %s43, %s44
    %p58 = scmp.eq.s32.totalorder %s15, 1
    %p59 = por %p57, %p58
    %p61 = scmp.ne.s32.totalorder %s44, %s60
    %p62 = scmp.eq.s32.totalorder %s15, 0
    %p63 = por %p61, %p62
    %s64 = ssub.s32 %s18, %s27
    %s65 = ssub.s32 %s17, %s31
    %s66 = sor.u32 %s64, %s65
    %p67 = scmp.eq.s32.totalorder %s66, 0
    %s69 = sadd.s32 %s68, 1
    %s70 = scalar_select %p67, %s68, %s69
    %p73 = pneg %p67
    %p74 = scmp.eq.s32.totalorder %s9, 1
    %p75 = por %p73, %p74
    %p76 = scmp.ne.s32.totalorder %s68, %s71
    %p77 = scmp.eq.s32.totalorder %s9, 0
    %p78 = por %p76, %p77
    %p79 = scmp.ne.s32.totalorder %s68, %s71
    %p80 = scmp.eq.s32.totalorder %s14, 1
    %p81 = por %p79, %p80
    %p82 = scmp.ne.s32.totalorder %s71, %s72
    %p83 = scmp.eq.s32.totalorder %s14, 0
    %p84 = por %p82, %p83
    %p85 = scmp.ne.s32.totalorder %s71, %s72
    %p86 = scmp.eq.s32.totalorder %s15, 1
    %p87 = por %p85, %p86
    %p89 = scmp.ne.s32.totalorder %s72, %s88
    %p90 = scmp.eq.s32.totalorder %s15, 0
    %p91 = por %p89, %p90
    %s92 = ssub.s32 %s17, %s31
    %p93 = scmp.eq.s32.totalorder %s92, 0
    %s95 = sadd.s32 %s94, 1
    %s96 = scalar_select %p93, %s94, %s95
    %p99 = pneg %p93
    %p100 = scmp.eq.s32.totalorder %s9, 1
    %p101 = por %p99, %p100
    %p102 = scmp.ne.s32.totalorder %s94, %s97
    %p103 = scmp.eq.s32.totalorder %s9, 0
    %p104 = por %p102, %p103
    %p105 = scmp.ne.s32.totalorder %s94, %s97
    %p106 = scmp.eq.s32.totalorder %s14, 1
    %p107 = por %p105, %p106
    %p108 = scmp.ne.s32.totalorder %s97, %s98
    %p109 = scmp.eq.s32.totalorder %s14, 0
    %p110 = por %p108, %p109
    %p111 = scmp.ne.s32.totalorder %s97, %s98
    %p112 = scmp.eq.s32.totalorder %s15, 1
    %p113 = por %p111, %p112
    %p115 = scmp.ne.s32.totalorder %s98, %s114
    %p116 = scmp.eq.s32.totalorder %s15, 0
    %p117 = por %p115, %p116
    %s118 = ssub.s32 %s16, %s35
    %s119 = ssub.s32 %s17, %s31
    %s120 = sor.u32 %s118, %s119
    %p121 = scmp.eq.s32.totalorder %s120, 0
    %s123 = sadd.s32 %s122, 1
    %s124 = scalar_select %p121, %s122, %s123
    %p127 = pneg %p121
    %p128 = scmp.eq.s32.totalorder %s9, 1
    %p129 = por %p127, %p128
    %p130 = scmp.ne.s32.totalorder %s122, %s125
    %p131 = scmp.eq.s32.totalorder %s9, 0
    %p132 = por %p130, %p131
    %p133 = scmp.ne.s32.totalorder %s122, %s125
    %p134 = scmp.eq.s32.totalorder %s14, 1
    %p135 = por %p133, %p134
    %p136 = scmp.ne.s32.totalorder %s125, %s126
    %p137 = scmp.eq.s32.totalorder %s14, 0
    %p138 = por %p136, %p137
    %p139 = scmp.ne.s32.totalorder %s125, %s126
    %p140 = scmp.eq.s32.totalorder %s15, 1
    %p141 = por %p139, %p140
    %p143 = scmp.ne.s32.totalorder %s126, %s142
    %p144 = scmp.eq.s32.totalorder %s15, 0
    %p145 = por %p143, %p144
    %p146 = scmp.le.s32.totalorder 1, %s9
    %p147 = scmp.lt.s32.totalorder %s9, 3
    %p148 = pnand %p146, %p147
    %p149 = pneg %p148
    // Predicated region
    $region9: #{mlsp.33} parent=5 // pred_check
      _
    $region10: #{mlsp.33} parent=5 // pred_check_branch
      %151 = sbr.rel (%p148) target = $region12
    $region11: #{mlsp.33} parent=5 // pred_region
      %s152 = ssub.s32 %s9, 1
      // Predicated region
      $region13: #{mlsp.33} parent=11 // pred_check
        %p153 = pneg %p84
      $region14: #{mlsp.33} parent=11 // pred_check_branch
        %155 = sbr.rel (%p153) target = $region16
      $region15: #{mlsp.33} parent=11 // pred_region
        %s156 = smul.u32 16, %s21
        %p157 = scmp.lt.s32.totalorder %s156, 15
        %s158 = scalar_select %p157, %s156, 15
        %p159 = scmp.lt.s32.totalorder %s20, 0
        %s160 = scalar_select %p159, %s20, 0
        %s161 = sadd.s32 %s160, %s158
        %s162 = smul.addr %s161, 4
        %s163 = scalar_lea.vmem %s1, %s162
        %s164 = smul.u32 16, %s21
      $region16: #{mlsp.33} parent=11 // pred_fallthru
        _
      // Predicated region
      $region17: #{mlsp.33} parent=11 // pred_check
        %p165 = pneg %p110
      $region18: #{mlsp.33} parent=11 // pred_check_branch
        %167 = sbr.rel (%p165) target = $region20
      $region19: #{mlsp.33} parent=11 // pred_region
        %p168 = scmp.lt.s32.totalorder %s20, 0
        %s169 = scalar_select %p168, %s20, 0
        %s170 = scalar_lea.vmem %s2, %s169
      $region20: #{mlsp.33} parent=11 // pred_fallthru
        _
    $region12: #{mlsp.33} parent=5 // pred_fallthru
      _
    %p171 = scmp.lt.s32.totalorder %s9, 2
    // Predicated region
    $region21: #{mlsp.33} parent=5 // pred_check
      %p172 = pneg %p171
    $region22: #{mlsp.33} parent=5 // pred_check_branch
      %174 = sbr.rel (%p172) target = $region24
    $region23: #{mlsp.33} parent=5 // pred_region
      // Predicated region
      $region25: #{mlsp.33} parent=23 // pred_check
        %p175 = pneg %p50
      $region26: #{mlsp.33} parent=23 // pred_check_branch
        %177 = sbr.rel (%p175) target = $region28
      $region27: #{mlsp.33} parent=23 // pred_region
        %s178 = smul.u32 32, %s16
        %p179 = scmp.lt.s32.totalorder %s178, 63
        %s180 = scalar_select %p179, %s178, 63
        %p181 = scmp.lt.s32.totalorder %s18, 0
        %s182 = scalar_select %p181, %s18, 0
        %s183 = sadd.s32 %s182, %s180
        %s184 = smul.addr %s183, 4
        %s185 = scalar_lea.vmem %s0, %s184
        %s186 = smul.u32 32, %s16
      $region28: #{mlsp.33} parent=23 // pred_fallthru
        _
    $region24: #{mlsp.33} parent=5 // pred_fallthru
      _
    %p187 = scmp.le.s32.totalorder 1, %s9
    %p188 = scmp.lt.s32.totalorder %s9, 3
    %p189 = pnand %p187, %p188
    %p190 = pneg %p189
    // Predicated region
    $region29: #{mlsp.33} parent=5 // pred_check
      _
    $region30: #{mlsp.33} parent=5 // pred_check_branch
      %192 = sbr.rel (%p189) target = $region32
    $region31: #{mlsp.33} parent=5 // pred_region
      %s193 = ssub.s32 %s9, 1
      %s194 = smul.u32 32, %s19
      %p195 = scmp.lt.s32.totalorder %s194, 63
      %s196 = scalar_select %p195, %s194, 63
      %p197 = scmp.lt.s32.totalorder %s21, 0
      %s198 = scalar_select %p197, %s21, 0
      %s199 = sadd.s32 %s198, %s196
      %s200 = smul.addr %s199, 4
      %s201 = scalar_lea.vmem %s0, %s200
      %p202 = pneg %p56
      %p203 = pneg %p53
      %s204 = smul.u32 16, %s21
      %p205 = scmp.lt.s32.totalorder %s204, 15
      %s206 = scalar_select %p205, %s204, 15
      %p207 = scmp.lt.s32.totalorder %s20, 0
      %s208 = scalar_select %p207, %s20, 0
      %s209 = sadd.s32 %s208, %s206
      %s210 = smul.addr %s209, 4
      %s211 = scalar_lea.vmem %s1, %s210
      %p212 = pneg %p84
      %p213 = pneg %p81
      %p214 = scmp.lt.s32.totalorder %s20, 0
      %s215 = scalar_select %p214, %s20, 0
      %s216 = scalar_lea.vmem %s2, %s215
      %p217 = pneg %p110
      %p218 = pneg %p107
      %p219 = pneg %p138
      %p220 = pneg %p135
      %s221 = smul.u32 32, %s19
      %p222 = scmp.lt.s32.totalorder %s221, 63
      %s223 = scalar_select %p222, %s221, 63
      %p224 = scmp.lt.s32.totalorder %s20, 0
      %s225 = scalar_select %p224, %s20, 0
      %s226 = sadd.s32 %s225, %s223
      %s227 = smul.addr %s226, 8
      %s228 = scalar_lea.vmem %s3, %s227
      %s229 = smul.u32 32, %s19
      %p230 = scmp.lt.s32.totalorder %s229, 63
      %s231 = scalar_select %p230, %s229, 63
      %p232 = scmp.lt.s32.totalorder %s21, 0
      %s233 = scalar_select %p232, %s21, 0
      %s234 = sadd.s32 %s233, %s231
      %s235 = smul.addr %s234, 4
      %s236 = scalar_lea.vmem %s0, %s235
      %s237 = smul.u32 32, %s19
      %s238 = smul.u32 16, %s21
      %p239 = scmp.lt.s32.totalorder %s238, 15
      %s240 = scalar_select %p239, %s238, 15
      %p241 = scmp.lt.s32.totalorder %s20, 0
      %s242 = scalar_select %p241, %s20, 0
      %s243 = sadd.s32 %s242, %s240
      %s244 = smul.addr %s243, 4
      %s245 = scalar_lea.vmem %s1, %s244
      %s246 = smul.u32 16, %s21
      %p247 = scmp.lt.s32.totalorder %s20, 0
      %s248 = scalar_select %p247, %s20, 0
      %s249 = scalar_lea.vmem %s2, %s248
      %s250 = smul.u32 32, %s19
      %p251 = scmp.lt.s32.totalorder %s250, 63
      %s252 = scalar_select %p251, %s250, 63
      %p253 = scmp.lt.s32.totalorder %s20, 0
      %s254 = scalar_select %p253, %s20, 0
      %s255 = sadd.s32 %s254, %s252
      %s256 = smul.addr %s255, 8
      %s257 = scalar_lea.vmem %s3, %s256
      %s258 = smul.u32 32, %s19
      %p260 = scmp.eq.s32.totalorder %s21, 0
      // Predicated region
      $region33: #{mlsp.33} parent=31 // pred_check
        %p261 = pneg %p260
      $region34: #{mlsp.33} parent=31 // pred_check_branch
        %263 = sbr.rel (%p261) target = $region36
      $region35: #{mlsp.33} parent=31 // pred_region
        %v264 = vld [vmem:[%s249] sm:$0x1]
        %v266 = vlaneseq
        %v267 = vshrl.u32 %v266, 7
        %v268 = vsub.s32 0, %v267
        %v269 = vrot.slane %v264, %v268
        %271 = vst [vmem:[%s257] sm:$0xff] %v269
        %272 = vst [vmem:[%s257 + $0x8] sm:$0xff] %v269
        %273 = vst [vmem:[%s257 + $0x10] sm:$0xff] %v269
        %274 = vst [vmem:[%s257 + $0x18] sm:$0xff] %v269
        %275 = vst [vmem:[%s257 + $0x20] sm:$0xff] %v269
        %276 = vst [vmem:[%s257 + $0x28] sm:$0xff] %v269
        %277 = vst [vmem:[%s257 + $0x30] sm:$0xff] %v269
        %278 = vst [vmem:[%s257 + $0x38] sm:$0xff] %v269
        %279 = vst [vmem:[%s257 + $0x40] sm:$0xff] %v269
        %280 = vst [vmem:[%s257 + $0x48] sm:$0xff] %v269
        %281 = vst [vmem:[%s257 + $0x50] sm:$0xff] %v269
        %282 = vst [vmem:[%s257 + $0x58] sm:$0xff] %v269
        %283 = vst [vmem:[%s257 + $0x60] sm:$0xff] %v269
        %284 = vst [vmem:[%s257 + $0x68] sm:$0xff] %v269
        %285 = vst [vmem:[%s257 + $0x70] sm:$0xff] %v269
        %286 = vst [vmem:[%s257 + $0x78] sm:$0xff] %v269
        %287 = vst [vmem:[%s257 + $0x80] sm:$0xff] %v269
        %288 = vst [vmem:[%s257 + $0x88] sm:$0xff] %v269
        %289 = vst [vmem:[%s257 + $0x90] sm:$0xff] %v269
        %290 = vst [vmem:[%s257 + $0x98] sm:$0xff] %v269
        %291 = vst [vmem:[%s257 + $0xa0] sm:$0xff] %v269
        %292 = vst [vmem:[%s257 + $0xa8] sm:$0xff] %v269
        %293 = vst [vmem:[%s257 + $0xb0] sm:$0xff] %v269
        %294 = vst [vmem:[%s257 + $0xb8] sm:$0xff] %v269
        %295 = vst [vmem:[%s257 + $0xc0] sm:$0xff] %v269
        %296 = vst [vmem:[%s257 + $0xc8] sm:$0xff] %v269
        %297 = vst [vmem:[%s257 + $0xd0] sm:$0xff] %v269
        %298 = vst [vmem:[%s257 + $0xd8] sm:$0xff] %v269
        %299 = vst [vmem:[%s257 + $0xe0] sm:$0xff] %v269
        %300 = vst [vmem:[%s257 + $0xe8] sm:$0xff] %v269
        %301 = vst [vmem:[%s257 + $0xf0] sm:$0xff] %v269
        %302 = vst [vmem:[%s257 + $0xf8] sm:$0xff] %v269
      $region36: #{mlsp.33} parent=31 // pred_fallthru
        _
      %v303 = vld [vmem:[%s257] sm:$0xff]
      %v304 = vld [vmem:[%s257 + $0x8] sm:$0xff]
      %v305 = vld [vmem:[%s257 + $0x10] sm:$0xff]
      %v306 = vld [vmem:[%s257 + $0x18] sm:$0xff]
      %v307 = vld [vmem:[%s257 + $0x20] sm:$0xff]
      %v308 = vld [vmem:[%s257 + $0x28] sm:$0xff]
      %v309 = vld [vmem:[%s257 + $0x30] sm:$0xff]
      %v310 = vld [vmem:[%s257 + $0x38] sm:$0xff]
      %v311 = vld [vmem:[%s257 + $0x40] sm:$0xff]
      %v312 = vld [vmem:[%s257 + $0x48] sm:$0xff]
      %v313 = vld [vmem:[%s257 + $0x50] sm:$0xff]
      %v314 = vld [vmem:[%s257 + $0x58] sm:$0xff]
      %v315 = vld [vmem:[%s257 + $0x60] sm:$0xff]
      %v316 = vld [vmem:[%s257 + $0x68] sm:$0xff]
      %v317 = vld [vmem:[%s257 + $0x70] sm:$0xff]
      %v318 = vld [vmem:[%s257 + $0x78] sm:$0xff]
      %v319 = vld [vmem:[%s257 + $0x80] sm:$0xff]
      %v320 = vld [vmem:[%s257 + $0x88] sm:$0xff]
      %v321 = vld [vmem:[%s257 + $0x90] sm:$0xff]
      %v322 = vld [vmem:[%s257 + $0x98] sm:$0xff]
      %v323 = vld [vmem:[%s257 + $0xa0] sm:$0xff]
      %v324 = vld [vmem:[%s257 + $0xa8] sm:$0xff]
      %v325 = vld [vmem:[%s257 + $0xb0] sm:$0xff]
      %v326 = vld [vmem:[%s257 + $0xb8] sm:$0xff]
      %v327 = vld [vmem:[%s257 + $0xc0] sm:$0xff]
      %v328 = vld [vmem:[%s257 + $0xc8] sm:$0xff]
      %v329 = vld [vmem:[%s257 + $0xd0] sm:$0xff]
      %v330 = vld [vmem:[%s257 + $0xd8] sm:$0xff]
      %v331 = vld [vmem:[%s257 + $0xe0] sm:$0xff]
      %v332 = vld [vmem:[%s257 + $0xe8] sm:$0xff]
      %v333 = vld [vmem:[%s257 + $0xf0] sm:$0xff]
      %v334 = vld [vmem:[%s257 + $0xf8] sm:$0xff]
      %v335 = vld [vmem:[%s236] sm:$0xf]
      %v336 = vld [vmem:[%s236 + $0x4] sm:$0xf]
      %v337 = vld [vmem:[%s236 + $0x8] sm:$0xf]
      %v338 = vld [vmem:[%s236 + $0xc] sm:$0xf]
      %v339 = vld [vmem:[%s236 + $0x10] sm:$0xf]
      %v340 = vld [vmem:[%s236 + $0x14] sm:$0xf]
      %v341 = vld [vmem:[%s236 + $0x18] sm:$0xf]
      %v342 = vld [vmem:[%s236 + $0x1c] sm:$0xf]
      %v343 = vld [vmem:[%s236 + $0x20] sm:$0xf]
      %v344 = vld [vmem:[%s236 + $0x24] sm:$0xf]
      %v345 = vld [vmem:[%s236 + $0x28] sm:$0xf]
      %v346 = vld [vmem:[%s236 + $0x2c] sm:$0xf]
      %v347 = vld [vmem:[%s236 + $0x30] sm:$0xf]
      %v348 = vld [vmem:[%s236 + $0x34] sm:$0xf]
      %v349 = vld [vmem:[%s236 + $0x38] sm:$0xf]
      %v350 = vld [vmem:[%s236 + $0x3c] sm:$0xf]
      %v351 = vld [vmem:[%s236 + $0x40] sm:$0xf]
      %v352 = vld [vmem:[%s236 + $0x44] sm:$0xf]
      %v353 = vld [vmem:[%s236 + $0x48] sm:$0xf]
      %v354 = vld [vmem:[%s236 + $0x4c] sm:$0xf]
      %v355 = vld [vmem:[%s236 + $0x50] sm:$0xf]
      %v356 = vld [vmem:[%s236 + $0x54] sm:$0xf]
      %v357 = vld [vmem:[%s236 + $0x58] sm:$0xf]
      %v358 = vld [vmem:[%s236 + $0x5c] sm:$0xf]
      %v359 = vld [vmem:[%s236 + $0x60] sm:$0xf]
      %v360 = vld [vmem:[%s236 + $0x64] sm:$0xf]
      %v361 = vld [vmem:[%s236 + $0x68] sm:$0xf]
      %v362 = vld [vmem:[%s236 + $0x6c] sm:$0xf]
      %v363 = vld [vmem:[%s236 + $0x70] sm:$0xf]
      %v364 = vld [vmem:[%s236 + $0x74] sm:$0xf]
      %v365 = vld [vmem:[%s236 + $0x78] sm:$0xf]
      %v366 = vld [vmem:[%s236 + $0x7c] sm:$0xf]
      %v367 = vld [vmem:[%s245] sm:$0xf]
      %v368 = vld [vmem:[%s245 + $0x4] sm:$0xf]
      %v369 = vld [vmem:[%s245 + $0x8] sm:$0xf]
      %v370 = vld [vmem:[%s245 + $0xc] sm:$0xf]
      %v371 = vld [vmem:[%s245 + $0x10] sm:$0xf]
      %v372 = vld [vmem:[%s245 + $0x14] sm:$0xf]
      %v373 = vld [vmem:[%s245 + $0x18] sm:$0xf]
      %v374 = vld [vmem:[%s245 + $0x1c] sm:$0xf]
      %v375 = vld [vmem:[%s245 + $0x20] sm:$0xf]
      %v376 = vld [vmem:[%s245 + $0x24] sm:$0xf]
      %v377 = vld [vmem:[%s245 + $0x28] sm:$0xf]
      %v378 = vld [vmem:[%s245 + $0x2c] sm:$0xf]
      %v379 = vld [vmem:[%s245 + $0x30] sm:$0xf]
      %v380 = vld [vmem:[%s245 + $0x34] sm:$0xf]
      %v381 = vld [vmem:[%s245 + $0x38] sm:$0xf]
      %v382 = vld [vmem:[%s245 + $0x3c] sm:$0xf]
      %v415 = vunpack.c.l.b16 %v335
      %v416 = vunpack.c.l.b16 %v336
      %v417 = vunpack.c.l.b16 %v337
      %v418 = vunpack.c.l.b16 %v338
      %v419 = vunpack.c.l.b16 %v339
      %v420 = vunpack.c.l.b16 %v340
      %v421 = vunpack.c.l.b16 %v341
      %v422 = vunpack.c.l.b16 %v342
      %v423 = vunpack.c.l.b16 %v343
      %v424 = vunpack.c.l.b16 %v344
      %v425 = vunpack.c.l.b16 %v345
      %v426 = vunpack.c.l.b16 %v346
      %v427 = vunpack.c.l.b16 %v347
      %v428 = vunpack.c.l.b16 %v348
      %v429 = vunpack.c.l.b16 %v349
      %v430 = vunpack.c.l.b16 %v350
      %v431 = vunpack.c.l.b16 %v351
      %v432 = vunpack.c.l.b16 %v352
      %v433 = vunpack.c.l.b16 %v353
      %v434 = vunpack.c.l.b16 %v354
      %v435 = vunpack.c.l.b16 %v355
      %v436 = vunpack.c.l.b16 %v356
      %v437 = vunpack.c.l.b16 %v357
      %v438 = vunpack.c.l.b16 %v358
      %v439 = vunpack.c.l.b16 %v359
      %v440 = vunpack.c.l.b16 %v360
      %v441 = vunpack.c.l.b16 %v361
      %v442 = vunpack.c.l.b16 %v362
      %v443 = vunpack.c.l.b16 %v363
      %v444 = vunpack.c.l.b16 %v364
      %v445 = vunpack.c.l.b16 %v365
      %v446 = vunpack.c.l.b16 %v366
      %v447 = vpack.c.b16 %v416, %v415
      %v448 = vpack.c.b16 %v418, %v417
      %v449 = vpack.c.b16 %v420, %v419
      %v450 = vpack.c.b16 %v422, %v421
      %v451 = vpack.c.b16 %v424, %v423
      %v452 = vpack.c.b16 %v426, %v425
      %v453 = vpack.c.b16 %v428, %v427
      %v454 = vpack.c.b16 %v430, %v429
      %v455 = vpack.c.b16 %v432, %v431
      %v456 = vpack.c.b16 %v434, %v433
      %v457 = vpack.c.b16 %v436, %v435
      %v458 = vpack.c.b16 %v438, %v437
      %v459 = vpack.c.b16 %v440, %v439
      %v460 = vpack.c.b16 %v442, %v441
      %v461 = vpack.c.b16 %v444, %v443
      %v462 = vpack.c.b16 %v446, %v445
      %v495 = vunpack.c.l.b16 %v367
      %v496 = vunpack.c.l.b16 %v368
      %v497 = vunpack.c.l.b16 %v369
      %v498 = vunpack.c.l.b16 %v370
      %v499 = vunpack.c.l.b16 %v371
      %v500 = vunpack.c.l.b16 %v372
      %v501 = vunpack.c.l.b16 %v373
      %v502 = vunpack.c.l.b16 %v374
      %v503 = vunpack.c.l.b16 %v375
      %v504 = vunpack.c.l.b16 %v376
      %v505 = vunpack.c.l.b16 %v377
      %v506 = vunpack.c.l.b16 %v378
      %v507 = vunpack.c.l.b16 %v379
      %v508 = vunpack.c.l.b16 %v380
      %v509 = vunpack.c.l.b16 %v381
      %v510 = vunpack.c.l.b16 %v382
      %v511 = vpack.c.b16 %v496, %v495
      %v512 = vpack.c.b16 %v498, %v497
      %v513 = vpack.c.b16 %v500, %v499
      %v514 = vpack.c.b16 %v502, %v501
      %v515 = vpack.c.b16 %v504, %v503
      %v516 = vpack.c.b16 %v506, %v505
      %v517 = vpack.c.b16 %v508, %v507
      %v518 = vpack.c.b16 %v510, %v509
      %527 = vmatprep.subr.bf16.mxu0 0
      %528 = vmatpush1.bf16.msra.mxu0 %v518
      %529 = vmatprep.subr.bf16.mxu0 0
      %530 = vmatpush1.bf16.msra.mxu0 %v517
      %531 = vmatprep.subr.bf16.mxu0 0
      %532 = vmatpush1.bf16.msra.mxu0 %v516
      %533 = vmatprep.subr.bf16.mxu0 0
      %534 = vmatpush1.bf16.msra.mxu0 %v515
      %535 = vmatprep.subr.bf16.mxu0 0
      %536 = vmatpush1.bf16.msra.mxu0 %v514
      %537 = vmatprep.subr.bf16.mxu0 0
      %538 = vmatpush1.bf16.msra.mxu0 %v513
      %539 = vmatprep.subr.bf16.mxu0 0
      %540 = vmatpush1.bf16.msra.mxu0 %v512
      %541 = vmatprep.subr.bf16.mxu0 0
      %542 = vmatpush1.bf16.msra.mxu0 %v511
      %543 = vmatprep.subr.bf16.mxu0 0
      %544 = vmatpush2.bf16.msra.mxu0 0
      %545 = vmatprep.subr.bf16.mxu0 0
      %546 = vmatpush2.bf16.msra.mxu0 0
      %547 = vmatprep.subr.bf16.mxu0 0
      %548 = vmatpush2.bf16.msra.mxu0 0
      %549 = vmatprep.subr.bf16.mxu0 0
      %550 = vmatpush2.bf16.msra.mxu0 0
      %551 = vmatprep.subr.bf16.mxu0 0
      %552 = vmatpush2.bf16.msra.mxu0 0
      %553 = vmatprep.subr.bf16.mxu0 0
      %554 = vmatpush2.bf16.msra.mxu0 0
      %555 = vmatprep.subr.bf16.mxu0 0
      %556 = vmatpush2.bf16.msra.mxu0 0
      %557 = vmatprep.subr.bf16.mxu0 0
      %558 = vmatpush2.bf16.msra.mxu0 0
      %559 = vmatprep.mubr.bf16.mxu0 0
      %560 = vmatmul.mubr.bf16.gmra.mxu0 %v447
      %v561 = vpop.f32.mrf.mxu0
      %v562 = vadd.f32 0.0, %v561
      %v563 = vpop.f32.mrf.mxu0
      %v564 = vpop.f32.mrf.mxu0
      %v565 = vadd.f32 0.0, %v564
      %v566 = vpop.f32.mrf.mxu0
      %567 = vmatprep.mubr.bf16.mxu0 0
      %568 = vmatmul.mubr.bf16.gmra.mxu0 %v448
      %v569 = vpop.f32.mrf.mxu0
      %v570 = vadd.f32 0.0, %v569
      %v571 = vpop.f32.mrf.mxu0
      %v572 = vpop.f32.mrf.mxu0
      %v573 = vadd.f32 0.0, %v572
      %v574 = vpop.f32.mrf.mxu0
      %575 = vmatprep.mubr.bf16.mxu0 0
      %576 = vmatmul.mubr.bf16.gmra.mxu0 %v449
      %v577 = vpop.f32.mrf.mxu0
      %v578 = vadd.f32 0.0, %v577
      %v579 = vpop.f32.mrf.mxu0
      %v580 = vpop.f32.mrf.mxu0
      %v581 = vadd.f32 0.0, %v580
      %v582 = vpop.f32.mrf.mxu0
      %583 = vmatprep.mubr.bf16.mxu0 0
      %584 = vmatmul.mubr.bf16.gmra.mxu0 %v450
      %v585 = vpop.f32.mrf.mxu0
      %v586 = vadd.f32 0.0, %v585
      %v587 = vpop.f32.mrf.mxu0
      %v588 = vpop.f32.mrf.mxu0
      %v589 = vadd.f32 0.0, %v588
      %v590 = vpop.f32.mrf.mxu0
      %591 = vmatprep.mubr.bf16.mxu0 0
      %592 = vmatmul.mubr.bf16.gmra.mxu0 %v451
      %v593 = vpop.f32.mrf.mxu0
      %v594 = vadd.f32 0.0, %v593
      %v595 = vpop.f32.mrf.mxu0
      %v596 = vpop.f32.mrf.mxu0
      %v597 = vadd.f32 0.0, %v596
      %v598 = vpop.f32.mrf.mxu0
      %599 = vmatprep.mubr.bf16.mxu0 0
      %600 = vmatmul.mubr.bf16.gmra.mxu0 %v452
      %v601 = vpop.f32.mrf.mxu0
      %v602 = vadd.f32 0.0, %v601
      %v603 = vpop.f32.mrf.mxu0
      %v604 = vpop.f32.mrf.mxu0
      %v605 = vadd.f32 0.0, %v604
      %v606 = vpop.f32.mrf.mxu0
      %607 = vmatprep.mubr.bf16.mxu0 0
      %608 = vmatmul.mubr.bf16.gmra.mxu0 %v453
      %v609 = vpop.f32.mrf.mxu0
      %v610 = vadd.f32 0.0, %v609
      %v611 = vpop.f32.mrf.mxu0
      %v612 = vpop.f32.mrf.mxu0
      %v613 = vadd.f32 0.0, %v612
      %v614 = vpop.f32.mrf.mxu0
      %615 = vmatprep.mubr.bf16.mxu0 0
      %616 = vmatmul.mubr.bf16.gmra.mxu0 %v454
      %v617 = vpop.f32.mrf.mxu0
      %v618 = vadd.f32 0.0, %v617
      %v619 = vpop.f32.mrf.mxu0
      %v620 = vpop.f32.mrf.mxu0
      %v621 = vadd.f32 0.0, %v620
      %v622 = vpop.f32.mrf.mxu0
      %623 = vmatprep.mubr.bf16.mxu0 0
      %624 = vmatmul.mubr.bf16.gmra.mxu0 %v455
      %v625 = vpop.f32.mrf.mxu0
      %v626 = vadd.f32 0.0, %v625
      %v627 = vpop.f32.mrf.mxu0
      %v628 = vpop.f32.mrf.mxu0
      %v629 = vadd.f32 0.0, %v628
      %v630 = vpop.f32.mrf.mxu0
      %631 = vmatprep.mubr.bf16.mxu0 0
      %632 = vmatmul.mubr.bf16.gmra.mxu0 %v456
      %v633 = vpop.f32.mrf.mxu0
      %v634 = vadd.f32 0.0, %v633
      %v635 = vpop.f32.mrf.mxu0
      %v636 = vpop.f32.mrf.mxu0
      %v637 = vadd.f32 0.0, %v636
      %v638 = vpop.f32.mrf.mxu0
      %639 = vmatprep.mubr.bf16.mxu0 0
      %640 = vmatmul.mubr.bf16.gmra.mxu0 %v457
      %v641 = vpop.f32.mrf.mxu0
      %v642 = vadd.f32 0.0, %v641
      %v643 = vpop.f32.mrf.mxu0
      %v644 = vpop.f32.mrf.mxu0
      %v645 = vadd.f32 0.0, %v644
      %v646 = vpop.f32.mrf.mxu0
      %647 = vmatprep.mubr.bf16.mxu0 0
      %648 = vmatmul.mubr.bf16.gmra.mxu0 %v458
      %v649 = vpop.f32.mrf.mxu0
      %v650 = vadd.f32 0.0, %v649
      %v651 = vpop.f32.mrf.mxu0
      %v652 = vpop.f32.mrf.mxu0
      %v653 = vadd.f32 0.0, %v652
      %v654 = vpop.f32.mrf.mxu0
      %655 = vmatprep.mubr.bf16.mxu0 0
      %656 = vmatmul.mubr.bf16.gmra.mxu0 %v459
      %v657 = vpop.f32.mrf.mxu0
      %v658 = vadd.f32 0.0, %v657
      %v659 = vpop.f32.mrf.mxu0
      %v660 = vpop.f32.mrf.mxu0
      %v661 = vadd.f32 0.0, %v660
      %v662 = vpop.f32.mrf.mxu0
      %663 = vmatprep.mubr.bf16.mxu0 0
      %664 = vmatmul.mubr.bf16.gmra.mxu0 %v460
      %v665 = vpop.f32.mrf.mxu0
      %v666 = vadd.f32 0.0, %v665
      %v667 = vpop.f32.mrf.mxu0
      %v668 = vpop.f32.mrf.mxu0
      %v669 = vadd.f32 0.0, %v668
      %v670 = vpop.f32.mrf.mxu0
      %671 = vmatprep.mubr.bf16.mxu0 0
      %672 = vmatmul.mubr.bf16.gmra.mxu0 %v461
      %v673 = vpop.f32.mrf.mxu0
      %v674 = vadd.f32 0.0, %v673
      %v675 = vpop.f32.mrf.mxu0
      %v676 = vpop.f32.mrf.mxu0
      %v677 = vadd.f32 0.0, %v676
      %v678 = vpop.f32.mrf.mxu0
      %679 = vmatprep.mubr.bf16.mxu0 0
      %680 = vmatmul.mubr.bf16.gmra.mxu0 %v462
      %v681 = vpop.f32.mrf.mxu0
      %v682 = vadd.f32 0.0, %v681
      %v683 = vpop.f32.mrf.mxu0
      %v684 = vpop.f32.mrf.mxu0
      %v685 = vadd.f32 0.0, %v684
      %v686 = vpop.f32.mrf.mxu0
      %687 = vdwg.mxu0
      %v688 = vadd.f32 %v303, %v562
      %v689 = vadd.f32 %v304, %v565
      %v690 = vadd.f32 %v305, %v570
      %v691 = vadd.f32 %v306, %v573
      %v692 = vadd.f32 %v307, %v578
      %v693 = vadd.f32 %v308, %v581
      %v694 = vadd.f32 %v309, %v586
      %v695 = vadd.f32 %v310, %v589
      %v696 = vadd.f32 %v311, %v594
      %v697 = vadd.f32 %v312, %v597
      %v698 = vadd.f32 %v313, %v602
      %v699 = vadd.f32 %v314, %v605
      %v700 = vadd.f32 %v315, %v610
      %v701 = vadd.f32 %v316, %v613
      %v702 = vadd.f32 %v317, %v618
      %v703 = vadd.f32 %v318, %v621
      %v704 = vadd.f32 %v319, %v626
      %v705 = vadd.f32 %v320, %v629
      %v706 = vadd.f32 %v321, %v634
      %v707 = vadd.f32 %v322, %v637
      %v708 = vadd.f32 %v323, %v642
      %v709 = vadd.f32 %v324, %v645
      %v710 = vadd.f32 %v325, %v650
      %v711 = vadd.f32 %v326, %v653
      %v712 = vadd.f32 %v327, %v658
      %v713 = vadd.f32 %v328, %v661
      %v714 = vadd.f32 %v329, %v666
      %v715 = vadd.f32 %v330, %v669
      %v716 = vadd.f32 %v331, %v674
      %v717 = vadd.f32 %v332, %v677
      %v718 = vadd.f32 %v333, %v682
      %v719 = vadd.f32 %v334, %v685
      %720 = vst [vmem:[%s257] sm:$0xff] %v688
      %721 = vst [vmem:[%s257 + $0x8] sm:$0xff] %v689
      %722 = vst [vmem:[%s257 + $0x10] sm:$0xff] %v690
      %723 = vst [vmem:[%s257 + $0x18] sm:$0xff] %v691
      %724 = vst [vmem:[%s257 + $0x20] sm:$0xff] %v692
      %725 = vst [vmem:[%s257 + $0x28] sm:$0xff] %v693
      %726 = vst [vmem:[%s257 + $0x30] sm:$0xff] %v694
      %727 = vst [vmem:[%s257 + $0x38] sm:$0xff] %v695
      %728 = vst [vmem:[%s257 + $0x40] sm:$0xff] %v696
      %729 = vst [vmem:[%s257 + $0x48] sm:$0xff] %v697
      %730 = vst [vmem:[%s257 + $0x50] sm:$0xff] %v698
      %731 = vst [vmem:[%s257 + $0x58] sm:$0xff] %v699
      %732 = vst [vmem:[%s257 + $0x60] sm:$0xff] %v700
      %733 = vst [vmem:[%s257 + $0x68] sm:$0xff] %v701
      %734 = vst [vmem:[%s257 + $0x70] sm:$0xff] %v702
      %735 = vst [vmem:[%s257 + $0x78] sm:$0xff] %v703
      %736 = vst [vmem:[%s257 + $0x80] sm:$0xff] %v704
      %737 = vst [vmem:[%s257 + $0x88] sm:$0xff] %v705
      %738 = vst [vmem:[%s257 + $0x90] sm:$0xff] %v706
      %739 = vst [vmem:[%s257 + $0x98] sm:$0xff] %v707
      %740 = vst [vmem:[%s257 + $0xa0] sm:$0xff] %v708
      %741 = vst [vmem:[%s257 + $0xa8] sm:$0xff] %v709
      %742 = vst [vmem:[%s257 + $0xb0] sm:$0xff] %v710
      %743 = vst [vmem:[%s257 + $0xb8] sm:$0xff] %v711
      %744 = vst [vmem:[%s257 + $0xc0] sm:$0xff] %v712
      %745 = vst [vmem:[%s257 + $0xc8] sm:$0xff] %v713
      %746 = vst [vmem:[%s257 + $0xd0] sm:$0xff] %v714
      %747 = vst [vmem:[%s257 + $0xd8] sm:$0xff] %v715
      %748 = vst [vmem:[%s257 + $0xe0] sm:$0xff] %v716
      %749 = vst [vmem:[%s257 + $0xe8] sm:$0xff] %v717
      %750 = vst [vmem:[%s257 + $0xf0] sm:$0xff] %v718
      %751 = vst [vmem:[%s257 + $0xf8] sm:$0xff] %v719
      %s752 = smul.u32 32, %s19
      %p753 = scmp.lt.s32.totalorder %s752, 63
      %s754 = scalar_select %p753, %s752, 63
      %p755 = scmp.lt.s32.totalorder %s20, 0
      %s756 = scalar_select %p755, %s20, 0
      %s757 = sadd.s32 %s756, %s754
      %s758 = smul.addr %s757, 8
      %s759 = scalar_lea.vmem %s3, %s758
      // Predicated region
      $region37: #{mlsp.33} parent=31 // pred_check
        %p760 = pneg %p135
      $region38: #{mlsp.33} parent=31 // pred_check_branch
        %762 = sbr.rel (%p760) target = $region40
      $region39: #{mlsp.33} parent=31 // pred_region
        %s763 = smul.u32 32, %s19
      $region40: #{mlsp.33} parent=31 // pred_fallthru
        _
    $region32: #{mlsp.33} parent=5 // pred_fallthru
      _
    %p764 = scmp.le.s32.totalorder 2, %s9
    // Predicated region
    $region41: #{mlsp.33} parent=5 // pred_check
      %p765 = pneg %p764
    $region42: #{mlsp.33} parent=5 // pred_check_branch
      %767 = sbr.rel (%p765) target = $region44
    $region43: #{mlsp.33} parent=5 // pred_region
      %s768 = ssub.s32 %s9, 2
      // Predicated region
      $region45: #{mlsp.33} parent=43 // pred_check
        %p769 = pneg %p141
      $region46: #{mlsp.33} parent=43 // pred_check_branch
        %771 = sbr.rel (%p769) target = $region48
      $region47: #{mlsp.33} parent=43 // pred_region
        %s772 = smul.u32 32, %s22
        %p773 = scmp.lt.s32.totalorder %s772, 63
        %s774 = scalar_select %p773, %s772, 63
        %p775 = scmp.lt.s32.totalorder %s23, 0
        %s776 = scalar_select %p775, %s23, 0
        %s777 = sadd.s32 %s776, %s774
        %s778 = smul.addr %s777, 8
        %s779 = scalar_lea.vmem %s3, %s778
      $region48: #{mlsp.33} parent=43 // pred_fallthru
        _
    $region44: #{mlsp.33} parent=5 // pred_fallthru
      _
  $region6: #{mlsp.33} parent=0 // loop_footer
    %s13 = sadd.s32 1, %s9
  $region7: #{mlsp.33} parent=0 // loop_footer_branch
    %8 = sbr.rel target = $region3
  $region8: #{mlsp.33} parent=0 // loop_exit
    _

// kernel: mlsp.29
$region0: #{mlsp.29}
  #allocation0 [shape = 'u32[]', space=smem, size = 0x4, offset = 0x4, fixed_abs, tag = 'smem constant byte address 0x4 - core index']
  #allocation1 [shape = 'u32[144,128]{1,0:T(1,128)}', space=vmem, size = 0x12000, scoped, tag = 'internal scratch']
  %s0 = inlined_call_operand.vmem [shape: bf16[512,512], index: 0, kind: input, shape index: {}]
  %s1 = inlined_call_operand.vmem [shape: bf16[512,128], index: 1, kind: input, shape index: {}]
  %s2 = inlined_call_operand.vmem [shape: f32[1,128], index: 2, kind: input, shape index: {}]
  %s3 = inlined_call_operand.vmem [shape: f32[512,128], index: 3, kind: output, shape index: {}]
  %s4 = sld [smem:[#allocation0]]
  $region87: #{mlsp.29} parent=0
    _
  %s6 = ssub.s32 1, %s4
  %s7 = scalar_select 0, %s6, %s4
  $region1: #{mlsp.29} parent=0
    #allocation2 [shape = 'u8[262144]{0}', space=vmem, size = 0x40000, scoped, tag = 'input window, operand 0']
    loop: start=0, step=1, limit=6
    $region2: #{mlsp.29} parent=1 // loop_pre_header
      _
    $region3: #{mlsp.29} parent=1 // loop_header
      %s9 = sphi 0, %s13
      %p10 = scmp.ge.s32.totalorder %s9, 6
      %s16 = sphi 0, %s35
      %s17 = sphi 0, %s31
      %s18 = sphi 0, %s27
      %s19 = sphi 0, %s16
      %s20 = sphi 0, %s17
      %s21 = sphi 0, %s18
      %s22 = sphi 0, %s19
      %s23 = sphi 0, %s20
      %s24 = sphi 0, %s21
      %s40 = sphi 0, %s42
      %s43 = sphi 0, %s40
      %s44 = sphi 0, %s43
      %s60 = sphi 0, %s44
      %s68 = sphi 0, %s70
      %s71 = sphi 0, %s68
      %s72 = sphi 0, %s71
      %s88 = sphi 0, %s72
      %s94 = sphi 0, %s96
      %s97 = sphi 0, %s94
      %s98 = sphi 0, %s97
      %s114 = sphi 0, %s98
      %s122 = sphi 0, %s124
      %s125 = sphi 0, %s122
      %s126 = sphi 0, %s125
      %s142 = sphi 0, %s126
    $region4: #{mlsp.29} parent=1 // loop_header_branch
      %12 = sbr.rel (%p10) target = $region8
    $region5: #{mlsp.29} parent=1 // loop_body
      %s14 = ssub.s32 %s9, 1
      %s15 = ssub.s32 %s9, 2
      %s25 = sadd.s32 1, %s18
      %p26 = scmp.ge.s32.totalorder %s25, 2
      %s27 = scalar_select %p26, 0, %s25
      %s28 = sadd.s32 1, %s17
      %s29 = scalar_select %p26, %s28, %s17
      %p30 = scmp.ge.s32.totalorder %s29, 1
      %s31 = scalar_select %p30, 0, %s29
      %s32 = sadd.s32 1, %s16
      %s33 = scalar_select %p30, %s32, %s16
      %p34 = scmp.ge.s32.totalorder %s33, 2
      %s35 = scalar_select %p34, 0, %s33
      %s36 = ssub.s32 %s16, %s35
      %s37 = ssub.s32 %s18, %s27
      %s38 = sor.u32 %s36, %s37
      %p39 = scmp.eq.s32.totalorder %s38, 0
      %s41 = sadd.s32 %s40, 1
      %s42 = scalar_select %p39, %s40, %s41
      %p45 = pneg %p39
      %p46 = scmp.eq.s32.totalorder %s9, 3
      %p47 = por %p45, %p46
      %p48 = scmp.ne.s32.totalorder %s40, %s43
      %p49 = scmp.eq.s32.totalorder %s9, 0
      %p50 = por %p48, %p49
      %p51 = scmp.ne.s32.totalorder %s40, %s43
      %p52 = scmp.eq.s32.totalorder %s14, 3
      %p53 = por %p51, %p52
      %p54 = scmp.ne.s32.totalorder %s43, %s44
      %p55 = scmp.eq.s32.totalorder %s14, 0
      %p56 = por %p54, %p55
      %p57 = scmp.ne.s32.totalorder %s43, %s44
      %p58 = scmp.eq.s32.totalorder %s15, 3
      %p59 = por %p57, %p58
      %p61 = scmp.ne.s32.totalorder %s44, %s60
      %p62 = scmp.eq.s32.totalorder %s15, 0
      %p63 = por %p61, %p62
      %s64 = ssub.s32 %s18, %s27
      %s65 = ssub.s32 %s17, %s31
      %s66 = sor.u32 %s64, %s65
      %p67 = scmp.eq.s32.totalorder %s66, 0
      %s69 = sadd.s32 %s68, 1
      %s70 = scalar_select %p67, %s68, %s69
      %p73 = pneg %p67
      %p74 = scmp.eq.s32.totalorder %s9, 3
      %p75 = por %p73, %p74
      %p76 = scmp.ne.s32.totalorder %s68, %s71
      %p77 = scmp.eq.s32.totalorder %s9, 0
      %p78 = por %p76, %p77
      %p79 = scmp.ne.s32.totalorder %s68, %s71
      %p80 = scmp.eq.s32.totalorder %s14, 3
      %p81 = por %p79, %p80
      %p82 = scmp.ne.s32.totalorder %s71, %s72
      %p83 = scmp.eq.s32.totalorder %s14, 0
      %p84 = por %p82, %p83
      %p85 = scmp.ne.s32.totalorder %s71, %s72
      %p86 = scmp.eq.s32.totalorder %s15, 3
      %p87 = por %p85, %p86
      %p89 = scmp.ne.s32.totalorder %s72, %s88
      %p90 = scmp.eq.s32.totalorder %s15, 0
      %p91 = por %p89, %p90
      %s92 = ssub.s32 %s17, %s31
      %p93 = scmp.eq.s32.totalorder %s92, 0
      %s95 = sadd.s32 %s94, 1
      %s96 = scalar_select %p93, %s94, %s95
      %p99 = pneg %p93
      %p100 = scmp.eq.s32.totalorder %s9, 3
      %p101 = por %p99, %p100
      %p102 = scmp.ne.s32.totalorder %s94, %s97
      %p103 = scmp.eq.s32.totalorder %s9, 0
      %p104 = por %p102, %p103
      %p105 = scmp.ne.s32.totalorder %s94, %s97
      %p106 = scmp.eq.s32.totalorder %s14, 3
      %p107 = por %p105, %p106
      %p108 = scmp.ne.s32.totalorder %s97, %s98
      %p109 = scmp.eq.s32.totalorder %s14, 0
      %p110 = por %p108, %p109
      %p111 = scmp.ne.s32.totalorder %s97, %s98
      %p112 = scmp.eq.s32.totalorder %s15, 3
      %p113 = por %p111, %p112
      %p115 = scmp.ne.s32.totalorder %s98, %s114
      %p116 = scmp.eq.s32.totalorder %s15, 0
      %p117 = por %p115, %p116
      %s118 = ssub.s32 %s16, %s35
      %s119 = ssub.s32 %s17, %s31
      %s120 = sor.u32 %s118, %s119
      %p121 = scmp.eq.s32.totalorder %s120, 0
      %s123 = sadd.s32 %s122, 1
      %s124 = scalar_select %p121, %s122, %s123
      %p127 = pneg %p121
      %p128 = scmp.eq.s32.totalorder %s9, 3
      %p129 = por %p127, %p128
      %p130 = scmp.ne.s32.totalorder %s122, %s125
      %p131 = scmp.eq.s32.totalorder %s9, 0
      %p132 = por %p130, %p131
      %p133 = scmp.ne.s32.totalorder %s122, %s125
      %p134 = scmp.eq.s32.totalorder %s14, 3
      %p135 = por %p133, %p134
      %p136 = scmp.ne.s32.totalorder %s125, %s126
      %p137 = scmp.eq.s32.totalorder %s14, 0
      %p138 = por %p136, %p137
      %p139 = scmp.ne.s32.totalorder %s125, %s126
      %p140 = scmp.eq.s32.totalorder %s15, 3
      %p141 = por %p139, %p140
      %p143 = scmp.ne.s32.totalorder %s126, %s142
      %p144 = scmp.eq.s32.totalorder %s15, 0
      %p145 = por %p143, %p144
      %p146 = scmp.le.s32.totalorder 1, %s9
      %p147 = scmp.lt.s32.totalorder %s9, 5
      %p148 = pnand %p146, %p147
      %p149 = pneg %p148
      // Predicated region
      $region9: #{mlsp.29} parent=5 // pred_check
        _
      $region10: #{mlsp.29} parent=5 // pred_check_branch
        %151 = sbr.rel (%p148) target = $region12
      $region11: #{mlsp.29} parent=5 // pred_region
        %s152 = ssub.s32 %s9, 1
        // Predicated region
        $region13: #{mlsp.29} parent=11 // pred_check
          %p153 = pneg %p110
        $region14: #{mlsp.29} parent=11 // pred_check_branch
          %155 = sbr.rel (%p153) target = $region16
        $region15: #{mlsp.29} parent=11 // pred_region
          %p156 = scmp.lt.s32.totalorder %s20, 0
          %s157 = scalar_select %p156, %s20, 0
          %s158 = scalar_lea.vmem %s2, %s157
        $region16: #{mlsp.29} parent=11 // pred_fallthru
          _
      $region12: #{mlsp.29} parent=5 // pred_fallthru
        _
      %p159 = scmp.lt.s32.totalorder %s9, 4
      // Predicated region
      $region17: #{mlsp.29} parent=5 // pred_check
        %p160 = pneg %p159
      $region18: #{mlsp.29} parent=5 // pred_check_branch
        %162 = sbr.rel (%p160) target = $region20
      $region19: #{mlsp.29} parent=5 // pred_region
        // Predicated region
        $region21: #{mlsp.29} parent=19 // pred_check
          %p163 = pneg %p50
        $region22: #{mlsp.29} parent=19 // pred_check_branch
          %165 = sbr.rel (%p163) target = $region24
        $region23: #{mlsp.29} parent=19 // pred_region
          %s166 = sand.u32 %s40, 1
          %s167 = sand.u32 %s40, 1
          %s168 = smul.addr %s167, 256
          %s169 = scalar_lea.vmem [#allocation2], %s168
          %s170 = smul.u32 32, %s16
          %s171 = smul.u32 2, %s18
          %s172 = smul.addr %s170, 4
          %s173 = sadd.s32 %s171, %s172
          %s174 = smul.addr %s173, 4
          %s175 = scalar_lea.vmem %s0, %s174
          // Predicated region
          $region25: #{mlsp.29} parent=23 // pred_check
            _
          $region26: #{mlsp.29} parent=23 // pred_check_branch
            %177 = sbr.rel (0) target = $region28
          $region27: #{mlsp.29} parent=23 // pred_region
            // Predicated region
            $region29: #{mlsp.29} parent=27 // pred_check
              _
            $region30: #{mlsp.29} parent=27 // pred_check_branch
              %179 = sbr.rel (0) target = $region32
            $region31: #{mlsp.29} parent=27 // pred_region
              // Predicated region
              $region44: #{mlsp.29} parent=31 // pred_check
                _
              $region45: #{mlsp.29} parent=31 // pred_check_branch
                %257 = sbr.rel (0) target = $region47
              $region46: #{mlsp.29} parent=31 // pred_region
                loop: start=0, step=1, limit=1
                $region48: #{mlsp.29} parent=46 // loop_pre_header
                  _
                $region49: #{mlsp.29} parent=46 // loop_header
                  %s259 = sphi 0, %s263
                  %p260 = scmp.ge.s32.totalorder %s259, 1
                  %s264 = sphi %s175, %s175
                  %s265 = sphi %s169, %s169
                $region50: #{mlsp.29} parent=46 // loop_header_branch
                  %262 = sbr.rel (%p260) target = $region54
                $region51: #{mlsp.29} parent=46 // loop_body
                  %v266 = vld [vmem:[%s264] sm:$0xff]
                  %267 = vst [vmem:[%s265] sm:$0xff] %v266
                  %v268 = vld [vmem:[%s264 + $0x10] sm:$0xff]
                  %269 = vst [vmem:[%s265 + $0x8] sm:$0xff] %v268
                  %v270 = vld [vmem:[%s264 + $0x20] sm:$0xff]
                  %271 = vst [vmem:[%s265 + $0x10] sm:$0xff] %v270
                  %v272 = vld [vmem:[%s264 + $0x30] sm:$0xff]
                  %273 = vst [vmem:[%s265 + $0x18] sm:$0xff] %v272
                  %v274 = vld [vmem:[%s264 + $0x40] sm:$0xff]
                  %275 = vst [vmem:[%s265 + $0x20] sm:$0xff] %v274
                  %v276 = vld [vmem:[%s264 + $0x50] sm:$0xff]
                  %277 = vst [vmem:[%s265 + $0x28] sm:$0xff] %v276
                  %v278 = vld [vmem:[%s264 + $0x60] sm:$0xff]
                  %279 = vst [vmem:[%s265 + $0x30] sm:$0xff] %v278
                  %v280 = vld [vmem:[%s264 + $0x70] sm:$0xff]
                  %281 = vst [vmem:[%s265 + $0x38] sm:$0xff] %v280
                  %v282 = vld [vmem:[%s264 + $0x80] sm:$0xff]
                  %283 = vst [vmem:[%s265 + $0x40] sm:$0xff] %v282
                  %v284 = vld [vmem:[%s264 + $0x90] sm:$0xff]
                  %285 = vst [vmem:[%s265 + $0x48] sm:$0xff] %v284
                  %v286 = vld [vmem:[%s264 + $0xa0] sm:$0xff]
                  %287 = vst [vmem:[%s265 + $0x50] sm:$0xff] %v286
                  %v288 = vld [vmem:[%s264 + $0xb0] sm:$0xff]
                  %289 = vst [vmem:[%s265 + $0x58] sm:$0xff] %v288
                  %v290 = vld [vmem:[%s264 + $0xc0] sm:$0xff]
                  %291 = vst [vmem:[%s265 + $0x60] sm:$0xff] %v290
                  %v292 = vld [vmem:[%s264 + $0xd0] sm:$0xff]
                  %293 = vst [vmem:[%s265 + $0x68] sm:$0xff] %v292
                  %v294 = vld [vmem:[%s264 + $0xe0] sm:$0xff]
                  %295 = vst [vmem:[%s265 + $0x70] sm:$0xff] %v294
                  %v296 = vld [vmem:[%s264 + $0xf0] sm:$0xff]
                  %297 = vst [vmem:[%s265 + $0x78] sm:$0xff] %v296
                  %v298 = vld [vmem:[%s264 + $0x100] sm:$0xff]
                  %299 = vst [vmem:[%s265 + $0x80] sm:$0xff] %v298
                  %v300 = vld [vmem:[%s264 + $0x110] sm:$0xff]
                  %301 = vst [vmem:[%s265 + $0x88] sm:$0xff] %v300
                  %v302 = vld [vmem:[%s264 + $0x120] sm:$0xff]
                  %303 = vst [vmem:[%s265 + $0x90] sm:$0xff] %v302
                  %v304 = vld [vmem:[%s264 + $0x130] sm:$0xff]
                  %305 = vst [vmem:[%s265 + $0x98] sm:$0xff] %v304
                  %v306 = vld [vmem:[%s264 + $0x140] sm:$0xff]
                  %307 = vst [vmem:[%s265 + $0xa0] sm:$0xff] %v306
                  %v308 = vld [vmem:[%s264 + $0x150] sm:$0xff]
                  %309 = vst [vmem:[%s265 + $0xa8] sm:$0xff] %v308
                  %v310 = vld [vmem:[%s264 + $0x160] sm:$0xff]
                  %311 = vst [vmem:[%s265 + $0xb0] sm:$0xff] %v310
                  %v312 = vld [vmem:[%s264 + $0x170] sm:$0xff]
                  %313 = vst [vmem:[%s265 + $0xb8] sm:$0xff] %v312
                  %v314 = vld [vmem:[%s264 + $0x180] sm:$0xff]
                  %315 = vst [vmem:[%s265 + $0xc0] sm:$0xff] %v314
                  %v316 = vld [vmem:[%s264 + $0x190] sm:$0xff]
                  %317 = vst [vmem:[%s265 + $0xc8] sm:$0xff] %v316
                  %v318 = vld [vmem:[%s264 + $0x1a0] sm:$0xff]
                  %319 = vst [vmem:[%s265 + $0xd0] sm:$0xff] %v318
                  %v320 = vld [vmem:[%s264 + $0x1b0] sm:$0xff]
                  %321 = vst [vmem:[%s265 + $0xd8] sm:$0xff] %v320
                  %v322 = vld [vmem:[%s264 + $0x1c0] sm:$0xff]
                  %323 = vst [vmem:[%s265 + $0xe0] sm:$0xff] %v322
                  %v324 = vld [vmem:[%s264 + $0x1d0] sm:$0xff]
                  %325 = vst [vmem:[%s265 + $0xe8] sm:$0xff] %v324
                  %v326 = vld [vmem:[%s264 + $0x1e0] sm:$0xff]
                  %327 = vst [vmem:[%s265 + $0xf0] sm:$0xff] %v326
                  %v328 = vld [vmem:[%s264 + $0x1f0] sm:$0xff]
                  %329 = vst [vmem:[%s265 + $0xf8] sm:$0xff] %v328
                $region52: #{mlsp.29} parent=46 // loop_footer
                  %s263 = sadd.s32 1, %s259
                $region53: #{mlsp.29} parent=46 // loop_footer_branch
                  %258 = sbr.rel target = $region49
                $region54: #{mlsp.29} parent=46 // loop_exit
                  _
              $region47: #{mlsp.29} parent=31 // pred_fallthru
                _
              // Predicated region
              $region55: #{mlsp.29} parent=31 // pred_check
                _
              $region56: #{mlsp.29} parent=31 // pred_check_branch
                %331 = sbr.rel target = $region58
              $region57: #{mlsp.29} parent=31 // pred_region
                _
              $region58: #{mlsp.29} parent=31 // pred_fallthru
                _
            $region32: #{mlsp.29} parent=27 // pred_fallthru
              _
            // Predicated region
            $region33: #{mlsp.29} parent=27 // pred_check
              _
            $region34: #{mlsp.29} parent=27 // pred_check_branch
              %181 = sbr.rel target = $region36
            $region35: #{mlsp.29} parent=27 // pred_region
              %s183 = ssub.s32 256, 1
              loop: start=0, step=1, limit=1
              $region37: #{mlsp.29} parent=35 // loop_pre_header
                _
              $region38: #{mlsp.29} parent=35 // loop_header
                %s185 = sphi 0, %s189
                %p186 = scmp.ge.s32.totalorder %s185, 1
                %s190 = sphi %s175, %s175
                %s191 = sphi %s169, %s169
              $region39: #{mlsp.29} parent=35 // loop_header_branch
                %188 = sbr.rel (%p186) target = $region43
              $region40: #{mlsp.29} parent=35 // loop_body
                %v192 = vld [vmem:[%s190] sm:%s183]
                %193 = vst [vmem:[%s191] sm:%s183] %v192
                %v194 = vld [vmem:[%s190 + $0x10] sm:%s183]
                %195 = vst [vmem:[%s191 + $0x8] sm:%s183] %v194
                %v196 = vld [vmem:[%s190 + $0x20] sm:%s183]
                %197 = vst [vmem:[%s191 + $0x10] sm:%s183] %v196
                %v198 = vld [vmem:[%s190 + $0x30] sm:%s183]
                %199 = vst [vmem:[%s191 + $0x18] sm:%s183] %v198
                %v200 = vld [vmem:[%s190 + $0x40] sm:%s183]
                %201 = vst [vmem:[%s191 + $0x20] sm:%s183] %v200
                %v202 = vld [vmem:[%s190 + $0x50] sm:%s183]
                %203 = vst [vmem:[%s191 + $0x28] sm:%s183] %v202
                %v204 = vld [vmem:[%s190 + $0x60] sm:%s183]
                %205 = vst [vmem:[%s191 + $0x30] sm:%s183] %v204
                %v206 = vld [vmem:[%s190 + $0x70] sm:%s183]
                %207 = vst [vmem:[%s191 + $0x38] sm:%s183] %v206
                %v208 = vld [vmem:[%s190 + $0x80] sm:%s183]
                %209 = vst [vmem:[%s191 + $0x40] sm:%s183] %v208
                %v210 = vld [vmem:[%s190 + $0x90] sm:%s183]
                %211 = vst [vmem:[%s191 + $0x48] sm:%s183] %v210
                %v212 = vld [vmem:[%s190 + $0xa0] sm:%s183]
                %213 = vst [vmem:[%s191 + $0x50] sm:%s183] %v212
                %v214 = vld [vmem:[%s190 + $0xb0] sm:%s183]
                %215 = vst [vmem:[%s191 + $0x58] sm:%s183] %v214
                %v216 = vld [vmem:[%s190 + $0xc0] sm:%s183]
                %217 = vst [vmem:[%s191 + $0x60] sm:%s183] %v216
                %v218 = vld [vmem:[%s190 + $0xd0] sm:%s183]
                %219 = vst [vmem:[%s191 + $0x68] sm:%s183] %v218
                %v220 = vld [vmem:[%s190 + $0xe0] sm:%s183]
                %221 = vst [vmem:[%s191 + $0x70] sm:%s183] %v220
                %v222 = vld [vmem:[%s190 + $0xf0] sm:%s183]
                %223 = vst [vmem:[%s191 + $0x78] sm:%s183] %v222
                %v224 = vld [vmem:[%s190 + $0x100] sm:%s183]
                %225 = vst [vmem:[%s191 + $0x80] sm:%s183] %v224
                %v226 = vld [vmem:[%s190 + $0x110] sm:%s183]
                %227 = vst [vmem:[%s191 + $0x88] sm:%s183] %v226
                %v228 = vld [vmem:[%s190 + $0x120] sm:%s183]
                %229 = vst [vmem:[%s191 + $0x90] sm:%s183] %v228
                %v230 = vld [vmem:[%s190 + $0x130] sm:%s183]
                %231 = vst [vmem:[%s191 + $0x98] sm:%s183] %v230
                %v232 = vld [vmem:[%s190 + $0x140] sm:%s183]
                %233 = vst [vmem:[%s191 + $0xa0] sm:%s183] %v232
                %v234 = vld [vmem:[%s190 + $0x150] sm:%s183]
                %235 = vst [vmem:[%s191 + $0xa8] sm:%s183] %v234
                %v236 = vld [vmem:[%s190 + $0x160] sm:%s183]
                %237 = vst [vmem:[%s191 + $0xb0] sm:%s183] %v236
                %v238 = vld [vmem:[%s190 + $0x170] sm:%s183]
                %239 = vst [vmem:[%s191 + $0xb8] sm:%s183] %v238
                %v240 = vld [vmem:[%s190 + $0x180] sm:%s183]
                %241 = vst [vmem:[%s191 + $0xc0] sm:%s183] %v240
                %v242 = vld [vmem:[%s190 + $0x190] sm:%s183]
                %243 = vst [vmem:[%s191 + $0xc8] sm:%s183] %v242
                %v244 = vld [vmem:[%s190 + $0x1a0] sm:%s183]
                %245 = vst [vmem:[%s191 + $0xd0] sm:%s183] %v244
                %v246 = vld [vmem:[%s190 + $0x1b0] sm:%s183]
                %247 = vst [vmem:[%s191 + $0xd8] sm:%s183] %v246
                %v248 = vld [vmem:[%s190 + $0x1c0] sm:%s183]
                %249 = vst [vmem:[%s191 + $0xe0] sm:%s183] %v248
                %v250 = vld [vmem:[%s190 + $0x1d0] sm:%s183]
                %251 = vst [vmem:[%s191 + $0xe8] sm:%s183] %v250
                %v252 = vld [vmem:[%s190 + $0x1e0] sm:%s183]
                %253 = vst [vmem:[%s191 + $0xf0] sm:%s183] %v252
                %v254 = vld [vmem:[%s190 + $0x1f0] sm:%s183]
                %255 = vst [vmem:[%s191 + $0xf8] sm:%s183] %v254
              $region41: #{mlsp.29} parent=35 // loop_footer
                %s189 = sadd.s32 1, %s185
              $region42: #{mlsp.29} parent=35 // loop_footer_branch
                %184 = sbr.rel target = $region38
              $region43: #{mlsp.29} parent=35 // loop_exit
                _
            $region36: #{mlsp.29} parent=27 // pred_fallthru
              _
          $region28: #{mlsp.29} parent=23 // pred_fallthru
            _
          %332 = vnop
        $region24: #{mlsp.29} parent=19 // pred_fallthru
          _
        // Predicated region
        $region59: #{mlsp.29} parent=19 // pred_check
          %p333 = pneg %p78
        $region60: #{mlsp.29} parent=19 // pred_check_branch
          %335 = sbr.rel (%p333) target = $region62
        $region61: #{mlsp.29} parent=19 // pred_region
          %s336 = smul.u32 32, %s18
          %p337 = scmp.lt.s32.totalorder %s336, 63
          %s338 = scalar_select %p337, %s336, 63
          %p339 = scmp.lt.s32.totalorder %s17, 0
          %s340 = scalar_select %p339, %s17, 0
          %s341 = sadd.s32 %s340, %s338
          %s342 = smul.addr %s341, 4
          %s343 = scalar_lea.vmem %s1, %s342
          %s344 = smul.u32 32, %s18
        $region62: #{mlsp.29} parent=19 // pred_fallthru
          _
      $region20: #{mlsp.29} parent=5 // pred_fallthru
        _
      %p345 = scmp.le.s32.totalorder 1, %s9
      %p346 = scmp.lt.s32.totalorder %s9, 5
      %p347 = pnand %p345, %p346
      %p348 = pneg %p347
      // Predicated region
      $region63: #{mlsp.29} parent=5 // pred_check
        _
      $region64: #{mlsp.29} parent=5 // pred_check_branch
        %350 = sbr.rel (%p347) target = $region66
      $region65: #{mlsp.29} parent=5 // pred_region
        %s351 = ssub.s32 %s9, 1
        %s352 = sand.u32 %s43, 1
        %s353 = sand.u32 %s43, 1
        %s354 = smul.addr %s353, 256
        %s355 = scalar_lea.vmem [#allocation2], %s354
        // Predicated region
        $region67: #{mlsp.29} parent=65 // pred_check
          %p356 = pneg %p56
        $region68: #{mlsp.29} parent=65 // pred_check_branch
          %358 = sbr.rel (%p356) target = $region70
        $region69: #{mlsp.29} parent=65 // pred_region
          _
        $region70: #{mlsp.29} parent=65 // pred_fallthru
          _
        %s359 = sand.u32 %s43, 1
        %s360 = sand.u32 %s43, 1
        %s361 = smul.addr %s360, 256
        %s362 = scalar_lea.vmem [#allocation2], %s361
        %p363 = pneg %p56
        %p364 = pneg %p53
        %s365 = smul.u32 32, %s21
        %p366 = scmp.lt.s32.totalorder %s365, 63
        %s367 = scalar_select %p366, %s365, 63
        %p368 = scmp.lt.s32.totalorder %s20, 0
        %s369 = scalar_select %p368, %s20, 0
        %s370 = sadd.s32 %s369, %s367
        %s371 = smul.addr %s370, 4
        %s372 = scalar_lea.vmem %s1, %s371
        %p373 = pneg %p84
        %p374 = pneg %p81
        %p375 = scmp.lt.s32.totalorder %s20, 0
        %s376 = scalar_select %p375, %s20, 0
        %s377 = scalar_lea.vmem %s2, %s376
        %p378 = pneg %p110
        %p379 = pneg %p107
        %p380 = pneg %p138
        %p381 = pneg %p135
        %s382 = smul.u32 32, %s19
        %p383 = scmp.lt.s32.totalorder %s382, 63
        %s384 = scalar_select %p383, %s382, 63
        %p385 = scmp.lt.s32.totalorder %s20, 0
        %s386 = scalar_select %p385, %s20, 0
        %s387 = sadd.s32 %s386, %s384
        %s388 = smul.addr %s387, 8
        %s389 = scalar_lea.vmem %s3, %s388
        %s390 = smul.u32 32, %s19
        %s391 = smul.u32 2, %s21
        %s392 = smul.u32 32, %s21
        %p393 = scmp.lt.s32.totalorder %s392, 63
        %s394 = scalar_select %p393, %s392, 63
        %p395 = scmp.lt.s32.totalorder %s20, 0
        %s396 = scalar_select %p395, %s20, 0
        %s397 = sadd.s32 %s396, %s394
        %s398 = smul.addr %s397, 4
        %s399 = scalar_lea.vmem %s1, %s398
        %s400 = smul.u32 32, %s21
        %p401 = scmp.lt.s32.totalorder %s20, 0
        %s402 = scalar_select %p401, %s20, 0
        %s403 = scalar_lea.vmem %s2, %s402
        %s404 = smul.u32 32, %s19
        %p405 = scmp.lt.s32.totalorder %s404, 63
        %s406 = scalar_select %p405, %s404, 63
        %p407 = scmp.lt.s32.totalorder %s20, 0
        %s408 = scalar_select %p407, %s20, 0
        %s409 = sadd.s32 %s408, %s406
        %s410 = smul.addr %s409, 8
        %s411 = scalar_lea.vmem %s3, %s410
        %s412 = smul.u32 32, %s19
        %p414 = scmp.eq.s32.totalorder %s21, 0
        // Predicated region
        $region71: #{mlsp.29} parent=65 // pred_check
          %p415 = pneg %p414
        $region72: #{mlsp.29} parent=65 // pred_check_branch
          %417 = sbr.rel (%p415) target = $region74
        $region73: #{mlsp.29} parent=65 // pred_region
          %v418 = vld [vmem:[%s403] sm:$0x1]
          %v420 = vlaneseq
          %v421 = vshrl.u32 %v420, 7
          %v422 = vsub.s32 0, %v421
          %v423 = vrot.slane %v418, %v422
          %425 = vst [vmem:[%s411] sm:$0xff] %v423
          %426 = vst [vmem:[%s411 + $0x8] sm:$0xff] %v423
          %427 = vst [vmem:[%s411 + $0x10] sm:$0xff] %v423
          %428 = vst [vmem:[%s411 + $0x18] sm:$0xff] %v423
          %429 = vst [vmem:[%s411 + $0x20] sm:$0xff] %v423
          %430 = vst [vmem:[%s411 + $0x28] sm:$0xff] %v423
          %431 = vst [vmem:[%s411 + $0x30] sm:$0xff] %v423
          %432 = vst [vmem:[%s411 + $0x38] sm:$0xff] %v423
          %433 = vst [vmem:[%s411 + $0x40] sm:$0xff] %v423
          %434 = vst [vmem:[%s411 + $0x48] sm:$0xff] %v423
          %435 = vst [vmem:[%s411 + $0x50] sm:$0xff] %v423
          %436 = vst [vmem:[%s411 + $0x58] sm:$0xff] %v423
          %437 = vst [vmem:[%s411 + $0x60] sm:$0xff] %v423
          %438 = vst [vmem:[%s411 + $0x68] sm:$0xff] %v423
          %439 = vst [vmem:[%s411 + $0x70] sm:$0xff] %v423
          %440 = vst [vmem:[%s411 + $0x78] sm:$0xff] %v423
          %441 = vst [vmem:[%s411 + $0x80] sm:$0xff] %v423
          %442 = vst [vmem:[%s411 + $0x88] sm:$0xff] %v423
          %443 = vst [vmem:[%s411 + $0x90] sm:$0xff] %v423
          %444 = vst [vmem:[%s411 + $0x98] sm:$0xff] %v423
          %445 = vst [vmem:[%s411 + $0xa0] sm:$0xff] %v423
          %446 = vst [vmem:[%s411 + $0xa8] sm:$0xff] %v423
          %447 = vst [vmem:[%s411 + $0xb0] sm:$0xff] %v423
          %448 = vst [vmem:[%s411 + $0xb8] sm:$0xff] %v423
          %449 = vst [vmem:[%s411 + $0xc0] sm:$0xff] %v423
          %450 = vst [vmem:[%s411 + $0xc8] sm:$0xff] %v423
          %451 = vst [vmem:[%s411 + $0xd0] sm:$0xff] %v423
          %452 = vst [vmem:[%s411 + $0xd8] sm:$0xff] %v423
          %453 = vst [vmem:[%s411 + $0xe0] sm:$0xff] %v423
          %454 = vst [vmem:[%s411 + $0xe8] sm:$0xff] %v423
          %455 = vst [vmem:[%s411 + $0xf0] sm:$0xff] %v423
          %456 = vst [vmem:[%s411 + $0xf8] sm:$0xff] %v423
        $region74: #{mlsp.29} parent=65 // pred_fallthru
          _
        %v457 = vld [vmem:[%s411] sm:$0xff]
        %v458 = vld [vmem:[%s411 + $0x8] sm:$0xff]
        %v459 = vld [vmem:[%s411 + $0x10] sm:$0xff]
        %v460 = vld [vmem:[%s411 + $0x18] sm:$0xff]
        %v461 = vld [vmem:[%s411 + $0x20] sm:$0xff]
        %v462 = vld [vmem:[%s411 + $0x28] sm:$0xff]
        %v463 = vld [vmem:[%s411 + $0x30] sm:$0xff]
        %v464 = vld [vmem:[%s411 + $0x38] sm:$0xff]
        %v465 = vld [vmem:[%s411 + $0x40] sm:$0xff]
        %v466 = vld [vmem:[%s411 + $0x48] sm:$0xff]
        %v467 = vld [vmem:[%s411 + $0x50] sm:$0xff]
        %v468 = vld [vmem:[%s411 + $0x58] sm:$0xff]
        %v469 = vld [vmem:[%s411 + $0x60] sm:$0xff]
        %v470 = vld [vmem:[%s411 + $0x68] sm:$0xff]
        %v471 = vld [vmem:[%s411 + $0x70] sm:$0xff]
        %v472 = vld [vmem:[%s411 + $0x78] sm:$0xff]
        %v473 = vld [vmem:[%s411 + $0x80] sm:$0xff]
        %v474 = vld [vmem:[%s411 + $0x88] sm:$0xff]
        %v475 = vld [vmem:[%s411 + $0x90] sm:$0xff]
        %v476 = vld [vmem:[%s411 + $0x98] sm:$0xff]
        %v477 = vld [vmem:[%s411 + $0xa0] sm:$0xff]
        %v478 = vld [vmem:[%s411 + $0xa8] sm:$0xff]
        %v479 = vld [vmem:[%s411 + $0xb0] sm:$0xff]
        %v480 = vld [vmem:[%s411 + $0xb8] sm:$0xff]
        %v481 = vld [vmem:[%s411 + $0xc0] sm:$0xff]
        %v482 = vld [vmem:[%s411 + $0xc8] sm:$0xff]
        %v483 = vld [vmem:[%s411 + $0xd0] sm:$0xff]
        %v484 = vld [vmem:[%s411 + $0xd8] sm:$0xff]
        %v485 = vld [vmem:[%s411 + $0xe0] sm:$0xff]
        %v486 = vld [vmem:[%s411 + $0xe8] sm:$0xff]
        %v487 = vld [vmem:[%s411 + $0xf0] sm:$0xff]
        %v488 = vld [vmem:[%s411 + $0xf8] sm:$0xff]
        %v489 = vld [vmem:[%s355] sm:$0xff]
        %v490 = vld [vmem:[%s355 + $0x8] sm:$0xff]
        %v491 = vld [vmem:[%s355 + $0x10] sm:$0xff]
        %v492 = vld [vmem:[%s355 + $0x18] sm:$0xff]
        %v493 = vld [vmem:[%s355 + $0x20] sm:$0xff]
        %v494 = vld [vmem:[%s355 + $0x28] sm:$0xff]
        %v495 = vld [vmem:[%s355 + $0x30] sm:$0xff]
        %v496 = vld [vmem:[%s355 + $0x38] sm:$0xff]
        %v497 = vld [vmem:[%s355 + $0x40] sm:$0xff]
        %v498 = vld [vmem:[%s355 + $0x48] sm:$0xff]
        %v499 = vld [vmem:[%s355 + $0x50] sm:$0xff]
        %v500 = vld [vmem:[%s355 + $0x58] sm:$0xff]
        %v501 = vld [vmem:[%s355 + $0x60] sm:$0xff]
        %v502 = vld [vmem:[%s355 + $0x68] sm:$0xff]
        %v503 = vld [vmem:[%s355 + $0x70] sm:$0xff]
        %v504 = vld [vmem:[%s355 + $0x78] sm:$0xff]
        %v505 = vld [vmem:[%s355 + $0x80] sm:$0xff]
        %v506 = vld [vmem:[%s355 + $0x88] sm:$0xff]
        %v507 = vld [vmem:[%s355 + $0x90] sm:$0xff]
        %v508 = vld [vmem:[%s355 + $0x98] sm:$0xff]
        %v509 = vld [vmem:[%s355 + $0xa0] sm:$0xff]
        %v510 = vld [vmem:[%s355 + $0xa8] sm:$0xff]
        %v511 = vld [vmem:[%s355 + $0xb0] sm:$0xff]
        %v512 = vld [vmem:[%s355 + $0xb8] sm:$0xff]
        %v513 = vld [vmem:[%s355 + $0xc0] sm:$0xff]
        %v514 = vld [vmem:[%s355 + $0xc8] sm:$0xff]
        %v515 = vld [vmem:[%s355 + $0xd0] sm:$0xff]
        %v516 = vld [vmem:[%s355 + $0xd8] sm:$0xff]
        %v517 = vld [vmem:[%s355 + $0xe0] sm:$0xff]
        %v518 = vld [vmem:[%s355 + $0xe8] sm:$0xff]
        %v519 = vld [vmem:[%s355 + $0xf0] sm:$0xff]
        %v520 = vld [vmem:[%s355 + $0xf8] sm:$0xff]
        %v521 = vld [vmem:[%s399] sm:$0xf]
        %v522 = vld [vmem:[%s399 + $0x4] sm:$0xf]
        %v523 = vld [vmem:[%s399 + $0x8] sm:$0xf]
        %v524 = vld [vmem:[%s399 + $0xc] sm:$0xf]
        %v525 = vld [vmem:[%s399 + $0x10] sm:$0xf]
        %v526 = vld [vmem:[%s399 + $0x14] sm:$0xf]
        %v527 = vld [vmem:[%s399 + $0x18] sm:$0xf]
        %v528 = vld [vmem:[%s399 + $0x1c] sm:$0xf]
        %v529 = vld [vmem:[%s399 + $0x20] sm:$0xf]
        %v530 = vld [vmem:[%s399 + $0x24] sm:$0xf]
        %v531 = vld [vmem:[%s399 + $0x28] sm:$0xf]
        %v532 = vld [vmem:[%s399 + $0x2c] sm:$0xf]
        %v533 = vld [vmem:[%s399 + $0x30] sm:$0xf]
        %v534 = vld [vmem:[%s399 + $0x34] sm:$0xf]
        %v535 = vld [vmem:[%s399 + $0x38] sm:$0xf]
        %v536 = vld [vmem:[%s399 + $0x3c] sm:$0xf]
        %v537 = vld [vmem:[%s399 + $0x40] sm:$0xf]
        %v538 = vld [vmem:[%s399 + $0x44] sm:$0xf]
        %v539 = vld [vmem:[%s399 + $0x48] sm:$0xf]
        %v540 = vld [vmem:[%s399 + $0x4c] sm:$0xf]
        %v541 = vld [vmem:[%s399 + $0x50] sm:$0xf]
        %v542 = vld [vmem:[%s399 + $0x54] sm:$0xf]
        %v543 = vld [vmem:[%s399 + $0x58] sm:$0xf]
        %v544 = vld [vmem:[%s399 + $0x5c] sm:$0xf]
        %v545 = vld [vmem:[%s399 + $0x60] sm:$0xf]
        %v546 = vld [vmem:[%s399 + $0x64] sm:$0xf]
        %v547 = vld [vmem:[%s399 + $0x68] sm:$0xf]
        %v548 = vld [vmem:[%s399 + $0x6c] sm:$0xf]
        %v549 = vld [vmem:[%s399 + $0x70] sm:$0xf]
        %v550 = vld [vmem:[%s399 + $0x74] sm:$0xf]
        %v551 = vld [vmem:[%s399 + $0x78] sm:$0xf]
        %v552 = vld [vmem:[%s399 + $0x7c] sm:$0xf]
        %v585 = vunpack.c.l.b16 %v489
        %v586 = vunpack.c.h.b16 %v489
        %v587 = vunpack.c.l.b16 %v490
        %v588 = vunpack.c.h.b16 %v490
        %v589 = vunpack.c.l.b16 %v491
        %v590 = vunpack.c.h.b16 %v491
        %v591 = vunpack.c.l.b16 %v492
        %v592 = vunpack.c.h.b16 %v492
        %v593 = vunpack.c.l.b16 %v493
        %v594 = vunpack.c.h.b16 %v493
        %v595 = vunpack.c.l.b16 %v494
        %v596 = vunpack.c.h.b16 %v494
        %v597 = vunpack.c.l.b16 %v495
        %v598 = vunpack.c.h.b16 %v495
        %v599 = vunpack.c.l.b16 %v496
        %v600 = vunpack.c.h.b16 %v496
        %v601 = vunpack.c.l.b16 %v497
        %v602 = vunpack.c.h.b16 %v497
        %v603 = vunpack.c.l.b16 %v498
        %v604 = vunpack.c.h.b16 %v498
        %v605 = vunpack.c.l.b16 %v499
        %v606 = vunpack.c.h.b16 %v499
        %v607 = vunpack.c.l.b16 %v500
        %v608 = vunpack.c.h.b16 %v500
        %v609 = vunpack.c.l.b16 %v501
        %v610 = vunpack.c.h.b16 %v501
        %v611 = vunpack.c.l.b16 %v502
        %v612 = vunpack.c.h.b16 %v502
        %v613 = vunpack.c.l.b16 %v503
        %v614 = vunpack.c.h.b16 %v503
        %v615 = vunpack.c.l.b16 %v504
        %v616 = vunpack.c.h.b16 %v504
        %v617 = vunpack.c.l.b16 %v505
        %v618 = vunpack.c.h.b16 %v505
        %v619 = vunpack.c.l.b16 %v506
        %v620 = vunpack.c.h.b16 %v506
        %v621 = vunpack.c.l.b16 %v507
        %v622 = vunpack.c.h.b16 %v507
        %v623 = vunpack.c.l.b16 %v508
        %v624 = vunpack.c.h.b16 %v508
        %v625 = vunpack.c.l.b16 %v509
        %v626 = vunpack.c.h.b16 %v509
        %v627 = vunpack.c.l.b16 %v510
        %v628 = vunpack.c.h.b16 %v510
        %v629 = vunpack.c.l.b16 %v511
        %v630 = vunpack.c.h.b16 %v511
        %v631 = vunpack.c.l.b16 %v512
        %v632 = vunpack.c.h.b16 %v512
        %v633 = vunpack.c.l.b16 %v513
        %v634 = vunpack.c.h.b16 %v513
        %v635 = vunpack.c.l.b16 %v514
        %v636 = vunpack.c.h.b16 %v514
        %v637 = vunpack.c.l.b16 %v515
        %v638 = vunpack.c.h.b16 %v515
        %v639 = vunpack.c.l.b16 %v516
        %v640 = vunpack.c.h.b16 %v516
        %v641 = vunpack.c.l.b16 %v517
        %v642 = vunpack.c.h.b16 %v517
        %v643 = vunpack.c.l.b16 %v518
        %v644 = vunpack.c.h.b16 %v518
        %v645 = vunpack.c.l.b16 %v519
        %v646 = vunpack.c.h.b16 %v519
        %v647 = vunpack.c.l.b16 %v520
        %v648 = vunpack.c.h.b16 %v520
        %v649 = vpack.c.b16 %v587, %v585
        %v650 = vpack.c.b16 %v588, %v586
        %v651 = vpack.c.b16 %v591, %v589
        %v652 = vpack.c.b16 %v592, %v590
        %v653 = vpack.c.b16 %v595, %v593
        %v654 = vpack.c.b16 %v596, %v594
        %v655 = vpack.c.b16 %v599, %v597
        %v656 = vpack.c.b16 %v600, %v598
        %v657 = vpack.c.b16 %v603, %v601
        %v658 = vpack.c.b16 %v604, %v602
        %v659 = vpack.c.b16 %v607, %v605
        %v660 = vpack.c.b16 %v608, %v606
        %v661 = vpack.c.b16 %v611, %v609
        %v662 = vpack.c.b16 %v612, %v610
        %v663 = vpack.c.b16 %v615, %v613
        %v664 = vpack.c.b16 %v616, %v614
        %v665 = vpack.c.b16 %v619, %v617
        %v666 = vpack.c.b16 %v620, %v618
        %v667 = vpack.c.b16 %v623, %v621
        %v668 = vpack.c.b16 %v624, %v622
        %v669 = vpack.c.b16 %v627, %v625
        %v670 = vpack.c.b16 %v628, %v626
        %v671 = vpack.c.b16 %v631, %v629
        %v672 = vpack.c.b16 %v632, %v630
        %v673 = vpack.c.b16 %v635, %v633
        %v674 = vpack.c.b16 %v636, %v634
        %v675 = vpack.c.b16 %v639, %v637
        %v676 = vpack.c.b16 %v640, %v638
        %v677 = vpack.c.b16 %v643, %v641
        %v678 = vpack.c.b16 %v644, %v642
        %v679 = vpack.c.b16 %v647, %v645
        %v680 = vpack.c.b16 %v648, %v646
        %v745 = vunpack.c.l.b16 %v521
        %v746 = vunpack.c.l.b16 %v522
        %v747 = vunpack.c.l.b16 %v523
        %v748 = vunpack.c.l.b16 %v524
        %v749 = vunpack.c.l.b16 %v525
        %v750 = vunpack.c.l.b16 %v526
        %v751 = vunpack.c.l.b16 %v527
        %v752 = vunpack.c.l.b16 %v528
        %v753 = vunpack.c.l.b16 %v529
        %v754 = vunpack.c.l.b16 %v530
        %v755 = vunpack.c.l.b16 %v531
        %v756 = vunpack.c.l.b16 %v532
        %v757 = vunpack.c.l.b16 %v533
        %v758 = vunpack.c.l.b16 %v534
        %v759 = vunpack.c.l.b16 %v535
        %v760 = vunpack.c.l.b16 %v536
        %v761 = vunpack.c.l.b16 %v537
        %v762 = vunpack.c.l.b16 %v538
        %v763 = vunpack.c.l.b16 %v539
        %v764 = vunpack.c.l.b16 %v540
        %v765 = vunpack.c.l.b16 %v541
        %v766 = vunpack.c.l.b16 %v542
        %v767 = vunpack.c.l.b16 %v543
        %v768 = vunpack.c.l.b16 %v544
        %v769 = vunpack.c.l.b16 %v545
        %v770 = vunpack.c.l.b16 %v546
        %v771 = vunpack.c.l.b16 %v547
        %v772 = vunpack.c.l.b16 %v548
        %v773 = vunpack.c.l.b16 %v549
        %v774 = vunpack.c.l.b16 %v550
        %v775 = vunpack.c.l.b16 %v551
        %v776 = vunpack.c.l.b16 %v552
        %v777 = vpack.c.b16 %v746, %v745
        %v778 = vpack.c.b16 %v748, %v747
        %v779 = vpack.c.b16 %v750, %v749
        %v780 = vpack.c.b16 %v752, %v751
        %v781 = vpack.c.b16 %v754, %v753
        %v782 = vpack.c.b16 %v756, %v755
        %v783 = vpack.c.b16 %v758, %v757
        %v784 = vpack.c.b16 %v760, %v759
        %v785 = vpack.c.b16 %v762, %v761
        %v786 = vpack.c.b16 %v764, %v763
        %v787 = vpack.c.b16 %v766, %v765
        %v788 = vpack.c.b16 %v768, %v767
        %v789 = vpack.c.b16 %v770, %v769
        %v790 = vpack.c.b16 %v772, %v771
        %v791 = vpack.c.b16 %v774, %v773
        %v792 = vpack.c.b16 %v776, %v775
        %809 = vmatprep.subr.bf16.mxu0 0
        %810 = vmatpush1.bf16.msra.mxu0 %v784
        %811 = vmatprep.subr.bf16.mxu0 0
        %812 = vmatpush1.bf16.msra.mxu0 %v783
        %813 = vmatprep.subr.bf16.mxu0 0
        %814 = vmatpush1.bf16.msra.mxu0 %v782
        %815 = vmatprep.subr.bf16.mxu0 0
        %816 = vmatpush1.bf16.msra.mxu0 %v781
        %817 = vmatprep.subr.bf16.mxu0 0
        %818 = vmatpush1.bf16.msra.mxu0 %v780
        %819 = vmatprep.subr.bf16.mxu0 0
        %820 = vmatpush1.bf16.msra.mxu0 %v779
        %821 = vmatprep.subr.bf16.mxu0 0
        %822 = vmatpush1.bf16.msra.mxu0 %v778
        %823 = vmatprep.subr.bf16.mxu0 0
        %824 = vmatpush1.bf16.msra.mxu0 %v777
        %825 = vmatprep.subr.bf16.mxu0 0
        %826 = vmatpush2.bf16.msra.mxu0 %v792
        %827 = vmatprep.subr.bf16.mxu0 0
        %828 = vmatpush2.bf16.msra.mxu0 %v791
        %829 = vmatprep.subr.bf16.mxu0 0
        %830 = vmatpush2.bf16.msra.mxu0 %v790
        %831 = vmatprep.subr.bf16.mxu0 0
        %832 = vmatpush2.bf16.msra.mxu0 %v789
        %833 = vmatprep.subr.bf16.mxu0 0
        %834 = vmatpush2.bf16.msra.mxu0 %v788
        %835 = vmatprep.subr.bf16.mxu0 0
        %836 = vmatpush2.bf16.msra.mxu0 %v787
        %837 = vmatprep.subr.bf16.mxu0 0
        %838 = vmatpush2.bf16.msra.mxu0 %v786
        %839 = vmatprep.subr.bf16.mxu0 0
        %840 = vmatpush2.bf16.msra.mxu0 %v785
        %841 = vmatprep.mubr.bf16.mxu0 %v650
        %842 = vmatmul.mubr.bf16.gmra.mxu0 %v649
        %v843 = vpop.f32.mrf.mxu0
        %v844 = vadd.f32 0.0, %v843
        %v845 = vpop.f32.mrf.mxu0
        %v846 = vpop.f32.mrf.mxu0
        %v847 = vadd.f32 0.0, %v846
        %v848 = vpop.f32.mrf.mxu0
        %849 = vmatprep.mubr.bf16.mxu0 %v652
        %850 = vmatmul.mubr.bf16.gmra.mxu0 %v651
        %v851 = vpop.f32.mrf.mxu0
        %v852 = vadd.f32 0.0, %v851
        %v853 = vpop.f32.mrf.mxu0
        %v854 = vpop.f32.mrf.mxu0
        %v855 = vadd.f32 0.0, %v854
        %v856 = vpop.f32.mrf.mxu0
        %857 = vmatprep.mubr.bf16.mxu0 %v654
        %858 = vmatmul.mubr.bf16.gmra.mxu0 %v653
        %v859 = vpop.f32.mrf.mxu0
        %v860 = vadd.f32 0.0, %v859
        %v861 = vpop.f32.mrf.mxu0
        %v862 = vpop.f32.mrf.mxu0
        %v863 = vadd.f32 0.0, %v862
        %v864 = vpop.f32.mrf.mxu0
        %865 = vmatprep.mubr.bf16.mxu0 %v656
        %866 = vmatmul.mubr.bf16.gmra.mxu0 %v655
        %v867 = vpop.f32.mrf.mxu0
        %v868 = vadd.f32 0.0, %v867
        %v869 = vpop.f32.mrf.mxu0
        %v870 = vpop.f32.mrf.mxu0
        %v871 = vadd.f32 0.0, %v870
        %v872 = vpop.f32.mrf.mxu0
        %873 = vmatprep.mubr.bf16.mxu0 %v658
        %874 = vmatmul.mubr.bf16.gmra.mxu0 %v657
        %v875 = vpop.f32.mrf.mxu0
        %v876 = vadd.f32 0.0, %v875
        %v877 = vpop.f32.mrf.mxu0
        %v878 = vpop.f32.mrf.mxu0
        %v879 = vadd.f32 0.0, %v878
        %v880 = vpop.f32.mrf.mxu0
        %881 = vmatprep.mubr.bf16.mxu0 %v660
        %882 = vmatmul.mubr.bf16.gmra.mxu0 %v659
        %v883 = vpop.f32.mrf.mxu0
        %v884 = vadd.f32 0.0, %v883
        %v885 = vpop.f32.mrf.mxu0
        %v886 = vpop.f32.mrf.mxu0
        %v887 = vadd.f32 0.0, %v886
        %v888 = vpop.f32.mrf.mxu0
        %889 = vmatprep.mubr.bf16.mxu0 %v662
        %890 = vmatmul.mubr.bf16.gmra.mxu0 %v661
        %v891 = vpop.f32.mrf.mxu0
        %v892 = vadd.f32 0.0, %v891
        %v893 = vpop.f32.mrf.mxu0
        %v894 = vpop.f32.mrf.mxu0
        %v895 = vadd.f32 0.0, %v894
        %v896 = vpop.f32.mrf.mxu0
        %897 = vmatprep.mubr.bf16.mxu0 %v664
        %898 = vmatmul.mubr.bf16.gmra.mxu0 %v663
        %v899 = vpop.f32.mrf.mxu0
        %v900 = vadd.f32 0.0, %v899
        %v901 = vpop.f32.mrf.mxu0
        %v902 = vpop.f32.mrf.mxu0
        %v903 = vadd.f32 0.0, %v902
        %v904 = vpop.f32.mrf.mxu0
        %905 = vmatprep.mubr.bf16.mxu0 %v666
        %906 = vmatmul.mubr.bf16.gmra.mxu0 %v665
        %v907 = vpop.f32.mrf.mxu0
        %v908 = vadd.f32 0.0, %v907
        %v909 = vpop.f32.mrf.mxu0
        %v910 = vpop.f32.mrf.mxu0
        %v911 = vadd.f32 0.0, %v910
        %v912 = vpop.f32.mrf.mxu0
        %913 = vmatprep.mubr.bf16.mxu0 %v668
        %914 = vmatmul.mubr.bf16.gmra.mxu0 %v667
        %v915 = vpop.f32.mrf.mxu0
        %v916 = vadd.f32 0.0, %v915
        %v917 = vpop.f32.mrf.mxu0
        %v918 = vpop.f32.mrf.mxu0
        %v919 = vadd.f32 0.0, %v918
        %v920 = vpop.f32.mrf.mxu0
        %921 = vmatprep.mubr.bf16.mxu0 %v670
        %922 = vmatmul.mubr.bf16.gmra.mxu0 %v669
        %v923 = vpop.f32.mrf.mxu0
        %v924 = vadd.f32 0.0, %v923
        %v925 = vpop.f32.mrf.mxu0
        %v926 = vpop.f32.mrf.mxu0
        %v927 = vadd.f32 0.0, %v926
        %v928 = vpop.f32.mrf.mxu0
        %929 = vmatprep.mubr.bf16.mxu0 %v672
        %930 = vmatmul.mubr.bf16.gmra.mxu0 %v671
        %v931 = vpop.f32.mrf.mxu0
        %v932 = vadd.f32 0.0, %v931
        %v933 = vpop.f32.mrf.mxu0
        %v934 = vpop.f32.mrf.mxu0
        %v935 = vadd.f32 0.0, %v934
        %v936 = vpop.f32.mrf.mxu0
        %937 = vmatprep.mubr.bf16.mxu0 %v674
        %938 = vmatmul.mubr.bf16.gmra.mxu0 %v673
        %v939 = vpop.f32.mrf.mxu0
        %v940 = vadd.f32 0.0, %v939
        %v941 = vpop.f32.mrf.mxu0
        %v942 = vpop.f32.mrf.mxu0
        %v943 = vadd.f32 0.0, %v942
        %v944 = vpop.f32.mrf.mxu0
        %945 = vmatprep.mubr.bf16.mxu0 %v676
        %946 = vmatmul.mubr.bf16.gmra.mxu0 %v675
        %v947 = vpop.f32.mrf.mxu0
        %v948 = vadd.f32 0.0, %v947
        %v949 = vpop.f32.mrf.mxu0
        %v950 = vpop.f32.mrf.mxu0
        %v951 = vadd.f32 0.0, %v950
        %v952 = vpop.f32.mrf.mxu0
        %953 = vmatprep.mubr.bf16.mxu0 %v678
        %954 = vmatmul.mubr.bf16.gmra.mxu0 %v677
        %v955 = vpop.f32.mrf.mxu0
        %v956 = vadd.f32 0.0, %v955
        %v957 = vpop.f32.mrf.mxu0
        %v958 = vpop.f32.mrf.mxu0
        %v959 = vadd.f32 0.0, %v958
        %v960 = vpop.f32.mrf.mxu0
        %961 = vmatprep.mubr.bf16.mxu0 %v680
        %962 = vmatmul.mubr.bf16.gmra.mxu0 %v679
        %v963 = vpop.f32.mrf.mxu0
        %v964 = vadd.f32 0.0, %v963
        %v965 = vpop.f32.mrf.mxu0
        %v966 = vpop.f32.mrf.mxu0
        %v967 = vadd.f32 0.0, %v966
        %v968 = vpop.f32.mrf.mxu0
        %969 = vdwg.mxu0
        %v970 = vadd.f32 %v457, %v844
        %v971 = vadd.f32 %v458, %v847
        %v972 = vadd.f32 %v459, %v852
        %v973 = vadd.f32 %v460, %v855
        %v974 = vadd.f32 %v461, %v860
        %v975 = vadd.f32 %v462, %v863
        %v976 = vadd.f32 %v463, %v868
        %v977 = vadd.f32 %v464, %v871
        %v978 = vadd.f32 %v465, %v876
        %v979 = vadd.f32 %v466, %v879
        %v980 = vadd.f32 %v467, %v884
        %v981 = vadd.f32 %v468, %v887
        %v982 = vadd.f32 %v469, %v892
        %v983 = vadd.f32 %v470, %v895
        %v984 = vadd.f32 %v471, %v900
        %v985 = vadd.f32 %v472, %v903
        %v986 = vadd.f32 %v473, %v908
        %v987 = vadd.f32 %v474, %v911
        %v988 = vadd.f32 %v475, %v916
        %v989 = vadd.f32 %v476, %v919
        %v990 = vadd.f32 %v477, %v924
        %v991 = vadd.f32 %v478, %v927
        %v992 = vadd.f32 %v479, %v932
        %v993 = vadd.f32 %v480, %v935
        %v994 = vadd.f32 %v481, %v940
        %v995 = vadd.f32 %v482, %v943
        %v996 = vadd.f32 %v483, %v948
        %v997 = vadd.f32 %v484, %v951
        %v998 = vadd.f32 %v485, %v956
        %v999 = vadd.f32 %v486, %v959
        %v1000 = vadd.f32 %v487, %v964
        %v1001 = vadd.f32 %v488, %v967
        %1002 = vst [vmem:[%s411] sm:$0xff] %v970
        %1003 = vst [vmem:[%s411 + $0x8] sm:$0xff] %v971
        %1004 = vst [vmem:[%s411 + $0x10] sm:$0xff] %v972
        %1005 = vst [vmem:[%s411 + $0x18] sm:$0xff] %v973
        %1006 = vst [vmem:[%s411 + $0x20] sm:$0xff] %v974
        %1007 = vst [vmem:[%s411 + $0x28] sm:$0xff] %v975
        %1008 = vst [vmem:[%s411 + $0x30] sm:$0xff] %v976
        %1009 = vst [vmem:[%s411 + $0x38] sm:$0xff] %v977
        %1010 = vst [vmem:[%s411 + $0x40] sm:$0xff] %v978
        %1011 = vst [vmem:[%s411 + $0x48] sm:$0xff] %v979
        %1012 = vst [vmem:[%s411 + $0x50] sm:$0xff] %v980
        %1013 = vst [vmem:[%s411 + $0x58] sm:$0xff] %v981
        %1014 = vst [vmem:[%s411 + $0x60] sm:$0xff] %v982
        %1015 = vst [vmem:[%s411 + $0x68] sm:$0xff] %v983
        %1016 = vst [vmem:[%s411 + $0x70] sm:$0xff] %v984
        %1017 = vst [vmem:[%s411 + $0x78] sm:$0xff] %v985
        %1018 = vst [vmem:[%s411 + $0x80] sm:$0xff] %v986
        %1019 = vst [vmem:[%s411 + $0x88] sm:$0xff] %v987
        %1020 = vst [vmem:[%s411 + $0x90] sm:$0xff] %v988
        %1021 = vst [vmem:[%s411 + $0x98] sm:$0xff] %v989
        %1022 = vst [vmem:[%s411 + $0xa0] sm:$0xff] %v990
        %1023 = vst [vmem:[%s411 + $0xa8] sm:$0xff] %v991
        %1024 = vst [vmem:[%s411 + $0xb0] sm:$0xff] %v992
        %1025 = vst [vmem:[%s411 + $0xb8] sm:$0xff] %v993
        %1026 = vst [vmem:[%s411 + $0xc0] sm:$0xff] %v994
        %1027 = vst [vmem:[%s411 + $0xc8] sm:$0xff] %v995
        %1028 = vst [vmem:[%s411 + $0xd0] sm:$0xff] %v996
        %1029 = vst [vmem:[%s411 + $0xd8] sm:$0xff] %v997
        %1030 = vst [vmem:[%s411 + $0xe0] sm:$0xff] %v998
        %1031 = vst [vmem:[%s411 + $0xe8] sm:$0xff] %v999
        %1032 = vst [vmem:[%s411 + $0xf0] sm:$0xff] %v1000
        %1033 = vst [vmem:[%s411 + $0xf8] sm:$0xff] %v1001
        %s1034 = smul.u32 32, %s19
        %p1035 = scmp.lt.s32.totalorder %s1034, 63
        %s1036 = scalar_select %p1035, %s1034, 63
        %p1037 = scmp.lt.s32.totalorder %s20, 0
        %s1038 = scalar_select %p1037, %s20, 0
        %s1039 = sadd.s32 %s1038, %s1036
        %s1040 = smul.addr %s1039, 8
        %s1041 = scalar_lea.vmem %s3, %s1040
        // Predicated region
        $region75: #{mlsp.29} parent=65 // pred_check
          %p1042 = pneg %p135
        $region76: #{mlsp.29} parent=65 // pred_check_branch
          %1044 = sbr.rel (%p1042) target = $region78
        $region77: #{mlsp.29} parent=65 // pred_region
          %s1045 = smul.u32 32, %s19
        $region78: #{mlsp.29} parent=65 // pred_fallthru
          _
      $region66: #{mlsp.29} parent=5 // pred_fallthru
        _
      %p1046 = scmp.le.s32.totalorder 2, %s9
      // Predicated region
      $region79: #{mlsp.29} parent=5 // pred_check
        %p1047 = pneg %p1046
      $region80: #{mlsp.29} parent=5 // pred_check_branch
        %1049 = sbr.rel (%p1047) target = $region82
      $region81: #{mlsp.29} parent=5 // pred_region
        %s1050 = ssub.s32 %s9, 2
        // Predicated region
        $region83: #{mlsp.29} parent=81 // pred_check
          %p1051 = pneg %p141
        $region84: #{mlsp.29} parent=81 // pred_check_branch
          %1053 = sbr.rel (%p1051) target = $region86
        $region85: #{mlsp.29} parent=81 // pred_region
          %s1054 = smul.u32 32, %s22
          %p1055 = scmp.lt.s32.totalorder %s1054, 63
          %s1056 = scalar_select %p1055, %s1054, 63
          %p1057 = scmp.lt.s32.totalorder %s23, 0
          %s1058 = scalar_select %p1057, %s23, 0
          %s1059 = sadd.s32 %s1058, %s1056
          %s1060 = smul.addr %s1059, 8
          %s1061 = scalar_lea.vmem %s3, %s1060
        $region86: #{mlsp.29} parent=81 // pred_fallthru
          _
      $region82: #{mlsp.29} parent=5 // pred_fallthru
        _
    $region6: #{mlsp.29} parent=1 // loop_footer
      %s13 = sadd.s32 1, %s9
    $region7: #{mlsp.29} parent=1 // loop_footer_branch
      %8 = sbr.rel target = $region3
    $region8: #{mlsp.29} parent=1 // loop_exit
      _

// kernel: mlsp.31
$region0: #{mlsp.31}
  #allocation0 [shape = 'u32[]', space=smem, size = 0x4, offset = 0x4, fixed_abs, tag = 'smem constant byte address 0x4 - core index']
  #allocation1 [shape = 'u32[144,128]{1,0:T(1,128)}', space=vmem, size = 0x12000, scoped, tag = 'internal scratch']
  %s0 = inlined_call_operand.vmem [shape: bf16[512,256], index: 0, kind: input, shape index: {}]
  %s1 = inlined_call_operand.vmem [shape: bf16[256,128], index: 1, kind: input, shape index: {}]
  %s2 = inlined_call_operand.vmem [shape: f32[1,128], index: 2, kind: input, shape index: {}]
  %s3 = inlined_call_operand.vmem [shape: f32[512,128], index: 3, kind: output, shape index: {}]
  %s4 = sld [smem:[#allocation0]]
  $region49: #{mlsp.31} parent=0
    _
  %s6 = ssub.s32 1, %s4
  %s7 = scalar_select 0, %s6, %s4
  loop: start=0, step=1, limit=4
  $region2: #{mlsp.31} parent=0 // loop_pre_header
    _
  $region3: #{mlsp.31} parent=0 // loop_header
    %s9 = sphi 0, %s13
    %p10 = scmp.ge.s32.totalorder %s9, 4
    %s16 = sphi 0, %s35
    %s17 = sphi 0, %s31
    %s18 = sphi 0, %s27
    %s19 = sphi 0, %s16
    %s20 = sphi 0, %s17
    %s21 = sphi 0, %s18
    %s22 = sphi 0, %s19
    %s23 = sphi 0, %s20
    %s24 = sphi 0, %s21
    %s40 = sphi 0, %s42
    %s43 = sphi 0, %s40
    %s44 = sphi 0, %s43
    %s60 = sphi 0, %s44
    %s68 = sphi 0, %s70
    %s71 = sphi 0, %s68
    %s72 = sphi 0, %s71
    %s88 = sphi 0, %s72
    %s94 = sphi 0, %s96
    %s97 = sphi 0, %s94
    %s98 = sphi 0, %s97
    %s114 = sphi 0, %s98
    %s122 = sphi 0, %s124
    %s125 = sphi 0, %s122
    %s126 = sphi 0, %s125
    %s142 = sphi 0, %s126
  $region4: #{mlsp.31} parent=0 // loop_header_branch
    %12 = sbr.rel (%p10) target = $region8
  $region5: #{mlsp.31} parent=0 // loop_body
    %s14 = ssub.s32 %s9, 1
    %s15 = ssub.s32 %s9, 2
    %s25 = sadd.s32 1, %s18
    %p26 = scmp.ge.s32.totalorder %s25, 1
    %s27 = scalar_select %p26, 0, %s25
    %s28 = sadd.s32 1, %s17
    %s29 = scalar_select %p26, %s28, %s17
    %p30 = scmp.ge.s32.totalorder %s29, 1
    %s31 = scalar_select %p30, 0, %s29
    %s32 = sadd.s32 1, %s16
    %s33 = scalar_select %p30, %s32, %s16
    %p34 = scmp.ge.s32.totalorder %s33, 2
    %s35 = scalar_select %p34, 0, %s33
    %s36 = ssub.s32 %s16, %s35
    %s37 = ssub.s32 %s18, %s27
    %s38 = sor.u32 %s36, %s37
    %p39 = scmp.eq.s32.totalorder %s38, 0
    %s41 = sadd.s32 %s40, 1
    %s42 = scalar_select %p39, %s40, %s41
    %p45 = pneg %p39
    %p46 = scmp.eq.s32.totalorder %s9, 1
    %p47 = por %p45, %p46
    %p48 = scmp.ne.s32.totalorder %s40, %s43
    %p49 = scmp.eq.s32.totalorder %s9, 0
    %p50 = por %p48, %p49
    %p51 = scmp.ne.s32.totalorder %s40, %s43
    %p52 = scmp.eq.s32.totalorder %s14, 1
    %p53 = por %p51, %p52
    %p54 = scmp.ne.s32.totalorder %s43, %s44
    %p55 = scmp.eq.s32.totalorder %s14, 0
    %p56 = por %p54, %p55
    %p57 = scmp.ne.s32.totalorder %s43, %s44
    %p58 = scmp.eq.s32.totalorder %s15, 1
    %p59 = por %p57, %p58
    %p61 = scmp.ne.s32.totalorder %s44, %s60
    %p62 = scmp.eq.s32.totalorder %s15, 0
    %p63 = por %p61, %p62
    %s64 = ssub.s32 %s18, %s27
    %s65 = ssub.s32 %s17, %s31
    %s66 = sor.u32 %s64, %s65
    %p67 = scmp.eq.s32.totalorder %s66, 0
    %s69 = sadd.s32 %s68, 1
    %s70 = scalar_select %p67, %s68, %s69
    %p73 = pneg %p67
    %p74 = scmp.eq.s32.totalorder %s9, 1
    %p75 = por %p73, %p74
    %p76 = scmp.ne.s32.totalorder %s68, %s71
    %p77 = scmp.eq.s32.totalorder %s9, 0
    %p78 = por %p76, %p77
    %p79 = scmp.ne.s32.totalorder %s68, %s71
    %p80 = scmp.eq.s32.totalorder %s14, 1
    %p81 = por %p79, %p80
    %p82 = scmp.ne.s32.totalorder %s71, %s72
    %p83 = scmp.eq.s32.totalorder %s14, 0
    %p84 = por %p82, %p83
    %p85 = scmp.ne.s32.totalorder %s71, %s72
    %p86 = scmp.eq.s32.totalorder %s15, 1
    %p87 = por %p85, %p86
    %p89 = scmp.ne.s32.totalorder %s72, %s88
    %p90 = scmp.eq.s32.totalorder %s15, 0
    %p91 = por %p89, %p90
    %s92 = ssub.s32 %s17, %s31
    %p93 = scmp.eq.s32.totalorder %s92, 0
    %s95 = sadd.s32 %s94, 1
    %s96 = scalar_select %p93, %s94, %s95
    %p99 = pneg %p93
    %p100 = scmp.eq.s32.totalorder %s9, 1
    %p101 = por %p99, %p100
    %p102 = scmp.ne.s32.totalorder %s94, %s97
    %p103 = scmp.eq.s32.totalorder %s9, 0
    %p104 = por %p102, %p103
    %p105 = scmp.ne.s32.totalorder %s94, %s97
    %p106 = scmp.eq.s32.totalorder %s14, 1
    %p107 = por %p105, %p106
    %p108 = scmp.ne.s32.totalorder %s97, %s98
    %p109 = scmp.eq.s32.totalorder %s14, 0
    %p110 = por %p108, %p109
    %p111 = scmp.ne.s32.totalorder %s97, %s98
    %p112 = scmp.eq.s32.totalorder %s15, 1
    %p113 = por %p111, %p112
    %p115 = scmp.ne.s32.totalorder %s98, %s114
    %p116 = scmp.eq.s32.totalorder %s15, 0
    %p117 = por %p115, %p116
    %s118 = ssub.s32 %s16, %s35
    %s119 = ssub.s32 %s17, %s31
    %s120 = sor.u32 %s118, %s119
    %p121 = scmp.eq.s32.totalorder %s120, 0
    %s123 = sadd.s32 %s122, 1
    %s124 = scalar_select %p121, %s122, %s123
    %p127 = pneg %p121
    %p128 = scmp.eq.s32.totalorder %s9, 1
    %p129 = por %p127, %p128
    %p130 = scmp.ne.s32.totalorder %s122, %s125
    %p131 = scmp.eq.s32.totalorder %s9, 0
    %p132 = por %p130, %p131
    %p133 = scmp.ne.s32.totalorder %s122, %s125
    %p134 = scmp.eq.s32.totalorder %s14, 1
    %p135 = por %p133, %p134
    %p136 = scmp.ne.s32.totalorder %s125, %s126
    %p137 = scmp.eq.s32.totalorder %s14, 0
    %p138 = por %p136, %p137
    %p139 = scmp.ne.s32.totalorder %s125, %s126
    %p140 = scmp.eq.s32.totalorder %s15, 1
    %p141 = por %p139, %p140
    %p143 = scmp.ne.s32.totalorder %s126, %s142
    %p144 = scmp.eq.s32.totalorder %s15, 0
    %p145 = por %p143, %p144
    %p146 = scmp.le.s32.totalorder 1, %s9
    %p147 = scmp.lt.s32.totalorder %s9, 3
    %p148 = pnand %p146, %p147
    %p149 = pneg %p148
    // Predicated region
    $region9: #{mlsp.31} parent=5 // pred_check
      _
    $region10: #{mlsp.31} parent=5 // pred_check_branch
      %151 = sbr.rel (%p148) target = $region12
    $region11: #{mlsp.31} parent=5 // pred_region
      %s152 = ssub.s32 %s9, 1
      // Predicated region
      $region13: #{mlsp.31} parent=11 // pred_check
        %p153 = pneg %p84
      $region14: #{mlsp.31} parent=11 // pred_check_branch
        %155 = sbr.rel (%p153) target = $region16
      $region15: #{mlsp.31} parent=11 // pred_region
        %s156 = smul.u32 32, %s21
        %p157 = scmp.lt.s32.totalorder %s156, 31
        %s158 = scalar_select %p157, %s156, 31
        %p159 = scmp.lt.s32.totalorder %s20, 0
        %s160 = scalar_select %p159, %s20, 0
        %s161 = sadd.s32 %s160, %s158
        %s162 = smul.addr %s161, 4
        %s163 = scalar_lea.vmem %s1, %s162
        %s164 = smul.u32 32, %s21
      $region16: #{mlsp.31} parent=11 // pred_fallthru
        _
      // Predicated region
      $region17: #{mlsp.31} parent=11 // pred_check
        %p165 = pneg %p110
      $region18: #{mlsp.31} parent=11 // pred_check_branch
        %167 = sbr.rel (%p165) target = $region20
      $region19: #{mlsp.31} parent=11 // pred_region
        %p168 = scmp.lt.s32.totalorder %s20, 0
        %s169 = scalar_select %p168, %s20, 0
        %s170 = scalar_lea.vmem %s2, %s169
      $region20: #{mlsp.31} parent=11 // pred_fallthru
        _
    $region12: #{mlsp.31} parent=5 // pred_fallthru
      _
    %p171 = scmp.lt.s32.totalorder %s9, 2
    // Predicated region
    $region21: #{mlsp.31} parent=5 // pred_check
      %p172 = pneg %p171
    $region22: #{mlsp.31} parent=5 // pred_check_branch
      %174 = sbr.rel (%p172) target = $region24
    $region23: #{mlsp.31} parent=5 // pred_region
      // Predicated region
      $region25: #{mlsp.31} parent=23 // pred_check
        %p175 = pneg %p50
      $region26: #{mlsp.31} parent=23 // pred_check_branch
        %177 = sbr.rel (%p175) target = $region28
      $region27: #{mlsp.31} parent=23 // pred_region
        %s178 = smul.u32 32, %s16
        %s179 = smul.u32 2, %s18
        %p180 = scmp.lt.s32.totalorder %s178, 63
        %s181 = scalar_select %p180, %s178, 63
        %p182 = scmp.lt.s32.totalorder %s179, 1
        %s183 = scalar_select %p182, %s179, 1
        %s184 = smul.addr %s181, 2
        %s185 = sadd.s32 %s183, %s184
        %s186 = smul.addr %s185, 4
        %s187 = scalar_lea.vmem %s0, %s186
        %s188 = smul.u32 32, %s16
        %s189 = smul.u32 2, %s18
      $region28: #{mlsp.31} parent=23 // pred_fallthru
        _
    $region24: #{mlsp.31} parent=5 // pred_fallthru
      _
    %p190 = scmp.le.s32.totalorder 1, %s9
    %p191 = scmp.lt.s32.totalorder %s9, 3
    %p192 = pnand %p190, %p191
    %p193 = pneg %p192
    // Predicated region
    $region29: #{mlsp.31} parent=5 // pred_check
      _
    $region30: #{mlsp.31} parent=5 // pred_check_branch
      %195 = sbr.rel (%p192) target = $region32
    $region31: #{mlsp.31} parent=5 // pred_region
      %s196 = ssub.s32 %s9, 1
      %s197 = smul.u32 32, %s19
      %s198 = smul.u32 2, %s21
      %p199 = scmp.lt.s32.totalorder %s197, 63
      %s200 = scalar_select %p199, %s197, 63
      %p201 = scmp.lt.s32.totalorder %s198, 1
      %s202 = scalar_select %p201, %s198, 1
      %s203 = smul.addr %s200, 2
      %s204 = sadd.s32 %s202, %s203
      %s205 = smul.addr %s204, 4
      %s206 = scalar_lea.vmem %s0, %s205
      %p207 = pneg %p56
      %p208 = pneg %p53
      %s209 = smul.u32 32, %s21
      %p210 = scmp.lt.s32.totalorder %s209, 31
      %s211 = scalar_select %p210, %s209, 31
      %p212 = scmp.lt.s32.totalorder %s20, 0
      %s213 = scalar_select %p212, %s20, 0
      %s214 = sadd.s32 %s213, %s211
      %s215 = smul.addr %s214, 4
      %s216 = scalar_lea.vmem %s1, %s215
      %p217 = pneg %p84
      %p218 = pneg %p81
      %p219 = scmp.lt.s32.totalorder %s20, 0
      %s220 = scalar_select %p219, %s20, 0
      %s221 = scalar_lea.vmem %s2, %s220
      %p222 = pneg %p110
      %p223 = pneg %p107
      %p224 = pneg %p138
      %p225 = pneg %p135
      %s226 = smul.u32 32, %s19
      %p227 = scmp.lt.s32.totalorder %s226, 63
      %s228 = scalar_select %p227, %s226, 63
      %p229 = scmp.lt.s32.totalorder %s20, 0
      %s230 = scalar_select %p229, %s20, 0
      %s231 = sadd.s32 %s230, %s228
      %s232 = smul.addr %s231, 8
      %s233 = scalar_lea.vmem %s3, %s232
      %s234 = smul.u32 32, %s19
      %s235 = smul.u32 2, %s21
      %p236 = scmp.lt.s32.totalorder %s234, 63
      %s237 = scalar_select %p236, %s234, 63
      %p238 = scmp.lt.s32.totalorder %s235, 1
      %s239 = scalar_select %p238, %s235, 1
      %s240 = smul.addr %s237, 2
      %s241 = sadd.s32 %s239, %s240
      %s242 = smul.addr %s241, 4
      %s243 = scalar_lea.vmem %s0, %s242
      %s244 = smul.u32 32, %s19
      %s245 = smul.u32 2, %s21
      %s246 = smul.u32 32, %s21
      %p247 = scmp.lt.s32.totalorder %s246, 31
      %s248 = scalar_select %p247, %s246, 31
      %p249 = scmp.lt.s32.totalorder %s20, 0
      %s250 = scalar_select %p249, %s20, 0
      %s251 = sadd.s32 %s250, %s248
      %s252 = smul.addr %s251, 4
      %s253 = scalar_lea.vmem %s1, %s252
      %s254 = smul.u32 32, %s21
      %p255 = scmp.lt.s32.totalorder %s20, 0
      %s256 = scalar_select %p255, %s20, 0
      %s257 = scalar_lea.vmem %s2, %s256
      %s258 = smul.u32 32, %s19
      %p259 = scmp.lt.s32.totalorder %s258, 63
      %s260 = scalar_select %p259, %s258, 63
      %p261 = scmp.lt.s32.totalorder %s20, 0
      %s262 = scalar_select %p261, %s20, 0
      %s263 = sadd.s32 %s262, %s260
      %s264 = smul.addr %s263, 8
      %s265 = scalar_lea.vmem %s3, %s264
      %s266 = smul.u32 32, %s19
      %p268 = scmp.eq.s32.totalorder %s21, 0
      // Predicated region
      $region33: #{mlsp.31} parent=31 // pred_check
        %p269 = pneg %p268
      $region34: #{mlsp.31} parent=31 // pred_check_branch
        %271 = sbr.rel (%p269) target = $region36
      $region35: #{mlsp.31} parent=31 // pred_region
        %v272 = vld [vmem:[%s257] sm:$0x1]
        %v274 = vlaneseq
        %v275 = vshrl.u32 %v274, 7
        %v276 = vsub.s32 0, %v275
        %v277 = vrot.slane %v272, %v276
        %279 = vst [vmem:[%s265] sm:$0xff] %v277
        %280 = vst [vmem:[%s265 + $0x8] sm:$0xff] %v277
        %281 = vst [vmem:[%s265 + $0x10] sm:$0xff] %v277
        %282 = vst [vmem:[%s265 + $0x18] sm:$0xff] %v277
        %283 = vst [vmem:[%s265 + $0x20] sm:$0xff] %v277
        %284 = vst [vmem:[%s265 + $0x28] sm:$0xff] %v277
        %285 = vst [vmem:[%s265 + $0x30] sm:$0xff] %v277
        %286 = vst [vmem:[%s265 + $0x38] sm:$0xff] %v277
        %287 = vst [vmem:[%s265 + $0x40] sm:$0xff] %v277
        %288 = vst [vmem:[%s265 + $0x48] sm:$0xff] %v277
        %289 = vst [vmem:[%s265 + $0x50] sm:$0xff] %v277
        %290 = vst [vmem:[%s265 + $0x58] sm:$0xff] %v277
        %291 = vst [vmem:[%s265 + $0x60] sm:$0xff] %v277
        %292 = vst [vmem:[%s265 + $0x68] sm:$0xff] %v277
        %293 = vst [vmem:[%s265 + $0x70] sm:$0xff] %v277
        %294 = vst [vmem:[%s265 + $0x78] sm:$0xff] %v277
        %295 = vst [vmem:[%s265 + $0x80] sm:$0xff] %v277
        %296 = vst [vmem:[%s265 + $0x88] sm:$0xff] %v277
        %297 = vst [vmem:[%s265 + $0x90] sm:$0xff] %v277
        %298 = vst [vmem:[%s265 + $0x98] sm:$0xff] %v277
        %299 = vst [vmem:[%s265 + $0xa0] sm:$0xff] %v277
        %300 = vst [vmem:[%s265 + $0xa8] sm:$0xff] %v277
        %301 = vst [vmem:[%s265 + $0xb0] sm:$0xff] %v277
        %302 = vst [vmem:[%s265 + $0xb8] sm:$0xff] %v277
        %303 = vst [vmem:[%s265 + $0xc0] sm:$0xff] %v277
        %304 = vst [vmem:[%s265 + $0xc8] sm:$0xff] %v277
        %305 = vst [vmem:[%s265 + $0xd0] sm:$0xff] %v277
        %306 = vst [vmem:[%s265 + $0xd8] sm:$0xff] %v277
        %307 = vst [vmem:[%s265 + $0xe0] sm:$0xff] %v277
        %308 = vst [vmem:[%s265 + $0xe8] sm:$0xff] %v277
        %309 = vst [vmem:[%s265 + $0xf0] sm:$0xff] %v277
        %310 = vst [vmem:[%s265 + $0xf8] sm:$0xff] %v277
      $region36: #{mlsp.31} parent=31 // pred_fallthru
        _
      %v311 = vld [vmem:[%s265] sm:$0xff]
      %v312 = vld [vmem:[%s265 + $0x8] sm:$0xff]
      %v313 = vld [vmem:[%s265 + $0x10] sm:$0xff]
      %v314 = vld [vmem:[%s265 + $0x18] sm:$0xff]
      %v315 = vld [vmem:[%s265 + $0x20] sm:$0xff]
      %v316 = vld [vmem:[%s265 + $0x28] sm:$0xff]
      %v317 = vld [vmem:[%s265 + $0x30] sm:$0xff]
      %v318 = vld [vmem:[%s265 + $0x38] sm:$0xff]
      %v319 = vld [vmem:[%s265 + $0x40] sm:$0xff]
      %v320 = vld [vmem:[%s265 + $0x48] sm:$0xff]
      %v321 = vld [vmem:[%s265 + $0x50] sm:$0xff]
      %v322 = vld [vmem:[%s265 + $0x58] sm:$0xff]
      %v323 = vld [vmem:[%s265 + $0x60] sm:$0xff]
      %v324 = vld [vmem:[%s265 + $0x68] sm:$0xff]
      %v325 = vld [vmem:[%s265 + $0x70] sm:$0xff]
      %v326 = vld [vmem:[%s265 + $0x78] sm:$0xff]
      %v327 = vld [vmem:[%s265 + $0x80] sm:$0xff]
      %v328 = vld [vmem:[%s265 + $0x88] sm:$0xff]
      %v329 = vld [vmem:[%s265 + $0x90] sm:$0xff]
      %v330 = vld [vmem:[%s265 + $0x98] sm:$0xff]
      %v331 = vld [vmem:[%s265 + $0xa0] sm:$0xff]
      %v332 = vld [vmem:[%s265 + $0xa8] sm:$0xff]
      %v333 = vld [vmem:[%s265 + $0xb0] sm:$0xff]
      %v334 = vld [vmem:[%s265 + $0xb8] sm:$0xff]
      %v335 = vld [vmem:[%s265 + $0xc0] sm:$0xff]
      %v336 = vld [vmem:[%s265 + $0xc8] sm:$0xff]
      %v337 = vld [vmem:[%s265 + $0xd0] sm:$0xff]
      %v338 = vld [vmem:[%s265 + $0xd8] sm:$0xff]
      %v339 = vld [vmem:[%s265 + $0xe0] sm:$0xff]
      %v340 = vld [vmem:[%s265 + $0xe8] sm:$0xff]
      %v341 = vld [vmem:[%s265 + $0xf0] sm:$0xff]
      %v342 = vld [vmem:[%s265 + $0xf8] sm:$0xff]
      %v343 = vld [vmem:[%s243] sm:$0xff]
      %v344 = vld [vmem:[%s243 + $0x8] sm:$0xff]
      %v345 = vld [vmem:[%s243 + $0x10] sm:$0xff]
      %v346 = vld [vmem:[%s243 + $0x18] sm:$0xff]
      %v347 = vld [vmem:[%s243 + $0x20] sm:$0xff]
      %v348 = vld [vmem:[%s243 + $0x28] sm:$0xff]
      %v349 = vld [vmem:[%s243 + $0x30] sm:$0xff]
      %v350 = vld [vmem:[%s243 + $0x38] sm:$0xff]
      %v351 = vld [vmem:[%s243 + $0x40] sm:$0xff]
      %v352 = vld [vmem:[%s243 + $0x48] sm:$0xff]
      %v353 = vld [vmem:[%s243 + $0x50] sm:$0xff]
      %v354 = vld [vmem:[%s243 + $0x58] sm:$0xff]
      %v355 = vld [vmem:[%s243 + $0x60] sm:$0xff]
      %v356 = vld [vmem:[%s243 + $0x68] sm:$0xff]
      %v357 = vld [vmem:[%s243 + $0x70] sm:$0xff]
      %v358 = vld [vmem:[%s243 + $0x78] sm:$0xff]
      %v359 = vld [vmem:[%s243 + $0x80] sm:$0xff]
      %v360 = vld [vmem:[%s243 + $0x88] sm:$0xff]
      %v361 = vld [vmem:[%s243 + $0x90] sm:$0xff]
      %v362 = vld [vmem:[%s243 + $0x98] sm:$0xff]
      %v363 = vld [vmem:[%s243 + $0xa0] sm:$0xff]
      %v364 = vld [vmem:[%s243 + $0xa8] sm:$0xff]
      %v365 = vld [vmem:[%s243 + $0xb0] sm:$0xff]
      %v366 = vld [vmem:[%s243 + $0xb8] sm:$0xff]
      %v367 = vld [vmem:[%s243 + $0xc0] sm:$0xff]
      %v368 = vld [vmem:[%s243 + $0xc8] sm:$0xff]
      %v369 = vld [vmem:[%s243 + $0xd0] sm:$0xff]
      %v370 = vld [vmem:[%s243 + $0xd8] sm:$0xff]
      %v371 = vld [vmem:[%s243 + $0xe0] sm:$0xff]
      %v372 = vld [vmem:[%s243 + $0xe8] sm:$0xff]
      %v373 = vld [vmem:[%s243 + $0xf0] sm:$0xff]
      %v374 = vld [vmem:[%s243 + $0xf8] sm:$0xff]
      %v375 = vld [vmem:[%s253] sm:$0xf]
      %v376 = vld [vmem:[%s253 + $0x4] sm:$0xf]
      %v377 = vld [vmem:[%s253 + $0x8] sm:$0xf]
      %v378 = vld [vmem:[%s253 + $0xc] sm:$0xf]
      %v379 = vld [vmem:[%s253 + $0x10] sm:$0xf]
      %v380 = vld [vmem:[%s253 + $0x14] sm:$0xf]
      %v381 = vld [vmem:[%s253 + $0x18] sm:$0xf]
      %v382 = vld [vmem:[%s253 + $0x1c] sm:$0xf]
      %v383 = vld [vmem:[%s253 + $0x20] sm:$0xf]
      %v384 = vld [vmem:[%s253 + $0x24] sm:$0xf]
      %v385 = vld [vmem:[%s253 + $0x28] sm:$0xf]
      %v386 = vld [vmem:[%s253 + $0x2c] sm:$0xf]
      %v387 = vld [vmem:[%s253 + $0x30] sm:$0xf]
      %v388 = vld [vmem:[%s253 + $0x34] sm:$0xf]
      %v389 = vld [vmem:[%s253 + $0x38] sm:$0xf]
      %v390 = vld [vmem:[%s253 + $0x3c] sm:$0xf]
      %v391 = vld [vmem:[%s253 + $0x40] sm:$0xf]
      %v392 = vld [vmem:[%s253 + $0x44] sm:$0xf]
      %v393 = vld [vmem:[%s253 + $0x48] sm:$0xf]
      %v394 = vld [vmem:[%s253 + $0x4c] sm:$0xf]
      %v395 = vld [vmem:[%s253 + $0x50] sm:$0xf]
      %v396 = vld [vmem:[%s253 + $0x54] sm:$0xf]
      %v397 = vld [vmem:[%s253 + $0x58] sm:$0xf]
      %v398 = vld [vmem:[%s253 + $0x5c] sm:$0xf]
      %v399 = vld [vmem:[%s253 + $0x60] sm:$0xf]
      %v400 = vld [vmem:[%s253 + $0x64] sm:$0xf]
      %v401 = vld [vmem:[%s253 + $0x68] sm:$0xf]
      %v402 = vld [vmem:[%s253 + $0x6c] sm:$0xf]
      %v403 = vld [vmem:[%s253 + $0x70] sm:$0xf]
      %v404 = vld [vmem:[%s253 + $0x74] sm:$0xf]
      %v405 = vld [vmem:[%s253 + $0x78] sm:$0xf]
      %v406 = vld [vmem:[%s253 + $0x7c] sm:$0xf]
      %v439 = vunpack.c.l.b16 %v343
      %v440 = vunpack.c.h.b16 %v343
      %v441 = vunpack.c.l.b16 %v344
      %v442 = vunpack.c.h.b16 %v344
      %v443 = vunpack.c.l.b16 %v345
      %v444 = vunpack.c.h.b16 %v345
      %v445 = vunpack.c.l.b16 %v346
      %v446 = vunpack.c.h.b16 %v346
      %v447 = vunpack.c.l.b16 %v347
      %v448 = vunpack.c.h.b16 %v347
      %v449 = vunpack.c.l.b16 %v348
      %v450 = vunpack.c.h.b16 %v348
      %v451 = vunpack.c.l.b16 %v349
      %v452 = vunpack.c.h.b16 %v349
      %v453 = vunpack.c.l.b16 %v350
      %v454 = vunpack.c.h.b16 %v350
      %v455 = vunpack.c.l.b16 %v351
      %v456 = vunpack.c.h.b16 %v351
      %v457 = vunpack.c.l.b16 %v352
      %v458 = vunpack.c.h.b16 %v352
      %v459 = vunpack.c.l.b16 %v353
      %v460 = vunpack.c.h.b16 %v353
      %v461 = vunpack.c.l.b16 %v354
      %v462 = vunpack.c.h.b16 %v354
      %v463 = vunpack.c.l.b16 %v355
      %v464 = vunpack.c.h.b16 %v355
      %v465 = vunpack.c.l.b16 %v356
      %v466 = vunpack.c.h.b16 %v356
      %v467 = vunpack.c.l.b16 %v357
      %v468 = vunpack.c.h.b16 %v357
      %v469 = vunpack.c.l.b16 %v358
      %v470 = vunpack.c.h.b16 %v358
      %v471 = vunpack.c.l.b16 %v359
      %v472 = vunpack.c.h.b16 %v359
      %v473 = vunpack.c.l.b16 %v360
      %v474 = vunpack.c.h.b16 %v360
      %v475 = vunpack.c.l.b16 %v361
      %v476 = vunpack.c.h.b16 %v361
      %v477 = vunpack.c.l.b16 %v362
      %v478 = vunpack.c.h.b16 %v362
      %v479 = vunpack.c.l.b16 %v363
      %v480 = vunpack.c.h.b16 %v363
      %v481 = vunpack.c.l.b16 %v364
      %v482 = vunpack.c.h.b16 %v364
      %v483 = vunpack.c.l.b16 %v365
      %v484 = vunpack.c.h.b16 %v365
      %v485 = vunpack.c.l.b16 %v366
      %v486 = vunpack.c.h.b16 %v366
      %v487 = vunpack.c.l.b16 %v367
      %v488 = vunpack.c.h.b16 %v367
      %v489 = vunpack.c.l.b16 %v368
      %v490 = vunpack.c.h.b16 %v368
      %v491 = vunpack.c.l.b16 %v369
      %v492 = vunpack.c.h.b16 %v369
      %v493 = vunpack.c.l.b16 %v370
      %v494 = vunpack.c.h.b16 %v370
      %v495 = vunpack.c.l.b16 %v371
      %v496 = vunpack.c.h.b16 %v371
      %v497 = vunpack.c.l.b16 %v372
      %v498 = vunpack.c.h.b16 %v372
      %v499 = vunpack.c.l.b16 %v373
      %v500 = vunpack.c.h.b16 %v373
      %v501 = vunpack.c.l.b16 %v374
      %v502 = vunpack.c.h.b16 %v374
      %v503 = vpack.c.b16 %v441, %v439
      %v504 = vpack.c.b16 %v442, %v440
      %v505 = vpack.c.b16 %v445, %v443
      %v506 = vpack.c.b16 %v446, %v444
      %v507 = vpack.c.b16 %v449, %v447
      %v508 = vpack.c.b16 %v450, %v448
      %v509 = vpack.c.b16 %v453, %v451
      %v510 = vpack.c.b16 %v454, %v452
      %v511 = vpack.c.b16 %v457, %v455
      %v512 = vpack.c.b16 %v458, %v456
      %v513 = vpack.c.b16 %v461, %v459
      %v514 = vpack.c.b16 %v462, %v460
      %v515 = vpack.c.b16 %v465, %v463
      %v516 = vpack.c.b16 %v466, %v464
      %v517 = vpack.c.b16 %v469, %v467
      %v518 = vpack.c.b16 %v470, %v468
      %v519 = vpack.c.b16 %v473, %v471
      %v520 = vpack.c.b16 %v474, %v472
      %v521 = vpack.c.b16 %v477, %v475
      %v522 = vpack.c.b16 %v478, %v476
      %v523 = vpack.c.b16 %v481, %v479
      %v524 = vpack.c.b16 %v482, %v480
      %v525 = vpack.c.b16 %v485, %v483
      %v526 = vpack.c.b16 %v486, %v484
      %v527 = vpack.c.b16 %v489, %v487
      %v528 = vpack.c.b16 %v490, %v488
      %v529 = vpack.c.b16 %v493, %v491
      %v530 = vpack.c.b16 %v494, %v492
      %v531 = vpack.c.b16 %v497, %v495
      %v532 = vpack.c.b16 %v498, %v496
      %v533 = vpack.c.b16 %v501, %v499
      %v534 = vpack.c.b16 %v502, %v500
      %v599 = vunpack.c.l.b16 %v375
      %v600 = vunpack.c.l.b16 %v376
      %v601 = vunpack.c.l.b16 %v377
      %v602 = vunpack.c.l.b16 %v378
      %v603 = vunpack.c.l.b16 %v379
      %v604 = vunpack.c.l.b16 %v380
      %v605 = vunpack.c.l.b16 %v381
      %v606 = vunpack.c.l.b16 %v382
      %v607 = vunpack.c.l.b16 %v383
      %v608 = vunpack.c.l.b16 %v384
      %v609 = vunpack.c.l.b16 %v385
      %v610 = vunpack.c.l.b16 %v386
      %v611 = vunpack.c.l.b16 %v387
      %v612 = vunpack.c.l.b16 %v388
      %v613 = vunpack.c.l.b16 %v389
      %v614 = vunpack.c.l.b16 %v390
      %v615 = vunpack.c.l.b16 %v391
      %v616 = vunpack.c.l.b16 %v392
      %v617 = vunpack.c.l.b16 %v393
      %v618 = vunpack.c.l.b16 %v394
      %v619 = vunpack.c.l.b16 %v395
      %v620 = vunpack.c.l.b16 %v396
      %v621 = vunpack.c.l.b16 %v397
      %v622 = vunpack.c.l.b16 %v398
      %v623 = vunpack.c.l.b16 %v399
      %v624 = vunpack.c.l.b16 %v400
      %v625 = vunpack.c.l.b16 %v401
      %v626 = vunpack.c.l.b16 %v402
      %v627 = vunpack.c.l.b16 %v403
      %v628 = vunpack.c.l.b16 %v404
      %v629 = vunpack.c.l.b16 %v405
      %v630 = vunpack.c.l.b16 %v406
      %v631 = vpack.c.b16 %v600, %v599
      %v632 = vpack.c.b16 %v602, %v601
      %v633 = vpack.c.b16 %v604, %v603
      %v634 = vpack.c.b16 %v606, %v605
      %v635 = vpack.c.b16 %v608, %v607
      %v636 = vpack.c.b16 %v610, %v609
      %v637 = vpack.c.b16 %v612, %v611
      %v638 = vpack.c.b16 %v614, %v613
      %v639 = vpack.c.b16 %v616, %v615
      %v640 = vpack.c.b16 %v618, %v617
      %v641 = vpack.c.b16 %v620, %v619
      %v642 = vpack.c.b16 %v622, %v621
      %v643 = vpack.c.b16 %v624, %v623
      %v644 = vpack.c.b16 %v626, %v625
      %v645 = vpack.c.b16 %v628, %v627
      %v646 = vpack.c.b16 %v630, %v629
      %663 = vmatprep.subr.bf16.mxu0 0
      %664 = vmatpush1.bf16.msra.mxu0 %v638
      %665 = vmatprep.subr.bf16.mxu0 0
      %666 = vmatpush1.bf16.msra.mxu0 %v637
      %667 = vmatprep.subr.bf16.mxu0 0
      %668 = vmatpush1.bf16.msra.mxu0 %v636
      %669 = vmatprep.subr.bf16.mxu0 0
      %670 = vmatpush1.bf16.msra.mxu0 %v635
      %671 = vmatprep.subr.bf16.mxu0 0
      %672 = vmatpush1.bf16.msra.mxu0 %v634
      %673 = vmatprep.subr.bf16.mxu0 0
      %674 = vmatpush1.bf16.msra.mxu0 %v633
      %675 = vmatprep.subr.bf16.mxu0 0
      %676 = vmatpush1.bf16.msra.mxu0 %v632
      %677 = vmatprep.subr.bf16.mxu0 0
      %678 = vmatpush1.bf16.msra.mxu0 %v631
      %679 = vmatprep.subr.bf16.mxu0 0
      %680 = vmatpush2.bf16.msra.mxu0 %v646
      %681 = vmatprep.subr.bf16.mxu0 0
      %682 = vmatpush2.bf16.msra.mxu0 %v645
      %683 = vmatprep.subr.bf16.mxu0 0
      %684 = vmatpush2.bf16.msra.mxu0 %v644
      %685 = vmatprep.subr.bf16.mxu0 0
      %686 = vmatpush2.bf16.msra.mxu0 %v643
      %687 = vmatprep.subr.bf16.mxu0 0
      %688 = vmatpush2.bf16.msra.mxu0 %v642
      %689 = vmatprep.subr.bf16.mxu0 0
      %690 = vmatpush2.bf16.msra.mxu0 %v641
      %691 = vmatprep.subr.bf16.mxu0 0
      %692 = vmatpush2.bf16.msra.mxu0 %v640
      %693 = vmatprep.subr.bf16.mxu0 0
      %694 = vmatpush2.bf16.msra.mxu0 %v639
      %695 = vmatprep.mubr.bf16.mxu0 %v504
      %696 = vmatmul.mubr.bf16.gmra.mxu0 %v503
      %v697 = vpop.f32.mrf.mxu0
      %v698 = vadd.f32 0.0, %v697
      %v699 = vpop.f32.mrf.mxu0
      %v700 = vpop.f32.mrf.mxu0
      %v701 = vadd.f32 0.0, %v700
      %v702 = vpop.f32.mrf.mxu0
      %703 = vmatprep.mubr.bf16.mxu0 %v506
      %704 = vmatmul.mubr.bf16.gmra.mxu0 %v505
      %v705 = vpop.f32.mrf.mxu0
      %v706 = vadd.f32 0.0, %v705
      %v707 = vpop.f32.mrf.mxu0
      %v708 = vpop.f32.mrf.mxu0
      %v709 = vadd.f32 0.0, %v708
      %v710 = vpop.f32.mrf.mxu0
      %711 = vmatprep.mubr.bf16.mxu0 %v508
      %712 = vmatmul.mubr.bf16.gmra.mxu0 %v507
      %v713 = vpop.f32.mrf.mxu0
      %v714 = vadd.f32 0.0, %v713
      %v715 = vpop.f32.mrf.mxu0
      %v716 = vpop.f32.mrf.mxu0
      %v717 = vadd.f32 0.0, %v716
      %v718 = vpop.f32.mrf.mxu0
      %719 = vmatprep.mubr.bf16.mxu0 %v510
      %720 = vmatmul.mubr.bf16.gmra.mxu0 %v509
      %v721 = vpop.f32.mrf.mxu0
      %v722 = vadd.f32 0.0, %v721
      %v723 = vpop.f32.mrf.mxu0
      %v724 = vpop.f32.mrf.mxu0
      %v725 = vadd.f32 0.0, %v724
      %v726 = vpop.f32.mrf.mxu0
      %727 = vmatprep.mubr.bf16.mxu0 %v512
      %728 = vmatmul.mubr.bf16.gmra.mxu0 %v511
      %v729 = vpop.f32.mrf.mxu0
      %v730 = vadd.f32 0.0, %v729
      %v731 = vpop.f32.mrf.mxu0
      %v732 = vpop.f32.mrf.mxu0
      %v733 = vadd.f32 0.0, %v732
      %v734 = vpop.f32.mrf.mxu0
      %735 = vmatprep.mubr.bf16.mxu0 %v514
      %736 = vmatmul.mubr.bf16.gmra.mxu0 %v513
      %v737 = vpop.f32.mrf.mxu0
      %v738 = vadd.f32 0.0, %v737
      %v739 = vpop.f32.mrf.mxu0
      %v740 = vpop.f32.mrf.mxu0
      %v741 = vadd.f32 0.0, %v740
      %v742 = vpop.f32.mrf.mxu0
      %743 = vmatprep.mubr.bf16.mxu0 %v516
      %744 = vmatmul.mubr.bf16.gmra.mxu0 %v515
      %v745 = vpop.f32.mrf.mxu0
      %v746 = vadd.f32 0.0, %v745
      %v747 = vpop.f32.mrf.mxu0
      %v748 = vpop.f32.mrf.mxu0
      %v749 = vadd.f32 0.0, %v748
      %v750 = vpop.f32.mrf.mxu0
      %751 = vmatprep.mubr.bf16.mxu0 %v518
      %752 = vmatmul.mubr.bf16.gmra.mxu0 %v517
      %v753 = vpop.f32.mrf.mxu0
      %v754 = vadd.f32 0.0, %v753
      %v755 = vpop.f32.mrf.mxu0
      %v756 = vpop.f32.mrf.mxu0
      %v757 = vadd.f32 0.0, %v756
      %v758 = vpop.f32.mrf.mxu0
      %759 = vmatprep.mubr.bf16.mxu0 %v520
      %760 = vmatmul.mubr.bf16.gmra.mxu0 %v519
      %v761 = vpop.f32.mrf.mxu0
      %v762 = vadd.f32 0.0, %v761
      %v763 = vpop.f32.mrf.mxu0
      %v764 = vpop.f32.mrf.mxu0
      %v765 = vadd.f32 0.0, %v764
      %v766 = vpop.f32.mrf.mxu0
      %767 = vmatprep.mubr.bf16.mxu0 %v522
      %768 = vmatmul.mubr.bf16.gmra.mxu0 %v521
      %v769 = vpop.f32.mrf.mxu0
      %v770 = vadd.f32 0.0, %v769
      %v771 = vpop.f32.mrf.mxu0
      %v772 = vpop.f32.mrf.mxu0
      %v773 = vadd.f32 0.0, %v772
      %v774 = vpop.f32.mrf.mxu0
      %775 = vmatprep.mubr.bf16.mxu0 %v524
      %776 = vmatmul.mubr.bf16.gmra.mxu0 %v523
      %v777 = vpop.f32.mrf.mxu0
      %v778 = vadd.f32 0.0, %v777
      %v779 = vpop.f32.mrf.mxu0
      %v780 = vpop.f32.mrf.mxu0
      %v781 = vadd.f32 0.0, %v780
      %v782 = vpop.f32.mrf.mxu0
      %783 = vmatprep.mubr.bf16.mxu0 %v526
      %784 = vmatmul.mubr.bf16.gmra.mxu0 %v525
      %v785 = vpop.f32.mrf.mxu0
      %v786 = vadd.f32 0.0, %v785
      %v787 = vpop.f32.mrf.mxu0
      %v788 = vpop.f32.mrf.mxu0
      %v789 = vadd.f32 0.0, %v788
      %v790 = vpop.f32.mrf.mxu0
      %791 = vmatprep.mubr.bf16.mxu0 %v528
      %792 = vmatmul.mubr.bf16.gmra.mxu0 %v527
      %v793 = vpop.f32.mrf.mxu0
      %v794 = vadd.f32 0.0, %v793
      %v795 = vpop.f32.mrf.mxu0
      %v796 = vpop.f32.mrf.mxu0
      %v797 = vadd.f32 0.0, %v796
      %v798 = vpop.f32.mrf.mxu0
      %799 = vmatprep.mubr.bf16.mxu0 %v530
      %800 = vmatmul.mubr.bf16.gmra.mxu0 %v529
      %v801 = vpop.f32.mrf.mxu0
      %v802 = vadd.f32 0.0, %v801
      %v803 = vpop.f32.mrf.mxu0
      %v804 = vpop.f32.mrf.mxu0
      %v805 = vadd.f32 0.0, %v804
      %v806 = vpop.f32.mrf.mxu0
      %807 = vmatprep.mubr.bf16.mxu0 %v532
      %808 = vmatmul.mubr.bf16.gmra.mxu0 %v531
      %v809 = vpop.f32.mrf.mxu0
      %v810 = vadd.f32 0.0, %v809
      %v811 = vpop.f32.mrf.mxu0
      %v812 = vpop.f32.mrf.mxu0
      %v813 = vadd.f32 0.0, %v812
      %v814 = vpop.f32.mrf.mxu0
      %815 = vmatprep.mubr.bf16.mxu0 %v534
      %816 = vmatmul.mubr.bf16.gmra.mxu0 %v533
      %v817 = vpop.f32.mrf.mxu0
      %v818 = vadd.f32 0.0, %v817
      %v819 = vpop.f32.mrf.mxu0
      %v820 = vpop.f32.mrf.mxu0
      %v821 = vadd.f32 0.0, %v820
      %v822 = vpop.f32.mrf.mxu0
      %823 = vdwg.mxu0
      %v824 = vadd.f32 %v311, %v698
      %v825 = vadd.f32 %v312, %v701
      %v826 = vadd.f32 %v313, %v706
      %v827 = vadd.f32 %v314, %v709
      %v828 = vadd.f32 %v315, %v714
      %v829 = vadd.f32 %v316, %v717
      %v830 = vadd.f32 %v317, %v722
      %v831 = vadd.f32 %v318, %v725
      %v832 = vadd.f32 %v319, %v730
      %v833 = vadd.f32 %v320, %v733
      %v834 = vadd.f32 %v321, %v738
      %v835 = vadd.f32 %v322, %v741
      %v836 = vadd.f32 %v323, %v746
      %v837 = vadd.f32 %v324, %v749
      %v838 = vadd.f32 %v325, %v754
      %v839 = vadd.f32 %v326, %v757
      %v840 = vadd.f32 %v327, %v762
      %v841 = vadd.f32 %v328, %v765
      %v842 = vadd.f32 %v329, %v770
      %v843 = vadd.f32 %v330, %v773
      %v844 = vadd.f32 %v331, %v778
      %v845 = vadd.f32 %v332, %v781
      %v846 = vadd.f32 %v333, %v786
      %v847 = vadd.f32 %v334, %v789
      %v848 = vadd.f32 %v335, %v794
      %v849 = vadd.f32 %v336, %v797
      %v850 = vadd.f32 %v337, %v802
      %v851 = vadd.f32 %v338, %v805
      %v852 = vadd.f32 %v339, %v810
      %v853 = vadd.f32 %v340, %v813
      %v854 = vadd.f32 %v341, %v818
      %v855 = vadd.f32 %v342, %v821
      %856 = vst [vmem:[%s265] sm:$0xff] %v824
      %857 = vst [vmem:[%s265 + $0x8] sm:$0xff] %v825
      %858 = vst [vmem:[%s265 + $0x10] sm:$0xff] %v826
      %859 = vst [vmem:[%s265 + $0x18] sm:$0xff] %v827
      %860 = vst [vmem:[%s265 + $0x20] sm:$0xff] %v828
      %861 = vst [vmem:[%s265 + $0x28] sm:$0xff] %v829
      %862 = vst [vmem:[%s265 + $0x30] sm:$0xff] %v830
      %863 = vst [vmem:[%s265 + $0x38] sm:$0xff] %v831
      %864 = vst [vmem:[%s265 + $0x40] sm:$0xff] %v832
      %865 = vst [vmem:[%s265 + $0x48] sm:$0xff] %v833
      %866 = vst [vmem:[%s265 + $0x50] sm:$0xff] %v834
      %867 = vst [vmem:[%s265 + $0x58] sm:$0xff] %v835
      %868 = vst [vmem:[%s265 + $0x60] sm:$0xff] %v836
      %869 = vst [vmem:[%s265 + $0x68] sm:$0xff] %v837
      %870 = vst [vmem:[%s265 + $0x70] sm:$0xff] %v838
      %871 = vst [vmem:[%s265 + $0x78] sm:$0xff] %v839
      %872 = vst [vmem:[%s265 + $0x80] sm:$0xff] %v840
      %873 = vst [vmem:[%s265 + $0x88] sm:$0xff] %v841
      %874 = vst [vmem:[%s265 + $0x90] sm:$0xff] %v842
      %875 = vst [vmem:[%s265 + $0x98] sm:$0xff] %v843
      %876 = vst [vmem:[%s265 + $0xa0] sm:$0xff] %v844
      %877 = vst [vmem:[%s265 + $0xa8] sm:$0xff] %v845
      %878 = vst [vmem:[%s265 + $0xb0] sm:$0xff] %v846
      %879 = vst [vmem:[%s265 + $0xb8] sm:$0xff] %v847
      %880 = vst [vmem:[%s265 + $0xc0] sm:$0xff] %v848
      %881 = vst [vmem:[%s265 + $0xc8] sm:$0xff] %v849
      %882 = vst [vmem:[%s265 + $0xd0] sm:$0xff] %v850
      %883 = vst [vmem:[%s265 + $0xd8] sm:$0xff] %v851
      %884 = vst [vmem:[%s265 + $0xe0] sm:$0xff] %v852
      %885 = vst [vmem:[%s265 + $0xe8] sm:$0xff] %v853
      %886 = vst [vmem:[%s265 + $0xf0] sm:$0xff] %v854
      %887 = vst [vmem:[%s265 + $0xf8] sm:$0xff] %v855
      %s888 = smul.u32 32, %s19
      %p889 = scmp.lt.s32.totalorder %s888, 63
      %s890 = scalar_select %p889, %s888, 63
      %p891 = scmp.lt.s32.totalorder %s20, 0
      %s892 = scalar_select %p891, %s20, 0
      %s893 = sadd.s32 %s892, %s890
      %s894 = smul.addr %s893, 8
      %s895 = scalar_lea.vmem %s3, %s894
      // Predicated region
      $region37: #{mlsp.31} parent=31 // pred_check
        %p896 = pneg %p135
      $region38: #{mlsp.31} parent=31 // pred_check_branch
        %898 = sbr.rel (%p896) target = $region40
      $region39: #{mlsp.31} parent=31 // pred_region
        %s899 = smul.u32 32, %s19
      $region40: #{mlsp.31} parent=31 // pred_fallthru
        _
    $region32: #{mlsp.31} parent=5 // pred_fallthru
      _
    %p900 = scmp.le.s32.totalorder 2, %s9
    // Predicated region
    $region41: #{mlsp.31} parent=5 // pred_check
      %p901 = pneg %p900
    $region42: #{mlsp.31} parent=5 // pred_check_branch
      %903 = sbr.rel (%p901) target = $region44
    $region43: #{mlsp.31} parent=5 // pred_region
      %s904 = ssub.s32 %s9, 2
      // Predicated region
      $region45: #{mlsp.31} parent=43 // pred_check
        %p905 = pneg %p141
      $region46: #{mlsp.31} parent=43 // pred_check_branch
        %907 = sbr.rel (%p905) target = $region48
      $region47: #{mlsp.31} parent=43 // pred_region
        %s908 = smul.u32 32, %s22
        %p909 = scmp.lt.s32.totalorder %s908, 63
        %s910 = scalar_select %p909, %s908, 63
        %p911 = scmp.lt.s32.totalorder %s23, 0
        %s912 = scalar_select %p911, %s23, 0
        %s913 = sadd.s32 %s912, %s910
        %s914 = smul.addr %s913, 8
        %s915 = scalar_lea.vmem %s3, %s914
      $region48: #{mlsp.31} parent=43 // pred_fallthru
        _
    $region44: #{mlsp.31} parent=5 // pred_fallthru
      _
  $region6: #{mlsp.31} parent=0 // loop_footer
    %s13 = sadd.s32 1, %s9
  $region7: #{mlsp.31} parent=0 // loop_footer_branch
    %8 = sbr.rel target = $region3
  $region8: #{mlsp.31} parent=0 // loop_exit
    _

// kernel: mlsp.38
$region0: #{mlsp.38}
  #allocation0 [shape = 'u32[]', space=smem, size = 0x4, offset = 0x4, fixed_abs, tag = 'smem constant byte address 0x4 - core index']
  #allocation1 [shape = 'u32[144,128]{1,0:T(1,128)}', space=vmem, size = 0x12000, scoped, tag = 'internal scratch']
  %s0 = inlined_call_operand.vmem [shape: f32[32,256], index: 0, kind: input, shape index: {}]
  %s1 = inlined_call_operand.vmem [shape: f32[32,256], index: 1, kind: output, shape index: {}]
  %s2 = sld [smem:[#allocation0]]
  $region37: #{mlsp.38} parent=0
    _
  %s4 = ssub.s32 1, %s2
  %s5 = scalar_select 0, %s4, %s2
  loop: start=0, step=1, limit=6
  $region2: #{mlsp.38} parent=0 // loop_pre_header
    _
  $region3: #{mlsp.38} parent=0 // loop_header
    %s7 = sphi 0, %s11
    %p8 = scmp.ge.s32.totalorder %s7, 6
    %s17 = sphi 0, %s19
    %s20 = sphi 0, %s17
    %s21 = sphi 0, %s20
    %s37 = sphi 0, %s21
    %s43 = sphi 0, %s45
    %s46 = sphi 0, %s43
    %s47 = sphi 0, %s46
    %s63 = sphi 0, %s47
  $region4: #{mlsp.38} parent=0 // loop_header_branch
    %10 = sbr.rel (%p8) target = $region8
  $region5: #{mlsp.38} parent=0 // loop_body
    %s12 = ssub.s32 %s7, 1
    %s13 = ssub.s32 %s7, 2
    %s14 = sadd.s32 %s7, 1
    %s15 = ssub.s32 %s7, %s14
    %p16 = scmp.eq.s32.totalorder %s15, 0
    %s18 = sadd.s32 %s17, 1
    %s19 = scalar_select %p16, %s17, %s18
    %p22 = pneg %p16
    %p23 = scmp.eq.s32.totalorder %s7, 3
    %p24 = por %p22, %p23
    %p25 = scmp.ne.s32.totalorder %s17, %s20
    %p26 = scmp.eq.s32.totalorder %s7, 0
    %p27 = por %p25, %p26
    %p28 = scmp.ne.s32.totalorder %s17, %s20
    %p29 = scmp.eq.s32.totalorder %s12, 3
    %p30 = por %p28, %p29
    %p31 = scmp.ne.s32.totalorder %s20, %s21
    %p32 = scmp.eq.s32.totalorder %s12, 0
    %p33 = por %p31, %p32
    %p34 = scmp.ne.s32.totalorder %s20, %s21
    %p35 = scmp.eq.s32.totalorder %s13, 3
    %p36 = por %p34, %p35
    %p38 = scmp.ne.s32.totalorder %s21, %s37
    %p39 = scmp.eq.s32.totalorder %s13, 0
    %p40 = por %p38, %p39
    %s41 = ssub.s32 %s7, %s14
    %p42 = scmp.eq.s32.totalorder %s41, 0
    %s44 = sadd.s32 %s43, 1
    %s45 = scalar_select %p42, %s43, %s44
    %p48 = pneg %p42
    %p49 = scmp.eq.s32.totalorder %s7, 3
    %p50 = por %p48, %p49
    %p51 = scmp.ne.s32.totalorder %s43, %s46
    %p52 = scmp.eq.s32.totalorder %s7, 0
    %p53 = por %p51, %p52
    %p54 = scmp.ne.s32.totalorder %s43, %s46
    %p55 = scmp.eq.s32.totalorder %s12, 3
    %p56 = por %p54, %p55
    %p57 = scmp.ne.s32.totalorder %s46, %s47
    %p58 = scmp.eq.s32.totalorder %s12, 0
    %p59 = por %p57, %p58
    %p60 = scmp.ne.s32.totalorder %s46, %s47
    %p61 = scmp.eq.s32.totalorder %s13, 3
    %p62 = por %p60, %p61
    %p64 = scmp.ne.s32.totalorder %s47, %s63
    %p65 = scmp.eq.s32.totalorder %s13, 0
    %p66 = por %p64, %p65
    %p67 = scmp.le.s32.totalorder 1, %s7
    %p68 = scmp.lt.s32.totalorder %s7, 5
    %p69 = pnand %p67, %p68
    %p70 = pneg %p69
    // Predicated region
    $region9: #{mlsp.38} parent=5 // pred_check
      _
    $region10: #{mlsp.38} parent=5 // pred_check_branch
      %72 = sbr.rel (%p69) target = $region12
    $region11: #{mlsp.38} parent=5 // pred_region
      %s73 = ssub.s32 %s7, 1
    $region12: #{mlsp.38} parent=5 // pred_fallthru
      _
    %p74 = scmp.lt.s32.totalorder %s7, 4
    // Predicated region
    $region13: #{mlsp.38} parent=5 // pred_check
      %p75 = pneg %p74
    $region14: #{mlsp.38} parent=5 // pred_check_branch
      %77 = sbr.rel (%p75) target = $region16
    $region15: #{mlsp.38} parent=5 // pred_region
      // Predicated region
      $region17: #{mlsp.38} parent=15 // pred_check
        %p78 = pneg %p27
      $region18: #{mlsp.38} parent=15 // pred_check_branch
        %80 = sbr.rel (%p78) target = $region20
      $region19: #{mlsp.38} parent=15 // pred_region
        %p81 = scmp.lt.s32.totalorder %s7, 3
        %s82 = scalar_select %p81, %s7, 3
        %s83 = smul.addr %s82, 2
        %s84 = smul.addr %s83, 8
        %s85 = scalar_lea.vmem %s0, %s84
      $region20: #{mlsp.38} parent=15 // pred_fallthru
        _
    $region16: #{mlsp.38} parent=5 // pred_fallthru
      _
    %p86 = scmp.le.s32.totalorder 1, %s7
    %p87 = scmp.lt.s32.totalorder %s7, 5
    %p88 = pnand %p86, %p87
    %p89 = pneg %p88
    // Predicated region
    $region21: #{mlsp.38} parent=5 // pred_check
      _
    $region22: #{mlsp.38} parent=5 // pred_check_branch
      %91 = sbr.rel (%p88) target = $region24
    $region23: #{mlsp.38} parent=5 // pred_region
      %s92 = ssub.s32 %s7, 1
      %p93 = scmp.lt.s32.totalorder %s12, 3
      %s94 = scalar_select %p93, %s12, 3
      %s95 = smul.addr %s94, 2
      %s96 = smul.addr %s95, 8
      %s97 = scalar_lea.vmem %s0, %s96
      %p98 = pneg %p33
      %p99 = pneg %p30
      %p100 = pneg %p59
      %p101 = pneg %p56
      %p102 = scmp.lt.s32.totalorder %s12, 3
      %s103 = scalar_select %p102, %s12, 3
      %s104 = smul.addr %s103, 2
      %s105 = smul.addr %s104, 8
      %s106 = scalar_lea.vmem %s1, %s105
      %p107 = scmp.lt.s32.totalorder %s12, 3
      %s108 = scalar_select %p107, %s12, 3
      %s109 = smul.addr %s108, 2
      %s110 = smul.addr %s109, 8
      %s111 = scalar_lea.vmem %s0, %s110
      %p112 = scmp.lt.s32.totalorder %s12, 3
      %s113 = scalar_select %p112, %s12, 3
      %s114 = smul.addr %s113, 2
      %s115 = smul.addr %s114, 8
      %s116 = scalar_lea.vmem %s1, %s115
      %v117 = vld [vmem:[%s111] sm:$0xff]
      %v118 = vld [vmem:[%s111 + $0x8] sm:$0xff]
      %v119 = vadd.f32 %v117, %v118
      %120 = vadd.xlane.f32.xlu0 %v119
      %v121 = vpop.xlane.xlu0 %120
      %v122 = vrcp.pop 256.0
      %v123 = vmul.f32 %v121, %v122
      %v124 = vsub.f32 %v117, %v123
      %v125 = vsub.f32 %v118, %v123
      %v126 = vmul.f32 %v124, %v124
      %v127 = vmul.f32 %v125, %v125
      %v128 = vadd.f32 %v126, %v127
      %129 = vadd.xlane.f32.xlu0 %v128
      %v130 = vpop.xlane.xlu0 %129
      %v131 = vmul.f32 %v130, %v122
      %v132 = vadd.f32 %v131, 1e-05
      %v133 = vrsqrt.pop %v132
      %v134 = vmul.f32 %v124, %v133
      %v135 = vmul.f32 %v125, %v133
      %136 = vst [vmem:[%s116] sm:$0xff] %v134
      %137 = vst [vmem:[%s116 + $0x8] sm:$0xff] %v135
      %p138 = scmp.lt.s32.totalorder %s12, 3
      %s139 = scalar_select %p138, %s12, 3
      %s140 = smul.addr %s139, 2
      %s141 = smul.addr %s140, 8
      %s142 = scalar_lea.vmem %s1, %s141
      // Predicated region
      $region25: #{mlsp.38} parent=23 // pred_check
        %p143 = pneg %p56
      $region26: #{mlsp.38} parent=23 // pred_check_branch
        %145 = sbr.rel (%p143) target = $region28
      $region27: #{mlsp.38} parent=23 // pred_region
        _
      $region28: #{mlsp.38} parent=23 // pred_fallthru
        _
    $region24: #{mlsp.38} parent=5 // pred_fallthru
      _
    %p146 = scmp.le.s32.totalorder 2, %s7
    // Predicated region
    $region29: #{mlsp.38} parent=5 // pred_check
      %p147 = pneg %p146
    $region30: #{mlsp.38} parent=5 // pred_check_branch
      %149 = sbr.rel (%p147) target = $region32
    $region31: #{mlsp.38} parent=5 // pred_region
      %s150 = ssub.s32 %s7, 2
      // Predicated region
      $region33: #{mlsp.38} parent=31 // pred_check
        %p151 = pneg %p62
      $region34: #{mlsp.38} parent=31 // pred_check_branch
        %153 = sbr.rel (%p151) target = $region36
      $region35: #{mlsp.38} parent=31 // pred_region
        %p154 = scmp.lt.s32.totalorder %s13, 3
        %s155 = scalar_select %p154, %s13, 3
        %s156 = smul.addr %s155, 2
        %s157 = smul.addr %s156, 8
        %s158 = scalar_lea.vmem %s1, %s157
      $region36: #{mlsp.38} parent=31 // pred_fallthru
        _
    $region32: #{mlsp.38} parent=5 // pred_fallthru
      _
  $region6: #{mlsp.38} parent=0 // loop_footer
    %s11 = sadd.s32 1, %s7
  $region7: #{mlsp.38} parent=0 // loop_footer_branch
    %6 = sbr.rel target = $region3
  $region8: #{mlsp.38} parent=0 // loop_exit
    _

// kernel: mlsp.40
$region0: #{mlsp.40}
  #allocation0 [shape = 'u32[]', space=smem, size = 0x4, offset = 0x4, fixed_abs, tag = 'smem constant byte address 0x4 - core index']
  #allocation1 [shape = 'u32[144,128]{1,0:T(1,128)}', space=vmem, size = 0x12000, scoped, tag = 'internal scratch']
  %s0 = inlined_call_operand.vmem [shape: bf16[1024,128], index: 0, kind: input, shape index: {}]
  %s1 = inlined_call_operand.vmem [shape: bf16[128,128], index: 1, kind: input, shape index: {}]
  %s2 = inlined_call_operand.vmem [shape: f32[1,128], index: 2, kind: input, shape index: {}]
  %s3 = inlined_call_operand.vmem [shape: f32[1024,128], index: 3, kind: output, shape index: {}]
  %s4 = sld [smem:[#allocation0]]
  $region49: #{mlsp.40} parent=0
    _
  %s6 = ssub.s32 1, %s4
  %s7 = scalar_select 0, %s6, %s4
  loop: start=0, step=1, limit=6
  $region2: #{mlsp.40} parent=0 // loop_pre_header
    _
  $region3: #{mlsp.40} parent=0 // loop_header
    %s9 = sphi 0, %s13
    %p10 = scmp.ge.s32.totalorder %s9, 6
    %s16 = sphi 0, %s35
    %s17 = sphi 0, %s31
    %s18 = sphi 0, %s27
    %s19 = sphi 0, %s16
    %s20 = sphi 0, %s17
    %s21 = sphi 0, %s18
    %s22 = sphi 0, %s19
    %s23 = sphi 0, %s20
    %s24 = sphi 0, %s21
    %s40 = sphi 0, %s42
    %s43 = sphi 0, %s40
    %s44 = sphi 0, %s43
    %s60 = sphi 0, %s44
    %s68 = sphi 0, %s70
    %s71 = sphi 0, %s68
    %s72 = sphi 0, %s71
    %s88 = sphi 0, %s72
    %s94 = sphi 0, %s96
    %s97 = sphi 0, %s94
    %s98 = sphi 0, %s97
    %s114 = sphi 0, %s98
    %s122 = sphi 0, %s124
    %s125 = sphi 0, %s122
    %s126 = sphi 0, %s125
    %s142 = sphi 0, %s126
  $region4: #{mlsp.40} parent=0 // loop_header_branch
    %12 = sbr.rel (%p10) target = $region8
  $region5: #{mlsp.40} parent=0 // loop_body
    %s14 = ssub.s32 %s9, 1
    %s15 = ssub.s32 %s9, 2
    %s25 = sadd.s32 1, %s18
    %p26 = scmp.ge.s32.totalorder %s25, 1
    %s27 = scalar_select %p26, 0, %s25
    %s28 = sadd.s32 1, %s17
    %s29 = scalar_select %p26, %s28, %s17
    %p30 = scmp.ge.s32.totalorder %s29, 1
    %s31 = scalar_select %p30, 0, %s29
    %s32 = sadd.s32 1, %s16
    %s33 = scalar_select %p30, %s32, %s16
    %p34 = scmp.ge.s32.totalorder %s33, 4
    %s35 = scalar_select %p34, 0, %s33
    %s36 = ssub.s32 %s16, %s35
    %s37 = ssub.s32 %s18, %s27
    %s38 = sor.u32 %s36, %s37
    %p39 = scmp.eq.s32.totalorder %s38, 0
    %s41 = sadd.s32 %s40, 1
    %s42 = scalar_select %p39, %s40, %s41
    %p45 = pneg %p39
    %p46 = scmp.eq.s32.totalorder %s9, 3
    %p47 = por %p45, %p46
    %p48 = scmp.ne.s32.totalorder %s40, %s43
    %p49 = scmp.eq.s32.totalorder %s9, 0
    %p50 = por %p48, %p49
    %p51 = scmp.ne.s32.totalorder %s40, %s43
    %p52 = scmp.eq.s32.totalorder %s14, 3
    %p53 = por %p51, %p52
    %p54 = scmp.ne.s32.totalorder %s43, %s44
    %p55 = scmp.eq.s32.totalorder %s14, 0
    %p56 = por %p54, %p55
    %p57 = scmp.ne.s32.totalorder %s43, %s44
    %p58 = scmp.eq.s32.totalorder %s15, 3
    %p59 = por %p57, %p58
    %p61 = scmp.ne.s32.totalorder %s44, %s60
    %p62 = scmp.eq.s32.totalorder %s15, 0
    %p63 = por %p61, %p62
    %s64 = ssub.s32 %s18, %s27
    %s65 = ssub.s32 %s17, %s31
    %s66 = sor.u32 %s64, %s65
    %p67 = scmp.eq.s32.totalorder %s66, 0
    %s69 = sadd.s32 %s68, 1
    %s70 = scalar_select %p67, %s68, %s69
    %p73 = pneg %p67
    %p74 = scmp.eq.s32.totalorder %s9, 3
    %p75 = por %p73, %p74
    %p76 = scmp.ne.s32.totalorder %s68, %s71
    %p77 = scmp.eq.s32.totalorder %s9, 0
    %p78 = por %p76, %p77
    %p79 = scmp.ne.s32.totalorder %s68, %s71
    %p80 = scmp.eq.s32.totalorder %s14, 3
    %p81 = por %p79, %p80
    %p82 = scmp.ne.s32.totalorder %s71, %s72
    %p83 = scmp.eq.s32.totalorder %s14, 0
    %p84 = por %p82, %p83
    %p85 = scmp.ne.s32.totalorder %s71, %s72
    %p86 = scmp.eq.s32.totalorder %s15, 3
    %p87 = por %p85, %p86
    %p89 = scmp.ne.s32.totalorder %s72, %s88
    %p90 = scmp.eq.s32.totalorder %s15, 0
    %p91 = por %p89, %p90
    %s92 = ssub.s32 %s17, %s31
    %p93 = scmp.eq.s32.totalorder %s92, 0
    %s95 = sadd.s32 %s94, 1
    %s96 = scalar_select %p93, %s94, %s95
    %p99 = pneg %p93
    %p100 = scmp.eq.s32.totalorder %s9, 3
    %p101 = por %p99, %p100
    %p102 = scmp.ne.s32.totalorder %s94, %s97
    %p103 = scmp.eq.s32.totalorder %s9, 0
    %p104 = por %p102, %p103
    %p105 = scmp.ne.s32.totalorder %s94, %s97
    %p106 = scmp.eq.s32.totalorder %s14, 3
    %p107 = por %p105, %p106
    %p108 = scmp.ne.s32.totalorder %s97, %s98
    %p109 = scmp.eq.s32.totalorder %s14, 0
    %p110 = por %p108, %p109
    %p111 = scmp.ne.s32.totalorder %s97, %s98
    %p112 = scmp.eq.s32.totalorder %s15, 3
    %p113 = por %p111, %p112
    %p115 = scmp.ne.s32.totalorder %s98, %s114
    %p116 = scmp.eq.s32.totalorder %s15, 0
    %p117 = por %p115, %p116
    %s118 = ssub.s32 %s16, %s35
    %s119 = ssub.s32 %s17, %s31
    %s120 = sor.u32 %s118, %s119
    %p121 = scmp.eq.s32.totalorder %s120, 0
    %s123 = sadd.s32 %s122, 1
    %s124 = scalar_select %p121, %s122, %s123
    %p127 = pneg %p121
    %p128 = scmp.eq.s32.totalorder %s9, 3
    %p129 = por %p127, %p128
    %p130 = scmp.ne.s32.totalorder %s122, %s125
    %p131 = scmp.eq.s32.totalorder %s9, 0
    %p132 = por %p130, %p131
    %p133 = scmp.ne.s32.totalorder %s122, %s125
    %p134 = scmp.eq.s32.totalorder %s14, 3
    %p135 = por %p133, %p134
    %p136 = scmp.ne.s32.totalorder %s125, %s126
    %p137 = scmp.eq.s32.totalorder %s14, 0
    %p138 = por %p136, %p137
    %p139 = scmp.ne.s32.totalorder %s125, %s126
    %p140 = scmp.eq.s32.totalorder %s15, 3
    %p141 = por %p139, %p140
    %p143 = scmp.ne.s32.totalorder %s126, %s142
    %p144 = scmp.eq.s32.totalorder %s15, 0
    %p145 = por %p143, %p144
    %p146 = scmp.le.s32.totalorder 1, %s9
    %p147 = scmp.lt.s32.totalorder %s9, 5
    %p148 = pnand %p146, %p147
    %p149 = pneg %p148
    // Predicated region
    $region9: #{mlsp.40} parent=5 // pred_check
      _
    $region10: #{mlsp.40} parent=5 // pred_check_branch
      %151 = sbr.rel (%p148) target = $region12
    $region11: #{mlsp.40} parent=5 // pred_region
      %s152 = ssub.s32 %s9, 1
      // Predicated region
      $region13: #{mlsp.40} parent=11 // pred_check
        %p153 = pneg %p84
      $region14: #{mlsp.40} parent=11 // pred_check_branch
        %155 = sbr.rel (%p153) target = $region16
      $region15: #{mlsp.40} parent=11 // pred_region
        %s156 = smul.u32 16, %s21
        %p157 = scmp.lt.s32.totalorder %s156, 15
        %s158 = scalar_select %p157, %s156, 15
        %p159 = scmp.lt.s32.totalorder %s20, 0
        %s160 = scalar_select %p159, %s20, 0
        %s161 = sadd.s32 %s160, %s158
        %s162 = smul.addr %s161, 4
        %s163 = scalar_lea.vmem %s1, %s162
        %s164 = smul.u32 16, %s21
      $region16: #{mlsp.40} parent=11 // pred_fallthru
        _
      // Predicated region
      $region17: #{mlsp.40} parent=11 // pred_check
        %p165 = pneg %p110
      $region18: #{mlsp.40} parent=11 // pred_check_branch
        %167 = sbr.rel (%p165) target = $region20
      $region19: #{mlsp.40} parent=11 // pred_region
        %p168 = scmp.lt.s32.totalorder %s20, 0
        %s169 = scalar_select %p168, %s20, 0
        %s170 = scalar_lea.vmem %s2, %s169
      $region20: #{mlsp.40} parent=11 // pred_fallthru
        _
    $region12: #{mlsp.40} parent=5 // pred_fallthru
      _
    %p171 = scmp.lt.s32.totalorder %s9, 4
    // Predicated region
    $region21: #{mlsp.40} parent=5 // pred_check
      %p172 = pneg %p171
    $region22: #{mlsp.40} parent=5 // pred_check_branch
      %174 = sbr.rel (%p172) target = $region24
    $region23: #{mlsp.40} parent=5 // pred_region
      // Predicated region
      $region25: #{mlsp.40} parent=23 // pred_check
        %p175 = pneg %p50
      $region26: #{mlsp.40} parent=23 // pred_check_branch
        %177 = sbr.rel (%p175) target = $region28
      $region27: #{mlsp.40} parent=23 // pred_region
        %s178 = smul.u32 32, %s16
        %p179 = scmp.lt.s32.totalorder %s178, 127
        %s180 = scalar_select %p179, %s178, 127
        %p181 = scmp.lt.s32.totalorder %s18, 0
        %s182 = scalar_select %p181, %s18, 0
        %s183 = sadd.s32 %s182, %s180
        %s184 = smul.addr %s183, 4
        %s185 = scalar_lea.vmem %s0, %s184
        %s186 = smul.u32 32, %s16
      $region28: #{mlsp.40} parent=23 // pred_fallthru
        _
    $region24: #{mlsp.40} parent=5 // pred_fallthru
      _
    %p187 = scmp.le.s32.totalorder 1, %s9
    %p188 = scmp.lt.s32.totalorder %s9, 5
    %p189 = pnand %p187, %p188
    %p190 = pneg %p189
    // Predicated region
    $region29: #{mlsp.40} parent=5 // pred_check
      _
    $region30: #{mlsp.40} parent=5 // pred_check_branch
      %192 = sbr.rel (%p189) target = $region32
    $region31: #{mlsp.40} parent=5 // pred_region
      %s193 = ssub.s32 %s9, 1
      %s194 = smul.u32 32, %s19
      %p195 = scmp.lt.s32.totalorder %s194, 127
      %s196 = scalar_select %p195, %s194, 127
      %p197 = scmp.lt.s32.totalorder %s21, 0
      %s198 = scalar_select %p197, %s21, 0
      %s199 = sadd.s32 %s198, %s196
      %s200 = smul.addr %s199, 4
      %s201 = scalar_lea.vmem %s0, %s200
      %p202 = pneg %p56
      %p203 = pneg %p53
      %s204 = smul.u32 16, %s21
      %p205 = scmp.lt.s32.totalorder %s204, 15
      %s206 = scalar_select %p205, %s204, 15
      %p207 = scmp.lt.s32.totalorder %s20, 0
      %s208 = scalar_select %p207, %s20, 0
      %s209 = sadd.s32 %s208, %s206
      %s210 = smul.addr %s209, 4
      %s211 = scalar_lea.vmem %s1, %s210
      %p212 = pneg %p84
      %p213 = pneg %p81
      %p214 = scmp.lt.s32.totalorder %s20, 0
      %s215 = scalar_select %p214, %s20, 0
      %s216 = scalar_lea.vmem %s2, %s215
      %p217 = pneg %p110
      %p218 = pneg %p107
      %p219 = pneg %p138
      %p220 = pneg %p135
      %s221 = smul.u32 32, %s19
      %p222 = scmp.lt.s32.totalorder %s221, 127
      %s223 = scalar_select %p222, %s221, 127
      %p224 = scmp.lt.s32.totalorder %s20, 0
      %s225 = scalar_select %p224, %s20, 0
      %s226 = sadd.s32 %s225, %s223
      %s227 = smul.addr %s226, 8
      %s228 = scalar_lea.vmem %s3, %s227
      %s229 = smul.u32 32, %s19
      %p230 = scmp.lt.s32.totalorder %s229, 127
      %s231 = scalar_select %p230, %s229, 127
      %p232 = scmp.lt.s32.totalorder %s21, 0
      %s233 = scalar_select %p232, %s21, 0
      %s234 = sadd.s32 %s233, %s231
      %s235 = smul.addr %s234, 4
      %s236 = scalar_lea.vmem %s0, %s235
      %s237 = smul.u32 32, %s19
      %s238 = smul.u32 16, %s21
      %p239 = scmp.lt.s32.totalorder %s238, 15
      %s240 = scalar_select %p239, %s238, 15
      %p241 = scmp.lt.s32.totalorder %s20, 0
      %s242 = scalar_select %p241, %s20, 0
      %s243 = sadd.s32 %s242, %s240
      %s244 = smul.addr %s243, 4
      %s245 = scalar_lea.vmem %s1, %s244
      %s246 = smul.u32 16, %s21
      %p247 = scmp.lt.s32.totalorder %s20, 0
      %s248 = scalar_select %p247, %s20, 0
      %s249 = scalar_lea.vmem %s2, %s248
      %s250 = smul.u32 32, %s19
      %p251 = scmp.lt.s32.totalorder %s250, 127
      %s252 = scalar_select %p251, %s250, 127
      %p253 = scmp.lt.s32.totalorder %s20, 0
      %s254 = scalar_select %p253, %s20, 0
      %s255 = sadd.s32 %s254, %s252
      %s256 = smul.addr %s255, 8
      %s257 = scalar_lea.vmem %s3, %s256
      %s258 = smul.u32 32, %s19
      %p260 = scmp.eq.s32.totalorder %s21, 0
      // Predicated region
      $region33: #{mlsp.40} parent=31 // pred_check
        %p261 = pneg %p260
      $region34: #{mlsp.40} parent=31 // pred_check_branch
        %263 = sbr.rel (%p261) target = $region36
      $region35: #{mlsp.40} parent=31 // pred_region
        %v264 = vld [vmem:[%s249] sm:$0x1]
        %v266 = vlaneseq
        %v267 = vshrl.u32 %v266, 7
        %v268 = vsub.s32 0, %v267
        %v269 = vrot.slane %v264, %v268
        %271 = vst [vmem:[%s257] sm:$0xff] %v269
        %272 = vst [vmem:[%s257 + $0x8] sm:$0xff] %v269
        %273 = vst [vmem:[%s257 + $0x10] sm:$0xff] %v269
        %274 = vst [vmem:[%s257 + $0x18] sm:$0xff] %v269
        %275 = vst [vmem:[%s257 + $0x20] sm:$0xff] %v269
        %276 = vst [vmem:[%s257 + $0x28] sm:$0xff] %v269
        %277 = vst [vmem:[%s257 + $0x30] sm:$0xff] %v269
        %278 = vst [vmem:[%s257 + $0x38] sm:$0xff] %v269
        %279 = vst [vmem:[%s257 + $0x40] sm:$0xff] %v269
        %280 = vst [vmem:[%s257 + $0x48] sm:$0xff] %v269
        %281 = vst [vmem:[%s257 + $0x50] sm:$0xff] %v269
        %282 = vst [vmem:[%s257 + $0x58] sm:$0xff] %v269
        %283 = vst [vmem:[%s257 + $0x60] sm:$0xff] %v269
        %284 = vst [vmem:[%s257 + $0x68] sm:$0xff] %v269
        %285 = vst [vmem:[%s257 + $0x70] sm:$0xff] %v269
        %286 = vst [vmem:[%s257 + $0x78] sm:$0xff] %v269
        %287 = vst [vmem:[%s257 + $0x80] sm:$0xff] %v269
        %288 = vst [vmem:[%s257 + $0x88] sm:$0xff] %v269
        %289 = vst [vmem:[%s257 + $0x90] sm:$0xff] %v269
        %290 = vst [vmem:[%s257 + $0x98] sm:$0xff] %v269
        %291 = vst [vmem:[%s257 + $0xa0] sm:$0xff] %v269
        %292 = vst [vmem:[%s257 + $0xa8] sm:$0xff] %v269
        %293 = vst [vmem:[%s257 + $0xb0] sm:$0xff] %v269
        %294 = vst [vmem:[%s257 + $0xb8] sm:$0xff] %v269
        %295 = vst [vmem:[%s257 + $0xc0] sm:$0xff] %v269
        %296 = vst [vmem:[%s257 + $0xc8] sm:$0xff] %v269
        %297 = vst [vmem:[%s257 + $0xd0] sm:$0xff] %v269
        %298 = vst [vmem:[%s257 + $0xd8] sm:$0xff] %v269
        %299 = vst [vmem:[%s257 + $0xe0] sm:$0xff] %v269
        %300 = vst [vmem:[%s257 + $0xe8] sm:$0xff] %v269
        %301 = vst [vmem:[%s257 + $0xf0] sm:$0xff] %v269
        %302 = vst [vmem:[%s257 + $0xf8] sm:$0xff] %v269
      $region36: #{mlsp.40} parent=31 // pred_fallthru
        _
      %v303 = vld [vmem:[%s257] sm:$0xff]
      %v304 = vld [vmem:[%s257 + $0x8] sm:$0xff]
      %v305 = vld [vmem:[%s257 + $0x10] sm:$0xff]
      %v306 = vld [vmem:[%s257 + $0x18] sm:$0xff]
      %v307 = vld [vmem:[%s257 + $0x20] sm:$0xff]
      %v308 = vld [vmem:[%s257 + $0x28] sm:$0xff]
      %v309 = vld [vmem:[%s257 + $0x30] sm:$0xff]
      %v310 = vld [vmem:[%s257 + $0x38] sm:$0xff]
      %v311 = vld [vmem:[%s257 + $0x40] sm:$0xff]
      %v312 = vld [vmem:[%s257 + $0x48] sm:$0xff]
      %v313 = vld [vmem:[%s257 + $0x50] sm:$0xff]
      %v314 = vld [vmem:[%s257 + $0x58] sm:$0xff]
      %v315 = vld [vmem:[%s257 + $0x60] sm:$0xff]
      %v316 = vld [vmem:[%s257 + $0x68] sm:$0xff]
      %v317 = vld [vmem:[%s257 + $0x70] sm:$0xff]
      %v318 = vld [vmem:[%s257 + $0x78] sm:$0xff]
      %v319 = vld [vmem:[%s257 + $0x80] sm:$0xff]
      %v320 = vld [vmem:[%s257 + $0x88] sm:$0xff]
      %v321 = vld [vmem:[%s257 + $0x90] sm:$0xff]
      %v322 = vld [vmem:[%s257 + $0x98] sm:$0xff]
      %v323 = vld [vmem:[%s257 + $0xa0] sm:$0xff]
      %v324 = vld [vmem:[%s257 + $0xa8] sm:$0xff]
      %v325 = vld [vmem:[%s257 + $0xb0] sm:$0xff]
      %v326 = vld [vmem:[%s257 + $0xb8] sm:$0xff]
      %v327 = vld [vmem:[%s257 + $0xc0] sm:$0xff]
      %v328 = vld [vmem:[%s257 + $0xc8] sm:$0xff]
      %v329 = vld [vmem:[%s257 + $0xd0] sm:$0xff]
      %v330 = vld [vmem:[%s257 + $0xd8] sm:$0xff]
      %v331 = vld [vmem:[%s257 + $0xe0] sm:$0xff]
      %v332 = vld [vmem:[%s257 + $0xe8] sm:$0xff]
      %v333 = vld [vmem:[%s257 + $0xf0] sm:$0xff]
      %v334 = vld [vmem:[%s257 + $0xf8] sm:$0xff]
      %v335 = vld [vmem:[%s236] sm:$0xf]
      %v336 = vld [vmem:[%s236 + $0x4] sm:$0xf]
      %v337 = vld [vmem:[%s236 + $0x8] sm:$0xf]
      %v338 = vld [vmem:[%s236 + $0xc] sm:$0xf]
      %v339 = vld [vmem:[%s236 + $0x10] sm:$0xf]
      %v340 = vld [vmem:[%s236 + $0x14] sm:$0xf]
      %v341 = vld [vmem:[%s236 + $0x18] sm:$0xf]
      %v342 = vld [vmem:[%s236 + $0x1c] sm:$0xf]
      %v343 = vld [vmem:[%s236 + $0x20] sm:$0xf]
      %v344 = vld [vmem:[%s236 + $0x24] sm:$0xf]
      %v345 = vld [vmem:[%s236 + $0x28] sm:$0xf]
      %v346 = vld [vmem:[%s236 + $0x2c] sm:$0xf]
      %v347 = vld [vmem:[%s236 + $0x30] sm:$0xf]
      %v348 = vld [vmem:[%s236 + $0x34] sm:$0xf]
      %v349 = vld [vmem:[%s236 + $0x38] sm:$0xf]
      %v350 = vld [vmem:[%s236 + $0x3c] sm:$0xf]
      %v351 = vld [vmem:[%s236 + $0x40] sm:$0xf]
      %v352 = vld [vmem:[%s236 + $0x44] sm:$0xf]
      %v353 = vld [vmem:[%s236 + $0x48] sm:$0xf]
      %v354 = vld [vmem:[%s236 + $0x4c] sm:$0xf]
      %v355 = vld [vmem:[%s236 + $0x50] sm:$0xf]
      %v356 = vld [vmem:[%s236 + $0x54] sm:$0xf]
      %v357 = vld [vmem:[%s236 + $0x58] sm:$0xf]
      %v358 = vld [vmem:[%s236 + $0x5c] sm:$0xf]
      %v359 = vld [vmem:[%s236 + $0x60] sm:$0xf]
      %v360 = vld [vmem:[%s236 + $0x64] sm:$0xf]
      %v361 = vld [vmem:[%s236 + $0x68] sm:$0xf]
      %v362 = vld [vmem:[%s236 + $0x6c] sm:$0xf]
      %v363 = vld [vmem:[%s236 + $0x70] sm:$0xf]
      %v364 = vld [vmem:[%s236 + $0x74] sm:$0xf]
      %v365 = vld [vmem:[%s236 + $0x78] sm:$0xf]
      %v366 = vld [vmem:[%s236 + $0x7c] sm:$0xf]
      %v367 = vld [vmem:[%s245] sm:$0xf]
      %v368 = vld [vmem:[%s245 + $0x4] sm:$0xf]
      %v369 = vld [vmem:[%s245 + $0x8] sm:$0xf]
      %v370 = vld [vmem:[%s245 + $0xc] sm:$0xf]
      %v371 = vld [vmem:[%s245 + $0x10] sm:$0xf]
      %v372 = vld [vmem:[%s245 + $0x14] sm:$0xf]
      %v373 = vld [vmem:[%s245 + $0x18] sm:$0xf]
      %v374 = vld [vmem:[%s245 + $0x1c] sm:$0xf]
      %v375 = vld [vmem:[%s245 + $0x20] sm:$0xf]
      %v376 = vld [vmem:[%s245 + $0x24] sm:$0xf]
      %v377 = vld [vmem:[%s245 + $0x28] sm:$0xf]
      %v378 = vld [vmem:[%s245 + $0x2c] sm:$0xf]
      %v379 = vld [vmem:[%s245 + $0x30] sm:$0xf]
      %v380 = vld [vmem:[%s245 + $0x34] sm:$0xf]
      %v381 = vld [vmem:[%s245 + $0x38] sm:$0xf]
      %v382 = vld [vmem:[%s245 + $0x3c] sm:$0xf]
      %v415 = vunpack.c.l.b16 %v335
      %v416 = vunpack.c.l.b16 %v336
      %v417 = vunpack.c.l.b16 %v337
      %v418 = vunpack.c.l.b16 %v338
      %v419 = vunpack.c.l.b16 %v339
      %v420 = vunpack.c.l.b16 %v340
      %v421 = vunpack.c.l.b16 %v341
      %v422 = vunpack.c.l.b16 %v342
      %v423 = vunpack.c.l.b16 %v343
      %v424 = vunpack.c.l.b16 %v344
      %v425 = vunpack.c.l.b16 %v345
      %v426 = vunpack.c.l.b16 %v346
      %v427 = vunpack.c.l.b16 %v347
      %v428 = vunpack.c.l.b16 %v348
      %v429 = vunpack.c.l.b16 %v349
      %v430 = vunpack.c.l.b16 %v350
      %v431 = vunpack.c.l.b16 %v351
      %v432 = vunpack.c.l.b16 %v352
      %v433 = vunpack.c.l.b16 %v353
      %v434 = vunpack.c.l.b16 %v354
      %v435 = vunpack.c.l.b16 %v355
      %v436 = vunpack.c.l.b16 %v356
      %v437 = vunpack.c.l.b16 %v357
      %v438 = vunpack.c.l.b16 %v358
      %v439 = vunpack.c.l.b16 %v359
      %v440 = vunpack.c.l.b16 %v360
      %v441 = vunpack.c.l.b16 %v361
      %v442 = vunpack.c.l.b16 %v362
      %v443 = vunpack.c.l.b16 %v363
      %v444 = vunpack.c.l.b16 %v364
      %v445 = vunpack.c.l.b16 %v365
      %v446 = vunpack.c.l.b16 %v366
      %v447 = vpack.c.b16 %v416, %v415
      %v448 = vpack.c.b16 %v418, %v417
      %v449 = vpack.c.b16 %v420, %v419
      %v450 = vpack.c.b16 %v422, %v421
      %v451 = vpack.c.b16 %v424, %v423
      %v452 = vpack.c.b16 %v426, %v425
      %v453 = vpack.c.b16 %v428, %v427
      %v454 = vpack.c.b16 %v430, %v429
      %v455 = vpack.c.b16 %v432, %v431
      %v456 = vpack.c.b16 %v434, %v433
      %v457 = vpack.c.b16 %v436, %v435
      %v458 = vpack.c.b16 %v438, %v437
      %v459 = vpack.c.b16 %v440, %v439
      %v460 = vpack.c.b16 %v442, %v441
      %v461 = vpack.c.b16 %v444, %v443
      %v462 = vpack.c.b16 %v446, %v445
      %v495 = vunpack.c.l.b16 %v367
      %v496 = vunpack.c.l.b16 %v368
      %v497 = vunpack.c.l.b16 %v369
      %v498 = vunpack.c.l.b16 %v370
      %v499 = vunpack.c.l.b16 %v371
      %v500 = vunpack.c.l.b16 %v372
      %v501 = vunpack.c.l.b16 %v373
      %v502 = vunpack.c.l.b16 %v374
      %v503 = vunpack.c.l.b16 %v375
      %v504 = vunpack.c.l.b16 %v376
      %v505 = vunpack.c.l.b16 %v377
      %v506 = vunpack.c.l.b16 %v378
      %v507 = vunpack.c.l.b16 %v379
      %v508 = vunpack.c.l.b16 %v380
      %v509 = vunpack.c.l.b16 %v381
      %v510 = vunpack.c.l.b16 %v382
      %v511 = vpack.c.b16 %v496, %v495
      %v512 = vpack.c.b16 %v498, %v497
      %v513 = vpack.c.b16 %v500, %v499
      %v514 = vpack.c.b16 %v502, %v501
      %v515 = vpack.c.b16 %v504, %v503
      %v516 = vpack.c.b16 %v506, %v505
      %v517 = vpack.c.b16 %v508, %v507
      %v518 = vpack.c.b16 %v510, %v509
      %527 = vmatprep.subr.bf16.mxu0 0
      %528 = vmatpush1.bf16.msra.mxu0 %v518
      %529 = vmatprep.subr.bf16.mxu0 0
      %530 = vmatpush1.bf16.msra.mxu0 %v517
      %531 = vmatprep.subr.bf16.mxu0 0
      %532 = vmatpush1.bf16.msra.mxu0 %v516
      %533 = vmatprep.subr.bf16.mxu0 0
      %534 = vmatpush1.bf16.msra.mxu0 %v515
      %535 = vmatprep.subr.bf16.mxu0 0
      %536 = vmatpush1.bf16.msra.mxu0 %v514
      %537 = vmatprep.subr.bf16.mxu0 0
      %538 = vmatpush1.bf16.msra.mxu0 %v513
      %539 = vmatprep.subr.bf16.mxu0 0
      %540 = vmatpush1.bf16.msra.mxu0 %v512
      %541 = vmatprep.subr.bf16.mxu0 0
      %542 = vmatpush1.bf16.msra.mxu0 %v511
      %543 = vmatprep.subr.bf16.mxu0 0
      %544 = vmatpush2.bf16.msra.mxu0 0
      %545 = vmatprep.subr.bf16.mxu0 0
      %546 = vmatpush2.bf16.msra.mxu0 0
      %547 = vmatprep.subr.bf16.mxu0 0
      %548 = vmatpush2.bf16.msra.mxu0 0
      %549 = vmatprep.subr.bf16.mxu0 0
      %550 = vmatpush2.bf16.msra.mxu0 0
      %551 = vmatprep.subr.bf16.mxu0 0
      %552 = vmatpush2.bf16.msra.mxu0 0
      %553 = vmatprep.subr.bf16.mxu0 0
      %554 = vmatpush2.bf16.msra.mxu0 0
      %555 = vmatprep.subr.bf16.mxu0 0
      %556 = vmatpush2.bf16.msra.mxu0 0
      %557 = vmatprep.subr.bf16.mxu0 0
      %558 = vmatpush2.bf16.msra.mxu0 0
      %559 = vmatprep.mubr.bf16.mxu0 0
      %560 = vmatmul.mubr.bf16.gmra.mxu0 %v447
      %v561 = vpop.f32.mrf.mxu0
      %v562 = vadd.f32 0.0, %v561
      %v563 = vpop.f32.mrf.mxu0
      %v564 = vpop.f32.mrf.mxu0
      %v565 = vadd.f32 0.0, %v564
      %v566 = vpop.f32.mrf.mxu0
      %567 = vmatprep.mubr.bf16.mxu0 0
      %568 = vmatmul.mubr.bf16.gmra.mxu0 %v448
      %v569 = vpop.f32.mrf.mxu0
      %v570 = vadd.f32 0.0, %v569
      %v571 = vpop.f32.mrf.mxu0
      %v572 = vpop.f32.mrf.mxu0
      %v573 = vadd.f32 0.0, %v572
      %v574 = vpop.f32.mrf.mxu0
      %575 = vmatprep.mubr.bf16.mxu0 0
      %576 = vmatmul.mubr.bf16.gmra.mxu0 %v449
      %v577 = vpop.f32.mrf.mxu0
      %v578 = vadd.f32 0.0, %v577
      %v579 = vpop.f32.mrf.mxu0
      %v580 = vpop.f32.mrf.mxu0
      %v581 = vadd.f32 0.0, %v580
      %v582 = vpop.f32.mrf.mxu0
      %583 = vmatprep.mubr.bf16.mxu0 0
      %584 = vmatmul.mubr.bf16.gmra.mxu0 %v450
      %v585 = vpop.f32.mrf.mxu0
      %v586 = vadd.f32 0.0, %v585
      %v587 = vpop.f32.mrf.mxu0
      %v588 = vpop.f32.mrf.mxu0
      %v589 = vadd.f32 0.0, %v588
      %v590 = vpop.f32.mrf.mxu0
      %591 = vmatprep.mubr.bf16.mxu0 0
      %592 = vmatmul.mubr.bf16.gmra.mxu0 %v451
      %v593 = vpop.f32.mrf.mxu0
      %v594 = vadd.f32 0.0, %v593
      %v595 = vpop.f32.mrf.mxu0
      %v596 = vpop.f32.mrf.mxu0
      %v597 = vadd.f32 0.0, %v596
      %v598 = vpop.f32.mrf.mxu0
      %599 = vmatprep.mubr.bf16.mxu0 0
      %600 = vmatmul.mubr.bf16.gmra.mxu0 %v452
      %v601 = vpop.f32.mrf.mxu0
      %v602 = vadd.f32 0.0, %v601
      %v603 = vpop.f32.mrf.mxu0
      %v604 = vpop.f32.mrf.mxu0
      %v605 = vadd.f32 0.0, %v604
      %v606 = vpop.f32.mrf.mxu0
      %607 = vmatprep.mubr.bf16.mxu0 0
      %608 = vmatmul.mubr.bf16.gmra.mxu0 %v453
      %v609 = vpop.f32.mrf.mxu0
      %v610 = vadd.f32 0.0, %v609
      %v611 = vpop.f32.mrf.mxu0
      %v612 = vpop.f32.mrf.mxu0
      %v613 = vadd.f32 0.0, %v612
      %v614 = vpop.f32.mrf.mxu0
      %615 = vmatprep.mubr.bf16.mxu0 0
      %616 = vmatmul.mubr.bf16.gmra.mxu0 %v454
      %v617 = vpop.f32.mrf.mxu0
      %v618 = vadd.f32 0.0, %v617
      %v619 = vpop.f32.mrf.mxu0
      %v620 = vpop.f32.mrf.mxu0
      %v621 = vadd.f32 0.0, %v620
      %v622 = vpop.f32.mrf.mxu0
      %623 = vmatprep.mubr.bf16.mxu0 0
      %624 = vmatmul.mubr.bf16.gmra.mxu0 %v455
      %v625 = vpop.f32.mrf.mxu0
      %v626 = vadd.f32 0.0, %v625
      %v627 = vpop.f32.mrf.mxu0
      %v628 = vpop.f32.mrf.mxu0
      %v629 = vadd.f32 0.0, %v628
      %v630 = vpop.f32.mrf.mxu0
      %631 = vmatprep.mubr.bf16.mxu0 0
      %632 = vmatmul.mubr.bf16.gmra.mxu0 %v456
      %v633 = vpop.f32.mrf.mxu0
      %v634 = vadd.f32 0.0, %v633
      %v635 = vpop.f32.mrf.mxu0
      %v636 = vpop.f32.mrf.mxu0
      %v637 = vadd.f32 0.0, %v636
      %v638 = vpop.f32.mrf.mxu0
      %639 = vmatprep.mubr.bf16.mxu0 0
      %640 = vmatmul.mubr.bf16.gmra.mxu0 %v457
      %v641 = vpop.f32.mrf.mxu0
      %v642 = vadd.f32 0.0, %v641
      %v643 = vpop.f32.mrf.mxu0
      %v644 = vpop.f32.mrf.mxu0
      %v645 = vadd.f32 0.0, %v644
      %v646 = vpop.f32.mrf.mxu0
      %647 = vmatprep.mubr.bf16.mxu0 0
      %648 = vmatmul.mubr.bf16.gmra.mxu0 %v458
      %v649 = vpop.f32.mrf.mxu0
      %v650 = vadd.f32 0.0, %v649
      %v651 = vpop.f32.mrf.mxu0
      %v652 = vpop.f32.mrf.mxu0
      %v653 = vadd.f32 0.0, %v652
      %v654 = vpop.f32.mrf.mxu0
      %655 = vmatprep.mubr.bf16.mxu0 0
      %656 = vmatmul.mubr.bf16.gmra.mxu0 %v459
      %v657 = vpop.f32.mrf.mxu0
      %v658 = vadd.f32 0.0, %v657
      %v659 = vpop.f32.mrf.mxu0
      %v660 = vpop.f32.mrf.mxu0
      %v661 = vadd.f32 0.0, %v660
      %v662 = vpop.f32.mrf.mxu0
      %663 = vmatprep.mubr.bf16.mxu0 0
      %664 = vmatmul.mubr.bf16.gmra.mxu0 %v460
      %v665 = vpop.f32.mrf.mxu0
      %v666 = vadd.f32 0.0, %v665
      %v667 = vpop.f32.mrf.mxu0
      %v668 = vpop.f32.mrf.mxu0
      %v669 = vadd.f32 0.0, %v668
      %v670 = vpop.f32.mrf.mxu0
      %671 = vmatprep.mubr.bf16.mxu0 0
      %672 = vmatmul.mubr.bf16.gmra.mxu0 %v461
      %v673 = vpop.f32.mrf.mxu0
      %v674 = vadd.f32 0.0, %v673
      %v675 = vpop.f32.mrf.mxu0
      %v676 = vpop.f32.mrf.mxu0
      %v677 = vadd.f32 0.0, %v676
      %v678 = vpop.f32.mrf.mxu0
      %679 = vmatprep.mubr.bf16.mxu0 0
      %680 = vmatmul.mubr.bf16.gmra.mxu0 %v462
      %v681 = vpop.f32.mrf.mxu0
      %v682 = vadd.f32 0.0, %v681
      %v683 = vpop.f32.mrf.mxu0
      %v684 = vpop.f32.mrf.mxu0
      %v685 = vadd.f32 0.0, %v684
      %v686 = vpop.f32.mrf.mxu0
      %687 = vdwg.mxu0
      %v688 = vadd.f32 %v303, %v562
      %v689 = vadd.f32 %v304, %v565
      %v690 = vadd.f32 %v305, %v570
      %v691 = vadd.f32 %v306, %v573
      %v692 = vadd.f32 %v307, %v578
      %v693 = vadd.f32 %v308, %v581
      %v694 = vadd.f32 %v309, %v586
      %v695 = vadd.f32 %v310, %v589
      %v696 = vadd.f32 %v311, %v594
      %v697 = vadd.f32 %v312, %v597
      %v698 = vadd.f32 %v313, %v602
      %v699 = vadd.f32 %v314, %v605
      %v700 = vadd.f32 %v315, %v610
      %v701 = vadd.f32 %v316, %v613
      %v702 = vadd.f32 %v317, %v618
      %v703 = vadd.f32 %v318, %v621
      %v704 = vadd.f32 %v319, %v626
      %v705 = vadd.f32 %v320, %v629
      %v706 = vadd.f32 %v321, %v634
      %v707 = vadd.f32 %v322, %v637
      %v708 = vadd.f32 %v323, %v642
      %v709 = vadd.f32 %v324, %v645
      %v710 = vadd.f32 %v325, %v650
      %v711 = vadd.f32 %v326, %v653
      %v712 = vadd.f32 %v327, %v658
      %v713 = vadd.f32 %v328, %v661
      %v714 = vadd.f32 %v329, %v666
      %v715 = vadd.f32 %v330, %v669
      %v716 = vadd.f32 %v331, %v674
      %v717 = vadd.f32 %v332, %v677
      %v718 = vadd.f32 %v333, %v682
      %v719 = vadd.f32 %v334, %v685
      %720 = vst [vmem:[%s257] sm:$0xff] %v688
      %721 = vst [vmem:[%s257 + $0x8] sm:$0xff] %v689
      %722 = vst [vmem:[%s257 + $0x10] sm:$0xff] %v690
      %723 = vst [vmem:[%s257 + $0x18] sm:$0xff] %v691
      %724 = vst [vmem:[%s257 + $0x20] sm:$0xff] %v692
      %725 = vst [vmem:[%s257 + $0x28] sm:$0xff] %v693
      %726 = vst [vmem:[%s257 + $0x30] sm:$0xff] %v694
      %727 = vst [vmem:[%s257 + $0x38] sm:$0xff] %v695
      %728 = vst [vmem:[%s257 + $0x40] sm:$0xff] %v696
      %729 = vst [vmem:[%s257 + $0x48] sm:$0xff] %v697
      %730 = vst [vmem:[%s257 + $0x50] sm:$0xff] %v698
      %731 = vst [vmem:[%s257 + $0x58] sm:$0xff] %v699
      %732 = vst [vmem:[%s257 + $0x60] sm:$0xff] %v700
      %733 = vst [vmem:[%s257 + $0x68] sm:$0xff] %v701
      %734 = vst [vmem:[%s257 + $0x70] sm:$0xff] %v702
      %735 = vst [vmem:[%s257 + $0x78] sm:$0xff] %v703
      %736 = vst [vmem:[%s257 + $0x80] sm:$0xff] %v704
      %737 = vst [vmem:[%s257 + $0x88] sm:$0xff] %v705
      %738 = vst [vmem:[%s257 + $0x90] sm:$0xff] %v706
      %739 = vst [vmem:[%s257 + $0x98] sm:$0xff] %v707
      %740 = vst [vmem:[%s257 + $0xa0] sm:$0xff] %v708
      %741 = vst [vmem:[%s257 + $0xa8] sm:$0xff] %v709
      %742 = vst [vmem:[%s257 + $0xb0] sm:$0xff] %v710
      %743 = vst [vmem:[%s257 + $0xb8] sm:$0xff] %v711
      %744 = vst [vmem:[%s257 + $0xc0] sm:$0xff] %v712
      %745 = vst [vmem:[%s257 + $0xc8] sm:$0xff] %v713
      %746 = vst [vmem:[%s257 + $0xd0] sm:$0xff] %v714
      %747 = vst [vmem:[%s257 + $0xd8] sm:$0xff] %v715
      %748 = vst [vmem:[%s257 + $0xe0] sm:$0xff] %v716
      %749 = vst [vmem:[%s257 + $0xe8] sm:$0xff] %v717
      %750 = vst [vmem:[%s257 + $0xf0] sm:$0xff] %v718
      %751 = vst [vmem:[%s257 + $0xf8] sm:$0xff] %v719
      %s752 = smul.u32 32, %s19
      %p753 = scmp.lt.s32.totalorder %s752, 127
      %s754 = scalar_select %p753, %s752, 127
      %p755 = scmp.lt.s32.totalorder %s20, 0
      %s756 = scalar_select %p755, %s20, 0
      %s757 = sadd.s32 %s756, %s754
      %s758 = smul.addr %s757, 8
      %s759 = scalar_lea.vmem %s3, %s758
      // Predicated region
      $region37: #{mlsp.40} parent=31 // pred_check
        %p760 = pneg %p135
      $region38: #{mlsp.40} parent=31 // pred_check_branch
        %762 = sbr.rel (%p760) target = $region40
      $region39: #{mlsp.40} parent=31 // pred_region
        %s763 = smul.u32 32, %s19
      $region40: #{mlsp.40} parent=31 // pred_fallthru
        _
    $region32: #{mlsp.40} parent=5 // pred_fallthru
      _
    %p764 = scmp.le.s32.totalorder 2, %s9
    // Predicated region
    $region41: #{mlsp.40} parent=5 // pred_check
      %p765 = pneg %p764
    $region42: #{mlsp.40} parent=5 // pred_check_branch
      %767 = sbr.rel (%p765) target = $region44
    $region43: #{mlsp.40} parent=5 // pred_region
      %s768 = ssub.s32 %s9, 2
      // Predicated region
      $region45: #{mlsp.40} parent=43 // pred_check
        %p769 = pneg %p141
      $region46: #{mlsp.40} parent=43 // pred_check_branch
        %771 = sbr.rel (%p769) target = $region48
      $region47: #{mlsp.40} parent=43 // pred_region
        %s772 = smul.u32 32, %s22
        %p773 = scmp.lt.s32.totalorder %s772, 127
        %s774 = scalar_select %p773, %s772, 127
        %p775 = scmp.lt.s32.totalorder %s23, 0
        %s776 = scalar_select %p775, %s23, 0
        %s777 = sadd.s32 %s776, %s774
        %s778 = smul.addr %s777, 8
        %s779 = scalar_lea.vmem %s3, %s778
      $region48: #{mlsp.40} parent=43 // pred_fallthru
        _
    $region44: #{mlsp.40} parent=5 // pred_fallthru
      _
  $region6: #{mlsp.40} parent=0 // loop_footer
    %s13 = sadd.s32 1, %s9
  $region7: #{mlsp.40} parent=0 // loop_footer_branch
    %8 = sbr.rel target = $region3
  $region8: #{mlsp.40} parent=0 // loop_exit
    _

// kernel: mlsp.41
$region0: #{mlsp.41}
  #allocation0 [shape = 'u32[]', space=smem, size = 0x4, offset = 0x4, fixed_abs, tag = 'smem constant byte address 0x4 - core index']
  #allocation1 [shape = 'u32[144,128]{1,0:T(1,128)}', space=vmem, size = 0x12000, scoped, tag = 'internal scratch']
  %s0 = inlined_call_operand.vmem [shape: bf16[2048,256], index: 0, kind: input, shape index: {}]
  %s1 = inlined_call_operand.vmem [shape: bf16[256,128], index: 1, kind: input, shape index: {}]
  %s2 = inlined_call_operand.vmem [shape: f32[1,128], index: 2, kind: input, shape index: {}]
  %s3 = inlined_call_operand.vmem [shape: f32[2048,128], index: 3, kind: output, shape index: {}]
  %s4 = sld [smem:[#allocation0]]
  $region49: #{mlsp.41} parent=0
    _
  %s6 = ssub.s32 1, %s4
  %s7 = scalar_select 0, %s6, %s4
  loop: start=0, step=1, limit=10
  $region2: #{mlsp.41} parent=0 // loop_pre_header
    _
  $region3: #{mlsp.41} parent=0 // loop_header
    %s9 = sphi 0, %s13
    %p10 = scmp.ge.s32.totalorder %s9, 10
    %s16 = sphi 0, %s35
    %s17 = sphi 0, %s31
    %s18 = sphi 0, %s27
    %s19 = sphi 0, %s16
    %s20 = sphi 0, %s17
    %s21 = sphi 0, %s18
    %s22 = sphi 0, %s19
    %s23 = sphi 0, %s20
    %s24 = sphi 0, %s21
    %s40 = sphi 0, %s42
    %s43 = sphi 0, %s40
    %s44 = sphi 0, %s43
    %s60 = sphi 0, %s44
    %s68 = sphi 0, %s70
    %s71 = sphi 0, %s68
    %s72 = sphi 0, %s71
    %s88 = sphi 0, %s72
    %s94 = sphi 0, %s96
    %s97 = sphi 0, %s94
    %s98 = sphi 0, %s97
    %s114 = sphi 0, %s98
    %s122 = sphi 0, %s124
    %s125 = sphi 0, %s122
    %s126 = sphi 0, %s125
    %s142 = sphi 0, %s126
  $region4: #{mlsp.41} parent=0 // loop_header_branch
    %12 = sbr.rel (%p10) target = $region8
  $region5: #{mlsp.41} parent=0 // loop_body
    %s14 = ssub.s32 %s9, 1
    %s15 = ssub.s32 %s9, 2
    %s25 = sadd.s32 1, %s18
    %p26 = scmp.ge.s32.totalorder %s25, 1
    %s27 = scalar_select %p26, 0, %s25
    %s28 = sadd.s32 1, %s17
    %s29 = scalar_select %p26, %s28, %s17
    %p30 = scmp.ge.s32.totalorder %s29, 1
    %s31 = scalar_select %p30, 0, %s29
    %s32 = sadd.s32 1, %s16
    %s33 = scalar_select %p30, %s32, %s16
    %p34 = scmp.ge.s32.totalorder %s33, 8
    %s35 = scalar_select %p34, 0, %s33
    %s36 = ssub.s32 %s16, %s35
    %s37 = ssub.s32 %s18, %s27
    %s38 = sor.u32 %s36, %s37
    %p39 = scmp.eq.s32.totalorder %s38, 0
    %s41 = sadd.s32 %s40, 1
    %s42 = scalar_select %p39, %s40, %s41
    %p45 = pneg %p39
    %p46 = scmp.eq.s32.totalorder %s9, 7
    %p47 = por %p45, %p46
    %p48 = scmp.ne.s32.totalorder %s40, %s43
    %p49 = scmp.eq.s32.totalorder %s9, 0
    %p50 = por %p48, %p49
    %p51 = scmp.ne.s32.totalorder %s40, %s43
    %p52 = scmp.eq.s32.totalorder %s14, 7
    %p53 = por %p51, %p52
    %p54 = scmp.ne.s32.totalorder %s43, %s44
    %p55 = scmp.eq.s32.totalorder %s14, 0
    %p56 = por %p54, %p55
    %p57 = scmp.ne.s32.totalorder %s43, %s44
    %p58 = scmp.eq.s32.totalorder %s15, 7
    %p59 = por %p57, %p58
    %p61 = scmp.ne.s32.totalorder %s44, %s60
    %p62 = scmp.eq.s32.totalorder %s15, 0
    %p63 = por %p61, %p62
    %s64 = ssub.s32 %s18, %s27
    %s65 = ssub.s32 %s17, %s31
    %s66 = sor.u32 %s64, %s65
    %p67 = scmp.eq.s32.totalorder %s66, 0
    %s69 = sadd.s32 %s68, 1
    %s70 = scalar_select %p67, %s68, %s69
    %p73 = pneg %p67
    %p74 = scmp.eq.s32.totalorder %s9, 7
    %p75 = por %p73, %p74
    %p76 = scmp.ne.s32.totalorder %s68, %s71
    %p77 = scmp.eq.s32.totalorder %s9, 0
    %p78 = por %p76, %p77
    %p79 = scmp.ne.s32.totalorder %s68, %s71
    %p80 = scmp.eq.s32.totalorder %s14, 7
    %p81 = por %p79, %p80
    %p82 = scmp.ne.s32.totalorder %s71, %s72
    %p83 = scmp.eq.s32.totalorder %s14, 0
    %p84 = por %p82, %p83
    %p85 = scmp.ne.s32.totalorder %s71, %s72
    %p86 = scmp.eq.s32.totalorder %s15, 7
    %p87 = por %p85, %p86
    %p89 = scmp.ne.s32.totalorder %s72, %s88
    %p90 = scmp.eq.s32.totalorder %s15, 0
    %p91 = por %p89, %p90
    %s92 = ssub.s32 %s17, %s31
    %p93 = scmp.eq.s32.totalorder %s92, 0
    %s95 = sadd.s32 %s94, 1
    %s96 = scalar_select %p93, %s94, %s95
    %p99 = pneg %p93
    %p100 = scmp.eq.s32.totalorder %s9, 7
    %p101 = por %p99, %p100
    %p102 = scmp.ne.s32.totalorder %s94, %s97
    %p103 = scmp.eq.s32.totalorder %s9, 0
    %p104 = por %p102, %p103
    %p105 = scmp.ne.s32.totalorder %s94, %s97
    %p106 = scmp.eq.s32.totalorder %s14, 7
    %p107 = por %p105, %p106
    %p108 = scmp.ne.s32.totalorder %s97, %s98
    %p109 = scmp.eq.s32.totalorder %s14, 0
    %p110 = por %p108, %p109
    %p111 = scmp.ne.s32.totalorder %s97, %s98
    %p112 = scmp.eq.s32.totalorder %s15, 7
    %p113 = por %p111, %p112
    %p115 = scmp.ne.s32.totalorder %s98, %s114
    %p116 = scmp.eq.s32.totalorder %s15, 0
    %p117 = por %p115, %p116
    %s118 = ssub.s32 %s16, %s35
    %s119 = ssub.s32 %s17, %s31
    %s120 = sor.u32 %s118, %s119
    %p121 = scmp.eq.s32.totalorder %s120, 0
    %s123 = sadd.s32 %s122, 1
    %s124 = scalar_select %p121, %s122, %s123
    %p127 = pneg %p121
    %p128 = scmp.eq.s32.totalorder %s9, 7
    %p129 = por %p127, %p128
    %p130 = scmp.ne.s32.totalorder %s122, %s125
    %p131 = scmp.eq.s32.totalorder %s9, 0
    %p132 = por %p130, %p131
    %p133 = scmp.ne.s32.totalorder %s122, %s125
    %p134 = scmp.eq.s32.totalorder %s14, 7
    %p135 = por %p133, %p134
    %p136 = scmp.ne.s32.totalorder %s125, %s126
    %p137 = scmp.eq.s32.totalorder %s14, 0
    %p138 = por %p136, %p137
    %p139 = scmp.ne.s32.totalorder %s125, %s126
    %p140 = scmp.eq.s32.totalorder %s15, 7
    %p141 = por %p139, %p140
    %p143 = scmp.ne.s32.totalorder %s126, %s142
    %p144 = scmp.eq.s32.totalorder %s15, 0
    %p145 = por %p143, %p144
    %p146 = scmp.le.s32.totalorder 1, %s9
    %p147 = scmp.lt.s32.totalorder %s9, 9
    %p148 = pnand %p146, %p147
    %p149 = pneg %p148
    // Predicated region
    $region9: #{mlsp.41} parent=5 // pred_check
      _
    $region10: #{mlsp.41} parent=5 // pred_check_branch
      %151 = sbr.rel (%p148) target = $region12
    $region11: #{mlsp.41} parent=5 // pred_region
      %s152 = ssub.s32 %s9, 1
      // Predicated region
      $region13: #{mlsp.41} parent=11 // pred_check
        %p153 = pneg %p84
      $region14: #{mlsp.41} parent=11 // pred_check_branch
        %155 = sbr.rel (%p153) target = $region16
      $region15: #{mlsp.41} parent=11 // pred_region
        %s156 = smul.u32 32, %s21
        %p157 = scmp.lt.s32.totalorder %s156, 31
        %s158 = scalar_select %p157, %s156, 31
        %p159 = scmp.lt.s32.totalorder %s20, 0
        %s160 = scalar_select %p159, %s20, 0
        %s161 = sadd.s32 %s160, %s158
        %s162 = smul.addr %s161, 4
        %s163 = scalar_lea.vmem %s1, %s162
        %s164 = smul.u32 32, %s21
      $region16: #{mlsp.41} parent=11 // pred_fallthru
        _
      // Predicated region
      $region17: #{mlsp.41} parent=11 // pred_check
        %p165 = pneg %p110
      $region18: #{mlsp.41} parent=11 // pred_check_branch
        %167 = sbr.rel (%p165) target = $region20
      $region19: #{mlsp.41} parent=11 // pred_region
        %p168 = scmp.lt.s32.totalorder %s20, 0
        %s169 = scalar_select %p168, %s20, 0
        %s170 = scalar_lea.vmem %s2, %s169
      $region20: #{mlsp.41} parent=11 // pred_fallthru
        _
    $region12: #{mlsp.41} parent=5 // pred_fallthru
      _
    %p171 = scmp.lt.s32.totalorder %s9, 8
    // Predicated region
    $region21: #{mlsp.41} parent=5 // pred_check
      %p172 = pneg %p171
    $region22: #{mlsp.41} parent=5 // pred_check_branch
      %174 = sbr.rel (%p172) target = $region24
    $region23: #{mlsp.41} parent=5 // pred_region
      // Predicated region
      $region25: #{mlsp.41} parent=23 // pred_check
        %p175 = pneg %p50
      $region26: #{mlsp.41} parent=23 // pred_check_branch
        %177 = sbr.rel (%p175) target = $region28
      $region27: #{mlsp.41} parent=23 // pred_region
        %s178 = smul.u32 32, %s16
        %s179 = smul.u32 2, %s18
        %p180 = scmp.lt.s32.totalorder %s178, 255
        %s181 = scalar_select %p180, %s178, 255
        %p182 = scmp.lt.s32.totalorder %s179, 1
        %s183 = scalar_select %p182, %s179, 1
        %s184 = smul.addr %s181, 2
        %s185 = sadd.s32 %s183, %s184
        %s186 = smul.addr %s185, 4
        %s187 = scalar_lea.vmem %s0, %s186
        %s188 = smul.u32 32, %s16
        %s189 = smul.u32 2, %s18
      $region28: #{mlsp.41} parent=23 // pred_fallthru
        _
    $region24: #{mlsp.41} parent=5 // pred_fallthru
      _
    %p190 = scmp.le.s32.totalorder 1, %s9
    %p191 = scmp.lt.s32.totalorder %s9, 9
    %p192 = pnand %p190, %p191
    %p193 = pneg %p192
    // Predicated region
    $region29: #{mlsp.41} parent=5 // pred_check
      _
    $region30: #{mlsp.41} parent=5 // pred_check_branch
      %195 = sbr.rel (%p192) target = $region32
    $region31: #{mlsp.41} parent=5 // pred_region
      %s196 = ssub.s32 %s9, 1
      %s197 = smul.u32 32, %s19
      %s198 = smul.u32 2, %s21
      %p199 = scmp.lt.s32.totalorder %s197, 255
      %s200 = scalar_select %p199, %s197, 255
      %p201 = scmp.lt.s32.totalorder %s198, 1
      %s202 = scalar_select %p201, %s198, 1
      %s203 = smul.addr %s200, 2
      %s204 = sadd.s32 %s202, %s203
      %s205 = smul.addr %s204, 4
      %s206 = scalar_lea.vmem %s0, %s205
      %p207 = pneg %p56
      %p208 = pneg %p53
      %s209 = smul.u32 32, %s21
      %p210 = scmp.lt.s32.totalorder %s209, 31
      %s211 = scalar_select %p210, %s209, 31
      %p212 = scmp.lt.s32.totalorder %s20, 0
      %s213 = scalar_select %p212, %s20, 0
      %s214 = sadd.s32 %s213, %s211
      %s215 = smul.addr %s214, 4
      %s216 = scalar_lea.vmem %s1, %s215
      %p217 = pneg %p84
      %p218 = pneg %p81
      %p219 = scmp.lt.s32.totalorder %s20, 0
      %s220 = scalar_select %p219, %s20, 0
      %s221 = scalar_lea.vmem %s2, %s220
      %p222 = pneg %p110
      %p223 = pneg %p107
      %p224 = pneg %p138
      %p225 = pneg %p135
      %s226 = smul.u32 32, %s19
      %p227 = scmp.lt.s32.totalorder %s226, 255
      %s228 = scalar_select %p227, %s226, 255
      %p229 = scmp.lt.s32.totalorder %s20, 0
      %s230 = scalar_select %p229, %s20, 0
      %s231 = sadd.s32 %s230, %s228
      %s232 = smul.addr %s231, 8
      %s233 = scalar_lea.vmem %s3, %s232
      %s234 = smul.u32 32, %s19
      %s235 = smul.u32 2, %s21
      %p236 = scmp.lt.s32.totalorder %s234, 255
      %s237 = scalar_select %p236, %s234, 255
      %p238 = scmp.lt.s32.totalorder %s235, 1
      %s239 = scalar_select %p238, %s235, 1
      %s240 = smul.addr %s237, 2
      %s241 = sadd.s32 %s239, %s240
      %s242 = smul.addr %s241, 4
      %s243 = scalar_lea.vmem %s0, %s242
      %s244 = smul.u32 32, %s19
      %s245 = smul.u32 2, %s21
      %s246 = smul.u32 32, %s21
      %p247 = scmp.lt.s32.totalorder %s246, 31
      %s248 = scalar_select %p247, %s246, 31
      %p249 = scmp.lt.s32.totalorder %s20, 0
      %s250 = scalar_select %p249, %s20, 0
      %s251 = sadd.s32 %s250, %s248
      %s252 = smul.addr %s251, 4
      %s253 = scalar_lea.vmem %s1, %s252
      %s254 = smul.u32 32, %s21
      %p255 = scmp.lt.s32.totalorder %s20, 0
      %s256 = scalar_select %p255, %s20, 0
      %s257 = scalar_lea.vmem %s2, %s256
      %s258 = smul.u32 32, %s19
      %p259 = scmp.lt.s32.totalorder %s258, 255
      %s260 = scalar_select %p259, %s258, 255
      %p261 = scmp.lt.s32.totalorder %s20, 0
      %s262 = scalar_select %p261, %s20, 0
      %s263 = sadd.s32 %s262, %s260
      %s264 = smul.addr %s263, 8
      %s265 = scalar_lea.vmem %s3, %s264
      %s266 = smul.u32 32, %s19
      %p268 = scmp.eq.s32.totalorder %s21, 0
      // Predicated region
      $region33: #{mlsp.41} parent=31 // pred_check
        %p269 = pneg %p268
      $region34: #{mlsp.41} parent=31 // pred_check_branch
        %271 = sbr.rel (%p269) target = $region36
      $region35: #{mlsp.41} parent=31 // pred_region
        %v272 = vld [vmem:[%s257] sm:$0x1]
        %v274 = vlaneseq
        %v275 = vshrl.u32 %v274, 7
        %v276 = vsub.s32 0, %v275
        %v277 = vrot.slane %v272, %v276
        %279 = vst [vmem:[%s265] sm:$0xff] %v277
        %280 = vst [vmem:[%s265 + $0x8] sm:$0xff] %v277
        %281 = vst [vmem:[%s265 + $0x10] sm:$0xff] %v277
        %282 = vst [vmem:[%s265 + $0x18] sm:$0xff] %v277
        %283 = vst [vmem:[%s265 + $0x20] sm:$0xff] %v277
        %284 = vst [vmem:[%s265 + $0x28] sm:$0xff] %v277
        %285 = vst [vmem:[%s265 + $0x30] sm:$0xff] %v277
        %286 = vst [vmem:[%s265 + $0x38] sm:$0xff] %v277
        %287 = vst [vmem:[%s265 + $0x40] sm:$0xff] %v277
        %288 = vst [vmem:[%s265 + $0x48] sm:$0xff] %v277
        %289 = vst [vmem:[%s265 + $0x50] sm:$0xff] %v277
        %290 = vst [vmem:[%s265 + $0x58] sm:$0xff] %v277
        %291 = vst [vmem:[%s265 + $0x60] sm:$0xff] %v277
        %292 = vst [vmem:[%s265 + $0x68] sm:$0xff] %v277
        %293 = vst [vmem:[%s265 + $0x70] sm:$0xff] %v277
        %294 = vst [vmem:[%s265 + $0x78] sm:$0xff] %v277
        %295 = vst [vmem:[%s265 + $0x80] sm:$0xff] %v277
        %296 = vst [vmem:[%s265 + $0x88] sm:$0xff] %v277
        %297 = vst [vmem:[%s265 + $0x90] sm:$0xff] %v277
        %298 = vst [vmem:[%s265 + $0x98] sm:$0xff] %v277
        %299 = vst [vmem:[%s265 + $0xa0] sm:$0xff] %v277
        %300 = vst [vmem:[%s265 + $0xa8] sm:$0xff] %v277
        %301 = vst [vmem:[%s265 + $0xb0] sm:$0xff] %v277
        %302 = vst [vmem:[%s265 + $0xb8] sm:$0xff] %v277
        %303 = vst [vmem:[%s265 + $0xc0] sm:$0xff] %v277
        %304 = vst [vmem:[%s265 + $0xc8] sm:$0xff] %v277
        %305 = vst [vmem:[%s265 + $0xd0] sm:$0xff] %v277
        %306 = vst [vmem:[%s265 + $0xd8] sm:$0xff] %v277
        %307 = vst [vmem:[%s265 + $0xe0] sm:$0xff] %v277
        %308 = vst [vmem:[%s265 + $0xe8] sm:$0xff] %v277
        %309 = vst [vmem:[%s265 + $0xf0] sm:$0xff] %v277
        %310 = vst [vmem:[%s265 + $0xf8] sm:$0xff] %v277
      $region36: #{mlsp.41} parent=31 // pred_fallthru
        _
      %v311 = vld [vmem:[%s265] sm:$0xff]
      %v312 = vld [vmem:[%s265 + $0x8] sm:$0xff]
      %v313 = vld [vmem:[%s265 + $0x10] sm:$0xff]
      %v314 = vld [vmem:[%s265 + $0x18] sm:$0xff]
      %v315 = vld [vmem:[%s265 + $0x20] sm:$0xff]
      %v316 = vld [vmem:[%s265 + $0x28] sm:$0xff]
      %v317 = vld [vmem:[%s265 + $0x30] sm:$0xff]
      %v318 = vld [vmem:[%s265 + $0x38] sm:$0xff]
      %v319 = vld [vmem:[%s265 + $0x40] sm:$0xff]
      %v320 = vld [vmem:[%s265 + $0x48] sm:$0xff]
      %v321 = vld [vmem:[%s265 + $0x50] sm:$0xff]
      %v322 = vld [vmem:[%s265 + $0x58] sm:$0xff]
      %v323 = vld [vmem:[%s265 + $0x60] sm:$0xff]
      %v324 = vld [vmem:[%s265 + $0x68] sm:$0xff]
      %v325 = vld [vmem:[%s265 + $0x70] sm:$0xff]
      %v326 = vld [vmem:[%s265 + $0x78] sm:$0xff]
      %v327 = vld [vmem:[%s265 + $0x80] sm:$0xff]
      %v328 = vld [vmem:[%s265 + $0x88] sm:$0xff]
      %v329 = vld [vmem:[%s265 + $0x90] sm:$0xff]
      %v330 = vld [vmem:[%s265 + $0x98] sm:$0xff]
      %v331 = vld [vmem:[%s265 + $0xa0] sm:$0xff]
      %v332 = vld [vmem:[%s265 + $0xa8] sm:$0xff]
      %v333 = vld [vmem:[%s265 + $0xb0] sm:$0xff]
      %v334 = vld [vmem:[%s265 + $0xb8] sm:$0xff]
      %v335 = vld [vmem:[%s265 + $0xc0] sm:$0xff]
      %v336 = vld [vmem:[%s265 + $0xc8] sm:$0xff]
      %v337 = vld [vmem:[%s265 + $0xd0] sm:$0xff]
      %v338 = vld [vmem:[%s265 + $0xd8] sm:$0xff]
      %v339 = vld [vmem:[%s265 + $0xe0] sm:$0xff]
      %v340 = vld [vmem:[%s265 + $0xe8] sm:$0xff]
      %v341 = vld [vmem:[%s265 + $0xf0] sm:$0xff]
      %v342 = vld [vmem:[%s265 + $0xf8] sm:$0xff]
      %v343 = vld [vmem:[%s243] sm:$0xff]
      %v344 = vld [vmem:[%s243 + $0x8] sm:$0xff]
      %v345 = vld [vmem:[%s243 + $0x10] sm:$0xff]
      %v346 = vld [vmem:[%s243 + $0x18] sm:$0xff]
      %v347 = vld [vmem:[%s243 + $0x20] sm:$0xff]
      %v348 = vld [vmem:[%s243 + $0x28] sm:$0xff]
      %v349 = vld [vmem:[%s243 + $0x30] sm:$0xff]
      %v350 = vld [vmem:[%s243 + $0x38] sm:$0xff]
      %v351 = vld [vmem:[%s243 + $0x40] sm:$0xff]
      %v352 = vld [vmem:[%s243 + $0x48] sm:$0xff]
      %v353 = vld [vmem:[%s243 + $0x50] sm:$0xff]
      %v354 = vld [vmem:[%s243 + $0x58] sm:$0xff]
      %v355 = vld [vmem:[%s243 + $0x60] sm:$0xff]
      %v356 = vld [vmem:[%s243 + $0x68] sm:$0xff]
      %v357 = vld [vmem:[%s243 + $0x70] sm:$0xff]
      %v358 = vld [vmem:[%s243 + $0x78] sm:$0xff]
      %v359 = vld [vmem:[%s243 + $0x80] sm:$0xff]
      %v360 = vld [vmem:[%s243 + $0x88] sm:$0xff]
      %v361 = vld [vmem:[%s243 + $0x90] sm:$0xff]
      %v362 = vld [vmem:[%s243 + $0x98] sm:$0xff]
      %v363 = vld [vmem:[%s243 + $0xa0] sm:$0xff]
      %v364 = vld [vmem:[%s243 + $0xa8] sm:$0xff]
      %v365 = vld [vmem:[%s243 + $0xb0] sm:$0xff]
      %v366 = vld [vmem:[%s243 + $0xb8] sm:$0xff]
      %v367 = vld [vmem:[%s243 + $0xc0] sm:$0xff]
      %v368 = vld [vmem:[%s243 + $0xc8] sm:$0xff]
      %v369 = vld [vmem:[%s243 + $0xd0] sm:$0xff]
      %v370 = vld [vmem:[%s243 + $0xd8] sm:$0xff]
      %v371 = vld [vmem:[%s243 + $0xe0] sm:$0xff]
      %v372 = vld [vmem:[%s243 + $0xe8] sm:$0xff]
      %v373 = vld [vmem:[%s243 + $0xf0] sm:$0xff]
      %v374 = vld [vmem:[%s243 + $0xf8] sm:$0xff]
      %v375 = vld [vmem:[%s253] sm:$0xf]
      %v376 = vld [vmem:[%s253 + $0x4] sm:$0xf]
      %v377 = vld [vmem:[%s253 + $0x8] sm:$0xf]
      %v378 = vld [vmem:[%s253 + $0xc] sm:$0xf]
      %v379 = vld [vmem:[%s253 + $0x10] sm:$0xf]
      %v380 = vld [vmem:[%s253 + $0x14] sm:$0xf]
      %v381 = vld [vmem:[%s253 + $0x18] sm:$0xf]
      %v382 = vld [vmem:[%s253 + $0x1c] sm:$0xf]
      %v383 = vld [vmem:[%s253 + $0x20] sm:$0xf]
      %v384 = vld [vmem:[%s253 + $0x24] sm:$0xf]
      %v385 = vld [vmem:[%s253 + $0x28] sm:$0xf]
      %v386 = vld [vmem:[%s253 + $0x2c] sm:$0xf]
      %v387 = vld [vmem:[%s253 + $0x30] sm:$0xf]
      %v388 = vld [vmem:[%s253 + $0x34] sm:$0xf]
      %v389 = vld [vmem:[%s253 + $0x38] sm:$0xf]
      %v390 = vld [vmem:[%s253 + $0x3c] sm:$0xf]
      %v391 = vld [vmem:[%s253 + $0x40] sm:$0xf]
      %v392 = vld [vmem:[%s253 + $0x44] sm:$0xf]
      %v393 = vld [vmem:[%s253 + $0x48] sm:$0xf]
      %v394 = vld [vmem:[%s253 + $0x4c] sm:$0xf]
      %v395 = vld [vmem:[%s253 + $0x50] sm:$0xf]
      %v396 = vld [vmem:[%s253 + $0x54] sm:$0xf]
      %v397 = vld [vmem:[%s253 + $0x58] sm:$0xf]
      %v398 = vld [vmem:[%s253 + $0x5c] sm:$0xf]
      %v399 = vld [vmem:[%s253 + $0x60] sm:$0xf]
      %v400 = vld [vmem:[%s253 + $0x64] sm:$0xf]
      %v401 = vld [vmem:[%s253 + $0x68] sm:$0xf]
      %v402 = vld [vmem:[%s253 + $0x6c] sm:$0xf]
      %v403 = vld [vmem:[%s253 + $0x70] sm:$0xf]
      %v404 = vld [vmem:[%s253 + $0x74] sm:$0xf]
      %v405 = vld [vmem:[%s253 + $0x78] sm:$0xf]
      %v406 = vld [vmem:[%s253 + $0x7c] sm:$0xf]
      %v439 = vunpack.c.l.b16 %v343
      %v440 = vunpack.c.h.b16 %v343
      %v441 = vunpack.c.l.b16 %v344
      %v442 = vunpack.c.h.b16 %v344
      %v443 = vunpack.c.l.b16 %v345
      %v444 = vunpack.c.h.b16 %v345
      %v445 = vunpack.c.l.b16 %v346
      %v446 = vunpack.c.h.b16 %v346
      %v447 = vunpack.c.l.b16 %v347
      %v448 = vunpack.c.h.b16 %v347
      %v449 = vunpack.c.l.b16 %v348
      %v450 = vunpack.c.h.b16 %v348
      %v451 = vunpack.c.l.b16 %v349
      %v452 = vunpack.c.h.b16 %v349
      %v453 = vunpack.c.l.b16 %v350
      %v454 = vunpack.c.h.b16 %v350
      %v455 = vunpack.c.l.b16 %v351
      %v456 = vunpack.c.h.b16 %v351
      %v457 = vunpack.c.l.b16 %v352
      %v458 = vunpack.c.h.b16 %v352
      %v459 = vunpack.c.l.b16 %v353
      %v460 = vunpack.c.h.b16 %v353
      %v461 = vunpack.c.l.b16 %v354
      %v462 = vunpack.c.h.b16 %v354
      %v463 = vunpack.c.l.b16 %v355
      %v464 = vunpack.c.h.b16 %v355
      %v465 = vunpack.c.l.b16 %v356
      %v466 = vunpack.c.h.b16 %v356
      %v467 = vunpack.c.l.b16 %v357
      %v468 = vunpack.c.h.b16 %v357
      %v469 = vunpack.c.l.b16 %v358
      %v470 = vunpack.c.h.b16 %v358
      %v471 = vunpack.c.l.b16 %v359
      %v472 = vunpack.c.h.b16 %v359
      %v473 = vunpack.c.l.b16 %v360
      %v474 = vunpack.c.h.b16 %v360
      %v475 = vunpack.c.l.b16 %v361
      %v476 = vunpack.c.h.b16 %v361
      %v477 = vunpack.c.l.b16 %v362
      %v478 = vunpack.c.h.b16 %v362
      %v479 = vunpack.c.l.b16 %v363
      %v480 = vunpack.c.h.b16 %v363
      %v481 = vunpack.c.l.b16 %v364
      %v482 = vunpack.c.h.b16 %v364
      %v483 = vunpack.c.l.b16 %v365
      %v484 = vunpack.c.h.b16 %v365
      %v485 = vunpack.c.l.b16 %v366
      %v486 = vunpack.c.h.b16 %v366
      %v487 = vunpack.c.l.b16 %v367
      %v488 = vunpack.c.h.b16 %v367
      %v489 = vunpack.c.l.b16 %v368
      %v490 = vunpack.c.h.b16 %v368
      %v491 = vunpack.c.l.b16 %v369
      %v492 = vunpack.c.h.b16 %v369
      %v493 = vunpack.c.l.b16 %v370
      %v494 = vunpack.c.h.b16 %v370
      %v495 = vunpack.c.l.b16 %v371
      %v496 = vunpack.c.h.b16 %v371
      %v497 = vunpack.c.l.b16 %v372
      %v498 = vunpack.c.h.b16 %v372
      %v499 = vunpack.c.l.b16 %v373
      %v500 = vunpack.c.h.b16 %v373
      %v501 = vunpack.c.l.b16 %v374
      %v502 = vunpack.c.h.b16 %v374
      %v503 = vpack.c.b16 %v441, %v439
      %v504 = vpack.c.b16 %v442, %v440
      %v505 = vpack.c.b16 %v445, %v443
      %v506 = vpack.c.b16 %v446, %v444
      %v507 = vpack.c.b16 %v449, %v447
      %v508 = vpack.c.b16 %v450, %v448
      %v509 = vpack.c.b16 %v453, %v451
      %v510 = vpack.c.b16 %v454, %v452
      %v511 = vpack.c.b16 %v457, %v455
      %v512 = vpack.c.b16 %v458, %v456
      %v513 = vpack.c.b16 %v461, %v459
      %v514 = vpack.c.b16 %v462, %v460
      %v515 = vpack.c.b16 %v465, %v463
      %v516 = vpack.c.b16 %v466, %v464
      %v517 = vpack.c.b16 %v469, %v467
      %v518 = vpack.c.b16 %v470, %v468
      %v519 = vpack.c.b16 %v473, %v471
      %v520 = vpack.c.b16 %v474, %v472
      %v521 = vpack.c.b16 %v477, %v475
      %v522 = vpack.c.b16 %v478, %v476
      %v523 = vpack.c.b16 %v481, %v479
      %v524 = vpack.c.b16 %v482, %v480
      %v525 = vpack.c.b16 %v485, %v483
      %v526 = vpack.c.b16 %v486, %v484
      %v527 = vpack.c.b16 %v489, %v487
      %v528 = vpack.c.b16 %v490, %v488
      %v529 = vpack.c.b16 %v493, %v491
      %v530 = vpack.c.b16 %v494, %v492
      %v531 = vpack.c.b16 %v497, %v495
      %v532 = vpack.c.b16 %v498, %v496
      %v533 = vpack.c.b16 %v501, %v499
      %v534 = vpack.c.b16 %v502, %v500
      %v599 = vunpack.c.l.b16 %v375
      %v600 = vunpack.c.l.b16 %v376
      %v601 = vunpack.c.l.b16 %v377
      %v602 = vunpack.c.l.b16 %v378
      %v603 = vunpack.c.l.b16 %v379
      %v604 = vunpack.c.l.b16 %v380
      %v605 = vunpack.c.l.b16 %v381
      %v606 = vunpack.c.l.b16 %v382
      %v607 = vunpack.c.l.b16 %v383
      %v608 = vunpack.c.l.b16 %v384
      %v609 = vunpack.c.l.b16 %v385
      %v610 = vunpack.c.l.b16 %v386
      %v611 = vunpack.c.l.b16 %v387
      %v612 = vunpack.c.l.b16 %v388
      %v613 = vunpack.c.l.b16 %v389
      %v614 = vunpack.c.l.b16 %v390
      %v615 = vunpack.c.l.b16 %v391
      %v616 = vunpack.c.l.b16 %v392
      %v617 = vunpack.c.l.b16 %v393
      %v618 = vunpack.c.l.b16 %v394
      %v619 = vunpack.c.l.b16 %v395
      %v620 = vunpack.c.l.b16 %v396
      %v621 = vunpack.c.l.b16 %v397
      %v622 = vunpack.c.l.b16 %v398
      %v623 = vunpack.c.l.b16 %v399
      %v624 = vunpack.c.l.b16 %v400
      %v625 = vunpack.c.l.b16 %v401
      %v626 = vunpack.c.l.b16 %v402
      %v627 = vunpack.c.l.b16 %v403
      %v628 = vunpack.c.l.b16 %v404
      %v629 = vunpack.c.l.b16 %v405
      %v630 = vunpack.c.l.b16 %v406
      %v631 = vpack.c.b16 %v600, %v599
      %v632 = vpack.c.b16 %v602, %v601
      %v633 = vpack.c.b16 %v604, %v603
      %v634 = vpack.c.b16 %v606, %v605
      %v635 = vpack.c.b16 %v608, %v607
      %v636 = vpack.c.b16 %v610, %v609
      %v637 = vpack.c.b16 %v612, %v611
      %v638 = vpack.c.b16 %v614, %v613
      %v639 = vpack.c.b16 %v616, %v615
      %v640 = vpack.c.b16 %v618, %v617
      %v641 = vpack.c.b16 %v620, %v619
      %v642 = vpack.c.b16 %v622, %v621
      %v643 = vpack.c.b16 %v624, %v623
      %v644 = vpack.c.b16 %v626, %v625
      %v645 = vpack.c.b16 %v628, %v627
      %v646 = vpack.c.b16 %v630, %v629
      %663 = vmatprep.subr.bf16.mxu0 0
      %664 = vmatpush1.bf16.msra.mxu0 %v638
      %665 = vmatprep.subr.bf16.mxu0 0
      %666 = vmatpush1.bf16.msra.mxu0 %v637
      %667 = vmatprep.subr.bf16.mxu0 0
      %668 = vmatpush1.bf16.msra.mxu0 %v636
      %669 = vmatprep.subr.bf16.mxu0 0
      %670 = vmatpush1.bf16.msra.mxu0 %v635
      %671 = vmatprep.subr.bf16.mxu0 0
      %672 = vmatpush1.bf16.msra.mxu0 %v634
      %673 = vmatprep.subr.bf16.mxu0 0
      %674 = vmatpush1.bf16.msra.mxu0 %v633
      %675 = vmatprep.subr.bf16.mxu0 0
      %676 = vmatpush1.bf16.msra.mxu0 %v632
      %677 = vmatprep.subr.bf16.mxu0 0
      %678 = vmatpush1.bf16.msra.mxu0 %v631
      %679 = vmatprep.subr.bf16.mxu0 0
      %680 = vmatpush2.bf16.msra.mxu0 %v646
      %681 = vmatprep.subr.bf16.mxu0 0
      %682 = vmatpush2.bf16.msra.mxu0 %v645
      %683 = vmatprep.subr.bf16.mxu0 0
      %684 = vmatpush2.bf16.msra.mxu0 %v644
      %685 = vmatprep.subr.bf16.mxu0 0
      %686 = vmatpush2.bf16.msra.mxu0 %v643
      %687 = vmatprep.subr.bf16.mxu0 0
      %688 = vmatpush2.bf16.msra.mxu0 %v642
      %689 = vmatprep.subr.bf16.mxu0 0
      %690 = vmatpush2.bf16.msra.mxu0 %v641
      %691 = vmatprep.subr.bf16.mxu0 0
      %692 = vmatpush2.bf16.msra.mxu0 %v640
      %693 = vmatprep.subr.bf16.mxu0 0
      %694 = vmatpush2.bf16.msra.mxu0 %v639
      %695 = vmatprep.mubr.bf16.mxu0 %v504
      %696 = vmatmul.mubr.bf16.gmra.mxu0 %v503
      %v697 = vpop.f32.mrf.mxu0
      %v698 = vadd.f32 0.0, %v697
      %v699 = vpop.f32.mrf.mxu0
      %v700 = vpop.f32.mrf.mxu0
      %v701 = vadd.f32 0.0, %v700
      %v702 = vpop.f32.mrf.mxu0
      %703 = vmatprep.mubr.bf16.mxu0 %v506
      %704 = vmatmul.mubr.bf16.gmra.mxu0 %v505
      %v705 = vpop.f32.mrf.mxu0
      %v706 = vadd.f32 0.0, %v705
      %v707 = vpop.f32.mrf.mxu0
      %v708 = vpop.f32.mrf.mxu0
      %v709 = vadd.f32 0.0, %v708
      %v710 = vpop.f32.mrf.mxu0
      %711 = vmatprep.mubr.bf16.mxu0 %v508
      %712 = vmatmul.mubr.bf16.gmra.mxu0 %v507
      %v713 = vpop.f32.mrf.mxu0
      %v714 = vadd.f32 0.0, %v713
      %v715 = vpop.f32.mrf.mxu0
      %v716 = vpop.f32.mrf.mxu0
      %v717 = vadd.f32 0.0, %v716
      %v718 = vpop.f32.mrf.mxu0
      %719 = vmatprep.mubr.bf16.mxu0 %v510
      %720 = vmatmul.mubr.bf16.gmra.mxu0 %v509
      %v721 = vpop.f32.mrf.mxu0
      %v722 = vadd.f32 0.0, %v721
      %v723 = vpop.f32.mrf.mxu0
      %v724 = vpop.f32.mrf.mxu0
      %v725 = vadd.f32 0.0, %v724
      %v726 = vpop.f32.mrf.mxu0
      %727 = vmatprep.mubr.bf16.mxu0 %v512
      %728 = vmatmul.mubr.bf16.gmra.mxu0 %v511
      %v729 = vpop.f32.mrf.mxu0
      %v730 = vadd.f32 0.0, %v729
      %v731 = vpop.f32.mrf.mxu0
      %v732 = vpop.f32.mrf.mxu0
      %v733 = vadd.f32 0.0, %v732
      %v734 = vpop.f32.mrf.mxu0
      %735 = vmatprep.mubr.bf16.mxu0 %v514
      %736 = vmatmul.mubr.bf16.gmra.mxu0 %v513
      %v737 = vpop.f32.mrf.mxu0
      %v738 = vadd.f32 0.0, %v737
      %v739 = vpop.f32.mrf.mxu0
      %v740 = vpop.f32.mrf.mxu0
      %v741 = vadd.f32 0.0, %v740
      %v742 = vpop.f32.mrf.mxu0
      %743 = vmatprep.mubr.bf16.mxu0 %v516
      %744 = vmatmul.mubr.bf16.gmra.mxu0 %v515
      %v745 = vpop.f32.mrf.mxu0
      %v746 = vadd.f32 0.0, %v745
      %v747 = vpop.f32.mrf.mxu0
      %v748 = vpop.f32.mrf.mxu0
      %v749 = vadd.f32 0.0, %v748
      %v750 = vpop.f32.mrf.mxu0
      %751 = vmatprep.mubr.bf16.mxu0 %v518
      %752 = vmatmul.mubr.bf16.gmra.mxu0 %v517
      %v753 = vpop.f32.mrf.mxu0
      %v754 = vadd.f32 0.0, %v753
      %v755 = vpop.f32.mrf.mxu0
      %v756 = vpop.f32.mrf.mxu0
      %v757 = vadd.f32 0.0, %v756
      %v758 = vpop.f32.mrf.mxu0
      %759 = vmatprep.mubr.bf16.mxu0 %v520
      %760 = vmatmul.mubr.bf16.gmra.mxu0 %v519
      %v761 = vpop.f32.mrf.mxu0
      %v762 = vadd.f32 0.0, %v761
      %v763 = vpop.f32.mrf.mxu0
      %v764 = vpop.f32.mrf.mxu0
      %v765 = vadd.f32 0.0, %v764
      %v766 = vpop.f32.mrf.mxu0
      %767 = vmatprep.mubr.bf16.mxu0 %v522
      %768 = vmatmul.mubr.bf16.gmra.mxu0 %v521
      %v769 = vpop.f32.mrf.mxu0
      %v770 = vadd.f32 0.0, %v769
      %v771 = vpop.f32.mrf.mxu0
      %v772 = vpop.f32.mrf.mxu0
      %v773 = vadd.f32 0.0, %v772
      %v774 = vpop.f32.mrf.mxu0
      %775 = vmatprep.mubr.bf16.mxu0 %v524
      %776 = vmatmul.mubr.bf16.gmra.mxu0 %v523
      %v777 = vpop.f32.mrf.mxu0
      %v778 = vadd.f32 0.0, %v777
      %v779 = vpop.f32.mrf.mxu0
      %v780 = vpop.f32.mrf.mxu0
      %v781 = vadd.f32 0.0, %v780
      %v782 = vpop.f32.mrf.mxu0
      %783 = vmatprep.mubr.bf16.mxu0 %v526
      %784 = vmatmul.mubr.bf16.gmra.mxu0 %v525
      %v785 = vpop.f32.mrf.mxu0
      %v786 = vadd.f32 0.0, %v785
      %v787 = vpop.f32.mrf.mxu0
      %v788 = vpop.f32.mrf.mxu0
      %v789 = vadd.f32 0.0, %v788
      %v790 = vpop.f32.mrf.mxu0
      %791 = vmatprep.mubr.bf16.mxu0 %v528
      %792 = vmatmul.mubr.bf16.gmra.mxu0 %v527
      %v793 = vpop.f32.mrf.mxu0
      %v794 = vadd.f32 0.0, %v793
      %v795 = vpop.f32.mrf.mxu0
      %v796 = vpop.f32.mrf.mxu0
      %v797 = vadd.f32 0.0, %v796
      %v798 = vpop.f32.mrf.mxu0
      %799 = vmatprep.mubr.bf16.mxu0 %v530
      %800 = vmatmul.mubr.bf16.gmra.mxu0 %v529
      %v801 = vpop.f32.mrf.mxu0
      %v802 = vadd.f32 0.0, %v801
      %v803 = vpop.f32.mrf.mxu0
      %v804 = vpop.f32.mrf.mxu0
      %v805 = vadd.f32 0.0, %v804
      %v806 = vpop.f32.mrf.mxu0
      %807 = vmatprep.mubr.bf16.mxu0 %v532
      %808 = vmatmul.mubr.bf16.gmra.mxu0 %v531
      %v809 = vpop.f32.mrf.mxu0
      %v810 = vadd.f32 0.0, %v809
      %v811 = vpop.f32.mrf.mxu0
      %v812 = vpop.f32.mrf.mxu0
      %v813 = vadd.f32 0.0, %v812
      %v814 = vpop.f32.mrf.mxu0
      %815 = vmatprep.mubr.bf16.mxu0 %v534
      %816 = vmatmul.mubr.bf16.gmra.mxu0 %v533
      %v817 = vpop.f32.mrf.mxu0
      %v818 = vadd.f32 0.0, %v817
      %v819 = vpop.f32.mrf.mxu0
      %v820 = vpop.f32.mrf.mxu0
      %v821 = vadd.f32 0.0, %v820
      %v822 = vpop.f32.mrf.mxu0
      %823 = vdwg.mxu0
      %v824 = vadd.f32 %v311, %v698
      %v825 = vadd.f32 %v312, %v701
      %v826 = vadd.f32 %v313, %v706
      %v827 = vadd.f32 %v314, %v709
      %v828 = vadd.f32 %v315, %v714
      %v829 = vadd.f32 %v316, %v717
      %v830 = vadd.f32 %v317, %v722
      %v831 = vadd.f32 %v318, %v725
      %v832 = vadd.f32 %v319, %v730
      %v833 = vadd.f32 %v320, %v733
      %v834 = vadd.f32 %v321, %v738
      %v835 = vadd.f32 %v322, %v741
      %v836 = vadd.f32 %v323, %v746
      %v837 = vadd.f32 %v324, %v749
      %v838 = vadd.f32 %v325, %v754
      %v839 = vadd.f32 %v326, %v757
      %v840 = vadd.f32 %v327, %v762
      %v841 = vadd.f32 %v328, %v765
      %v842 = vadd.f32 %v329, %v770
      %v843 = vadd.f32 %v330, %v773
      %v844 = vadd.f32 %v331, %v778
      %v845 = vadd.f32 %v332, %v781
      %v846 = vadd.f32 %v333, %v786
      %v847 = vadd.f32 %v334, %v789
      %v848 = vadd.f32 %v335, %v794
      %v849 = vadd.f32 %v336, %v797
      %v850 = vadd.f32 %v337, %v802
      %v851 = vadd.f32 %v338, %v805
      %v852 = vadd.f32 %v339, %v810
      %v853 = vadd.f32 %v340, %v813
      %v854 = vadd.f32 %v341, %v818
      %v855 = vadd.f32 %v342, %v821
      %856 = vst [vmem:[%s265] sm:$0xff] %v824
      %857 = vst [vmem:[%s265 + $0x8] sm:$0xff] %v825
      %858 = vst [vmem:[%s265 + $0x10] sm:$0xff] %v826
      %859 = vst [vmem:[%s265 + $0x18] sm:$0xff] %v827
      %860 = vst [vmem:[%s265 + $0x20] sm:$0xff] %v828
      %861 = vst [vmem:[%s265 + $0x28] sm:$0xff] %v829
      %862 = vst [vmem:[%s265 + $0x30] sm:$0xff] %v830
      %863 = vst [vmem:[%s265 + $0x38] sm:$0xff] %v831
      %864 = vst [vmem:[%s265 + $0x40] sm:$0xff] %v832
      %865 = vst [vmem:[%s265 + $0x48] sm:$0xff] %v833
      %866 = vst [vmem:[%s265 + $0x50] sm:$0xff] %v834
      %867 = vst [vmem:[%s265 + $0x58] sm:$0xff] %v835
      %868 = vst [vmem:[%s265 + $0x60] sm:$0xff] %v836
      %869 = vst [vmem:[%s265 + $0x68] sm:$0xff] %v837
      %870 = vst [vmem:[%s265 + $0x70] sm:$0xff] %v838
      %871 = vst [vmem:[%s265 + $0x78] sm:$0xff] %v839
      %872 = vst [vmem:[%s265 + $0x80] sm:$0xff] %v840
      %873 = vst [vmem:[%s265 + $0x88] sm:$0xff] %v841
      %874 = vst [vmem:[%s265 + $0x90] sm:$0xff] %v842
      %875 = vst [vmem:[%s265 + $0x98] sm:$0xff] %v843
      %876 = vst [vmem:[%s265 + $0xa0] sm:$0xff] %v844
      %877 = vst [vmem:[%s265 + $0xa8] sm:$0xff] %v845
      %878 = vst [vmem:[%s265 + $0xb0] sm:$0xff] %v846
      %879 = vst [vmem:[%s265 + $0xb8] sm:$0xff] %v847
      %880 = vst [vmem:[%s265 + $0xc0] sm:$0xff] %v848
      %881 = vst [vmem:[%s265 + $0xc8] sm:$0xff] %v849
      %882 = vst [vmem:[%s265 + $0xd0] sm:$0xff] %v850
      %883 = vst [vmem:[%s265 + $0xd8] sm:$0xff] %v851
      %884 = vst [vmem:[%s265 + $0xe0] sm:$0xff] %v852
      %885 = vst [vmem:[%s265 + $0xe8] sm:$0xff] %v853
      %886 = vst [vmem:[%s265 + $0xf0] sm:$0xff] %v854
      %887 = vst [vmem:[%s265 + $0xf8] sm:$0xff] %v855
      %s888 = smul.u32 32, %s19
      %p889 = scmp.lt.s32.totalorder %s888, 255
      %s890 = scalar_select %p889, %s888, 255
      %p891 = scmp.lt.s32.totalorder %s20, 0
      %s892 = scalar_select %p891, %s20, 0
      %s893 = sadd.s32 %s892, %s890
      %s894 = smul.addr %s893, 8
      %s895 = scalar_lea.vmem %s3, %s894
      // Predicated region
      $region37: #{mlsp.41} parent=31 // pred_check
        %p896 = pneg %p135
      $region38: #{mlsp.41} parent=31 // pred_check_branch
        %898 = sbr.rel (%p896) target = $region40
      $region39: #{mlsp.41} parent=31 // pred_region
        %s899 = smul.u32 32, %s19
      $region40: #{mlsp.41} parent=31 // pred_fallthru
        _
    $region32: #{mlsp.41} parent=5 // pred_fallthru
      _
    %p900 = scmp.le.s32.totalorder 2, %s9
    // Predicated region
    $region41: #{mlsp.41} parent=5 // pred_check
      %p901 = pneg %p900
    $region42: #{mlsp.41} parent=5 // pred_check_branch
      %903 = sbr.rel (%p901) target = $region44
    $region43: #{mlsp.41} parent=5 // pred_region
      %s904 = ssub.s32 %s9, 2
      // Predicated region
      $region45: #{mlsp.41} parent=43 // pred_check
        %p905 = pneg %p141
      $region46: #{mlsp.41} parent=43 // pred_check_branch
        %907 = sbr.rel (%p905) target = $region48
      $region47: #{mlsp.41} parent=43 // pred_region
        %s908 = smul.u32 32, %s22
        %p909 = scmp.lt.s32.totalorder %s908, 255
        %s910 = scalar_select %p909, %s908, 255
        %p911 = scmp.lt.s32.totalorder %s23, 0
        %s912 = scalar_select %p911, %s23, 0
        %s913 = sadd.s32 %s912, %s910
        %s914 = smul.addr %s913, 8
        %s915 = scalar_lea.vmem %s3, %s914
      $region48: #{mlsp.41} parent=43 // pred_fallthru
        _
    $region44: #{mlsp.41} parent=5 // pred_fallthru
      _
  $region6: #{mlsp.41} parent=0 // loop_footer
    %s13 = sadd.s32 1, %s9
  $region7: #{mlsp.41} parent=0 // loop_footer_branch
    %8 = sbr.rel target = $region3
  $region8: #{mlsp.41} parent=0 // loop_exit
    _

// kernel: mlsp.42
$region0: #{mlsp.42}
  #allocation0 [shape = 'u32[]', space=smem, size = 0x4, offset = 0x4, fixed_abs, tag = 'smem constant byte address 0x4 - core index']
  #allocation1 [shape = 'u32[144,128]{1,0:T(1,128)}', space=vmem, size = 0x12000, scoped, tag = 'internal scratch']
  %s0 = inlined_call_operand.vmem [shape: f32[16,1024], index: 0, kind: input, shape index: {}]
  %s1 = inlined_call_operand.vmem [shape: f32[16,1024], index: 1, kind: output, shape index: {}]
  %s2 = sld [smem:[#allocation0]]
  $region37: #{mlsp.42} parent=0
    _
  %s4 = ssub.s32 1, %s2
  %s5 = scalar_select 0, %s4, %s2
  loop: start=0, step=1, limit=4
  $region2: #{mlsp.42} parent=0 // loop_pre_header
    _
  $region3: #{mlsp.42} parent=0 // loop_header
    %s7 = sphi 0, %s11
    %p8 = scmp.ge.s32.totalorder %s7, 4
    %s17 = sphi 0, %s19
    %s20 = sphi 0, %s17
    %s21 = sphi 0, %s20
    %s37 = sphi 0, %s21
    %s43 = sphi 0, %s45
    %s46 = sphi 0, %s43
    %s47 = sphi 0, %s46
    %s63 = sphi 0, %s47
  $region4: #{mlsp.42} parent=0 // loop_header_branch
    %10 = sbr.rel (%p8) target = $region8
  $region5: #{mlsp.42} parent=0 // loop_body
    %s12 = ssub.s32 %s7, 1
    %s13 = ssub.s32 %s7, 2
    %s14 = sadd.s32 %s7, 1
    %s15 = ssub.s32 %s7, %s14
    %p16 = scmp.eq.s32.totalorder %s15, 0
    %s18 = sadd.s32 %s17, 1
    %s19 = scalar_select %p16, %s17, %s18
    %p22 = pneg %p16
    %p23 = scmp.eq.s32.totalorder %s7, 1
    %p24 = por %p22, %p23
    %p25 = scmp.ne.s32.totalorder %s17, %s20
    %p26 = scmp.eq.s32.totalorder %s7, 0
    %p27 = por %p25, %p26
    %p28 = scmp.ne.s32.totalorder %s17, %s20
    %p29 = scmp.eq.s32.totalorder %s12, 1
    %p30 = por %p28, %p29
    %p31 = scmp.ne.s32.totalorder %s20, %s21
    %p32 = scmp.eq.s32.totalorder %s12, 0
    %p33 = por %p31, %p32
    %p34 = scmp.ne.s32.totalorder %s20, %s21
    %p35 = scmp.eq.s32.totalorder %s13, 1
    %p36 = por %p34, %p35
    %p38 = scmp.ne.s32.totalorder %s21, %s37
    %p39 = scmp.eq.s32.totalorder %s13, 0
    %p40 = por %p38, %p39
    %s41 = ssub.s32 %s7, %s14
    %p42 = scmp.eq.s32.totalorder %s41, 0
    %s44 = sadd.s32 %s43, 1
    %s45 = scalar_select %p42, %s43, %s44
    %p48 = pneg %p42
    %p49 = scmp.eq.s32.totalorder %s7, 1
    %p50 = por %p48, %p49
    %p51 = scmp.ne.s32.totalorder %s43, %s46
    %p52 = scmp.eq.s32.totalorder %s7, 0
    %p53 = por %p51, %p52
    %p54 = scmp.ne.s32.totalorder %s43, %s46
    %p55 = scmp.eq.s32.totalorder %s12, 1
    %p56 = por %p54, %p55
    %p57 = scmp.ne.s32.totalorder %s46, %s47
    %p58 = scmp.eq.s32.totalorder %s12, 0
    %p59 = por %p57, %p58
    %p60 = scmp.ne.s32.totalorder %s46, %s47
    %p61 = scmp.eq.s32.totalorder %s13, 1
    %p62 = por %p60, %p61
    %p64 = scmp.ne.s32.totalorder %s47, %s63
    %p65 = scmp.eq.s32.totalorder %s13, 0
    %p66 = por %p64, %p65
    %p67 = scmp.le.s32.totalorder 1, %s7
    %p68 = scmp.lt.s32.totalorder %s7, 3
    %p69 = pnand %p67, %p68
    %p70 = pneg %p69
    // Predicated region
    $region9: #{mlsp.42} parent=5 // pred_check
      _
    $region10: #{mlsp.42} parent=5 // pred_check_branch
      %72 = sbr.rel (%p69) target = $region12
    $region11: #{mlsp.42} parent=5 // pred_region
      %s73 = ssub.s32 %s7, 1
    $region12: #{mlsp.42} parent=5 // pred_fallthru
      _
    %p74 = scmp.lt.s32.totalorder %s7, 2
    // Predicated region
    $region13: #{mlsp.42} parent=5 // pred_check
      %p75 = pneg %p74
    $region14: #{mlsp.42} parent=5 // pred_check_branch
      %77 = sbr.rel (%p75) target = $region16
    $region15: #{mlsp.42} parent=5 // pred_region
      // Predicated region
      $region17: #{mlsp.42} parent=15 // pred_check
        %p78 = pneg %p27
      $region18: #{mlsp.42} parent=15 // pred_check_branch
        %80 = sbr.rel (%p78) target = $region20
      $region19: #{mlsp.42} parent=15 // pred_region
        %p81 = scmp.lt.s32.totalorder %s7, 1
        %s82 = scalar_select %p81, %s7, 1
        %s83 = smul.addr %s82, 8
        %s84 = smul.addr %s83, 8
        %s85 = scalar_lea.vmem %s0, %s84
      $region20: #{mlsp.42} parent=15 // pred_fallthru
        _
    $region16: #{mlsp.42} parent=5 // pred_fallthru
      _
    %p86 = scmp.le.s32.totalorder 1, %s7
    %p87 = scmp.lt.s32.totalorder %s7, 3
    %p88 = pnand %p86, %p87
    %p89 = pneg %p88
    // Predicated region
    $region21: #{mlsp.42} parent=5 // pred_check
      _
    $region22: #{mlsp.42} parent=5 // pred_check_branch
      %91 = sbr.rel (%p88) target = $region24
    $region23: #{mlsp.42} parent=5 // pred_region
      %s92 = ssub.s32 %s7, 1
      %p93 = scmp.lt.s32.totalorder %s12, 1
      %s94 = scalar_select %p93, %s12, 1
      %s95 = smul.addr %s94, 8
      %s96 = smul.addr %s95, 8
      %s97 = scalar_lea.vmem %s0, %s96
      %p98 = pneg %p33
      %p99 = pneg %p30
      %p100 = pneg %p59
      %p101 = pneg %p56
      %p102 = scmp.lt.s32.totalorder %s12, 1
      %s103 = scalar_select %p102, %s12, 1
      %s104 = smul.addr %s103, 8
      %s105 = smul.addr %s104, 8
      %s106 = scalar_lea.vmem %s1, %s105
      %p107 = scmp.lt.s32.totalorder %s12, 1
      %s108 = scalar_select %p107, %s12, 1
      %s109 = smul.addr %s108, 8
      %s110 = smul.addr %s109, 8
      %s111 = scalar_lea.vmem %s0, %s110
      %p112 = scmp.lt.s32.totalorder %s12, 1
      %s113 = scalar_select %p112, %s12, 1
      %s114 = smul.addr %s113, 8
      %s115 = smul.addr %s114, 8
      %s116 = scalar_lea.vmem %s1, %s115
      %v117 = vld [vmem:[%s111] sm:$0xff]
      %v118 = vld [vmem:[%s111 + $0x8] sm:$0xff]
      %v119 = vld [vmem:[%s111 + $0x10] sm:$0xff]
      %v120 = vld [vmem:[%s111 + $0x18] sm:$0xff]
      %v121 = vld [vmem:[%s111 + $0x20] sm:$0xff]
      %v122 = vld [vmem:[%s111 + $0x28] sm:$0xff]
      %v123 = vld [vmem:[%s111 + $0x30] sm:$0xff]
      %v124 = vld [vmem:[%s111 + $0x38] sm:$0xff]
      %v125 = vadd.f32 %v117, %v118
      %v126 = vadd.f32 %v125, %v119
      %v127 = vadd.f32 %v126, %v120
      %v128 = vadd.f32 %v127, %v121
      %v129 = vadd.f32 %v128, %v122
      %v130 = vadd.f32 %v129, %v123
      %v131 = vadd.f32 %v130, %v124
      %132 = vadd.xlane.f32.xlu0 %v131
      %v133 = vpop.xlane.xlu0 %132
      %v134 = vrcp.pop 1024.0
      %v135 = vmul.f32 %v133, %v134
      %v136 = vsub.f32 %v117, %v135
      %v137 = vsub.f32 %v118, %v135
      %v138 = vsub.f32 %v119, %v135
      %v139 = vsub.f32 %v120, %v135
      %v140 = vsub.f32 %v121, %v135
      %v141 = vsub.f32 %v122, %v135
      %v142 = vsub.f32 %v123, %v135
      %v143 = vsub.f32 %v124, %v135
      %v144 = vmul.f32 %v136, %v136
      %v145 = vmul.f32 %v137, %v137
      %v146 = vmul.f32 %v138, %v138
      %v147 = vmul.f32 %v139, %v139
      %v148 = vmul.f32 %v140, %v140
      %v149 = vmul.f32 %v141, %v141
      %v150 = vmul.f32 %v142, %v142
      %v151 = vmul.f32 %v143, %v143
      %v152 = vadd.f32 %v144, %v145
      %v153 = vadd.f32 %v152, %v146
      %v154 = vadd.f32 %v153, %v147
      %v155 = vadd.f32 %v154, %v148
      %v156 = vadd.f32 %v155, %v149
      %v157 = vadd.f32 %v156, %v150
      %v158 = vadd.f32 %v157, %v151
      %159 = vadd.xlane.f32.xlu0 %v158
      %v160 = vpop.xlane.xlu0 %159
      %v161 = vmul.f32 %v160, %v134
      %v162 = vadd.f32 %v161, 1e-05
      %v163 = vrsqrt.pop %v162
      %v164 = vmul.f32 %v136, %v163
      %v165 = vmul.f32 %v137, %v163
      %v166 = vmul.f32 %v138, %v163
      %v167 = vmul.f32 %v139, %v163
      %v168 = vmul.f32 %v140, %v163
      %v169 = vmul.f32 %v141, %v163
      %v170 = vmul.f32 %v142, %v163
      %v171 = vmul.f32 %v143, %v163
      %v172 = vmax.f32 %v164, 0.0
      %v173 = vmax.f32 %v165, 0.0
      %v174 = vmax.f32 %v166, 0.0
      %v175 = vmax.f32 %v167, 0.0
      %v176 = vmax.f32 %v168, 0.0
      %v177 = vmax.f32 %v169, 0.0
      %v178 = vmax.f32 %v170, 0.0
      %v179 = vmax.f32 %v171, 0.0
      %180 = vst [vmem:[%s116] sm:$0xff] %v172
      %181 = vst [vmem:[%s116 + $0x8] sm:$0xff] %v173
      %182 = vst [vmem:[%s116 + $0x10] sm:$0xff] %v174
      %183 = vst [vmem:[%s116 + $0x18] sm:$0xff] %v175
      %184 = vst [vmem:[%s116 + $0x20] sm:$0xff] %v176
      %185 = vst [vmem:[%s116 + $0x28] sm:$0xff] %v177
      %186 = vst [vmem:[%s116 + $0x30] sm:$0xff] %v178
      %187 = vst [vmem:[%s116 + $0x38] sm:$0xff] %v179
      %p188 = scmp.lt.s32.totalorder %s12, 1
      %s189 = scalar_select %p188, %s12, 1
      %s190 = smul.addr %s189, 8
      %s191 = smul.addr %s190, 8
      %s192 = scalar_lea.vmem %s1, %s191
      // Predicated region
      $region25: #{mlsp.42} parent=23 // pred_check
        %p193 = pneg %p56
      $region26: #{mlsp.42} parent=23 // pred_check_branch
        %195 = sbr.rel (%p193) target = $region28
      $region27: #{mlsp.42} parent=23 // pred_region
        _
      $region28: #{mlsp.42} parent=23 // pred_fallthru
        _
    $region24: #{mlsp.42} parent=5 // pred_fallthru
      _
    %p196 = scmp.le.s32.totalorder 2, %s7
    // Predicated region
    $region29: #{mlsp.42} parent=5 // pred_check
      %p197 = pneg %p196
    $region30: #{mlsp.42} parent=5 // pred_check_branch
      %199 = sbr.rel (%p197) target = $region32
    $region31: #{mlsp.42} parent=5 // pred_region
      %s200 = ssub.s32 %s7, 2
      // Predicated region
      $region33: #{mlsp.42} parent=31 // pred_check
        %p201 = pneg %p62
      $region34: #{mlsp.42} parent=31 // pred_check_branch
        %203 = sbr.rel (%p201) target = $region36
      $region35: #{mlsp.42} parent=31 // pred_region
        %p204 = scmp.lt.s32.totalorder %s13, 1
        %s205 = scalar_select %p204, %s13, 1
        %s206 = smul.addr %s205, 8
        %s207 = smul.addr %s206, 8
        %s208 = scalar_lea.vmem %s1, %s207
      $region36: #{mlsp.42} parent=31 // pred_fallthru
        _
    $region32: #{mlsp.42} parent=5 // pred_fallthru
      _
  $region6: #{mlsp.42} parent=0 // loop_footer
    %s11 = sadd.s32 1, %s7
  $region7: #{mlsp.42} parent=0 // loop_footer_branch
    %6 = sbr.rel target = $region3
  $region8: #{mlsp.42} parent=0 // loop_exit
    _

// kernel: mlsp.43
$region0: #{mlsp.43}
  #allocation0 [shape = 'u32[]', space=smem, size = 0x4, offset = 0x4, fixed_abs, tag = 'smem constant byte address 0x4 - core index']
  #allocation1 [shape = 'u32[144,128]{1,0:T(1,128)}', space=vmem, size = 0x12000, scoped, tag = 'internal scratch']
  %s0 = inlined_call_operand.vmem [shape: bf16[2048,128], index: 0, kind: input, shape index: {}]
  %s1 = inlined_call_operand.vmem [shape: bf16[128,128], index: 1, kind: input, shape index: {}]
  %s2 = inlined_call_operand.vmem [shape: f32[1,128], index: 2, kind: input, shape index: {}]
  %s3 = inlined_call_operand.vmem [shape: f32[2048,128], index: 3, kind: output, shape index: {}]
  %s4 = sld [smem:[#allocation0]]
  $region49: #{mlsp.43} parent=0
    _
  %s6 = ssub.s32 1, %s4
  %s7 = scalar_select 0, %s6, %s4
  loop: start=0, step=1, limit=10
  $region2: #{mlsp.43} parent=0 // loop_pre_header
    _
  $region3: #{mlsp.43} parent=0 // loop_header
    %s9 = sphi 0, %s13
    %p10 = scmp.ge.s32.totalorder %s9, 10
    %s16 = sphi 0, %s35
    %s17 = sphi 0, %s31
    %s18 = sphi 0, %s27
    %s19 = sphi 0, %s16
    %s20 = sphi 0, %s17
    %s21 = sphi 0, %s18
    %s22 = sphi 0, %s19
    %s23 = sphi 0, %s20
    %s24 = sphi 0, %s21
    %s40 = sphi 0, %s42
    %s43 = sphi 0, %s40
    %s44 = sphi 0, %s43
    %s60 = sphi 0, %s44
    %s68 = sphi 0, %s70
    %s71 = sphi 0, %s68
    %s72 = sphi 0, %s71
    %s88 = sphi 0, %s72
    %s94 = sphi 0, %s96
    %s97 = sphi 0, %s94
    %s98 = sphi 0, %s97
    %s114 = sphi 0, %s98
    %s122 = sphi 0, %s124
    %s125 = sphi 0, %s122
    %s126 = sphi 0, %s125
    %s142 = sphi 0, %s126
  $region4: #{mlsp.43} parent=0 // loop_header_branch
    %12 = sbr.rel (%p10) target = $region8
  $region5: #{mlsp.43} parent=0 // loop_body
    %s14 = ssub.s32 %s9, 1
    %s15 = ssub.s32 %s9, 2
    %s25 = sadd.s32 1, %s18
    %p26 = scmp.ge.s32.totalorder %s25, 1
    %s27 = scalar_select %p26, 0, %s25
    %s28 = sadd.s32 1, %s17
    %s29 = scalar_select %p26, %s28, %s17
    %p30 = scmp.ge.s32.totalorder %s29, 1
    %s31 = scalar_select %p30, 0, %s29
    %s32 = sadd.s32 1, %s16
    %s33 = scalar_select %p30, %s32, %s16
    %p34 = scmp.ge.s32.totalorder %s33, 8
    %s35 = scalar_select %p34, 0, %s33
    %s36 = ssub.s32 %s16, %s35
    %s37 = ssub.s32 %s18, %s27
    %s38 = sor.u32 %s36, %s37
    %p39 = scmp.eq.s32.totalorder %s38, 0
    %s41 = sadd.s32 %s40, 1
    %s42 = scalar_select %p39, %s40, %s41
    %p45 = pneg %p39
    %p46 = scmp.eq.s32.totalorder %s9, 7
    %p47 = por %p45, %p46
    %p48 = scmp.ne.s32.totalorder %s40, %s43
    %p49 = scmp.eq.s32.totalorder %s9, 0
    %p50 = por %p48, %p49
    %p51 = scmp.ne.s32.totalorder %s40, %s43
    %p52 = scmp.eq.s32.totalorder %s14, 7
    %p53 = por %p51, %p52
    %p54 = scmp.ne.s32.totalorder %s43, %s44
    %p55 = scmp.eq.s32.totalorder %s14, 0
    %p56 = por %p54, %p55
    %p57 = scmp.ne.s32.totalorder %s43, %s44
    %p58 = scmp.eq.s32.totalorder %s15, 7
    %p59 = por %p57, %p58
    %p61 = scmp.ne.s32.totalorder %s44, %s60
    %p62 = scmp.eq.s32.totalorder %s15, 0
    %p63 = por %p61, %p62
    %s64 = ssub.s32 %s18, %s27
    %s65 = ssub.s32 %s17, %s31
    %s66 = sor.u32 %s64, %s65
    %p67 = scmp.eq.s32.totalorder %s66, 0
    %s69 = sadd.s32 %s68, 1
    %s70 = scalar_select %p67, %s68, %s69
    %p73 = pneg %p67
    %p74 = scmp.eq.s32.totalorder %s9, 7
    %p75 = por %p73, %p74
    %p76 = scmp.ne.s32.totalorder %s68, %s71
    %p77 = scmp.eq.s32.totalorder %s9, 0
    %p78 = por %p76, %p77
    %p79 = scmp.ne.s32.totalorder %s68, %s71
    %p80 = scmp.eq.s32.totalorder %s14, 7
    %p81 = por %p79, %p80
    %p82 = scmp.ne.s32.totalorder %s71, %s72
    %p83 = scmp.eq.s32.totalorder %s14, 0
    %p84 = por %p82, %p83
    %p85 = scmp.ne.s32.totalorder %s71, %s72
    %p86 = scmp.eq.s32.totalorder %s15, 7
    %p87 = por %p85, %p86
    %p89 = scmp.ne.s32.totalorder %s72, %s88
    %p90 = scmp.eq.s32.totalorder %s15, 0
    %p91 = por %p89, %p90
    %s92 = ssub.s32 %s17, %s31
    %p93 = scmp.eq.s32.totalorder %s92, 0
    %s95 = sadd.s32 %s94, 1
    %s96 = scalar_select %p93, %s94, %s95
    %p99 = pneg %p93
    %p100 = scmp.eq.s32.totalorder %s9, 7
    %p101 = por %p99, %p100
    %p102 = scmp.ne.s32.totalorder %s94, %s97
    %p103 = scmp.eq.s32.totalorder %s9, 0
    %p104 = por %p102, %p103
    %p105 = scmp.ne.s32.totalorder %s94, %s97
    %p106 = scmp.eq.s32.totalorder %s14, 7
    %p107 = por %p105, %p106
    %p108 = scmp.ne.s32.totalorder %s97, %s98
    %p109 = scmp.eq.s32.totalorder %s14, 0
    %p110 = por %p108, %p109
    %p111 = scmp.ne.s32.totalorder %s97, %s98
    %p112 = scmp.eq.s32.totalorder %s15, 7
    %p113 = por %p111, %p112
    %p115 = scmp.ne.s32.totalorder %s98, %s114
    %p116 = scmp.eq.s32.totalorder %s15, 0
    %p117 = por %p115, %p116
    %s118 = ssub.s32 %s16, %s35
    %s119 = ssub.s32 %s17, %s31
    %s120 = sor.u32 %s118, %s119
    %p121 = scmp.eq.s32.totalorder %s120, 0
    %s123 = sadd.s32 %s122, 1
    %s124 = scalar_select %p121, %s122, %s123
    %p127 = pneg %p121
    %p128 = scmp.eq.s32.totalorder %s9, 7
    %p129 = por %p127, %p128
    %p130 = scmp.ne.s32.totalorder %s122, %s125
    %p131 = scmp.eq.s32.totalorder %s9, 0
    %p132 = por %p130, %p131
    %p133 = scmp.ne.s32.totalorder %s122, %s125
    %p134 = scmp.eq.s32.totalorder %s14, 7
    %p135 = por %p133, %p134
    %p136 = scmp.ne.s32.totalorder %s125, %s126
    %p137 = scmp.eq.s32.totalorder %s14, 0
    %p138 = por %p136, %p137
    %p139 = scmp.ne.s32.totalorder %s125, %s126
    %p140 = scmp.eq.s32.totalorder %s15, 7
    %p141 = por %p139, %p140
    %p143 = scmp.ne.s32.totalorder %s126, %s142
    %p144 = scmp.eq.s32.totalorder %s15, 0
    %p145 = por %p143, %p144
    %p146 = scmp.le.s32.totalorder 1, %s9
    %p147 = scmp.lt.s32.totalorder %s9, 9
    %p148 = pnand %p146, %p147
    %p149 = pneg %p148
    // Predicated region
    $region9: #{mlsp.43} parent=5 // pred_check
      _
    $region10: #{mlsp.43} parent=5 // pred_check_branch
      %151 = sbr.rel (%p148) target = $region12
    $region11: #{mlsp.43} parent=5 // pred_region
      %s152 = ssub.s32 %s9, 1
      // Predicated region
      $region13: #{mlsp.43} parent=11 // pred_check
        %p153 = pneg %p84
      $region14: #{mlsp.43} parent=11 // pred_check_branch
        %155 = sbr.rel (%p153) target = $region16
      $region15: #{mlsp.43} parent=11 // pred_region
        %s156 = smul.u32 16, %s21
        %p157 = scmp.lt.s32.totalorder %s156, 15
        %s158 = scalar_select %p157, %s156, 15
        %p159 = scmp.lt.s32.totalorder %s20, 0
        %s160 = scalar_select %p159, %s20, 0
        %s161 = sadd.s32 %s160, %s158
        %s162 = smul.addr %s161, 4
        %s163 = scalar_lea.vmem %s1, %s162
        %s164 = smul.u32 16, %s21
      $region16: #{mlsp.43} parent=11 // pred_fallthru
        _
      // Predicated region
      $region17: #{mlsp.43} parent=11 // pred_check
        %p165 = pneg %p110
      $region18: #{mlsp.43} parent=11 // pred_check_branch
        %167 = sbr.rel (%p165) target = $region20
      $region19: #{mlsp.43} parent=11 // pred_region
        %p168 = scmp.lt.s32.totalorder %s20, 0
        %s169 = scalar_select %p168, %s20, 0
        %s170 = scalar_lea.vmem %s2, %s169
      $region20: #{mlsp.43} parent=11 // pred_fallthru
        _
    $region12: #{mlsp.43} parent=5 // pred_fallthru
      _
    %p171 = scmp.lt.s32.totalorder %s9, 8
    // Predicated region
    $region21: #{mlsp.43} parent=5 // pred_check
      %p172 = pneg %p171
    $region22: #{mlsp.43} parent=5 // pred_check_branch
      %174 = sbr.rel (%p172) target = $region24
    $region23: #{mlsp.43} parent=5 // pred_region
      // Predicated region
      $region25: #{mlsp.43} parent=23 // pred_check
        %p175 = pneg %p50
      $region26: #{mlsp.43} parent=23 // pred_check_branch
        %177 = sbr.rel (%p175) target = $region28
      $region27: #{mlsp.43} parent=23 // pred_region
        %s178 = smul.u32 32, %s16
        %p179 = scmp.lt.s32.totalorder %s178, 255
        %s180 = scalar_select %p179, %s178, 255
        %p181 = scmp.lt.s32.totalorder %s18, 0
        %s182 = scalar_select %p181, %s18, 0
        %s183 = sadd.s32 %s182, %s180
        %s184 = smul.addr %s183, 4
        %s185 = scalar_lea.vmem %s0, %s184
        %s186 = smul.u32 32, %s16
      $region28: #{mlsp.43} parent=23 // pred_fallthru
        _
    $region24: #{mlsp.43} parent=5 // pred_fallthru
      _
    %p187 = scmp.le.s32.totalorder 1, %s9
    %p188 = scmp.lt.s32.totalorder %s9, 9
    %p189 = pnand %p187, %p188
    %p190 = pneg %p189
    // Predicated region
    $region29: #{mlsp.43} parent=5 // pred_check
      _
    $region30: #{mlsp.43} parent=5 // pred_check_branch
      %192 = sbr.rel (%p189) target = $region32
    $region31: #{mlsp.43} parent=5 // pred_region
      %s193 = ssub.s32 %s9, 1
      %s194 = smul.u32 32, %s19
      %p195 = scmp.lt.s32.totalorder %s194, 255
      %s196 = scalar_select %p195, %s194, 255
      %p197 = scmp.lt.s32.totalorder %s21, 0
      %s198 = scalar_select %p197, %s21, 0
      %s199 = sadd.s32 %s198, %s196
      %s200 = smul.addr %s199, 4
      %s201 = scalar_lea.vmem %s0, %s200
      %p202 = pneg %p56
      %p203 = pneg %p53
      %s204 = smul.u32 16, %s21
      %p205 = scmp.lt.s32.totalorder %s204, 15
      %s206 = scalar_select %p205, %s204, 15
      %p207 = scmp.lt.s32.totalorder %s20, 0
      %s208 = scalar_select %p207, %s20, 0
      %s209 = sadd.s32 %s208, %s206
      %s210 = smul.addr %s209, 4
      %s211 = scalar_lea.vmem %s1, %s210
      %p212 = pneg %p84
      %p213 = pneg %p81
      %p214 = scmp.lt.s32.totalorder %s20, 0
      %s215 = scalar_select %p214, %s20, 0
      %s216 = scalar_lea.vmem %s2, %s215
      %p217 = pneg %p110
      %p218 = pneg %p107
      %p219 = pneg %p138
      %p220 = pneg %p135
      %s221 = smul.u32 32, %s19
      %p222 = scmp.lt.s32.totalorder %s221, 255
      %s223 = scalar_select %p222, %s221, 255
      %p224 = scmp.lt.s32.totalorder %s20, 0
      %s225 = scalar_select %p224, %s20, 0
      %s226 = sadd.s32 %s225, %s223
      %s227 = smul.addr %s226, 8
      %s228 = scalar_lea.vmem %s3, %s227
      %s229 = smul.u32 32, %s19
      %p230 = scmp.lt.s32.totalorder %s229, 255
      %s231 = scalar_select %p230, %s229, 255
      %p232 = scmp.lt.s32.totalorder %s21, 0
      %s233 = scalar_select %p232, %s21, 0
      %s234 = sadd.s32 %s233, %s231
      %s235 = smul.addr %s234, 4
      %s236 = scalar_lea.vmem %s0, %s235
      %s237 = smul.u32 32, %s19
      %s238 = smul.u32 16, %s21
      %p239 = scmp.lt.s32.totalorder %s238, 15
      %s240 = scalar_select %p239, %s238, 15
      %p241 = scmp.lt.s32.totalorder %s20, 0
      %s242 = scalar_select %p241, %s20, 0
      %s243 = sadd.s32 %s242, %s240
      %s244 = smul.addr %s243, 4
      %s245 = scalar_lea.vmem %s1, %s244
      %s246 = smul.u32 16, %s21
      %p247 = scmp.lt.s32.totalorder %s20, 0
      %s248 = scalar_select %p247, %s20, 0
      %s249 = scalar_lea.vmem %s2, %s248
      %s250 = smul.u32 32, %s19
      %p251 = scmp.lt.s32.totalorder %s250, 255
      %s252 = scalar_select %p251, %s250, 255
      %p253 = scmp.lt.s32.totalorder %s20, 0
      %s254 = scalar_select %p253, %s20, 0
      %s255 = sadd.s32 %s254, %s252
      %s256 = smul.addr %s255, 8
      %s257 = scalar_lea.vmem %s3, %s256
      %s258 = smul.u32 32, %s19
      %p260 = scmp.eq.s32.totalorder %s21, 0
      // Predicated region
      $region33: #{mlsp.43} parent=31 // pred_check
        %p261 = pneg %p260
      $region34: #{mlsp.43} parent=31 // pred_check_branch
        %263 = sbr.rel (%p261) target = $region36
      $region35: #{mlsp.43} parent=31 // pred_region
        %v264 = vld [vmem:[%s249] sm:$0x1]
        %v266 = vlaneseq
        %v267 = vshrl.u32 %v266, 7
        %v268 = vsub.s32 0, %v267
        %v269 = vrot.slane %v264, %v268
        %271 = vst [vmem:[%s257] sm:$0xff] %v269
        %272 = vst [vmem:[%s257 + $0x8] sm:$0xff] %v269
        %273 = vst [vmem:[%s257 + $0x10] sm:$0xff] %v269
        %274 = vst [vmem:[%s257 + $0x18] sm:$0xff] %v269
        %275 = vst [vmem:[%s257 + $0x20] sm:$0xff] %v269
        %276 = vst [vmem:[%s257 + $0x28] sm:$0xff] %v269
        %277 = vst [vmem:[%s257 + $0x30] sm:$0xff] %v269
        %278 = vst [vmem:[%s257 + $0x38] sm:$0xff] %v269
        %279 = vst [vmem:[%s257 + $0x40] sm:$0xff] %v269
        %280 = vst [vmem:[%s257 + $0x48] sm:$0xff] %v269
        %281 = vst [vmem:[%s257 + $0x50] sm:$0xff] %v269
        %282 = vst [vmem:[%s257 + $0x58] sm:$0xff] %v269
        %283 = vst [vmem:[%s257 + $0x60] sm:$0xff] %v269
        %284 = vst [vmem:[%s257 + $0x68] sm:$0xff] %v269
        %285 = vst [vmem:[%s257 + $0x70] sm:$0xff] %v269
        %286 = vst [vmem:[%s257 + $0x78] sm:$0xff] %v269
        %287 = vst [vmem:[%s257 + $0x80] sm:$0xff] %v269
        %288 = vst [vmem:[%s257 + $0x88] sm:$0xff] %v269
        %289 = vst [vmem:[%s257 + $0x90] sm:$0xff] %v269
        %290 = vst [vmem:[%s257 + $0x98] sm:$0xff] %v269
        %291 = vst [vmem:[%s257 + $0xa0] sm:$0xff] %v269
        %292 = vst [vmem:[%s257 + $0xa8] sm:$0xff] %v269
        %293 = vst [vmem:[%s257 + $0xb0] sm:$0xff] %v269
        %294 = vst [vmem:[%s257 + $0xb8] sm:$0xff] %v269
        %295 = vst [vmem:[%s257 + $0xc0] sm:$0xff] %v269
        %296 = vst [vmem:[%s257 + $0xc8] sm:$0xff] %v269
        %297 = vst [vmem:[%s257 + $0xd0] sm:$0xff] %v269
        %298 = vst [vmem:[%s257 + $0xd8] sm:$0xff] %v269
        %299 = vst [vmem:[%s257 + $0xe0] sm:$0xff] %v269
        %300 = vst [vmem:[%s257 + $0xe8] sm:$0xff] %v269
        %301 = vst [vmem:[%s257 + $0xf0] sm:$0xff] %v269
        %302 = vst [vmem:[%s257 + $0xf8] sm:$0xff] %v269
      $region36: #{mlsp.43} parent=31 // pred_fallthru
        _
      %v303 = vld [vmem:[%s257] sm:$0xff]
      %v304 = vld [vmem:[%s257 + $0x8] sm:$0xff]
      %v305 = vld [vmem:[%s257 + $0x10] sm:$0xff]
      %v306 = vld [vmem:[%s257 + $0x18] sm:$0xff]
      %v307 = vld [vmem:[%s257 + $0x20] sm:$0xff]
      %v308 = vld [vmem:[%s257 + $0x28] sm:$0xff]
      %v309 = vld [vmem:[%s257 + $0x30] sm:$0xff]
      %v310 = vld [vmem:[%s257 + $0x38] sm:$0xff]
      %v311 = vld [vmem:[%s257 + $0x40] sm:$0xff]
      %v312 = vld [vmem:[%s257 + $0x48] sm:$0xff]
      %v313 = vld [vmem:[%s257 + $0x50] sm:$0xff]
      %v314 = vld [vmem:[%s257 + $0x58] sm:$0xff]
      %v315 = vld [vmem:[%s257 + $0x60] sm:$0xff]
      %v316 = vld [vmem:[%s257 + $0x68] sm:$0xff]
      %v317 = vld [vmem:[%s257 + $0x70] sm:$0xff]
      %v318 = vld [vmem:[%s257 + $0x78] sm:$0xff]
      %v319 = vld [vmem:[%s257 + $0x80] sm:$0xff]
      %v320 = vld [vmem:[%s257 + $0x88] sm:$0xff]
      %v321 = vld [vmem:[%s257 + $0x90] sm:$0xff]
      %v322 = vld [vmem:[%s257 + $0x98] sm:$0xff]
      %v323 = vld [vmem:[%s257 + $0xa0] sm:$0xff]
      %v324 = vld [vmem:[%s257 + $0xa8] sm:$0xff]
      %v325 = vld [vmem:[%s257 + $0xb0] sm:$0xff]
      %v326 = vld [vmem:[%s257 + $0xb8] sm:$0xff]
      %v327 = vld [vmem:[%s257 + $0xc0] sm:$0xff]
      %v328 = vld [vmem:[%s257 + $0xc8] sm:$0xff]
      %v329 = vld [vmem:[%s257 + $0xd0] sm:$0xff]
      %v330 = vld [vmem:[%s257 + $0xd8] sm:$0xff]
      %v331 = vld [vmem:[%s257 + $0xe0] sm:$0xff]
      %v332 = vld [vmem:[%s257 + $0xe8] sm:$0xff]
      %v333 = vld [vmem:[%s257 + $0xf0] sm:$0xff]
      %v334 = vld [vmem:[%s257 + $0xf8] sm:$0xff]
      %v335 = vld [vmem:[%s236] sm:$0xf]
      %v336 = vld [vmem:[%s236 + $0x4] sm:$0xf]
      %v337 = vld [vmem:[%s236 + $0x8] sm:$0xf]
      %v338 = vld [vmem:[%s236 + $0xc] sm:$0xf]
      %v339 = vld [vmem:[%s236 + $0x10] sm:$0xf]
      %v340 = vld [vmem:[%s236 + $0x14] sm:$0xf]
      %v341 = vld [vmem:[%s236 + $0x18] sm:$0xf]
      %v342 = vld [vmem:[%s236 + $0x1c] sm:$0xf]
      %v343 = vld [vmem:[%s236 + $0x20] sm:$0xf]
      %v344 = vld [vmem:[%s236 + $0x24] sm:$0xf]
      %v345 = vld [vmem:[%s236 + $0x28] sm:$0xf]
      %v346 = vld [vmem:[%s236 + $0x2c] sm:$0xf]
      %v347 = vld [vmem:[%s236 + $0x30] sm:$0xf]
      %v348 = vld [vmem:[%s236 + $0x34] sm:$0xf]
      %v349 = vld [vmem:[%s236 + $0x38] sm:$0xf]
      %v350 = vld [vmem:[%s236 + $0x3c] sm:$0xf]
      %v351 = vld [vmem:[%s236 + $0x40] sm:$0xf]
      %v352 = vld [vmem:[%s236 + $0x44] sm:$0xf]
      %v353 = vld [vmem:[%s236 + $0x48] sm:$0xf]
      %v354 = vld [vmem:[%s236 + $0x4c] sm:$0xf]
      %v355 = vld [vmem:[%s236 + $0x50] sm:$0xf]
      %v356 = vld [vmem:[%s236 + $0x54] sm:$0xf]
      %v357 = vld [vmem:[%s236 + $0x58] sm:$0xf]
      %v358 = vld [vmem:[%s236 + $0x5c] sm:$0xf]
      %v359 = vld [vmem:[%s236 + $0x60] sm:$0xf]
      %v360 = vld [vmem:[%s236 + $0x64] sm:$0xf]
      %v361 = vld [vmem:[%s236 + $0x68] sm:$0xf]
      %v362 = vld [vmem:[%s236 + $0x6c] sm:$0xf]
      %v363 = vld [vmem:[%s236 + $0x70] sm:$0xf]
      %v364 = vld [vmem:[%s236 + $0x74] sm:$0xf]
      %v365 = vld [vmem:[%s236 + $0x78] sm:$0xf]
      %v366 = vld [vmem:[%s236 + $0x7c] sm:$0xf]
      %v367 = vld [vmem:[%s245] sm:$0xf]
      %v368 = vld [vmem:[%s245 + $0x4] sm:$0xf]
      %v369 = vld [vmem:[%s245 + $0x8] sm:$0xf]
      %v370 = vld [vmem:[%s245 + $0xc] sm:$0xf]
      %v371 = vld [vmem:[%s245 + $0x10] sm:$0xf]
      %v372 = vld [vmem:[%s245 + $0x14] sm:$0xf]
      %v373 = vld [vmem:[%s245 + $0x18] sm:$0xf]
      %v374 = vld [vmem:[%s245 + $0x1c] sm:$0xf]
      %v375 = vld [vmem:[%s245 + $0x20] sm:$0xf]
      %v376 = vld [vmem:[%s245 + $0x24] sm:$0xf]
      %v377 = vld [vmem:[%s245 + $0x28] sm:$0xf]
      %v378 = vld [vmem:[%s245 + $0x2c] sm:$0xf]
      %v379 = vld [vmem:[%s245 + $0x30] sm:$0xf]
      %v380 = vld [vmem:[%s245 + $0x34] sm:$0xf]
      %v381 = vld [vmem:[%s245 + $0x38] sm:$0xf]
      %v382 = vld [vmem:[%s245 + $0x3c] sm:$0xf]
      %v415 = vunpack.c.l.b16 %v335
      %v416 = vunpack.c.l.b16 %v336
      %v417 = vunpack.c.l.b16 %v337
      %v418 = vunpack.c.l.b16 %v338
      %v419 = vunpack.c.l.b16 %v339
      %v420 = vunpack.c.l.b16 %v340
      %v421 = vunpack.c.l.b16 %v341
      %v422 = vunpack.c.l.b16 %v342
      %v423 = vunpack.c.l.b16 %v343
      %v424 = vunpack.c.l.b16 %v344
      %v425 = vunpack.c.l.b16 %v345
      %v426 = vunpack.c.l.b16 %v346
      %v427 = vunpack.c.l.b16 %v347
      %v428 = vunpack.c.l.b16 %v348
      %v429 = vunpack.c.l.b16 %v349
      %v430 = vunpack.c.l.b16 %v350
      %v431 = vunpack.c.l.b16 %v351
      %v432 = vunpack.c.l.b16 %v352
      %v433 = vunpack.c.l.b16 %v353
      %v434 = vunpack.c.l.b16 %v354
      %v435 = vunpack.c.l.b16 %v355
      %v436 = vunpack.c.l.b16 %v356
      %v437 = vunpack.c.l.b16 %v357
      %v438 = vunpack.c.l.b16 %v358
      %v439 = vunpack.c.l.b16 %v359
      %v440 = vunpack.c.l.b16 %v360
      %v441 = vunpack.c.l.b16 %v361
      %v442 = vunpack.c.l.b16 %v362
      %v443 = vunpack.c.l.b16 %v363
      %v444 = vunpack.c.l.b16 %v364
      %v445 = vunpack.c.l.b16 %v365
      %v446 = vunpack.c.l.b16 %v366
      %v447 = vpack.c.b16 %v416, %v415
      %v448 = vpack.c.b16 %v418, %v417
      %v449 = vpack.c.b16 %v420, %v419
      %v450 = vpack.c.b16 %v422, %v421
      %v451 = vpack.c.b16 %v424, %v423
      %v452 = vpack.c.b16 %v426, %v425
      %v453 = vpack.c.b16 %v428, %v427
      %v454 = vpack.c.b16 %v430, %v429
      %v455 = vpack.c.b16 %v432, %v431
      %v456 = vpack.c.b16 %v434, %v433
      %v457 = vpack.c.b16 %v436, %v435
      %v458 = vpack.c.b16 %v438, %v437
      %v459 = vpack.c.b16 %v440, %v439
      %v460 = vpack.c.b16 %v442, %v441
      %v461 = vpack.c.b16 %v444, %v443
      %v462 = vpack.c.b16 %v446, %v445
      %v495 = vunpack.c.l.b16 %v367
      %v496 = vunpack.c.l.b16 %v368
      %v497 = vunpack.c.l.b16 %v369
      %v498 = vunpack.c.l.b16 %v370
      %v499 = vunpack.c.l.b16 %v371
      %v500 = vunpack.c.l.b16 %v372
      %v501 = vunpack.c.l.b16 %v373
      %v502 = vunpack.c.l.b16 %v374
      %v503 = vunpack.c.l.b16 %v375
      %v504 = vunpack.c.l.b16 %v376
      %v505 = vunpack.c.l.b16 %v377
      %v506 = vunpack.c.l.b16 %v378
      %v507 = vunpack.c.l.b16 %v379
      %v508 = vunpack.c.l.b16 %v380
      %v509 = vunpack.c.l.b16 %v381
      %v510 = vunpack.c.l.b16 %v382
      %v511 = vpack.c.b16 %v496, %v495
      %v512 = vpack.c.b16 %v498, %v497
      %v513 = vpack.c.b16 %v500, %v499
      %v514 = vpack.c.b16 %v502, %v501
      %v515 = vpack.c.b16 %v504, %v503
      %v516 = vpack.c.b16 %v506, %v505
      %v517 = vpack.c.b16 %v508, %v507
      %v518 = vpack.c.b16 %v510, %v509
      %527 = vmatprep.subr.bf16.mxu0 0
      %528 = vmatpush1.bf16.msra.mxu0 %v518
      %529 = vmatprep.subr.bf16.mxu0 0
      %530 = vmatpush1.bf16.msra.mxu0 %v517
      %531 = vmatprep.subr.bf16.mxu0 0
      %532 = vmatpush1.bf16.msra.mxu0 %v516
      %533 = vmatprep.subr.bf16.mxu0 0
      %534 = vmatpush1.bf16.msra.mxu0 %v515
      %535 = vmatprep.subr.bf16.mxu0 0
      %536 = vmatpush1.bf16.msra.mxu0 %v514
      %537 = vmatprep.subr.bf16.mxu0 0
      %538 = vmatpush1.bf16.msra.mxu0 %v513
      %539 = vmatprep.subr.bf16.mxu0 0
      %540 = vmatpush1.bf16.msra.mxu0 %v512
      %541 = vmatprep.subr.bf16.mxu0 0
      %542 = vmatpush1.bf16.msra.mxu0 %v511
      %543 = vmatprep.subr.bf16.mxu0 0
      %544 = vmatpush2.bf16.msra.mxu0 0
      %545 = vmatprep.subr.bf16.mxu0 0
      %546 = vmatpush2.bf16.msra.mxu0 0
      %547 = vmatprep.subr.bf16.mxu0 0
      %548 = vmatpush2.bf16.msra.mxu0 0
      %549 = vmatprep.subr.bf16.mxu0 0
      %550 = vmatpush2.bf16.msra.mxu0 0
      %551 = vmatprep.subr.bf16.mxu0 0
      %552 = vmatpush2.bf16.msra.mxu0 0
      %553 = vmatprep.subr.bf16.mxu0 0
      %554 = vmatpush2.bf16.msra.mxu0 0
      %555 = vmatprep.subr.bf16.mxu0 0
      %556 = vmatpush2.bf16.msra.mxu0 0
      %557 = vmatprep.subr.bf16.mxu0 0
      %558 = vmatpush2.bf16.msra.mxu0 0
      %559 = vmatprep.mubr.bf16.mxu0 0
      %560 = vmatmul.mubr.bf16.gmra.mxu0 %v447
      %v561 = vpop.f32.mrf.mxu0
      %v562 = vadd.f32 0.0, %v561
      %v563 = vpop.f32.mrf.mxu0
      %v564 = vpop.f32.mrf.mxu0
      %v565 = vadd.f32 0.0, %v564
      %v566 = vpop.f32.mrf.mxu0
      %567 = vmatprep.mubr.bf16.mxu0 0
      %568 = vmatmul.mubr.bf16.gmra.mxu0 %v448
      %v569 = vpop.f32.mrf.mxu0
      %v570 = vadd.f32 0.0, %v569
      %v571 = vpop.f32.mrf.mxu0
      %v572 = vpop.f32.mrf.mxu0
      %v573 = vadd.f32 0.0, %v572
      %v574 = vpop.f32.mrf.mxu0
      %575 = vmatprep.mubr.bf16.mxu0 0
      %576 = vmatmul.mubr.bf16.gmra.mxu0 %v449
      %v577 = vpop.f32.mrf.mxu0
      %v578 = vadd.f32 0.0, %v577
      %v579 = vpop.f32.mrf.mxu0
      %v580 = vpop.f32.mrf.mxu0
      %v581 = vadd.f32 0.0, %v580
      %v582 = vpop.f32.mrf.mxu0
      %583 = vmatprep.mubr.bf16.mxu0 0
      %584 = vmatmul.mubr.bf16.gmra.mxu0 %v450
      %v585 = vpop.f32.mrf.mxu0
      %v586 = vadd.f32 0.0, %v585
      %v587 = vpop.f32.mrf.mxu0
      %v588 = vpop.f32.mrf.mxu0
      %v589 = vadd.f32 0.0, %v588
      %v590 = vpop.f32.mrf.mxu0
      %591 = vmatprep.mubr.bf16.mxu0 0
      %592 = vmatmul.mubr.bf16.gmra.mxu0 %v451
      %v593 = vpop.f32.mrf.mxu0
      %v594 = vadd.f32 0.0, %v593
      %v595 = vpop.f32.mrf.mxu0
      %v596 = vpop.f32.mrf.mxu0
      %v597 = vadd.f32 0.0, %v596
      %v598 = vpop.f32.mrf.mxu0
      %599 = vmatprep.mubr.bf16.mxu0 0
      %600 = vmatmul.mubr.bf16.gmra.mxu0 %v452
      %v601 = vpop.f32.mrf.mxu0
      %v602 = vadd.f32 0.0, %v601
      %v603 = vpop.f32.mrf.mxu0
      %v604 = vpop.f32.mrf.mxu0
      %v605 = vadd.f32 0.0, %v604
      %v606 = vpop.f32.mrf.mxu0
      %607 = vmatprep.mubr.bf16.mxu0 0
      %608 = vmatmul.mubr.bf16.gmra.mxu0 %v453
      %v609 = vpop.f32.mrf.mxu0
      %v610 = vadd.f32 0.0, %v609
      %v611 = vpop.f32.mrf.mxu0
      %v612 = vpop.f32.mrf.mxu0
      %v613 = vadd.f32 0.0, %v612
      %v614 = vpop.f32.mrf.mxu0
      %615 = vmatprep.mubr.bf16.mxu0 0
      %616 = vmatmul.mubr.bf16.gmra.mxu0 %v454
      %v617 = vpop.f32.mrf.mxu0
      %v618 = vadd.f32 0.0, %v617
      %v619 = vpop.f32.mrf.mxu0
      %v620 = vpop.f32.mrf.mxu0
      %v621 = vadd.f32 0.0, %v620
      %v622 = vpop.f32.mrf.mxu0
      %623 = vmatprep.mubr.bf16.mxu0 0
      %624 = vmatmul.mubr.bf16.gmra.mxu0 %v455
      %v625 = vpop.f32.mrf.mxu0
      %v626 = vadd.f32 0.0, %v625
      %v627 = vpop.f32.mrf.mxu0
      %v628 = vpop.f32.mrf.mxu0
      %v629 = vadd.f32 0.0, %v628
      %v630 = vpop.f32.mrf.mxu0
      %631 = vmatprep.mubr.bf16.mxu0 0
      %632 = vmatmul.mubr.bf16.gmra.mxu0 %v456
      %v633 = vpop.f32.mrf.mxu0
      %v634 = vadd.f32 0.0, %v633
      %v635 = vpop.f32.mrf.mxu0
      %v636 = vpop.f32.mrf.mxu0
      %v637 = vadd.f32 0.0, %v636
      %v638 = vpop.f32.mrf.mxu0
      %639 = vmatprep.mubr.bf16.mxu0 0
      %640 = vmatmul.mubr.bf16.gmra.mxu0 %v457
      %v641 = vpop.f32.mrf.mxu0
      %v642 = vadd.f32 0.0, %v641
      %v643 = vpop.f32.mrf.mxu0
      %v644 = vpop.f32.mrf.mxu0
      %v645 = vadd.f32 0.0, %v644
      %v646 = vpop.f32.mrf.mxu0
      %647 = vmatprep.mubr.bf16.mxu0 0
      %648 = vmatmul.mubr.bf16.gmra.mxu0 %v458
      %v649 = vpop.f32.mrf.mxu0
      %v650 = vadd.f32 0.0, %v649
      %v651 = vpop.f32.mrf.mxu0
      %v652 = vpop.f32.mrf.mxu0
      %v653 = vadd.f32 0.0, %v652
      %v654 = vpop.f32.mrf.mxu0
      %655 = vmatprep.mubr.bf16.mxu0 0
      %656 = vmatmul.mubr.bf16.gmra.mxu0 %v459
      %v657 = vpop.f32.mrf.mxu0
      %v658 = vadd.f32 0.0, %v657
      %v659 = vpop.f32.mrf.mxu0
      %v660 = vpop.f32.mrf.mxu0
      %v661 = vadd.f32 0.0, %v660
      %v662 = vpop.f32.mrf.mxu0
      %663 = vmatprep.mubr.bf16.mxu0 0
      %664 = vmatmul.mubr.bf16.gmra.mxu0 %v460
      %v665 = vpop.f32.mrf.mxu0
      %v666 = vadd.f32 0.0, %v665
      %v667 = vpop.f32.mrf.mxu0
      %v668 = vpop.f32.mrf.mxu0
      %v669 = vadd.f32 0.0, %v668
      %v670 = vpop.f32.mrf.mxu0
      %671 = vmatprep.mubr.bf16.mxu0 0
      %672 = vmatmul.mubr.bf16.gmra.mxu0 %v461
      %v673 = vpop.f32.mrf.mxu0
      %v674 = vadd.f32 0.0, %v673
      %v675 = vpop.f32.mrf.mxu0
      %v676 = vpop.f32.mrf.mxu0
      %v677 = vadd.f32 0.0, %v676
      %v678 = vpop.f32.mrf.mxu0
      %679 = vmatprep.mubr.bf16.mxu0 0
      %680 = vmatmul.mubr.bf16.gmra.mxu0 %v462
      %v681 = vpop.f32.mrf.mxu0
      %v682 = vadd.f32 0.0, %v681
      %v683 = vpop.f32.mrf.mxu0
      %v684 = vpop.f32.mrf.mxu0
      %v685 = vadd.f32 0.0, %v684
      %v686 = vpop.f32.mrf.mxu0
      %687 = vdwg.mxu0
      %v688 = vadd.f32 %v303, %v562
      %v689 = vadd.f32 %v304, %v565
      %v690 = vadd.f32 %v305, %v570
      %v691 = vadd.f32 %v306, %v573
      %v692 = vadd.f32 %v307, %v578
      %v693 = vadd.f32 %v308, %v581
      %v694 = vadd.f32 %v309, %v586
      %v695 = vadd.f32 %v310, %v589
      %v696 = vadd.f32 %v311, %v594
      %v697 = vadd.f32 %v312, %v597
      %v698 = vadd.f32 %v313, %v602
      %v699 = vadd.f32 %v314, %v605
      %v700 = vadd.f32 %v315, %v610
      %v701 = vadd.f32 %v316, %v613
      %v702 = vadd.f32 %v317, %v618
      %v703 = vadd.f32 %v318, %v621
      %v704 = vadd.f32 %v319, %v626
      %v705 = vadd.f32 %v320, %v629
      %v706 = vadd.f32 %v321, %v634
      %v707 = vadd.f32 %v322, %v637
      %v708 = vadd.f32 %v323, %v642
      %v709 = vadd.f32 %v324, %v645
      %v710 = vadd.f32 %v325, %v650
      %v711 = vadd.f32 %v326, %v653
      %v712 = vadd.f32 %v327, %v658
      %v713 = vadd.f32 %v328, %v661
      %v714 = vadd.f32 %v329, %v666
      %v715 = vadd.f32 %v330, %v669
      %v716 = vadd.f32 %v331, %v674
      %v717 = vadd.f32 %v332, %v677
      %v718 = vadd.f32 %v333, %v682
      %v719 = vadd.f32 %v334, %v685
      %720 = vst [vmem:[%s257] sm:$0xff] %v688
      %721 = vst [vmem:[%s257 + $0x8] sm:$0xff] %v689
      %722 = vst [vmem:[%s257 + $0x10] sm:$0xff] %v690
      %723 = vst [vmem:[%s257 + $0x18] sm:$0xff] %v691
      %724 = vst [vmem:[%s257 + $0x20] sm:$0xff] %v692
      %725 = vst [vmem:[%s257 + $0x28] sm:$0xff] %v693
      %726 = vst [vmem:[%s257 + $0x30] sm:$0xff] %v694
      %727 = vst [vmem:[%s257 + $0x38] sm:$0xff] %v695
      %728 = vst [vmem:[%s257 + $0x40] sm:$0xff] %v696
      %729 = vst [vmem:[%s257 + $0x48] sm:$0xff] %v697
      %730 = vst [vmem:[%s257 + $0x50] sm:$0xff] %v698
      %731 = vst [vmem:[%s257 + $0x58] sm:$0xff] %v699
      %732 = vst [vmem:[%s257 + $0x60] sm:$0xff] %v700
      %733 = vst [vmem:[%s257 + $0x68] sm:$0xff] %v701
      %734 = vst [vmem:[%s257 + $0x70] sm:$0xff] %v702
      %735 = vst [vmem:[%s257 + $0x78] sm:$0xff] %v703
      %736 = vst [vmem:[%s257 + $0x80] sm:$0xff] %v704
      %737 = vst [vmem:[%s257 + $0x88] sm:$0xff] %v705
      %738 = vst [vmem:[%s257 + $0x90] sm:$0xff] %v706
      %739 = vst [vmem:[%s257 + $0x98] sm:$0xff] %v707
      %740 = vst [vmem:[%s257 + $0xa0] sm:$0xff] %v708
      %741 = vst [vmem:[%s257 + $0xa8] sm:$0xff] %v709
      %742 = vst [vmem:[%s257 + $0xb0] sm:$0xff] %v710
      %743 = vst [vmem:[%s257 + $0xb8] sm:$0xff] %v711
      %744 = vst [vmem:[%s257 + $0xc0] sm:$0xff] %v712
      %745 = vst [vmem:[%s257 + $0xc8] sm:$0xff] %v713
      %746 = vst [vmem:[%s257 + $0xd0] sm:$0xff] %v714
      %747 = vst [vmem:[%s257 + $0xd8] sm:$0xff] %v715
      %748 = vst [vmem:[%s257 + $0xe0] sm:$0xff] %v716
      %749 = vst [vmem:[%s257 + $0xe8] sm:$0xff] %v717
      %750 = vst [vmem:[%s257 + $0xf0] sm:$0xff] %v718
      %751 = vst [vmem:[%s257 + $0xf8] sm:$0xff] %v719
      %s752 = smul.u32 32, %s19
      %p753 = scmp.lt.s32.totalorder %s752, 255
      %s754 = scalar_select %p753, %s752, 255
      %p755 = scmp.lt.s32.totalorder %s20, 0
      %s756 = scalar_select %p755, %s20, 0
      %s757 = sadd.s32 %s756, %s754
      %s758 = smul.addr %s757, 8
      %s759 = scalar_lea.vmem %s3, %s758
      // Predicated region
      $region37: #{mlsp.43} parent=31 // pred_check
        %p760 = pneg %p135
      $region38: #{mlsp.43} parent=31 // pred_check_branch
        %762 = sbr.rel (%p760) target = $region40
      $region39: #{mlsp.43} parent=31 // pred_region
        %s763 = smul.u32 32, %s19
      $region40: #{mlsp.43} parent=31 // pred_fallthru
        _
    $region32: #{mlsp.43} parent=5 // pred_fallthru
      _
    %p764 = scmp.le.s32.totalorder 2, %s9
    // Predicated region
    $region41: #{mlsp.43} parent=5 // pred_check
      %p765 = pneg %p764
    $region42: #{mlsp.43} parent=5 // pred_check_branch
      %767 = sbr.rel (%p765) target = $region44
    $region43: #{mlsp.43} parent=5 // pred_region
      %s768 = ssub.s32 %s9, 2
      // Predicated region
      $region45: #{mlsp.43} parent=43 // pred_check
        %p769 = pneg %p141
      $region46: #{mlsp.43} parent=43 // pred_check_branch
        %771 = sbr.rel (%p769) target = $region48
      $region47: #{mlsp.43} parent=43 // pred_region
        %s772 = smul.u32 32, %s22
        %p773 = scmp.lt.s32.totalorder %s772, 255
        %s774 = scalar_select %p773, %s772, 255
        %p775 = scmp.lt.s32.totalorder %s23, 0
        %s776 = scalar_select %p775, %s23, 0
        %s777 = sadd.s32 %s776, %s774
        %s778 = smul.addr %s777, 8
        %s779 = scalar_lea.vmem %s3, %s778
      $region48: #{mlsp.43} parent=43 // pred_fallthru
        _
    $region44: #{mlsp.43} parent=5 // pred_fallthru
      _
  $region6: #{mlsp.43} parent=0 // loop_footer
    %s13 = sadd.s32 1, %s9
  $region7: #{mlsp.43} parent=0 // loop_footer_branch
    %8 = sbr.rel target = $region3
  $region8: #{mlsp.43} parent=0 // loop_exit
    _

// kernel: mlsp.47
$region0: #{mlsp.47}
  #allocation0 [shape = 'u32[]', space=smem, size = 0x4, offset = 0x4, fixed_abs, tag = 'smem constant byte address 0x4 - core index']
  #allocation1 [shape = 'u32[144,128]{1,0:T(1,128)}', space=vmem, size = 0x12000, scoped, tag = 'internal scratch']
  %s0 = inlined_call_operand.vmem [shape: bf16[8192,256], index: 0, kind: input, shape index: {}]
  %s1 = inlined_call_operand.vmem [shape: bf16[256,128], index: 1, kind: input, shape index: {}]
  %s2 = inlined_call_operand.vmem [shape: f32[1,128], index: 2, kind: input, shape index: {}]
  %s3 = inlined_call_operand.vmem [shape: f32[8192,128], index: 3, kind: output, shape index: {}]
  %s4 = sld [smem:[#allocation0]]
  $region49: #{mlsp.47} parent=0
    _
  %s6 = ssub.s32 1, %s4
  %s7 = scalar_select 0, %s6, %s4
  loop: start=0, step=1, limit=34
  $region2: #{mlsp.47} parent=0 // loop_pre_header
    _
  $region3: #{mlsp.47} parent=0 // loop_header
    %s9 = sphi 0, %s13
    %p10 = scmp.ge.s32.totalorder %s9, 34
    %s16 = sphi 0, %s35
    %s17 = sphi 0, %s31
    %s18 = sphi 0, %s27
    %s19 = sphi 0, %s16
    %s20 = sphi 0, %s17
    %s21 = sphi 0, %s18
    %s22 = sphi 0, %s19
    %s23 = sphi 0, %s20
    %s24 = sphi 0, %s21
    %s40 = sphi 0, %s42
    %s43 = sphi 0, %s40
    %s44 = sphi 0, %s43
    %s60 = sphi 0, %s44
    %s68 = sphi 0, %s70
    %s71 = sphi 0, %s68
    %s72 = sphi 0, %s71
    %s88 = sphi 0, %s72
    %s94 = sphi 0, %s96
    %s97 = sphi 0, %s94
    %s98 = sphi 0, %s97
    %s114 = sphi 0, %s98
    %s122 = sphi 0, %s124
    %s125 = sphi 0, %s122
    %s126 = sphi 0, %s125
    %s142 = sphi 0, %s126
  $region4: #{mlsp.47} parent=0 // loop_header_branch
    %12 = sbr.rel (%p10) target = $region8
  $region5: #{mlsp.47} parent=0 // loop_body
    %s14 = ssub.s32 %s9, 1
    %s15 = ssub.s32 %s9, 2
    %s25 = sadd.s32 1, %s18
    %p26 = scmp.ge.s32.totalorder %s25, 1
    %s27 = scalar_select %p26, 0, %s25
    %s28 = sadd.s32 1, %s17
    %s29 = scalar_select %p26, %s28, %s17
    %p30 = scmp.ge.s32.totalorder %s29, 1
    %s31 = scalar_select %p30, 0, %s29
    %s32 = sadd.s32 1, %s16
    %s33 = scalar_select %p30, %s32, %s16
    %p34 = scmp.ge.s32.totalorder %s33, 32
    %s35 = scalar_select %p34, 0, %s33
    %s36 = ssub.s32 %s16, %s35
    %s37 = ssub.s32 %s18, %s27
    %s38 = sor.u32 %s36, %s37
    %p39 = scmp.eq.s32.totalorder %s38, 0
    %s41 = sadd.s32 %s40, 1
    %s42 = scalar_select %p39, %s40, %s41
    %p45 = pneg %p39
    %p46 = scmp.eq.s32.totalorder %s9, 31
    %p47 = por %p45, %p46
    %p48 = scmp.ne.s32.totalorder %s40, %s43
    %p49 = scmp.eq.s32.totalorder %s9, 0
    %p50 = por %p48, %p49
    %p51 = scmp.ne.s32.totalorder %s40, %s43
    %p52 = scmp.eq.s32.totalorder %s14, 31
    %p53 = por %p51, %p52
    %p54 = scmp.ne.s32.totalorder %s43, %s44
    %p55 = scmp.eq.s32.totalorder %s14, 0
    %p56 = por %p54, %p55
    %p57 = scmp.ne.s32.totalorder %s43, %s44
    %p58 = scmp.eq.s32.totalorder %s15, 31
    %p59 = por %p57, %p58
    %p61 = scmp.ne.s32.totalorder %s44, %s60
    %p62 = scmp.eq.s32.totalorder %s15, 0
    %p63 = por %p61, %p62
    %s64 = ssub.s32 %s18, %s27
    %s65 = ssub.s32 %s17, %s31
    %s66 = sor.u32 %s64, %s65
    %p67 = scmp.eq.s32.totalorder %s66, 0
    %s69 = sadd.s32 %s68, 1
    %s70 = scalar_select %p67, %s68, %s69
    %p73 = pneg %p67
    %p74 = scmp.eq.s32.totalorder %s9, 31
    %p75 = por %p73, %p74
    %p76 = scmp.ne.s32.totalorder %s68, %s71
    %p77 = scmp.eq.s32.totalorder %s9, 0
    %p78 = por %p76, %p77
    %p79 = scmp.ne.s32.totalorder %s68, %s71
    %p80 = scmp.eq.s32.totalorder %s14, 31
    %p81 = por %p79, %p80
    %p82 = scmp.ne.s32.totalorder %s71, %s72
    %p83 = scmp.eq.s32.totalorder %s14, 0
    %p84 = por %p82, %p83
    %p85 = scmp.ne.s32.totalorder %s71, %s72
    %p86 = scmp.eq.s32.totalorder %s15, 31
    %p87 = por %p85, %p86
    %p89 = scmp.ne.s32.totalorder %s72, %s88
    %p90 = scmp.eq.s32.totalorder %s15, 0
    %p91 = por %p89, %p90
    %s92 = ssub.s32 %s17, %s31
    %p93 = scmp.eq.s32.totalorder %s92, 0
    %s95 = sadd.s32 %s94, 1
    %s96 = scalar_select %p93, %s94, %s95
    %p99 = pneg %p93
    %p100 = scmp.eq.s32.totalorder %s9, 31
    %p101 = por %p99, %p100
    %p102 = scmp.ne.s32.totalorder %s94, %s97
    %p103 = scmp.eq.s32.totalorder %s9, 0
    %p104 = por %p102, %p103
    %p105 = scmp.ne.s32.totalorder %s94, %s97
    %p106 = scmp.eq.s32.totalorder %s14, 31
    %p107 = por %p105, %p106
    %p108 = scmp.ne.s32.totalorder %s97, %s98
    %p109 = scmp.eq.s32.totalorder %s14, 0
    %p110 = por %p108, %p109
    %p111 = scmp.ne.s32.totalorder %s97, %s98
    %p112 = scmp.eq.s32.totalorder %s15, 31
    %p113 = por %p111, %p112
    %p115 = scmp.ne.s32.totalorder %s98, %s114
    %p116 = scmp.eq.s32.totalorder %s15, 0
    %p117 = por %p115, %p116
    %s118 = ssub.s32 %s16, %s35
    %s119 = ssub.s32 %s17, %s31
    %s120 = sor.u32 %s118, %s119
    %p121 = scmp.eq.s32.totalorder %s120, 0
    %s123 = sadd.s32 %s122, 1
    %s124 = scalar_select %p121, %s122, %s123
    %p127 = pneg %p121
    %p128 = scmp.eq.s32.totalorder %s9, 31
    %p129 = por %p127, %p128
    %p130 = scmp.ne.s32.totalorder %s122, %s125
    %p131 = scmp.eq.s32.totalorder %s9, 0
    %p132 = por %p130, %p131
    %p133 = scmp.ne.s32.totalorder %s122, %s125
    %p134 = scmp.eq.s32.totalorder %s14, 31
    %p135 = por %p133, %p134
    %p136 = scmp.ne.s32.totalorder %s125, %s126
    %p137 = scmp.eq.s32.totalorder %s14, 0
    %p138 = por %p136, %p137
    %p139 = scmp.ne.s32.totalorder %s125, %s126
    %p140 = scmp.eq.s32.totalorder %s15, 31
    %p141 = por %p139, %p140
    %p143 = scmp.ne.s32.totalorder %s126, %s142
    %p144 = scmp.eq.s32.totalorder %s15, 0
    %p145 = por %p143, %p144
    %p146 = scmp.le.s32.totalorder 1, %s9
    %p147 = scmp.lt.s32.totalorder %s9, 33
    %p148 = pnand %p146, %p147
    %p149 = pneg %p148
    // Predicated region
    $region9: #{mlsp.47} parent=5 // pred_check
      _
    $region10: #{mlsp.47} parent=5 // pred_check_branch
      %151 = sbr.rel (%p148) target = $region12
    $region11: #{mlsp.47} parent=5 // pred_region
      %s152 = ssub.s32 %s9, 1
      // Predicated region
      $region13: #{mlsp.47} parent=11 // pred_check
        %p153 = pneg %p84
      $region14: #{mlsp.47} parent=11 // pred_check_branch
        %155 = sbr.rel (%p153) target = $region16
      $region15: #{mlsp.47} parent=11 // pred_region
        %s156 = smul.u32 32, %s21
        %p157 = scmp.lt.s32.totalorder %s156, 31
        %s158 = scalar_select %p157, %s156, 31
        %p159 = scmp.lt.s32.totalorder %s20, 0
        %s160 = scalar_select %p159, %s20, 0
        %s161 = sadd.s32 %s160, %s158
        %s162 = smul.addr %s161, 4
        %s163 = scalar_lea.vmem %s1, %s162
        %s164 = smul.u32 32, %s21
      $region16: #{mlsp.47} parent=11 // pred_fallthru
        _
      // Predicated region
      $region17: #{mlsp.47} parent=11 // pred_check
        %p165 = pneg %p110
      $region18: #{mlsp.47} parent=11 // pred_check_branch
        %167 = sbr.rel (%p165) target = $region20
      $region19: #{mlsp.47} parent=11 // pred_region
        %p168 = scmp.lt.s32.totalorder %s20, 0
        %s169 = scalar_select %p168, %s20, 0
        %s170 = scalar_lea.vmem %s2, %s169
      $region20: #{mlsp.47} parent=11 // pred_fallthru
        _
    $region12: #{mlsp.47} parent=5 // pred_fallthru
      _
    %p171 = scmp.lt.s32.totalorder %s9, 32
    // Predicated region
    $region21: #{mlsp.47} parent=5 // pred_check
      %p172 = pneg %p171
    $region22: #{mlsp.47} parent=5 // pred_check_branch
      %174 = sbr.rel (%p172) target = $region24
    $region23: #{mlsp.47} parent=5 // pred_region
      // Predicated region
      $region25: #{mlsp.47} parent=23 // pred_check
        %p175 = pneg %p50
      $region26: #{mlsp.47} parent=23 // pred_check_branch
        %177 = sbr.rel (%p175) target = $region28
      $region27: #{mlsp.47} parent=23 // pred_region
        %s178 = smul.u32 32, %s16
        %s179 = smul.u32 2, %s18
        %p180 = scmp.lt.s32.totalorder %s178, 1023
        %s181 = scalar_select %p180, %s178, 1023
        %p182 = scmp.lt.s32.totalorder %s179, 1
        %s183 = scalar_select %p182, %s179, 1
        %s184 = smul.addr %s181, 2
        %s185 = sadd.s32 %s183, %s184
        %s186 = smul.addr %s185, 4
        %s187 = scalar_lea.vmem %s0, %s186
        %s188 = smul.u32 32, %s16
        %s189 = smul.u32 2, %s18
      $region28: #{mlsp.47} parent=23 // pred_fallthru
        _
    $region24: #{mlsp.47} parent=5 // pred_fallthru
      _
    %p190 = scmp.le.s32.totalorder 1, %s9
    %p191 = scmp.lt.s32.totalorder %s9, 33
    %p192 = pnand %p190, %p191
    %p193 = pneg %p192
    // Predicated region
    $region29: #{mlsp.47} parent=5 // pred_check
      _
    $region30: #{mlsp.47} parent=5 // pred_check_branch
      %195 = sbr.rel (%p192) target = $region32
    $region31: #{mlsp.47} parent=5 // pred_region
      %s196 = ssub.s32 %s9, 1
      %s197 = smul.u32 32, %s19
      %s198 = smul.u32 2, %s21
      %p199 = scmp.lt.s32.totalorder %s197, 1023
      %s200 = scalar_select %p199, %s197, 1023
      %p201 = scmp.lt.s32.totalorder %s198, 1
      %s202 = scalar_select %p201, %s198, 1
      %s203 = smul.addr %s200, 2
      %s204 = sadd.s32 %s202, %s203
      %s205 = smul.addr %s204, 4
      %s206 = scalar_lea.vmem %s0, %s205
      %p207 = pneg %p56
      %p208 = pneg %p53
      %s209 = smul.u32 32, %s21
      %p210 = scmp.lt.s32.totalorder %s209, 31
      %s211 = scalar_select %p210, %s209, 31
      %p212 = scmp.lt.s32.totalorder %s20, 0
      %s213 = scalar_select %p212, %s20, 0
      %s214 = sadd.s32 %s213, %s211
      %s215 = smul.addr %s214, 4
      %s216 = scalar_lea.vmem %s1, %s215
      %p217 = pneg %p84
      %p218 = pneg %p81
      %p219 = scmp.lt.s32.totalorder %s20, 0
      %s220 = scalar_select %p219, %s20, 0
      %s221 = scalar_lea.vmem %s2, %s220
      %p222 = pneg %p110
      %p223 = pneg %p107
      %p224 = pneg %p138
      %p225 = pneg %p135
      %s226 = smul.u32 32, %s19
      %p227 = scmp.lt.s32.totalorder %s226, 1023
      %s228 = scalar_select %p227, %s226, 1023
      %p229 = scmp.lt.s32.totalorder %s20, 0
      %s230 = scalar_select %p229, %s20, 0
      %s231 = sadd.s32 %s230, %s228
      %s232 = smul.addr %s231, 8
      %s233 = scalar_lea.vmem %s3, %s232
      %s234 = smul.u32 32, %s19
      %s235 = smul.u32 2, %s21
      %p236 = scmp.lt.s32.totalorder %s234, 1023
      %s237 = scalar_select %p236, %s234, 1023
      %p238 = scmp.lt.s32.totalorder %s235, 1
      %s239 = scalar_select %p238, %s235, 1
      %s240 = smul.addr %s237, 2
      %s241 = sadd.s32 %s239, %s240
      %s242 = smul.addr %s241, 4
      %s243 = scalar_lea.vmem %s0, %s242
      %s244 = smul.u32 32, %s19
      %s245 = smul.u32 2, %s21
      %s246 = smul.u32 32, %s21
      %p247 = scmp.lt.s32.totalorder %s246, 31
      %s248 = scalar_select %p247, %s246, 31
      %p249 = scmp.lt.s32.totalorder %s20, 0
      %s250 = scalar_select %p249, %s20, 0
      %s251 = sadd.s32 %s250, %s248
      %s252 = smul.addr %s251, 4
      %s253 = scalar_lea.vmem %s1, %s252
      %s254 = smul.u32 32, %s21
      %p255 = scmp.lt.s32.totalorder %s20, 0
      %s256 = scalar_select %p255, %s20, 0
      %s257 = scalar_lea.vmem %s2, %s256
      %s258 = smul.u32 32, %s19
      %p259 = scmp.lt.s32.totalorder %s258, 1023
      %s260 = scalar_select %p259, %s258, 1023
      %p261 = scmp.lt.s32.totalorder %s20, 0
      %s262 = scalar_select %p261, %s20, 0
      %s263 = sadd.s32 %s262, %s260
      %s264 = smul.addr %s263, 8
      %s265 = scalar_lea.vmem %s3, %s264
      %s266 = smul.u32 32, %s19
      %p268 = scmp.eq.s32.totalorder %s21, 0
      // Predicated region
      $region33: #{mlsp.47} parent=31 // pred_check
        %p269 = pneg %p268
      $region34: #{mlsp.47} parent=31 // pred_check_branch
        %271 = sbr.rel (%p269) target = $region36
      $region35: #{mlsp.47} parent=31 // pred_region
        %v272 = vld [vmem:[%s257] sm:$0x1]
        %v274 = vlaneseq
        %v275 = vshrl.u32 %v274, 7
        %v276 = vsub.s32 0, %v275
        %v277 = vrot.slane %v272, %v276
        %279 = vst [vmem:[%s265] sm:$0xff] %v277
        %280 = vst [vmem:[%s265 + $0x8] sm:$0xff] %v277
        %281 = vst [vmem:[%s265 + $0x10] sm:$0xff] %v277
        %282 = vst [vmem:[%s265 + $0x18] sm:$0xff] %v277
        %283 = vst [vmem:[%s265 + $0x20] sm:$0xff] %v277
        %284 = vst [vmem:[%s265 + $0x28] sm:$0xff] %v277
        %285 = vst [vmem:[%s265 + $0x30] sm:$0xff] %v277
        %286 = vst [vmem:[%s265 + $0x38] sm:$0xff] %v277
        %287 = vst [vmem:[%s265 + $0x40] sm:$0xff] %v277
        %288 = vst [vmem:[%s265 + $0x48] sm:$0xff] %v277
        %289 = vst [vmem:[%s265 + $0x50] sm:$0xff] %v277
        %290 = vst [vmem:[%s265 + $0x58] sm:$0xff] %v277
        %291 = vst [vmem:[%s265 + $0x60] sm:$0xff] %v277
        %292 = vst [vmem:[%s265 + $0x68] sm:$0xff] %v277
        %293 = vst [vmem:[%s265 + $0x70] sm:$0xff] %v277
        %294 = vst [vmem:[%s265 + $0x78] sm:$0xff] %v277
        %295 = vst [vmem:[%s265 + $0x80] sm:$0xff] %v277
        %296 = vst [vmem:[%s265 + $0x88] sm:$0xff] %v277
        %297 = vst [vmem:[%s265 + $0x90] sm:$0xff] %v277
        %298 = vst [vmem:[%s265 + $0x98] sm:$0xff] %v277
        %299 = vst [vmem:[%s265 + $0xa0] sm:$0xff] %v277
        %300 = vst [vmem:[%s265 + $0xa8] sm:$0xff] %v277
        %301 = vst [vmem:[%s265 + $0xb0] sm:$0xff] %v277
        %302 = vst [vmem:[%s265 + $0xb8] sm:$0xff] %v277
        %303 = vst [vmem:[%s265 + $0xc0] sm:$0xff] %v277
        %304 = vst [vmem:[%s265 + $0xc8] sm:$0xff] %v277
        %305 = vst [vmem:[%s265 + $0xd0] sm:$0xff] %v277
        %306 = vst [vmem:[%s265 + $0xd8] sm:$0xff] %v277
        %307 = vst [vmem:[%s265 + $0xe0] sm:$0xff] %v277
        %308 = vst [vmem:[%s265 + $0xe8] sm:$0xff] %v277
        %309 = vst [vmem:[%s265 + $0xf0] sm:$0xff] %v277
        %310 = vst [vmem:[%s265 + $0xf8] sm:$0xff] %v277
      $region36: #{mlsp.47} parent=31 // pred_fallthru
        _
      %v311 = vld [vmem:[%s265] sm:$0xff]
      %v312 = vld [vmem:[%s265 + $0x8] sm:$0xff]
      %v313 = vld [vmem:[%s265 + $0x10] sm:$0xff]
      %v314 = vld [vmem:[%s265 + $0x18] sm:$0xff]
      %v315 = vld [vmem:[%s265 + $0x20] sm:$0xff]
      %v316 = vld [vmem:[%s265 + $0x28] sm:$0xff]
      %v317 = vld [vmem:[%s265 + $0x30] sm:$0xff]
      %v318 = vld [vmem:[%s265 + $0x38] sm:$0xff]
      %v319 = vld [vmem:[%s265 + $0x40] sm:$0xff]
      %v320 = vld [vmem:[%s265 + $0x48] sm:$0xff]
      %v321 = vld [vmem:[%s265 + $0x50] sm:$0xff]
      %v322 = vld [vmem:[%s265 + $0x58] sm:$0xff]
      %v323 = vld [vmem:[%s265 + $0x60] sm:$0xff]
      %v324 = vld [vmem:[%s265 + $0x68] sm:$0xff]
      %v325 = vld [vmem:[%s265 + $0x70] sm:$0xff]
      %v326 = vld [vmem:[%s265 + $0x78] sm:$0xff]
      %v327 = vld [vmem:[%s265 + $0x80] sm:$0xff]
      %v328 = vld [vmem:[%s265 + $0x88] sm:$0xff]
      %v329 = vld [vmem:[%s265 + $0x90] sm:$0xff]
      %v330 = vld [vmem:[%s265 + $0x98] sm:$0xff]
      %v331 = vld [vmem:[%s265 + $0xa0] sm:$0xff]
      %v332 = vld [vmem:[%s265 + $0xa8] sm:$0xff]
      %v333 = vld [vmem:[%s265 + $0xb0] sm:$0xff]
      %v334 = vld [vmem:[%s265 + $0xb8] sm:$0xff]
      %v335 = vld [vmem:[%s265 + $0xc0] sm:$0xff]
      %v336 = vld [vmem:[%s265 + $0xc8] sm:$0xff]
      %v337 = vld [vmem:[%s265 + $0xd0] sm:$0xff]
      %v338 = vld [vmem:[%s265 + $0xd8] sm:$0xff]
      %v339 = vld [vmem:[%s265 + $0xe0] sm:$0xff]
      %v340 = vld [vmem:[%s265 + $0xe8] sm:$0xff]
      %v341 = vld [vmem:[%s265 + $0xf0] sm:$0xff]
      %v342 = vld [vmem:[%s265 + $0xf8] sm:$0xff]
      %v343 = vld [vmem:[%s243] sm:$0xff]
      %v344 = vld [vmem:[%s243 + $0x8] sm:$0xff]
      %v345 = vld [vmem:[%s243 + $0x10] sm:$0xff]
      %v346 = vld [vmem:[%s243 + $0x18] sm:$0xff]
      %v347 = vld [vmem:[%s243 + $0x20] sm:$0xff]
      %v348 = vld [vmem:[%s243 + $0x28] sm:$0xff]
      %v349 = vld [vmem:[%s243 + $0x30] sm:$0xff]
      %v350 = vld [vmem:[%s243 + $0x38] sm:$0xff]
      %v351 = vld [vmem:[%s243 + $0x40] sm:$0xff]
      %v352 = vld [vmem:[%s243 + $0x48] sm:$0xff]
      %v353 = vld [vmem:[%s243 + $0x50] sm:$0xff]
      %v354 = vld [vmem:[%s243 + $0x58] sm:$0xff]
      %v355 = vld [vmem:[%s243 + $0x60] sm:$0xff]
      %v356 = vld [vmem:[%s243 + $0x68] sm:$0xff]
      %v357 = vld [vmem:[%s243 + $0x70] sm:$0xff]
      %v358 = vld [vmem:[%s243 + $0x78] sm:$0xff]
      %v359 = vld [vmem:[%s243 + $0x80] sm:$0xff]
      %v360 = vld [vmem:[%s243 + $0x88] sm:$0xff]
      %v361 = vld [vmem:[%s243 + $0x90] sm:$0xff]
      %v362 = vld [vmem:[%s243 + $0x98] sm:$0xff]
      %v363 = vld [vmem:[%s243 + $0xa0] sm:$0xff]
      %v364 = vld [vmem:[%s243 + $0xa8] sm:$0xff]
      %v365 = vld [vmem:[%s243 + $0xb0] sm:$0xff]
      %v366 = vld [vmem:[%s243 + $0xb8] sm:$0xff]
      %v367 = vld [vmem:[%s243 + $0xc0] sm:$0xff]
      %v368 = vld [vmem:[%s243 + $0xc8] sm:$0xff]
      %v369 = vld [vmem:[%s243 + $0xd0] sm:$0xff]
      %v370 = vld [vmem:[%s243 + $0xd8] sm:$0xff]
      %v371 = vld [vmem:[%s243 + $0xe0] sm:$0xff]
      %v372 = vld [vmem:[%s243 + $0xe8] sm:$0xff]
      %v373 = vld [vmem:[%s243 + $0xf0] sm:$0xff]
      %v374 = vld [vmem:[%s243 + $0xf8] sm:$0xff]
      %v375 = vld [vmem:[%s253] sm:$0xf]
      %v376 = vld [vmem:[%s253 + $0x4] sm:$0xf]
      %v377 = vld [vmem:[%s253 + $0x8] sm:$0xf]
      %v378 = vld [vmem:[%s253 + $0xc] sm:$0xf]
      %v379 = vld [vmem:[%s253 + $0x10] sm:$0xf]
      %v380 = vld [vmem:[%s253 + $0x14] sm:$0xf]
      %v381 = vld [vmem:[%s253 + $0x18] sm:$0xf]
      %v382 = vld [vmem:[%s253 + $0x1c] sm:$0xf]
      %v383 = vld [vmem:[%s253 + $0x20] sm:$0xf]
      %v384 = vld [vmem:[%s253 + $0x24] sm:$0xf]
      %v385 = vld [vmem:[%s253 + $0x28] sm:$0xf]
      %v386 = vld [vmem:[%s253 + $0x2c] sm:$0xf]
      %v387 = vld [vmem:[%s253 + $0x30] sm:$0xf]
      %v388 = vld [vmem:[%s253 + $0x34] sm:$0xf]
      %v389 = vld [vmem:[%s253 + $0x38] sm:$0xf]
      %v390 = vld [vmem:[%s253 + $0x3c] sm:$0xf]
      %v391 = vld [vmem:[%s253 + $0x40] sm:$0xf]
      %v392 = vld [vmem:[%s253 + $0x44] sm:$0xf]
      %v393 = vld [vmem:[%s253 + $0x48] sm:$0xf]
      %v394 = vld [vmem:[%s253 + $0x4c] sm:$0xf]
      %v395 = vld [vmem:[%s253 + $0x50] sm:$0xf]
      %v396 = vld [vmem:[%s253 + $0x54] sm:$0xf]
      %v397 = vld [vmem:[%s253 + $0x58] sm:$0xf]
      %v398 = vld [vmem:[%s253 + $0x5c] sm:$0xf]
      %v399 = vld [vmem:[%s253 + $0x60] sm:$0xf]
      %v400 = vld [vmem:[%s253 + $0x64] sm:$0xf]
      %v401 = vld [vmem:[%s253 + $0x68] sm:$0xf]
      %v402 = vld [vmem:[%s253 + $0x6c] sm:$0xf]
      %v403 = vld [vmem:[%s253 + $0x70] sm:$0xf]
      %v404 = vld [vmem:[%s253 + $0x74] sm:$0xf]
      %v405 = vld [vmem:[%s253 + $0x78] sm:$0xf]
      %v406 = vld [vmem:[%s253 + $0x7c] sm:$0xf]
      %v439 = vunpack.c.l.b16 %v343
      %v440 = vunpack.c.h.b16 %v343
      %v441 = vunpack.c.l.b16 %v344
      %v442 = vunpack.c.h.b16 %v344
      %v443 = vunpack.c.l.b16 %v345
      %v444 = vunpack.c.h.b16 %v345
      %v445 = vunpack.c.l.b16 %v346
      %v446 = vunpack.c.h.b16 %v346
      %v447 = vunpack.c.l.b16 %v347
      %v448 = vunpack.c.h.b16 %v347
      %v449 = vunpack.c.l.b16 %v348
      %v450 = vunpack.c.h.b16 %v348
      %v451 = vunpack.c.l.b16 %v349
      %v452 = vunpack.c.h.b16 %v349
      %v453 = vunpack.c.l.b16 %v350
      %v454 = vunpack.c.h.b16 %v350
      %v455 = vunpack.c.l.b16 %v351
      %v456 = vunpack.c.h.b16 %v351
      %v457 = vunpack.c.l.b16 %v352
      %v458 = vunpack.c.h.b16 %v352
      %v459 = vunpack.c.l.b16 %v353
      %v460 = vunpack.c.h.b16 %v353
      %v461 = vunpack.c.l.b16 %v354
      %v462 = vunpack.c.h.b16 %v354
      %v463 = vunpack.c.l.b16 %v355
      %v464 = vunpack.c.h.b16 %v355
      %v465 = vunpack.c.l.b16 %v356
      %v466 = vunpack.c.h.b16 %v356
      %v467 = vunpack.c.l.b16 %v357
      %v468 = vunpack.c.h.b16 %v357
      %v469 = vunpack.c.l.b16 %v358
      %v470 = vunpack.c.h.b16 %v358
      %v471 = vunpack.c.l.b16 %v359
      %v472 = vunpack.c.h.b16 %v359
      %v473 = vunpack.c.l.b16 %v360
      %v474 = vunpack.c.h.b16 %v360
      %v475 = vunpack.c.l.b16 %v361
      %v476 = vunpack.c.h.b16 %v361
      %v477 = vunpack.c.l.b16 %v362
      %v478 = vunpack.c.h.b16 %v362
      %v479 = vunpack.c.l.b16 %v363
      %v480 = vunpack.c.h.b16 %v363
      %v481 = vunpack.c.l.b16 %v364
      %v482 = vunpack.c.h.b16 %v364
      %v483 = vunpack.c.l.b16 %v365
      %v484 = vunpack.c.h.b16 %v365
      %v485 = vunpack.c.l.b16 %v366
      %v486 = vunpack.c.h.b16 %v366
      %v487 = vunpack.c.l.b16 %v367
      %v488 = vunpack.c.h.b16 %v367
      %v489 = vunpack.c.l.b16 %v368
      %v490 = vunpack.c.h.b16 %v368
      %v491 = vunpack.c.l.b16 %v369
      %v492 = vunpack.c.h.b16 %v369
      %v493 = vunpack.c.l.b16 %v370
      %v494 = vunpack.c.h.b16 %v370
      %v495 = vunpack.c.l.b16 %v371
      %v496 = vunpack.c.h.b16 %v371
      %v497 = vunpack.c.l.b16 %v372
      %v498 = vunpack.c.h.b16 %v372
      %v499 = vunpack.c.l.b16 %v373
      %v500 = vunpack.c.h.b16 %v373
      %v501 = vunpack.c.l.b16 %v374
      %v502 = vunpack.c.h.b16 %v374
      %v503 = vpack.c.b16 %v441, %v439
      %v504 = vpack.c.b16 %v442, %v440
      %v505 = vpack.c.b16 %v445, %v443
      %v506 = vpack.c.b16 %v446, %v444
      %v507 = vpack.c.b16 %v449, %v447
      %v508 = vpack.c.b16 %v450, %v448
      %v509 = vpack.c.b16 %v453, %v451
      %v510 = vpack.c.b16 %v454, %v452
      %v511 = vpack.c.b16 %v457, %v455
      %v512 = vpack.c.b16 %v458, %v456
      %v513 = vpack.c.b16 %v461, %v459
      %v514 = vpack.c.b16 %v462, %v460
      %v515 = vpack.c.b16 %v465, %v463
      %v516 = vpack.c.b16 %v466, %v464
      %v517 = vpack.c.b16 %v469, %v467
      %v518 = vpack.c.b16 %v470, %v468
      %v519 = vpack.c.b16 %v473, %v471
      %v520 = vpack.c.b16 %v474, %v472
      %v521 = vpack.c.b16 %v477, %v475
      %v522 = vpack.c.b16 %v478, %v476
      %v523 = vpack.c.b16 %v481, %v479
      %v524 = vpack.c.b16 %v482, %v480
      %v525 = vpack.c.b16 %v485, %v483
      %v526 = vpack.c.b16 %v486, %v484
      %v527 = vpack.c.b16 %v489, %v487
      %v528 = vpack.c.b16 %v490, %v488
      %v529 = vpack.c.b16 %v493, %v491
      %v530 = vpack.c.b16 %v494, %v492
      %v531 = vpack.c.b16 %v497, %v495
      %v532 = vpack.c.b16 %v498, %v496
      %v533 = vpack.c.b16 %v501, %v499
      %v534 = vpack.c.b16 %v502, %v500
      %v599 = vunpack.c.l.b16 %v375
      %v600 = vunpack.c.l.b16 %v376
      %v601 = vunpack.c.l.b16 %v377
      %v602 = vunpack.c.l.b16 %v378
      %v603 = vunpack.c.l.b16 %v379
      %v604 = vunpack.c.l.b16 %v380
      %v605 = vunpack.c.l.b16 %v381
      %v606 = vunpack.c.l.b16 %v382
      %v607 = vunpack.c.l.b16 %v383
      %v608 = vunpack.c.l.b16 %v384
      %v609 = vunpack.c.l.b16 %v385
      %v610 = vunpack.c.l.b16 %v386
      %v611 = vunpack.c.l.b16 %v387
      %v612 = vunpack.c.l.b16 %v388
      %v613 = vunpack.c.l.b16 %v389
      %v614 = vunpack.c.l.b16 %v390
      %v615 = vunpack.c.l.b16 %v391
      %v616 = vunpack.c.l.b16 %v392
      %v617 = vunpack.c.l.b16 %v393
      %v618 = vunpack.c.l.b16 %v394
      %v619 = vunpack.c.l.b16 %v395
      %v620 = vunpack.c.l.b16 %v396
      %v621 = vunpack.c.l.b16 %v397
      %v622 = vunpack.c.l.b16 %v398
      %v623 = vunpack.c.l.b16 %v399
      %v624 = vunpack.c.l.b16 %v400
      %v625 = vunpack.c.l.b16 %v401
      %v626 = vunpack.c.l.b16 %v402
      %v627 = vunpack.c.l.b16 %v403
      %v628 = vunpack.c.l.b16 %v404
      %v629 = vunpack.c.l.b16 %v405
      %v630 = vunpack.c.l.b16 %v406
      %v631 = vpack.c.b16 %v600, %v599
      %v632 = vpack.c.b16 %v602, %v601
      %v633 = vpack.c.b16 %v604, %v603
      %v634 = vpack.c.b16 %v606, %v605
      %v635 = vpack.c.b16 %v608, %v607
      %v636 = vpack.c.b16 %v610, %v609
      %v637 = vpack.c.b16 %v612, %v611
      %v638 = vpack.c.b16 %v614, %v613
      %v639 = vpack.c.b16 %v616, %v615
      %v640 = vpack.c.b16 %v618, %v617
      %v641 = vpack.c.b16 %v620, %v619
      %v642 = vpack.c.b16 %v622, %v621
      %v643 = vpack.c.b16 %v624, %v623
      %v644 = vpack.c.b16 %v626, %v625
      %v645 = vpack.c.b16 %v628, %v627
      %v646 = vpack.c.b16 %v630, %v629
      %663 = vmatprep.subr.bf16.mxu0 0
      %664 = vmatpush1.bf16.msra.mxu0 %v638
      %665 = vmatprep.subr.bf16.mxu0 0
      %666 = vmatpush1.bf16.msra.mxu0 %v637
      %667 = vmatprep.subr.bf16.mxu0 0
      %668 = vmatpush1.bf16.msra.mxu0 %v636
      %669 = vmatprep.subr.bf16.mxu0 0
      %670 = vmatpush1.bf16.msra.mxu0 %v635
      %671 = vmatprep.subr.bf16.mxu0 0
      %672 = vmatpush1.bf16.msra.mxu0 %v634
      %673 = vmatprep.subr.bf16.mxu0 0
      %674 = vmatpush1.bf16.msra.mxu0 %v633
      %675 = vmatprep.subr.bf16.mxu0 0
      %676 = vmatpush1.bf16.msra.mxu0 %v632
      %677 = vmatprep.subr.bf16.mxu0 0
      %678 = vmatpush1.bf16.msra.mxu0 %v631
      %679 = vmatprep.subr.bf16.mxu0 0
      %680 = vmatpush2.bf16.msra.mxu0 %v646
      %681 = vmatprep.subr.bf16.mxu0 0
      %682 = vmatpush2.bf16.msra.mxu0 %v645
      %683 = vmatprep.subr.bf16.mxu0 0
      %684 = vmatpush2.bf16.msra.mxu0 %v644
      %685 = vmatprep.subr.bf16.mxu0 0
      %686 = vmatpush2.bf16.msra.mxu0 %v643
      %687 = vmatprep.subr.bf16.mxu0 0
      %688 = vmatpush2.bf16.msra.mxu0 %v642
      %689 = vmatprep.subr.bf16.mxu0 0
      %690 = vmatpush2.bf16.msra.mxu0 %v641
      %691 = vmatprep.subr.bf16.mxu0 0
      %692 = vmatpush2.bf16.msra.mxu0 %v640
      %693 = vmatprep.subr.bf16.mxu0 0
      %694 = vmatpush2.bf16.msra.mxu0 %v639
      %695 = vmatprep.mubr.bf16.mxu0 %v504
      %696 = vmatmul.mubr.bf16.gmra.mxu0 %v503
      %v697 = vpop.f32.mrf.mxu0
      %v698 = vadd.f32 0.0, %v697
      %v699 = vpop.f32.mrf.mxu0
      %v700 = vpop.f32.mrf.mxu0
      %v701 = vadd.f32 0.0, %v700
      %v702 = vpop.f32.mrf.mxu0
      %703 = vmatprep.mubr.bf16.mxu0 %v506
      %704 = vmatmul.mubr.bf16.gmra.mxu0 %v505
      %v705 = vpop.f32.mrf.mxu0
      %v706 = vadd.f32 0.0, %v705
      %v707 = vpop.f32.mrf.mxu0
      %v708 = vpop.f32.mrf.mxu0
      %v709 = vadd.f32 0.0, %v708
      %v710 = vpop.f32.mrf.mxu0
      %711 = vmatprep.mubr.bf16.mxu0 %v508
      %712 = vmatmul.mubr.bf16.gmra.mxu0 %v507
      %v713 = vpop.f32.mrf.mxu0
      %v714 = vadd.f32 0.0, %v713
      %v715 = vpop.f32.mrf.mxu0
      %v716 = vpop.f32.mrf.mxu0
      %v717 = vadd.f32 0.0, %v716
      %v718 = vpop.f32.mrf.mxu0
      %719 = vmatprep.mubr.bf16.mxu0 %v510
      %720 = vmatmul.mubr.bf16.gmra.mxu0 %v509
      %v721 = vpop.f32.mrf.mxu0
      %v722 = vadd.f32 0.0, %v721
      %v723 = vpop.f32.mrf.mxu0
      %v724 = vpop.f32.mrf.mxu0
      %v725 = vadd.f32 0.0, %v724
      %v726 = vpop.f32.mrf.mxu0
      %727 = vmatprep.mubr.bf16.mxu0 %v512
      %728 = vmatmul.mubr.bf16.gmra.mxu0 %v511
      %v729 = vpop.f32.mrf.mxu0
      %v730 = vadd.f32 0.0, %v729
      %v731 = vpop.f32.mrf.mxu0
      %v732 = vpop.f32.mrf.mxu0
      %v733 = vadd.f32 0.0, %v732
      %v734 = vpop.f32.mrf.mxu0
      %735 = vmatprep.mubr.bf16.mxu0 %v514
      %736 = vmatmul.mubr.bf16.gmra.mxu0 %v513
      %v737 = vpop.f32.mrf.mxu0
      %v738 = vadd.f32 0.0, %v737
      %v739 = vpop.f32.mrf.mxu0
      %v740 = vpop.f32.mrf.mxu0
      %v741 = vadd.f32 0.0, %v740
      %v742 = vpop.f32.mrf.mxu0
      %743 = vmatprep.mubr.bf16.mxu0 %v516
      %744 = vmatmul.mubr.bf16.gmra.mxu0 %v515
      %v745 = vpop.f32.mrf.mxu0
      %v746 = vadd.f32 0.0, %v745
      %v747 = vpop.f32.mrf.mxu0
      %v748 = vpop.f32.mrf.mxu0
      %v749 = vadd.f32 0.0, %v748
      %v750 = vpop.f32.mrf.mxu0
      %751 = vmatprep.mubr.bf16.mxu0 %v518
      %752 = vmatmul.mubr.bf16.gmra.mxu0 %v517
      %v753 = vpop.f32.mrf.mxu0
      %v754 = vadd.f32 0.0, %v753
      %v755 = vpop.f32.mrf.mxu0
      %v756 = vpop.f32.mrf.mxu0
      %v757 = vadd.f32 0.0, %v756
      %v758 = vpop.f32.mrf.mxu0
      %759 = vmatprep.mubr.bf16.mxu0 %v520
      %760 = vmatmul.mubr.bf16.gmra.mxu0 %v519
      %v761 = vpop.f32.mrf.mxu0
      %v762 = vadd.f32 0.0, %v761
      %v763 = vpop.f32.mrf.mxu0
      %v764 = vpop.f32.mrf.mxu0
      %v765 = vadd.f32 0.0, %v764
      %v766 = vpop.f32.mrf.mxu0
      %767 = vmatprep.mubr.bf16.mxu0 %v522
      %768 = vmatmul.mubr.bf16.gmra.mxu0 %v521
      %v769 = vpop.f32.mrf.mxu0
      %v770 = vadd.f32 0.0, %v769
      %v771 = vpop.f32.mrf.mxu0
      %v772 = vpop.f32.mrf.mxu0
      %v773 = vadd.f32 0.0, %v772
      %v774 = vpop.f32.mrf.mxu0
      %775 = vmatprep.mubr.bf16.mxu0 %v524
      %776 = vmatmul.mubr.bf16.gmra.mxu0 %v523
      %v777 = vpop.f32.mrf.mxu0
      %v778 = vadd.f32 0.0, %v777
      %v779 = vpop.f32.mrf.mxu0
      %v780 = vpop.f32.mrf.mxu0
      %v781 = vadd.f32 0.0, %v780
      %v782 = vpop.f32.mrf.mxu0
      %783 = vmatprep.mubr.bf16.mxu0 %v526
      %784 = vmatmul.mubr.bf16.gmra.mxu0 %v525
      %v785 = vpop.f32.mrf.mxu0
      %v786 = vadd.f32 0.0, %v785
      %v787 = vpop.f32.mrf.mxu0
      %v788 = vpop.f32.mrf.mxu0
      %v789 = vadd.f32 0.0, %v788
      %v790 = vpop.f32.mrf.mxu0
      %791 = vmatprep.mubr.bf16.mxu0 %v528
      %792 = vmatmul.mubr.bf16.gmra.mxu0 %v527
      %v793 = vpop.f32.mrf.mxu0
      %v794 = vadd.f32 0.0, %v793
      %v795 = vpop.f32.mrf.mxu0
      %v796 = vpop.f32.mrf.mxu0
      %v797 = vadd.f32 0.0, %v796
      %v798 = vpop.f32.mrf.mxu0
      %799 = vmatprep.mubr.bf16.mxu0 %v530
      %800 = vmatmul.mubr.bf16.gmra.mxu0 %v529
      %v801 = vpop.f32.mrf.mxu0
      %v802 = vadd.f32 0.0, %v801
      %v803 = vpop.f32.mrf.mxu0
      %v804 = vpop.f32.mrf.mxu0
      %v805 = vadd.f32 0.0, %v804
      %v806 = vpop.f32.mrf.mxu0
      %807 = vmatprep.mubr.bf16.mxu0 %v532
      %808 = vmatmul.mubr.bf16.gmra.mxu0 %v531
      %v809 = vpop.f32.mrf.mxu0
      %v810 = vadd.f32 0.0, %v809
      %v811 = vpop.f32.mrf.mxu0
      %v812 = vpop.f32.mrf.mxu0
      %v813 = vadd.f32 0.0, %v812
      %v814 = vpop.f32.mrf.mxu0
      %815 = vmatprep.mubr.bf16.mxu0 %v534
      %816 = vmatmul.mubr.bf16.gmra.mxu0 %v533
      %v817 = vpop.f32.mrf.mxu0
      %v818 = vadd.f32 0.0, %v817
      %v819 = vpop.f32.mrf.mxu0
      %v820 = vpop.f32.mrf.mxu0
      %v821 = vadd.f32 0.0, %v820
      %v822 = vpop.f32.mrf.mxu0
      %823 = vdwg.mxu0
      %v824 = vadd.f32 %v311, %v698
      %v825 = vadd.f32 %v312, %v701
      %v826 = vadd.f32 %v313, %v706
      %v827 = vadd.f32 %v314, %v709
      %v828 = vadd.f32 %v315, %v714
      %v829 = vadd.f32 %v316, %v717
      %v830 = vadd.f32 %v317, %v722
      %v831 = vadd.f32 %v318, %v725
      %v832 = vadd.f32 %v319, %v730
      %v833 = vadd.f32 %v320, %v733
      %v834 = vadd.f32 %v321, %v738
      %v835 = vadd.f32 %v322, %v741
      %v836 = vadd.f32 %v323, %v746
      %v837 = vadd.f32 %v324, %v749
      %v838 = vadd.f32 %v325, %v754
      %v839 = vadd.f32 %v326, %v757
      %v840 = vadd.f32 %v327, %v762
      %v841 = vadd.f32 %v328, %v765
      %v842 = vadd.f32 %v329, %v770
      %v843 = vadd.f32 %v330, %v773
      %v844 = vadd.f32 %v331, %v778
      %v845 = vadd.f32 %v332, %v781
      %v846 = vadd.f32 %v333, %v786
      %v847 = vadd.f32 %v334, %v789
      %v848 = vadd.f32 %v335, %v794
      %v849 = vadd.f32 %v336, %v797
      %v850 = vadd.f32 %v337, %v802
      %v851 = vadd.f32 %v338, %v805
      %v852 = vadd.f32 %v339, %v810
      %v853 = vadd.f32 %v340, %v813
      %v854 = vadd.f32 %v341, %v818
      %v855 = vadd.f32 %v342, %v821
      %856 = vst [vmem:[%s265] sm:$0xff] %v824
      %857 = vst [vmem:[%s265 + $0x8] sm:$0xff] %v825
      %858 = vst [vmem:[%s265 + $0x10] sm:$0xff] %v826
      %859 = vst [vmem:[%s265 + $0x18] sm:$0xff] %v827
      %860 = vst [vmem:[%s265 + $0x20] sm:$0xff] %v828
      %861 = vst [vmem:[%s265 + $0x28] sm:$0xff] %v829
      %862 = vst [vmem:[%s265 + $0x30] sm:$0xff] %v830
      %863 = vst [vmem:[%s265 + $0x38] sm:$0xff] %v831
      %864 = vst [vmem:[%s265 + $0x40] sm:$0xff] %v832
      %865 = vst [vmem:[%s265 + $0x48] sm:$0xff] %v833
      %866 = vst [vmem:[%s265 + $0x50] sm:$0xff] %v834
      %867 = vst [vmem:[%s265 + $0x58] sm:$0xff] %v835
      %868 = vst [vmem:[%s265 + $0x60] sm:$0xff] %v836
      %869 = vst [vmem:[%s265 + $0x68] sm:$0xff] %v837
      %870 = vst [vmem:[%s265 + $0x70] sm:$0xff] %v838
      %871 = vst [vmem:[%s265 + $0x78] sm:$0xff] %v839
      %872 = vst [vmem:[%s265 + $0x80] sm:$0xff] %v840
      %873 = vst [vmem:[%s265 + $0x88] sm:$0xff] %v841
      %874 = vst [vmem:[%s265 + $0x90] sm:$0xff] %v842
      %875 = vst [vmem:[%s265 + $0x98] sm:$0xff] %v843
      %876 = vst [vmem:[%s265 + $0xa0] sm:$0xff] %v844
      %877 = vst [vmem:[%s265 + $0xa8] sm:$0xff] %v845
      %878 = vst [vmem:[%s265 + $0xb0] sm:$0xff] %v846
      %879 = vst [vmem:[%s265 + $0xb8] sm:$0xff] %v847
      %880 = vst [vmem:[%s265 + $0xc0] sm:$0xff] %v848
      %881 = vst [vmem:[%s265 + $0xc8] sm:$0xff] %v849
      %882 = vst [vmem:[%s265 + $0xd0] sm:$0xff] %v850
      %883 = vst [vmem:[%s265 + $0xd8] sm:$0xff] %v851
      %884 = vst [vmem:[%s265 + $0xe0] sm:$0xff] %v852
      %885 = vst [vmem:[%s265 + $0xe8] sm:$0xff] %v853
      %886 = vst [vmem:[%s265 + $0xf0] sm:$0xff] %v854
      %887 = vst [vmem:[%s265 + $0xf8] sm:$0xff] %v855
      %s888 = smul.u32 32, %s19
      %p889 = scmp.lt.s32.totalorder %s888, 1023
      %s890 = scalar_select %p889, %s888, 1023
      %p891 = scmp.lt.s32.totalorder %s20, 0
      %s892 = scalar_select %p891, %s20, 0
      %s893 = sadd.s32 %s892, %s890
      %s894 = smul.addr %s893, 8
      %s895 = scalar_lea.vmem %s3, %s894
      // Predicated region
      $region37: #{mlsp.47} parent=31 // pred_check
        %p896 = pneg %p135
      $region38: #{mlsp.47} parent=31 // pred_check_branch
        %898 = sbr.rel (%p896) target = $region40
      $region39: #{mlsp.47} parent=31 // pred_region
        %s899 = smul.u32 32, %s19
      $region40: #{mlsp.47} parent=31 // pred_fallthru
        _
    $region32: #{mlsp.47} parent=5 // pred_fallthru
      _
    %p900 = scmp.le.s32.totalorder 2, %s9
    // Predicated region
    $region41: #{mlsp.47} parent=5 // pred_check
      %p901 = pneg %p900
    $region42: #{mlsp.47} parent=5 // pred_check_branch
      %903 = sbr.rel (%p901) target = $region44
    $region43: #{mlsp.47} parent=5 // pred_region
      %s904 = ssub.s32 %s9, 2
      // Predicated region
      $region45: #{mlsp.47} parent=43 // pred_check
        %p905 = pneg %p141
      $region46: #{mlsp.47} parent=43 // pred_check_branch
        %907 = sbr.rel (%p905) target = $region48
      $region47: #{mlsp.47} parent=43 // pred_region
        %s908 = smul.u32 32, %s22
        %p909 = scmp.lt.s32.totalorder %s908, 1023
        %s910 = scalar_select %p909, %s908, 1023
        %p911 = scmp.lt.s32.totalorder %s23, 0
        %s912 = scalar_select %p911, %s23, 0
        %s913 = sadd.s32 %s912, %s910
        %s914 = smul.addr %s913, 8
        %s915 = scalar_lea.vmem %s3, %s914
      $region48: #{mlsp.47} parent=43 // pred_fallthru
        _
    $region44: #{mlsp.47} parent=5 // pred_fallthru
      _
  $region6: #{mlsp.47} parent=0 // loop_footer
    %s13 = sadd.s32 1, %s9
  $region7: #{mlsp.47} parent=0 // loop_footer_branch
    %8 = sbr.rel target = $region3
  $region8: #{mlsp.47} parent=0 // loop_exit
    _

// kernel: mlsp.48
$region0: #{mlsp.48}
  #allocation0 [shape = 'u32[]', space=smem, size = 0x4, offset = 0x4, fixed_abs, tag = 'smem constant byte address 0x4 - core index']
  #allocation1 [shape = 'u32[144,128]{1,0:T(1,128)}', space=vmem, size = 0x12000, scoped, tag = 'internal scratch']
  %s0 = inlined_call_operand.vmem [shape: f32[8,4096], index: 0, kind: input, shape index: {}]
  %s1 = inlined_call_operand.vmem [shape: f32[8,4096], index: 1, kind: output, shape index: {}]
  %s2 = sld [smem:[#allocation0]]
  $region14: #{mlsp.48} parent=0
    _
  %s4 = ssub.s32 1, %s2
  %s5 = scalar_select 0, %s4, %s2
  // Predicated region
  $region2: #{mlsp.48} parent=0 // pred_check
    _
  $region3: #{mlsp.48} parent=0 // pred_check_branch
    %7 = sbr.rel (0) target = $region5
  $region4: #{mlsp.48} parent=0 // pred_region
    _
  $region5: #{mlsp.48} parent=0 // pred_fallthru
    _
  %v8 = vld [vmem:[%s0] sm:$0xff]
  %v9 = vld [vmem:[%s0 + $0x8] sm:$0xff]
  %v10 = vld [vmem:[%s0 + $0x10] sm:$0xff]
  %v11 = vld [vmem:[%s0 + $0x18] sm:$0xff]
  %v12 = vld [vmem:[%s0 + $0x20] sm:$0xff]
  %v13 = vld [vmem:[%s0 + $0x28] sm:$0xff]
  %v14 = vld [vmem:[%s0 + $0x30] sm:$0xff]
  %v15 = vld [vmem:[%s0 + $0x38] sm:$0xff]
  %v16 = vld [vmem:[%s0 + $0x40] sm:$0xff]
  %v17 = vld [vmem:[%s0 + $0x48] sm:$0xff]
  %v18 = vld [vmem:[%s0 + $0x50] sm:$0xff]
  %v19 = vld [vmem:[%s0 + $0x58] sm:$0xff]
  %v20 = vld [vmem:[%s0 + $0x60] sm:$0xff]
  %v21 = vld [vmem:[%s0 + $0x68] sm:$0xff]
  %v22 = vld [vmem:[%s0 + $0x70] sm:$0xff]
  %v23 = vld [vmem:[%s0 + $0x78] sm:$0xff]
  %v24 = vld [vmem:[%s0 + $0x80] sm:$0xff]
  %v25 = vld [vmem:[%s0 + $0x88] sm:$0xff]
  %v26 = vld [vmem:[%s0 + $0x90] sm:$0xff]
  %v27 = vld [vmem:[%s0 + $0x98] sm:$0xff]
  %v28 = vld [vmem:[%s0 + $0xa0] sm:$0xff]
  %v29 = vld [vmem:[%s0 + $0xa8] sm:$0xff]
  %v30 = vld [vmem:[%s0 + $0xb0] sm:$0xff]
  %v31 = vld [vmem:[%s0 + $0xb8] sm:$0xff]
  %v32 = vld [vmem:[%s0 + $0xc0] sm:$0xff]
  %v33 = vld [vmem:[%s0 + $0xc8] sm:$0xff]
  %v34 = vld [vmem:[%s0 + $0xd0] sm:$0xff]
  %v35 = vld [vmem:[%s0 + $0xd8] sm:$0xff]
  %v36 = vld [vmem:[%s0 + $0xe0] sm:$0xff]
  %v37 = vld [vmem:[%s0 + $0xe8] sm:$0xff]
  %v38 = vld [vmem:[%s0 + $0xf0] sm:$0xff]
  %v39 = vld [vmem:[%s0 + $0xf8] sm:$0xff]
  %v40 = vadd.f32 %v8, %v9
  %v41 = vadd.f32 %v40, %v10
  %v42 = vadd.f32 %v41, %v11
  %v43 = vadd.f32 %v42, %v12
  %v44 = vadd.f32 %v43, %v13
  %v45 = vadd.f32 %v44, %v14
  %v46 = vadd.f32 %v45, %v15
  %v47 = vadd.f32 %v46, %v16
  %v48 = vadd.f32 %v47, %v17
  %v49 = vadd.f32 %v48, %v18
  %v50 = vadd.f32 %v49, %v19
  %v51 = vadd.f32 %v50, %v20
  %v52 = vadd.f32 %v51, %v21
  %v53 = vadd.f32 %v52, %v22
  %v54 = vadd.f32 %v53, %v23
  %v55 = vadd.f32 %v54, %v24
  %v56 = vadd.f32 %v55, %v25
  %v57 = vadd.f32 %v56, %v26
  %v58 = vadd.f32 %v57, %v27
  %v59 = vadd.f32 %v58, %v28
  %v60 = vadd.f32 %v59, %v29
  %v61 = vadd.f32 %v60, %v30
  %v62 = vadd.f32 %v61, %v31
  %v63 = vadd.f32 %v62, %v32
  %v64 = vadd.f32 %v63, %v33
  %v65 = vadd.f32 %v64, %v34
  %v66 = vadd.f32 %v65, %v35
  %v67 = vadd.f32 %v66, %v36
  %v68 = vadd.f32 %v67, %v37
  %v69 = vadd.f32 %v68, %v38
  %v70 = vadd.f32 %v69, %v39
  %71 = vadd.xlane.f32.xlu0 %v70
  %v72 = vpop.xlane.xlu0 %71
  %v73 = vrcp.pop 4096.0
  %v74 = vmul.f32 %v72, %v73
  %v75 = vsub.f32 %v8, %v74
  %v76 = vsub.f32 %v9, %v74
  %v77 = vsub.f32 %v10, %v74
  %v78 = vsub.f32 %v11, %v74
  %v79 = vsub.f32 %v12, %v74
  %v80 = vsub.f32 %v13, %v74
  %v81 = vsub.f32 %v14, %v74
  %v82 = vsub.f32 %v15, %v74
  %v83 = vsub.f32 %v16, %v74
  %v84 = vsub.f32 %v17, %v74
  %v85 = vsub.f32 %v18, %v74
  %v86 = vsub.f32 %v19, %v74
  %v87 = vsub.f32 %v20, %v74
  %v88 = vsub.f32 %v21, %v74
  %v89 = vsub.f32 %v22, %v74
  %v90 = vsub.f32 %v23, %v74
  %v91 = vsub.f32 %v24, %v74
  %v92 = vsub.f32 %v25, %v74
  %v93 = vsub.f32 %v26, %v74
  %v94 = vsub.f32 %v27, %v74
  %v95 = vsub.f32 %v28, %v74
  %v96 = vsub.f32 %v29, %v74
  %v97 = vsub.f32 %v30, %v74
  %v98 = vsub.f32 %v31, %v74
  %v99 = vsub.f32 %v32, %v74
  %v100 = vsub.f32 %v33, %v74
  %v101 = vsub.f32 %v34, %v74
  %v102 = vsub.f32 %v35, %v74
  %v103 = vsub.f32 %v36, %v74
  %v104 = vsub.f32 %v37, %v74
  %v105 = vsub.f32 %v38, %v74
  %v106 = vsub.f32 %v39, %v74
  %v107 = vmul.f32 %v75, %v75
  %v108 = vmul.f32 %v76, %v76
  %v109 = vmul.f32 %v77, %v77
  %v110 = vmul.f32 %v78, %v78
  %v111 = vmul.f32 %v79, %v79
  %v112 = vmul.f32 %v80, %v80
  %v113 = vmul.f32 %v81, %v81
  %v114 = vmul.f32 %v82, %v82
  %v115 = vmul.f32 %v83, %v83
  %v116 = vmul.f32 %v84, %v84
  %v117 = vmul.f32 %v85, %v85
  %v118 = vmul.f32 %v86, %v86
  %v119 = vmul.f32 %v87, %v87
  %v120 = vmul.f32 %v88, %v88
  %v121 = vmul.f32 %v89, %v89
  %v122 = vmul.f32 %v90, %v90
  %v123 = vmul.f32 %v91, %v91
  %v124 = vmul.f32 %v92, %v92
  %v125 = vmul.f32 %v93, %v93
  %v126 = vmul.f32 %v94, %v94
  %v127 = vmul.f32 %v95, %v95
  %v128 = vmul.f32 %v96, %v96
  %v129 = vmul.f32 %v97, %v97
  %v130 = vmul.f32 %v98, %v98
  %v131 = vmul.f32 %v99, %v99
  %v132 = vmul.f32 %v100, %v100
  %v133 = vmul.f32 %v101, %v101
  %v134 = vmul.f32 %v102, %v102
  %v135 = vmul.f32 %v103, %v103
  %v136 = vmul.f32 %v104, %v104
  %v137 = vmul.f32 %v105, %v105
  %v138 = vmul.f32 %v106, %v106
  %v139 = vadd.f32 %v107, %v108
  %v140 = vadd.f32 %v139, %v109
  %v141 = vadd.f32 %v140, %v110
  %v142 = vadd.f32 %v141, %v111
  %v143 = vadd.f32 %v142, %v112
  %v144 = vadd.f32 %v143, %v113
  %v145 = vadd.f32 %v144, %v114
  %v146 = vadd.f32 %v145, %v115
  %v147 = vadd.f32 %v146, %v116
  %v148 = vadd.f32 %v147, %v117
  %v149 = vadd.f32 %v148, %v118
  %v150 = vadd.f32 %v149, %v119
  %v151 = vadd.f32 %v150, %v120
  %v152 = vadd.f32 %v151, %v121
  %v153 = vadd.f32 %v152, %v122
  %v154 = vadd.f32 %v153, %v123
  %v155 = vadd.f32 %v154, %v124
  %v156 = vadd.f32 %v155, %v125
  %v157 = vadd.f32 %v156, %v126
  %v158 = vadd.f32 %v157, %v127
  %v159 = vadd.f32 %v158, %v128
  %v160 = vadd.f32 %v159, %v129
  %v161 = vadd.f32 %v160, %v130
  %v162 = vadd.f32 %v161, %v131
  %v163 = vadd.f32 %v162, %v132
  %v164 = vadd.f32 %v163, %v133
  %v165 = vadd.f32 %v164, %v134
  %v166 = vadd.f32 %v165, %v135
  %v167 = vadd.f32 %v166, %v136
  %v168 = vadd.f32 %v167, %v137
  %v169 = vadd.f32 %v168, %v138
  %170 = vadd.xlane.f32.xlu0 %v169
  %v171 = vpop.xlane.xlu0 %170
  %v172 = vmul.f32 %v171, %v73
  %v173 = vadd.f32 %v172, 1e-05
  %v174 = vrsqrt.pop %v173
  %v175 = vmul.f32 %v75, %v174
  %v176 = vmul.f32 %v76, %v174
  %v177 = vmul.f32 %v77, %v174
  %v178 = vmul.f32 %v78, %v174
  %v179 = vmul.f32 %v79, %v174
  %v180 = vmul.f32 %v80, %v174
  %v181 = vmul.f32 %v81, %v174
  %v182 = vmul.f32 %v82, %v174
  %v183 = vmul.f32 %v83, %v174
  %v184 = vmul.f32 %v84, %v174
  %v185 = vmul.f32 %v85, %v174
  %v186 = vmul.f32 %v86, %v174
  %v187 = vmul.f32 %v87, %v174
  %v188 = vmul.f32 %v88, %v174
  %v189 = vmul.f32 %v89, %v174
  %v190 = vmul.f32 %v90, %v174
  %v191 = vmul.f32 %v91, %v174
  %v192 = vmul.f32 %v92, %v174
  %v193 = vmul.f32 %v93, %v174
  %v194 = vmul.f32 %v94, %v174
  %v195 = vmul.f32 %v95, %v174
  %v196 = vmul.f32 %v96, %v174
  %v197 = vmul.f32 %v97, %v174
  %v198 = vmul.f32 %v98, %v174
  %v199 = vmul.f32 %v99, %v174
  %v200 = vmul.f32 %v100, %v174
  %v201 = vmul.f32 %v101, %v174
  %v202 = vmul.f32 %v102, %v174
  %v203 = vmul.f32 %v103, %v174
  %v204 = vmul.f32 %v104, %v174
  %v205 = vmul.f32 %v105, %v174
  %v206 = vmul.f32 %v106, %v174
  %v207 = vmax.f32 %v175, 0.0
  %v208 = vmax.f32 %v176, 0.0
  %v209 = vmax.f32 %v177, 0.0
  %v210 = vmax.f32 %v178, 0.0
  %v211 = vmax.f32 %v179, 0.0
  %v212 = vmax.f32 %v180, 0.0
  %v213 = vmax.f32 %v181, 0.0
  %v214 = vmax.f32 %v182, 0.0
  %v215 = vmax.f32 %v183, 0.0
  %v216 = vmax.f32 %v184, 0.0
  %v217 = vmax.f32 %v185, 0.0
  %v218 = vmax.f32 %v186, 0.0
  %v219 = vmax.f32 %v187, 0.0
  %v220 = vmax.f32 %v188, 0.0
  %v221 = vmax.f32 %v189, 0.0
  %v222 = vmax.f32 %v190, 0.0
  %v223 = vmax.f32 %v191, 0.0
  %v224 = vmax.f32 %v192, 0.0
  %v225 = vmax.f32 %v193, 0.0
  %v226 = vmax.f32 %v194, 0.0
  %v227 = vmax.f32 %v195, 0.0
  %v228 = vmax.f32 %v196, 0.0
  %v229 = vmax.f32 %v197, 0.0
  %v230 = vmax.f32 %v198, 0.0
  %v231 = vmax.f32 %v199, 0.0
  %v232 = vmax.f32 %v200, 0.0
  %v233 = vmax.f32 %v201, 0.0
  %v234 = vmax.f32 %v202, 0.0
  %v235 = vmax.f32 %v203, 0.0
  %v236 = vmax.f32 %v204, 0.0
  %v237 = vmax.f32 %v205, 0.0
  %v238 = vmax.f32 %v206, 0.0
  %239 = vst [vmem:[%s1] sm:$0xff] %v207
  %240 = vst [vmem:[%s1 + $0x8] sm:$0xff] %v208
  %241 = vst [vmem:[%s1 + $0x10] sm:$0xff] %v209
  %242 = vst [vmem:[%s1 + $0x18] sm:$0xff] %v210
  %243 = vst [vmem:[%s1 + $0x20] sm:$0xff] %v211
  %244 = vst [vmem:[%s1 + $0x28] sm:$0xff] %v212
  %245 = vst [vmem:[%s1 + $0x30] sm:$0xff] %v213
  %246 = vst [vmem:[%s1 + $0x38] sm:$0xff] %v214
  %247 = vst [vmem:[%s1 + $0x40] sm:$0xff] %v215
  %248 = vst [vmem:[%s1 + $0x48] sm:$0xff] %v216
  %249 = vst [vmem:[%s1 + $0x50] sm:$0xff] %v217
  %250 = vst [vmem:[%s1 + $0x58] sm:$0xff] %v218
  %251 = vst [vmem:[%s1 + $0x60] sm:$0xff] %v219
  %252 = vst [vmem:[%s1 + $0x68] sm:$0xff] %v220
  %253 = vst [vmem:[%s1 + $0x70] sm:$0xff] %v221
  %254 = vst [vmem:[%s1 + $0x78] sm:$0xff] %v222
  %255 = vst [vmem:[%s1 + $0x80] sm:$0xff] %v223
  %256 = vst [vmem:[%s1 + $0x88] sm:$0xff] %v224
  %257 = vst [vmem:[%s1 + $0x90] sm:$0xff] %v225
  %258 = vst [vmem:[%s1 + $0x98] sm:$0xff] %v226
  %259 = vst [vmem:[%s1 + $0xa0] sm:$0xff] %v227
  %260 = vst [vmem:[%s1 + $0xa8] sm:$0xff] %v228
  %261 = vst [vmem:[%s1 + $0xb0] sm:$0xff] %v229
  %262 = vst [vmem:[%s1 + $0xb8] sm:$0xff] %v230
  %263 = vst [vmem:[%s1 + $0xc0] sm:$0xff] %v231
  %264 = vst [vmem:[%s1 + $0xc8] sm:$0xff] %v232
  %265 = vst [vmem:[%s1 + $0xd0] sm:$0xff] %v233
  %266 = vst [vmem:[%s1 + $0xd8] sm:$0xff] %v234
  %267 = vst [vmem:[%s1 + $0xe0] sm:$0xff] %v235
  %268 = vst [vmem:[%s1 + $0xe8] sm:$0xff] %v236
  %269 = vst [vmem:[%s1 + $0xf0] sm:$0xff] %v237
  %270 = vst [vmem:[%s1 + $0xf8] sm:$0xff] %v238
  // Predicated region
  $region6: #{mlsp.48} parent=0 // pred_check
    _
  $region7: #{mlsp.48} parent=0 // pred_check_branch
    %272 = sbr.rel (0) target = $region9
  $region8: #{mlsp.48} parent=0 // pred_region
    _
  $region9: #{mlsp.48} parent=0 // pred_fallthru
    _
  // Predicated region
  $region10: #{mlsp.48} parent=0 // pred_check
    _
  $region11: #{mlsp.48} parent=0 // pred_check_branch
    %274 = sbr.rel (0) target = $region13
  $region12: #{mlsp.48} parent=0 // pred_region
    _
  $region13: #{mlsp.48} parent=0 // pred_fallthru
    _

// kernel: mlsp.49
$region0: #{mlsp.49}
  #allocation0 [shape = 'u32[]', space=smem, size = 0x4, offset = 0x4, fixed_abs, tag = 'smem constant byte address 0x4 - core index']
  #allocation1 [shape = 'u32[144,128]{1,0:T(1,128)}', space=vmem, size = 0x12000, scoped, tag = 'internal scratch']
  %s0 = inlined_call_operand.vmem [shape: bf16[8192,128], index: 0, kind: input, shape index: {}]
  %s1 = inlined_call_operand.vmem [shape: bf16[128,128], index: 1, kind: input, shape index: {}]
  %s2 = inlined_call_operand.vmem [shape: f32[1,128], index: 2, kind: input, shape index: {}]
  %s3 = inlined_call_operand.vmem [shape: f32[8192,128], index: 3, kind: output, shape index: {}]
  %s4 = sld [smem:[#allocation0]]
  $region49: #{mlsp.49} parent=0
    _
  %s6 = ssub.s32 1, %s4
  %s7 = scalar_select 0, %s6, %s4
  loop: start=0, step=1, limit=34
  $region2: #{mlsp.49} parent=0 // loop_pre_header
    _
  $region3: #{mlsp.49} parent=0 // loop_header
    %s9 = sphi 0, %s13
    %p10 = scmp.ge.s32.totalorder %s9, 34
    %s16 = sphi 0, %s35
    %s17 = sphi 0, %s31
    %s18 = sphi 0, %s27
    %s19 = sphi 0, %s16
    %s20 = sphi 0, %s17
    %s21 = sphi 0, %s18
    %s22 = sphi 0, %s19
    %s23 = sphi 0, %s20
    %s24 = sphi 0, %s21
    %s40 = sphi 0, %s42
    %s43 = sphi 0, %s40
    %s44 = sphi 0, %s43
    %s60 = sphi 0, %s44
    %s68 = sphi 0, %s70
    %s71 = sphi 0, %s68
    %s72 = sphi 0, %s71
    %s88 = sphi 0, %s72
    %s94 = sphi 0, %s96
    %s97 = sphi 0, %s94
    %s98 = sphi 0, %s97
    %s114 = sphi 0, %s98
    %s122 = sphi 0, %s124
    %s125 = sphi 0, %s122
    %s126 = sphi 0, %s125
    %s142 = sphi 0, %s126
  $region4: #{mlsp.49} parent=0 // loop_header_branch
    %12 = sbr.rel (%p10) target = $region8
  $region5: #{mlsp.49} parent=0 // loop_body
    %s14 = ssub.s32 %s9, 1
    %s15 = ssub.s32 %s9, 2
    %s25 = sadd.s32 1, %s18
    %p26 = scmp.ge.s32.totalorder %s25, 1
    %s27 = scalar_select %p26, 0, %s25
    %s28 = sadd.s32 1, %s17
    %s29 = scalar_select %p26, %s28, %s17
    %p30 = scmp.ge.s32.totalorder %s29, 1
    %s31 = scalar_select %p30, 0, %s29
    %s32 = sadd.s32 1, %s16
    %s33 = scalar_select %p30, %s32, %s16
    %p34 = scmp.ge.s32.totalorder %s33, 32
    %s35 = scalar_select %p34, 0, %s33
    %s36 = ssub.s32 %s16, %s35
    %s37 = ssub.s32 %s18, %s27
    %s38 = sor.u32 %s36, %s37
    %p39 = scmp.eq.s32.totalorder %s38, 0
    %s41 = sadd.s32 %s40, 1
    %s42 = scalar_select %p39, %s40, %s41
    %p45 = pneg %p39
    %p46 = scmp.eq.s32.totalorder %s9, 31
    %p47 = por %p45, %p46
    %p48 = scmp.ne.s32.totalorder %s40, %s43
    %p49 = scmp.eq.s32.totalorder %s9, 0
    %p50 = por %p48, %p49
    %p51 = scmp.ne.s32.totalorder %s40, %s43
    %p52 = scmp.eq.s32.totalorder %s14, 31
    %p53 = por %p51, %p52
    %p54 = scmp.ne.s32.totalorder %s43, %s44
    %p55 = scmp.eq.s32.totalorder %s14, 0
    %p56 = por %p54, %p55
    %p57 = scmp.ne.s32.totalorder %s43, %s44
    %p58 = scmp.eq.s32.totalorder %s15, 31
    %p59 = por %p57, %p58
    %p61 = scmp.ne.s32.totalorder %s44, %s60
    %p62 = scmp.eq.s32.totalorder %s15, 0
    %p63 = por %p61, %p62
    %s64 = ssub.s32 %s18, %s27
    %s65 = ssub.s32 %s17, %s31
    %s66 = sor.u32 %s64, %s65
    %p67 = scmp.eq.s32.totalorder %s66, 0
    %s69 = sadd.s32 %s68, 1
    %s70 = scalar_select %p67, %s68, %s69
    %p73 = pneg %p67
    %p74 = scmp.eq.s32.totalorder %s9, 31
    %p75 = por %p73, %p74
    %p76 = scmp.ne.s32.totalorder %s68, %s71
    %p77 = scmp.eq.s32.totalorder %s9, 0
    %p78 = por %p76, %p77
    %p79 = scmp.ne.s32.totalorder %s68, %s71
    %p80 = scmp.eq.s32.totalorder %s14, 31
    %p81 = por %p79, %p80
    %p82 = scmp.ne.s32.totalorder %s71, %s72
    %p83 = scmp.eq.s32.totalorder %s14, 0
    %p84 = por %p82, %p83
    %p85 = scmp.ne.s32.totalorder %s71, %s72
    %p86 = scmp.eq.s32.totalorder %s15, 31
    %p87 = por %p85, %p86
    %p89 = scmp.ne.s32.totalorder %s72, %s88
    %p90 = scmp.eq.s32.totalorder %s15, 0
    %p91 = por %p89, %p90
    %s92 = ssub.s32 %s17, %s31
    %p93 = scmp.eq.s32.totalorder %s92, 0
    %s95 = sadd.s32 %s94, 1
    %s96 = scalar_select %p93, %s94, %s95
    %p99 = pneg %p93
    %p100 = scmp.eq.s32.totalorder %s9, 31
    %p101 = por %p99, %p100
    %p102 = scmp.ne.s32.totalorder %s94, %s97
    %p103 = scmp.eq.s32.totalorder %s9, 0
    %p104 = por %p102, %p103
    %p105 = scmp.ne.s32.totalorder %s94, %s97
    %p106 = scmp.eq.s32.totalorder %s14, 31
    %p107 = por %p105, %p106
    %p108 = scmp.ne.s32.totalorder %s97, %s98
    %p109 = scmp.eq.s32.totalorder %s14, 0
    %p110 = por %p108, %p109
    %p111 = scmp.ne.s32.totalorder %s97, %s98
    %p112 = scmp.eq.s32.totalorder %s15, 31
    %p113 = por %p111, %p112
    %p115 = scmp.ne.s32.totalorder %s98, %s114
    %p116 = scmp.eq.s32.totalorder %s15, 0
    %p117 = por %p115, %p116
    %s118 = ssub.s32 %s16, %s35
    %s119 = ssub.s32 %s17, %s31
    %s120 = sor.u32 %s118, %s119
    %p121 = scmp.eq.s32.totalorder %s120, 0
    %s123 = sadd.s32 %s122, 1
    %s124 = scalar_select %p121, %s122, %s123
    %p127 = pneg %p121
    %p128 = scmp.eq.s32.totalorder %s9, 31
    %p129 = por %p127, %p128
    %p130 = scmp.ne.s32.totalorder %s122, %s125
    %p131 = scmp.eq.s32.totalorder %s9, 0
    %p132 = por %p130, %p131
    %p133 = scmp.ne.s32.totalorder %s122, %s125
    %p134 = scmp.eq.s32.totalorder %s14, 31
    %p135 = por %p133, %p134
    %p136 = scmp.ne.s32.totalorder %s125, %s126
    %p137 = scmp.eq.s32.totalorder %s14, 0
    %p138 = por %p136, %p137
    %p139 = scmp.ne.s32.totalorder %s125, %s126
    %p140 = scmp.eq.s32.totalorder %s15, 31
    %p141 = por %p139, %p140
    %p143 = scmp.ne.s32.totalorder %s126, %s142
    %p144 = scmp.eq.s32.totalorder %s15, 0
    %p145 = por %p143, %p144
    %p146 = scmp.le.s32.totalorder 1, %s9
    %p147 = scmp.lt.s32.totalorder %s9, 33
    %p148 = pnand %p146, %p147
    %p149 = pneg %p148
    // Predicated region
    $region9: #{mlsp.49} parent=5 // pred_check
      _
    $region10: #{mlsp.49} parent=5 // pred_check_branch
      %151 = sbr.rel (%p148) target = $region12
    $region11: #{mlsp.49} parent=5 // pred_region
      %s152 = ssub.s32 %s9, 1
      // Predicated region
      $region13: #{mlsp.49} parent=11 // pred_check
        %p153 = pneg %p84
      $region14: #{mlsp.49} parent=11 // pred_check_branch
        %155 = sbr.rel (%p153) target = $region16
      $region15: #{mlsp.49} parent=11 // pred_region
        %s156 = smul.u32 16, %s21
        %p157 = scmp.lt.s32.totalorder %s156, 15
        %s158 = scalar_select %p157, %s156, 15
        %p159 = scmp.lt.s32.totalorder %s20, 0
        %s160 = scalar_select %p159, %s20, 0
        %s161 = sadd.s32 %s160, %s158
        %s162 = smul.addr %s161, 4
        %s163 = scalar_lea.vmem %s1, %s162
        %s164 = smul.u32 16, %s21
      $region16: #{mlsp.49} parent=11 // pred_fallthru
        _
      // Predicated region
      $region17: #{mlsp.49} parent=11 // pred_check
        %p165 = pneg %p110
      $region18: #{mlsp.49} parent=11 // pred_check_branch
        %167 = sbr.rel (%p165) target = $region20
      $region19: #{mlsp.49} parent=11 // pred_region
        %p168 = scmp.lt.s32.totalorder %s20, 0
        %s169 = scalar_select %p168, %s20, 0
        %s170 = scalar_lea.vmem %s2, %s169
      $region20: #{mlsp.49} parent=11 // pred_fallthru
        _
    $region12: #{mlsp.49} parent=5 // pred_fallthru
      _
    %p171 = scmp.lt.s32.totalorder %s9, 32
    // Predicated region
    $region21: #{mlsp.49} parent=5 // pred_check
      %p172 = pneg %p171
    $region22: #{mlsp.49} parent=5 // pred_check_branch
      %174 = sbr.rel (%p172) target = $region24
    $region23: #{mlsp.49} parent=5 // pred_region
      // Predicated region
      $region25: #{mlsp.49} parent=23 // pred_check
        %p175 = pneg %p50
      $region26: #{mlsp.49} parent=23 // pred_check_branch
        %177 = sbr.rel (%p175) target = $region28
      $region27: #{mlsp.49} parent=23 // pred_region
        %s178 = smul.u32 32, %s16
        %p179 = scmp.lt.s32.totalorder %s178, 1023
        %s180 = scalar_select %p179, %s178, 1023
        %p181 = scmp.lt.s32.totalorder %s18, 0
        %s182 = scalar_select %p181, %s18, 0
        %s183 = sadd.s32 %s182, %s180
        %s184 = smul.addr %s183, 4
        %s185 = scalar_lea.vmem %s0, %s184
        %s186 = smul.u32 32, %s16
      $region28: #{mlsp.49} parent=23 // pred_fallthru
        _
    $region24: #{mlsp.49} parent=5 // pred_fallthru
      _
    %p187 = scmp.le.s32.totalorder 1, %s9
    %p188 = scmp.lt.s32.totalorder %s9, 33
    %p189 = pnand %p187, %p188
    %p190 = pneg %p189
    // Predicated region
    $region29: #{mlsp.49} parent=5 // pred_check
      _
    $region30: #{mlsp.49} parent=5 // pred_check_branch
      %192 = sbr.rel (%p189) target = $region32
    $region31: #{mlsp.49} parent=5 // pred_region
      %s193 = ssub.s32 %s9, 1
      %s194 = smul.u32 32, %s19
      %p195 = scmp.lt.s32.totalorder %s194, 1023
      %s196 = scalar_select %p195, %s194, 1023
      %p197 = scmp.lt.s32.totalorder %s21, 0
      %s198 = scalar_select %p197, %s21, 0
      %s199 = sadd.s32 %s198, %s196
      %s200 = smul.addr %s199, 4
      %s201 = scalar_lea.vmem %s0, %s200
      %p202 = pneg %p56
      %p203 = pneg %p53
      %s204 = smul.u32 16, %s21
      %p205 = scmp.lt.s32.totalorder %s204, 15
      %s206 = scalar_select %p205, %s204, 15
      %p207 = scmp.lt.s32.totalorder %s20, 0
      %s208 = scalar_select %p207, %s20, 0
      %s209 = sadd.s32 %s208, %s206
      %s210 = smul.addr %s209, 4
      %s211 = scalar_lea.vmem %s1, %s210
      %p212 = pneg %p84
      %p213 = pneg %p81
      %p214 = scmp.lt.s32.totalorder %s20, 0
      %s215 = scalar_select %p214, %s20, 0
      %s216 = scalar_lea.vmem %s2, %s215
      %p217 = pneg %p110
      %p218 = pneg %p107
      %p219 = pneg %p138
      %p220 = pneg %p135
      %s221 = smul.u32 32, %s19
      %p222 = scmp.lt.s32.totalorder %s221, 1023
      %s223 = scalar_select %p222, %s221, 1023
      %p224 = scmp.lt.s32.totalorder %s20, 0
      %s225 = scalar_select %p224, %s20, 0
      %s226 = sadd.s32 %s225, %s223
      %s227 = smul.addr %s226, 8
      %s228 = scalar_lea.vmem %s3, %s227
      %s229 = smul.u32 32, %s19
      %p230 = scmp.lt.s32.totalorder %s229, 1023
      %s231 = scalar_select %p230, %s229, 1023
      %p232 = scmp.lt.s32.totalorder %s21, 0
      %s233 = scalar_select %p232, %s21, 0
      %s234 = sadd.s32 %s233, %s231
      %s235 = smul.addr %s234, 4
      %s236 = scalar_lea.vmem %s0, %s235
      %s237 = smul.u32 32, %s19
      %s238 = smul.u32 16, %s21
      %p239 = scmp.lt.s32.totalorder %s238, 15
      %s240 = scalar_select %p239, %s238, 15
      %p241 = scmp.lt.s32.totalorder %s20, 0
      %s242 = scalar_select %p241, %s20, 0
      %s243 = sadd.s32 %s242, %s240
      %s244 = smul.addr %s243, 4
      %s245 = scalar_lea.vmem %s1, %s244
      %s246 = smul.u32 16, %s21
      %p247 = scmp.lt.s32.totalorder %s20, 0
      %s248 = scalar_select %p247, %s20, 0
      %s249 = scalar_lea.vmem %s2, %s248
      %s250 = smul.u32 32, %s19
      %p251 = scmp.lt.s32.totalorder %s250, 1023
      %s252 = scalar_select %p251, %s250, 1023
      %p253 = scmp.lt.s32.totalorder %s20, 0
      %s254 = scalar_select %p253, %s20, 0
      %s255 = sadd.s32 %s254, %s252
      %s256 = smul.addr %s255, 8
      %s257 = scalar_lea.vmem %s3, %s256
      %s258 = smul.u32 32, %s19
      %p260 = scmp.eq.s32.totalorder %s21, 0
      // Predicated region
      $region33: #{mlsp.49} parent=31 // pred_check
        %p261 = pneg %p260
      $region34: #{mlsp.49} parent=31 // pred_check_branch
        %263 = sbr.rel (%p261) target = $region36
      $region35: #{mlsp.49} parent=31 // pred_region
        %v264 = vld [vmem:[%s249] sm:$0x1]
        %v266 = vlaneseq
        %v267 = vshrl.u32 %v266, 7
        %v268 = vsub.s32 0, %v267
        %v269 = vrot.slane %v264, %v268
        %271 = vst [vmem:[%s257] sm:$0xff] %v269
        %272 = vst [vmem:[%s257 + $0x8] sm:$0xff] %v269
        %273 = vst [vmem:[%s257 + $0x10] sm:$0xff] %v269
        %274 = vst [vmem:[%s257 + $0x18] sm:$0xff] %v269
        %275 = vst [vmem:[%s257 + $0x20] sm:$0xff] %v269
        %276 = vst [vmem:[%s257 + $0x28] sm:$0xff] %v269
        %277 = vst [vmem:[%s257 + $0x30] sm:$0xff] %v269
        %278 = vst [vmem:[%s257 + $0x38] sm:$0xff] %v269
        %279 = vst [vmem:[%s257 + $0x40] sm:$0xff] %v269
        %280 = vst [vmem:[%s257 + $0x48] sm:$0xff] %v269
        %281 = vst [vmem:[%s257 + $0x50] sm:$0xff] %v269
        %282 = vst [vmem:[%s257 + $0x58] sm:$0xff] %v269
        %283 = vst [vmem:[%s257 + $0x60] sm:$0xff] %v269
        %284 = vst [vmem:[%s257 + $0x68] sm:$0xff] %v269
        %285 = vst [vmem:[%s257 + $0x70] sm:$0xff] %v269
        %286 = vst [vmem:[%s257 + $0x78] sm:$0xff] %v269
        %287 = vst [vmem:[%s257 + $0x80] sm:$0xff] %v269
        %288 = vst [vmem:[%s257 + $0x88] sm:$0xff] %v269
        %289 = vst [vmem:[%s257 + $0x90] sm:$0xff] %v269
        %290 = vst [vmem:[%s257 + $0x98] sm:$0xff] %v269
        %291 = vst [vmem:[%s257 + $0xa0] sm:$0xff] %v269
        %292 = vst [vmem:[%s257 + $0xa8] sm:$0xff] %v269
        %293 = vst [vmem:[%s257 + $0xb0] sm:$0xff] %v269
        %294 = vst [vmem:[%s257 + $0xb8] sm:$0xff] %v269
        %295 = vst [vmem:[%s257 + $0xc0] sm:$0xff] %v269
        %296 = vst [vmem:[%s257 + $0xc8] sm:$0xff] %v269
        %297 = vst [vmem:[%s257 + $0xd0] sm:$0xff] %v269
        %298 = vst [vmem:[%s257 + $0xd8] sm:$0xff] %v269
        %299 = vst [vmem:[%s257 + $0xe0] sm:$0xff] %v269
        %300 = vst [vmem:[%s257 + $0xe8] sm:$0xff] %v269
        %301 = vst [vmem:[%s257 + $0xf0] sm:$0xff] %v269
        %302 = vst [vmem:[%s257 + $0xf8] sm:$0xff] %v269
      $region36: #{mlsp.49} parent=31 // pred_fallthru
        _
      %v303 = vld [vmem:[%s257] sm:$0xff]
      %v304 = vld [vmem:[%s257 + $0x8] sm:$0xff]
      %v305 = vld [vmem:[%s257 + $0x10] sm:$0xff]
      %v306 = vld [vmem:[%s257 + $0x18] sm:$0xff]
      %v307 = vld [vmem:[%s257 + $0x20] sm:$0xff]
      %v308 = vld [vmem:[%s257 + $0x28] sm:$0xff]
      %v309 = vld [vmem:[%s257 + $0x30] sm:$0xff]
      %v310 = vld [vmem:[%s257 + $0x38] sm:$0xff]
      %v311 = vld [vmem:[%s257 + $0x40] sm:$0xff]
      %v312 = vld [vmem:[%s257 + $0x48] sm:$0xff]
      %v313 = vld [vmem:[%s257 + $0x50] sm:$0xff]
      %v314 = vld [vmem:[%s257 + $0x58] sm:$0xff]
      %v315 = vld [vmem:[%s257 + $0x60] sm:$0xff]
      %v316 = vld [vmem:[%s257 + $0x68] sm:$0xff]
      %v317 = vld [vmem:[%s257 + $0x70] sm:$0xff]
      %v318 = vld [vmem:[%s257 + $0x78] sm:$0xff]
      %v319 = vld [vmem:[%s257 + $0x80] sm:$0xff]
      %v320 = vld [vmem:[%s257 + $0x88] sm:$0xff]
      %v321 = vld [vmem:[%s257 + $0x90] sm:$0xff]
      %v322 = vld [vmem:[%s257 + $0x98] sm:$0xff]
      %v323 = vld [vmem:[%s257 + $0xa0] sm:$0xff]
      %v324 = vld [vmem:[%s257 + $0xa8] sm:$0xff]
      %v325 = vld [vmem:[%s257 + $0xb0] sm:$0xff]
      %v326 = vld [vmem:[%s257 + $0xb8] sm:$0xff]
      %v327 = vld [vmem:[%s257 + $0xc0] sm:$0xff]
      %v328 = vld [vmem:[%s257 + $0xc8] sm:$0xff]
      %v329 = vld [vmem:[%s257 + $0xd0] sm:$0xff]
      %v330 = vld [vmem:[%s257 + $0xd8] sm:$0xff]
      %v331 = vld [vmem:[%s257 + $0xe0] sm:$0xff]
      %v332 = vld [vmem:[%s257 + $0xe8] sm:$0xff]
      %v333 = vld [vmem:[%s257 + $0xf0] sm:$0xff]
      %v334 = vld [vmem:[%s257 + $0xf8] sm:$0xff]
      %v335 = vld [vmem:[%s236] sm:$0xf]
      %v336 = vld [vmem:[%s236 + $0x4] sm:$0xf]
      %v337 = vld [vmem:[%s236 + $0x8] sm:$0xf]
      %v338 = vld [vmem:[%s236 + $0xc] sm:$0xf]
      %v339 = vld [vmem:[%s236 + $0x10] sm:$0xf]
      %v340 = vld [vmem:[%s236 + $0x14] sm:$0xf]
      %v341 = vld [vmem:[%s236 + $0x18] sm:$0xf]
      %v342 = vld [vmem:[%s236 + $0x1c] sm:$0xf]
      %v343 = vld [vmem:[%s236 + $0x20] sm:$0xf]
      %v344 = vld [vmem:[%s236 + $0x24] sm:$0xf]
      %v345 = vld [vmem:[%s236 + $0x28] sm:$0xf]
      %v346 = vld [vmem:[%s236 + $0x2c] sm:$0xf]
      %v347 = vld [vmem:[%s236 + $0x30] sm:$0xf]
      %v348 = vld [vmem:[%s236 + $0x34] sm:$0xf]
      %v349 = vld [vmem:[%s236 + $0x38] sm:$0xf]
      %v350 = vld [vmem:[%s236 + $0x3c] sm:$0xf]
      %v351 = vld [vmem:[%s236 + $0x40] sm:$0xf]
      %v352 = vld [vmem:[%s236 + $0x44] sm:$0xf]
      %v353 = vld [vmem:[%s236 + $0x48] sm:$0xf]
      %v354 = vld [vmem:[%s236 + $0x4c] sm:$0xf]
      %v355 = vld [vmem:[%s236 + $0x50] sm:$0xf]
      %v356 = vld [vmem:[%s236 + $0x54] sm:$0xf]
      %v357 = vld [vmem:[%s236 + $0x58] sm:$0xf]
      %v358 = vld [vmem:[%s236 + $0x5c] sm:$0xf]
      %v359 = vld [vmem:[%s236 + $0x60] sm:$0xf]
      %v360 = vld [vmem:[%s236 + $0x64] sm:$0xf]
      %v361 = vld [vmem:[%s236 + $0x68] sm:$0xf]
      %v362 = vld [vmem:[%s236 + $0x6c] sm:$0xf]
      %v363 = vld [vmem:[%s236 + $0x70] sm:$0xf]
      %v364 = vld [vmem:[%s236 + $0x74] sm:$0xf]
      %v365 = vld [vmem:[%s236 + $0x78] sm:$0xf]
      %v366 = vld [vmem:[%s236 + $0x7c] sm:$0xf]
      %v367 = vld [vmem:[%s245] sm:$0xf]
      %v368 = vld [vmem:[%s245 + $0x4] sm:$0xf]
      %v369 = vld [vmem:[%s245 + $0x8] sm:$0xf]
      %v370 = vld [vmem:[%s245 + $0xc] sm:$0xf]
      %v371 = vld [vmem:[%s245 + $0x10] sm:$0xf]
      %v372 = vld [vmem:[%s245 + $0x14] sm:$0xf]
      %v373 = vld [vmem:[%s245 + $0x18] sm:$0xf]
      %v374 = vld [vmem:[%s245 + $0x1c] sm:$0xf]
      %v375 = vld [vmem:[%s245 + $0x20] sm:$0xf]
      %v376 = vld [vmem:[%s245 + $0x24] sm:$0xf]
      %v377 = vld [vmem:[%s245 + $0x28] sm:$0xf]
      %v378 = vld [vmem:[%s245 + $0x2c] sm:$0xf]
      %v379 = vld [vmem:[%s245 + $0x30] sm:$0xf]
      %v380 = vld [vmem:[%s245 + $0x34] sm:$0xf]
      %v381 = vld [vmem:[%s245 + $0x38] sm:$0xf]
      %v382 = vld [vmem:[%s245 + $0x3c] sm:$0xf]
      %v415 = vunpack.c.l.b16 %v335
      %v416 = vunpack.c.l.b16 %v336
      %v417 = vunpack.c.l.b16 %v337
      %v418 = vunpack.c.l.b16 %v338
      %v419 = vunpack.c.l.b16 %v339
      %v420 = vunpack.c.l.b16 %v340
      %v421 = vunpack.c.l.b16 %v341
      %v422 = vunpack.c.l.b16 %v342
      %v423 = vunpack.c.l.b16 %v343
      %v424 = vunpack.c.l.b16 %v344
      %v425 = vunpack.c.l.b16 %v345
      %v426 = vunpack.c.l.b16 %v346
      %v427 = vunpack.c.l.b16 %v347
      %v428 = vunpack.c.l.b16 %v348
      %v429 = vunpack.c.l.b16 %v349
      %v430 = vunpack.c.l.b16 %v350
      %v431 = vunpack.c.l.b16 %v351
      %v432 = vunpack.c.l.b16 %v352
      %v433 = vunpack.c.l.b16 %v353
      %v434 = vunpack.c.l.b16 %v354
      %v435 = vunpack.c.l.b16 %v355
      %v436 = vunpack.c.l.b16 %v356
      %v437 = vunpack.c.l.b16 %v357
      %v438 = vunpack.c.l.b16 %v358
      %v439 = vunpack.c.l.b16 %v359
      %v440 = vunpack.c.l.b16 %v360
      %v441 = vunpack.c.l.b16 %v361
      %v442 = vunpack.c.l.b16 %v362
      %v443 = vunpack.c.l.b16 %v363
      %v444 = vunpack.c.l.b16 %v364
      %v445 = vunpack.c.l.b16 %v365
      %v446 = vunpack.c.l.b16 %v366
      %v447 = vpack.c.b16 %v416, %v415
      %v448 = vpack.c.b16 %v418, %v417
      %v449 = vpack.c.b16 %v420, %v419
      %v450 = vpack.c.b16 %v422, %v421
      %v451 = vpack.c.b16 %v424, %v423
      %v452 = vpack.c.b16 %v426, %v425
      %v453 = vpack.c.b16 %v428, %v427
      %v454 = vpack.c.b16 %v430, %v429
      %v455 = vpack.c.b16 %v432, %v431
      %v456 = vpack.c.b16 %v434, %v433
      %v457 = vpack.c.b16 %v436, %v435
      %v458 = vpack.c.b16 %v438, %v437
      %v459 = vpack.c.b16 %v440, %v439
      %v460 = vpack.c.b16 %v442, %v441
      %v461 = vpack.c.b16 %v444, %v443
      %v462 = vpack.c.b16 %v446, %v445
      %v495 = vunpack.c.l.b16 %v367
      %v496 = vunpack.c.l.b16 %v368
      %v497 = vunpack.c.l.b16 %v369
      %v498 = vunpack.c.l.b16 %v370
      %v499 = vunpack.c.l.b16 %v371
      %v500 = vunpack.c.l.b16 %v372
      %v501 = vunpack.c.l.b16 %v373
      %v502 = vunpack.c.l.b16 %v374
      %v503 = vunpack.c.l.b16 %v375
      %v504 = vunpack.c.l.b16 %v376
      %v505 = vunpack.c.l.b16 %v377
      %v506 = vunpack.c.l.b16 %v378
      %v507 = vunpack.c.l.b16 %v379
      %v508 = vunpack.c.l.b16 %v380
      %v509 = vunpack.c.l.b16 %v381
      %v510 = vunpack.c.l.b16 %v382
      %v511 = vpack.c.b16 %v496, %v495
      %v512 = vpack.c.b16 %v498, %v497
      %v513 = vpack.c.b16 %v500, %v499
      %v514 = vpack.c.b16 %v502, %v501
      %v515 = vpack.c.b16 %v504, %v503
      %v516 = vpack.c.b16 %v506, %v505
      %v517 = vpack.c.b16 %v508, %v507
      %v518 = vpack.c.b16 %v510, %v509
      %527 = vmatprep.subr.bf16.mxu0 0
      %528 = vmatpush1.bf16.msra.mxu0 %v518
      %529 = vmatprep.subr.bf16.mxu0 0
      %530 = vmatpush1.bf16.msra.mxu0 %v517
      %531 = vmatprep.subr.bf16.mxu0 0
      %532 = vmatpush1.bf16.msra.mxu0 %v516
      %533 = vmatprep.subr.bf16.mxu0 0
      %534 = vmatpush1.bf16.msra.mxu0 %v515
      %535 = vmatprep.subr.bf16.mxu0 0
      %536 = vmatpush1.bf16.msra.mxu0 %v514
      %537 = vmatprep.subr.bf16.mxu0 0
      %538 = vmatpush1.bf16.msra.mxu0 %v513
      %539 = vmatprep.subr.bf16.mxu0 0
      %540 = vmatpush1.bf16.msra.mxu0 %v512
      %541 = vmatprep.subr.bf16.mxu0 0
      %542 = vmatpush1.bf16.msra.mxu0 %v511
      %543 = vmatprep.subr.bf16.mxu0 0
      %544 = vmatpush2.bf16.msra.mxu0 0
      %545 = vmatprep.subr.bf16.mxu0 0
      %546 = vmatpush2.bf16.msra.mxu0 0
      %547 = vmatprep.subr.bf16.mxu0 0
      %548 = vmatpush2.bf16.msra.mxu0 0
      %549 = vmatprep.subr.bf16.mxu0 0
      %550 = vmatpush2.bf16.msra.mxu0 0
      %551 = vmatprep.subr.bf16.mxu0 0
      %552 = vmatpush2.bf16.msra.mxu0 0
      %553 = vmatprep.subr.bf16.mxu0 0
      %554 = vmatpush2.bf16.msra.mxu0 0
      %555 = vmatprep.subr.bf16.mxu0 0
      %556 = vmatpush2.bf16.msra.mxu0 0
      %557 = vmatprep.subr.bf16.mxu0 0
      %558 = vmatpush2.bf16.msra.mxu0 0
      %559 = vmatprep.mubr.bf16.mxu0 0
      %560 = vmatmul.mubr.bf16.gmra.mxu0 %v447
      %v561 = vpop.f32.mrf.mxu0
      %v562 = vadd.f32 0.0, %v561
      %v563 = vpop.f32.mrf.mxu0
      %v564 = vpop.f32.mrf.mxu0
      %v565 = vadd.f32 0.0, %v564
      %v566 = vpop.f32.mrf.mxu0
      %567 = vmatprep.mubr.bf16.mxu0 0
      %568 = vmatmul.mubr.bf16.gmra.mxu0 %v448
      %v569 = vpop.f32.mrf.mxu0
      %v570 = vadd.f32 0.0, %v569
      %v571 = vpop.f32.mrf.mxu0
      %v572 = vpop.f32.mrf.mxu0
      %v573 = vadd.f32 0.0, %v572
      %v574 = vpop.f32.mrf.mxu0
      %575 = vmatprep.mubr.bf16.mxu0 0
      %576 = vmatmul.mubr.bf16.gmra.mxu0 %v449
      %v577 = vpop.f32.mrf.mxu0
      %v578 = vadd.f32 0.0, %v577
      %v579 = vpop.f32.mrf.mxu0
      %v580 = vpop.f32.mrf.mxu0
      %v581 = vadd.f32 0.0, %v580
      %v582 = vpop.f32.mrf.mxu0
      %583 = vmatprep.mubr.bf16.mxu0 0
      %584 = vmatmul.mubr.bf16.gmra.mxu0 %v450
      %v585 = vpop.f32.mrf.mxu0
      %v586 = vadd.f32 0.0, %v585
      %v587 = vpop.f32.mrf.mxu0
      %v588 = vpop.f32.mrf.mxu0
      %v589 = vadd.f32 0.0, %v588
      %v590 = vpop.f32.mrf.mxu0
      %591 = vmatprep.mubr.bf16.mxu0 0
      %592 = vmatmul.mubr.bf16.gmra.mxu0 %v451
      %v593 = vpop.f32.mrf.mxu0
      %v594 = vadd.f32 0.0, %v593
      %v595 = vpop.f32.mrf.mxu0
      %v596 = vpop.f32.mrf.mxu0
      %v597 = vadd.f32 0.0, %v596
      %v598 = vpop.f32.mrf.mxu0
      %599 = vmatprep.mubr.bf16.mxu0 0
      %600 = vmatmul.mubr.bf16.gmra.mxu0 %v452
      %v601 = vpop.f32.mrf.mxu0
      %v602 = vadd.f32 0.0, %v601
      %v603 = vpop.f32.mrf.mxu0
      %v604 = vpop.f32.mrf.mxu0
      %v605 = vadd.f32 0.0, %v604
      %v606 = vpop.f32.mrf.mxu0
      %607 = vmatprep.mubr.bf16.mxu0 0
      %608 = vmatmul.mubr.bf16.gmra.mxu0 %v453
      %v609 = vpop.f32.mrf.mxu0
      %v610 = vadd.f32 0.0, %v609
      %v611 = vpop.f32.mrf.mxu0
      %v612 = vpop.f32.mrf.mxu0
      %v613 = vadd.f32 0.0, %v612
      %v614 = vpop.f32.mrf.mxu0
      %615 = vmatprep.mubr.bf16.mxu0 0
      %616 = vmatmul.mubr.bf16.gmra.mxu0 %v454
      %v617 = vpop.f32.mrf.mxu0
      %v618 = vadd.f32 0.0, %v617
      %v619 = vpop.f32.mrf.mxu0
      %v620 = vpop.f32.mrf.mxu0
      %v621 = vadd.f32 0.0, %v620
      %v622 = vpop.f32.mrf.mxu0
      %623 = vmatprep.mubr.bf16.mxu0 0
      %624 = vmatmul.mubr.bf16.gmra.mxu0 %v455
      %v625 = vpop.f32.mrf.mxu0
      %v626 = vadd.f32 0.0, %v625
      %v627 = vpop.f32.mrf.mxu0
      %v628 = vpop.f32.mrf.mxu0
      %v629 = vadd.f32 0.0, %v628
      %v630 = vpop.f32.mrf.mxu0
      %631 = vmatprep.mubr.bf16.mxu0 0
      %632 = vmatmul.mubr.bf16.gmra.mxu0 %v456
      %v633 = vpop.f32.mrf.mxu0
      %v634 = vadd.f32 0.0, %v633
      %v635 = vpop.f32.mrf.mxu0
      %v636 = vpop.f32.mrf.mxu0
      %v637 = vadd.f32 0.0, %v636
      %v638 = vpop.f32.mrf.mxu0
      %639 = vmatprep.mubr.bf16.mxu0 0
      %640 = vmatmul.mubr.bf16.gmra.mxu0 %v457
      %v641 = vpop.f32.mrf.mxu0
      %v642 = vadd.f32 0.0, %v641
      %v643 = vpop.f32.mrf.mxu0
      %v644 = vpop.f32.mrf.mxu0
      %v645 = vadd.f32 0.0, %v644
      %v646 = vpop.f32.mrf.mxu0
      %647 = vmatprep.mubr.bf16.mxu0 0
      %648 = vmatmul.mubr.bf16.gmra.mxu0 %v458
      %v649 = vpop.f32.mrf.mxu0
      %v650 = vadd.f32 0.0, %v649
      %v651 = vpop.f32.mrf.mxu0
      %v652 = vpop.f32.mrf.mxu0
      %v653 = vadd.f32 0.0, %v652
      %v654 = vpop.f32.mrf.mxu0
      %655 = vmatprep.mubr.bf16.mxu0 0
      %656 = vmatmul.mubr.bf16.gmra.mxu0 %v459
      %v657 = vpop.f32.mrf.mxu0
      %v658 = vadd.f32 0.0, %v657
      %v659 = vpop.f32.mrf.mxu0
      %v660 = vpop.f32.mrf.mxu0
      %v661 = vadd.f32 0.0, %v660
      %v662 = vpop.f32.mrf.mxu0
      %663 = vmatprep.mubr.bf16.mxu0 0
      %664 = vmatmul.mubr.bf16.gmra.mxu0 %v460
      %v665 = vpop.f32.mrf.mxu0
      %v666 = vadd.f32 0.0, %v665
      %v667 = vpop.f32.mrf.mxu0
      %v668 = vpop.f32.mrf.mxu0
      %v669 = vadd.f32 0.0, %v668
      %v670 = vpop.f32.mrf.mxu0
      %671 = vmatprep.mubr.bf16.mxu0 0
      %672 = vmatmul.mubr.bf16.gmra.mxu0 %v461
      %v673 = vpop.f32.mrf.mxu0
      %v674 = vadd.f32 0.0, %v673
      %v675 = vpop.f32.mrf.mxu0
      %v676 = vpop.f32.mrf.mxu0
      %v677 = vadd.f32 0.0, %v676
      %v678 = vpop.f32.mrf.mxu0
      %679 = vmatprep.mubr.bf16.mxu0 0
      %680 = vmatmul.mubr.bf16.gmra.mxu0 %v462
      %v681 = vpop.f32.mrf.mxu0
      %v682 = vadd.f32 0.0, %v681
      %v683 = vpop.f32.mrf.mxu0
      %v684 = vpop.f32.mrf.mxu0
      %v685 = vadd.f32 0.0, %v684
      %v686 = vpop.f32.mrf.mxu0
      %687 = vdwg.mxu0
      %v688 = vadd.f32 %v303, %v562
      %v689 = vadd.f32 %v304, %v565
      %v690 = vadd.f32 %v305, %v570
      %v691 = vadd.f32 %v306, %v573
      %v692 = vadd.f32 %v307, %v578
      %v693 = vadd.f32 %v308, %v581
      %v694 = vadd.f32 %v309, %v586
      %v695 = vadd.f32 %v310, %v589
      %v696 = vadd.f32 %v311, %v594
      %v697 = vadd.f32 %v312, %v597
      %v698 = vadd.f32 %v313, %v602
      %v699 = vadd.f32 %v314, %v605
      %v700 = vadd.f32 %v315, %v610
      %v701 = vadd.f32 %v316, %v613
      %v702 = vadd.f32 %v317, %v618
      %v703 = vadd.f32 %v318, %v621
      %v704 = vadd.f32 %v319, %v626
      %v705 = vadd.f32 %v320, %v629
      %v706 = vadd.f32 %v321, %v634
      %v707 = vadd.f32 %v322, %v637
      %v708 = vadd.f32 %v323, %v642
      %v709 = vadd.f32 %v324, %v645
      %v710 = vadd.f32 %v325, %v650
      %v711 = vadd.f32 %v326, %v653
      %v712 = vadd.f32 %v327, %v658
      %v713 = vadd.f32 %v328, %v661
      %v714 = vadd.f32 %v329, %v666
      %v715 = vadd.f32 %v330, %v669
      %v716 = vadd.f32 %v331, %v674
      %v717 = vadd.f32 %v332, %v677
      %v718 = vadd.f32 %v333, %v682
      %v719 = vadd.f32 %v334, %v685
      %720 = vst [vmem:[%s257] sm:$0xff] %v688
      %721 = vst [vmem:[%s257 + $0x8] sm:$0xff] %v689
      %722 = vst [vmem:[%s257 + $0x10] sm:$0xff] %v690
      %723 = vst [vmem:[%s257 + $0x18] sm:$0xff] %v691
      %724 = vst [vmem:[%s257 + $0x20] sm:$0xff] %v692
      %725 = vst [vmem:[%s257 + $0x28] sm:$0xff] %v693
      %726 = vst [vmem:[%s257 + $0x30] sm:$0xff] %v694
      %727 = vst [vmem:[%s257 + $0x38] sm:$0xff] %v695
      %728 = vst [vmem:[%s257 + $0x40] sm:$0xff] %v696
      %729 = vst [vmem:[%s257 + $0x48] sm:$0xff] %v697
      %730 = vst [vmem:[%s257 + $0x50] sm:$0xff] %v698
      %731 = vst [vmem:[%s257 + $0x58] sm:$0xff] %v699
      %732 = vst [vmem:[%s257 + $0x60] sm:$0xff] %v700
      %733 = vst [vmem:[%s257 + $0x68] sm:$0xff] %v701
      %734 = vst [vmem:[%s257 + $0x70] sm:$0xff] %v702
      %735 = vst [vmem:[%s257 + $0x78] sm:$0xff] %v703
      %736 = vst [vmem:[%s257 + $0x80] sm:$0xff] %v704
      %737 = vst [vmem:[%s257 + $0x88] sm:$0xff] %v705
      %738 = vst [vmem:[%s257 + $0x90] sm:$0xff] %v706
      %739 = vst [vmem:[%s257 + $0x98] sm:$0xff] %v707
      %740 = vst [vmem:[%s257 + $0xa0] sm:$0xff] %v708
      %741 = vst [vmem:[%s257 + $0xa8] sm:$0xff] %v709
      %742 = vst [vmem:[%s257 + $0xb0] sm:$0xff] %v710
      %743 = vst [vmem:[%s257 + $0xb8] sm:$0xff] %v711
      %744 = vst [vmem:[%s257 + $0xc0] sm:$0xff] %v712
      %745 = vst [vmem:[%s257 + $0xc8] sm:$0xff] %v713
      %746 = vst [vmem:[%s257 + $0xd0] sm:$0xff] %v714
      %747 = vst [vmem:[%s257 + $0xd8] sm:$0xff] %v715
      %748 = vst [vmem:[%s257 + $0xe0] sm:$0xff] %v716
      %749 = vst [vmem:[%s257 + $0xe8] sm:$0xff] %v717
      %750 = vst [vmem:[%s257 + $0xf0] sm:$0xff] %v718
      %751 = vst [vmem:[%s257 + $0xf8] sm:$0xff] %v719
      %s752 = smul.u32 32, %s19
      %p753 = scmp.lt.s32.totalorder %s752, 1023
      %s754 = scalar_select %p753, %s752, 1023
      %p755 = scmp.lt.s32.totalorder %s20, 0
      %s756 = scalar_select %p755, %s20, 0
      %s757 = sadd.s32 %s756, %s754
      %s758 = smul.addr %s757, 8
      %s759 = scalar_lea.vmem %s3, %s758
      // Predicated region
      $region37: #{mlsp.49} parent=31 // pred_check
        %p760 = pneg %p135
      $region38: #{mlsp.49} parent=31 // pred_check_branch
        %762 = sbr.rel (%p760) target = $region40
      $region39: #{mlsp.49} parent=31 // pred_region
        %s763 = smul.u32 32, %s19
      $region40: #{mlsp.49} parent=31 // pred_fallthru
        _
    $region32: #{mlsp.49} parent=5 // pred_fallthru
      _
    %p764 = scmp.le.s32.totalorder 2, %s9
    // Predicated region
    $region41: #{mlsp.49} parent=5 // pred_check
      %p765 = pneg %p764
    $region42: #{mlsp.49} parent=5 // pred_check_branch
      %767 = sbr.rel (%p765) target = $region44
    $region43: #{mlsp.49} parent=5 // pred_region
      %s768 = ssub.s32 %s9, 2
      // Predicated region
      $region45: #{mlsp.49} parent=43 // pred_check
        %p769 = pneg %p141
      $region46: #{mlsp.49} parent=43 // pred_check_branch
        %771 = sbr.rel (%p769) target = $region48
      $region47: #{mlsp.49} parent=43 // pred_region
        %s772 = smul.u32 32, %s22
        %p773 = scmp.lt.s32.totalorder %s772, 1023
        %s774 = scalar_select %p773, %s772, 1023
        %p775 = scmp.lt.s32.totalorder %s23, 0
        %s776 = scalar_select %p775, %s23, 0
        %s777 = sadd.s32 %s776, %s774
        %s778 = smul.addr %s777, 8
        %s779 = scalar_lea.vmem %s3, %s778
      $region48: #{mlsp.49} parent=43 // pred_fallthru
        _
    $region44: #{mlsp.49} parent=5 // pred_fallthru
      _
  $region6: #{mlsp.49} parent=0 // loop_footer
    %s13 = sadd.s32 1, %s9
  $region7: #{mlsp.49} parent=0 // loop_footer_branch
    %8 = sbr.rel target = $region3
  $region8: #{mlsp.49} parent=0 // loop_exit
    _

</llo_original>
